<compile_context>
chip_gen: v6e
topology: v6e:2x2x1
jax: 0.10.0
libtpu: 0.0.40
codegen_flags: <defaults>
</compile_context>

<pallas_src>
import functools

import numpy as np
import jax
import jax.numpy as jnp
from jax.experimental import pallas as pl
from jax.experimental.pallas import tpu as pltpu


# ---------------------------- model configuration ---------------------------

C_IN = 4      # image channels
D_HID = 32    # conv hidden channels / transformer model dim
D_CODE = 16   # codebook embedding dim
K_CODE = 32   # number of codebook entries
VOCAB = 64    # caption vocabulary
SEQ = 8       # caption length
N_HEAD = 2
D_HEAD = D_HID // N_HEAD
D_FF = 128
LN_EPS = 1e-5

# rows of the packed (NUM_VEC_ROWS, 128) parameter slab
(ROW_C1B, ROW_C2B, ROW_C3B, ROW_LN1G, ROW_LN1B, ROW_BQ, ROW_BK, ROW_BV, ROW_BO,
 ROW_LN2G, ROW_LN2B, ROW_B1, ROW_B2, ROW_LNFG, ROW_LNFB, ROW_BC) = range(16)
NUM_VEC_ROWS = 16


# ----------------------------- in-kernel helpers -----------------------------

def _layernorm(x, g, b, eps=LN_EPS):
    mu = jnp.mean(x, axis=-1, keepdims=True)
    var = jnp.mean((x - mu) ** 2, axis=-1, keepdims=True)
    return (x - mu) * jax.lax.rsqrt(var + eps) * g + b


def _vq_lane_dense(z, cb_pad):
    """Nearest-codebook quantization. z:(N,Dc), cb_pad:(K,128) with the codebook in
    lanes [:Dc] and zeros elsewhere.  Returns (N,128) so the store is lane-dense;
    the wrapper slices [:, :Dc]."""
    dc = z.shape[-1]
    et = cb_pad[:, :dc].T                                              # (Dc, K)
    z2 = jnp.sum(z * z, axis=-1, keepdims=True)                        # (N, 1)
    e2 = jnp.sum(et * et, axis=0, keepdims=True)                       # (1, K)
    d = z2 - 2.0 * jnp.dot(z, et, preferred_element_type=jnp.float32) + e2
    dmin = jnp.min(d, axis=-1, keepdims=True)
    lane = jax.lax.broadcasted_iota(jnp.int32, d.shape, 1)
    # first index achieving the minimum (ties -> lowest index, matches torch argmin)
    idx = jnp.min(jnp.where(d <= dmin, lane, d.shape[1]), axis=-1, keepdims=True)
    onehot = (lane == idx).astype(jnp.float32)                         # (N, K)
    return jnp.dot(onehot, cb_pad, preferred_element_type=jnp.float32)  # (N, 128)


def _conv_from_taps(x2d, sel_taps, w_taps, *, batch, in_hw, out_hw):
    """Conv layer expressed as two batched dot_generals (no per-tap Python matmuls).

    x2d:      (batch*in_hw, Cin)  features, batch-major rows.
    sel_taps: (taps, out_hw, in_hw) per-image 0/1 gather matrices (O(1) in batch).
    w_taps:   (taps, Cin, Cout).
    returns   (batch*out_hw, Cout).
    """
    f32 = jnp.float32
    taps, cin, cout = w_taps.shape[0], x2d.shape[-1], w_taps.shape[-1]
    g = batch * taps
    x_g = jnp.broadcast_to(x2d.reshape(batch, 1, in_hw, cin),
                           (batch, taps, in_hw, cin)).reshape(g, in_hw, cin)
    s_g = jnp.broadcast_to(sel_taps[None],
                           (batch, taps, out_hw, in_hw)).reshape(g, out_hw, in_hw)
    w_g = jnp.broadcast_to(w_taps[None],
                           (batch, taps, cin, cout)).reshape(g, cin, cout)
    gathered = jnp.einsum('goi,gic->goc', s_g, x_g, preferred_element_type=f32)
    per_tap = jnp.einsum('goc,gcd->god', gathered, w_g, preferred_element_type=f32)
    y = jnp.sum(per_tap.reshape(batch, taps, out_hw, cout), axis=1)    # tap sum
    return y.reshape(batch * out_hw, cout)


# ------------------------------ the fused kernel ------------------------------

def _lg_kernel(cols1_ref, cap_ref, sel2_ref, sel3_ref,
               w_c1_ref, w_c2_ref, w_c3_ref,
               tok_ref, pos_ref,
               w_attn_ref, w_ff1_ref, w_ff2_ref, w_code_ref,
               cbpad_ref, vec_ref,
               img_out_ref, txt_out_ref, *, batch):
    f32 = jnp.float32
    B = batch

    def vrow(row, width):                      # (1, width) slice of the packed slab
        return vec_ref[row:row + 1, :width]

    # ================= VQVAE encoder =================
    # conv1 (patches extracted in the wrapper): matmul + bias + ReLU.
    h1 = jnp.dot(cols1_ref[...], w_c1_ref[...], preferred_element_type=f32)
    h1 = jnp.maximum(h1 + vrow(ROW_C1B, D_HID), 0.0)                   # (B*64, 32)

    # conv2: 4x4 / stride 2 / pad 1, 8x8 -> 4x4
    h2 = _conv_from_taps(h1, sel2_ref[...], w_c2_ref[...],
                         batch=B, in_hw=64, out_hw=16)
    h2 = jnp.maximum(h2 + vrow(ROW_C2B, D_HID), 0.0)                   # (B*16, 32)

    # conv3: 3x3 / stride 1 / pad 1, 4x4 -> 4x4, into codebook dim
    z_img = _conv_from_taps(h2, sel3_ref[...], w_c3_ref[...],
                            batch=B, in_hw=16, out_hw=16)
    z_img = z_img + vrow(ROW_C3B, D_CODE)                              # (B*16, 16)

    img_out_ref[...] = _vq_lane_dense(z_img, cbpad_ref[...])           # (B*16, 128)

    # ================= caption transformer =================
    bs = B * SEQ
    vocab_iota = jax.lax.broadcasted_iota(jnp.int32, (bs, VOCAB), 1)
    onehot = (vocab_iota == cap_ref[...]).astype(f32)                  # (B*S, VOCAB)
    x = jnp.dot(onehot, tok_ref[...], preferred_element_type=f32)
    pos = jnp.broadcast_to(pos_ref[...][None], (B, SEQ, D_HID)).reshape(bs, D_HID)
    x = x + pos                                                        # (B*S, 32)

    # pre-LN multi-head self-attention: fused full-width projections, heads on lanes
    hn = _layernorm(x, vrow(ROW_LN1G, D_HID), vrow(ROW_LN1B, D_HID))
    q = jnp.dot(hn, w_attn_ref[0], preferred_element_type=f32) + vrow(ROW_BQ, D_HID)
    k = jnp.dot(hn, w_attn_ref[1], preferred_element_type=f32) + vrow(ROW_BK, D_HID)
    v = jnp.dot(hn, w_attn_ref[2], preferred_element_type=f32) + vrow(ROW_BV, D_HID)
    scale = 1.0 / (D_HEAD ** 0.5)
    heads = []
    for hd in range(N_HEAD):
        lo = hd * D_HEAD
        qh = q[:, lo:lo + D_HEAD].reshape(B, SEQ, D_HEAD)
        kh = k[:, lo:lo + D_HEAD].reshape(B, SEQ, D_HEAD)
        vh = v[:, lo:lo + D_HEAD].reshape(B, SEQ, D_HEAD)
        s = jnp.einsum('bqe,bke->bqk', qh, kh, preferred_element_type=f32) * scale
        s = s - jnp.max(s, axis=-1, keepdims=True)
        p = jnp.exp(s)
        p = p * pl.reciprocal(jnp.sum(p, axis=-1, keepdims=True), approx=True)
        oh = jnp.einsum('bqk,bke->bqe', p, vh, preferred_element_type=f32)
        heads.append(oh.reshape(bs, D_HEAD))
    attn = jnp.concatenate(heads, axis=-1)                             # (B*S, 32)
    attn = jnp.dot(attn, w_attn_ref[3], preferred_element_type=f32) + vrow(ROW_BO, D_HID)
    x = x + attn

    # FFN (lane-dense 128-wide hidden)
    hn = _layernorm(x, vrow(ROW_LN2G, D_HID), vrow(ROW_LN2B, D_HID))
    ff = jnp.dot(hn, w_ff1_ref[...], preferred_element_type=f32) + vrow(ROW_B1, D_FF)
    ff = jnp.maximum(ff, 0.0)
    x = x + jnp.dot(ff, w_ff2_ref[...], preferred_element_type=f32) + vrow(ROW_B2, D_HID)

    # final LN + projection into codebook space + VQ
    hn = _layernorm(x, vrow(ROW_LNFG, D_HID), vrow(ROW_LNFB, D_HID))
    z_txt = jnp.dot(hn, w_code_ref[...], preferred_element_type=f32) + vrow(ROW_BC, D_CODE)
    txt_out_ref[...] = _vq_lane_dense(z_txt, cbpad_ref[...])           # (B*S, 128)


# -------------------------------- parameters ----------------------------------

def init_params(key):
    ks = jax.random.split(key, 16)
    n = lambda k, shape, s: jax.random.normal(k, shape, jnp.float32) * s
    zeros = lambda shape: jnp.zeros(shape, jnp.float32)
    ones = lambda shape: jnp.ones(shape, jnp.float32)
    return {
        # VQVAE encoder. conv1 weight in im2col layout; conv2/conv3 as (taps, Cin, Cout).
        "conv1_w": n(ks[0], (4 * 4 * C_IN, D_HID), 0.05), "conv1_b": zeros((D_HID,)),
        "conv2_w": n(ks[1], (16, D_HID, D_HID), 0.05),    "conv2_b": zeros((D_HID,)),
        "conv3_w": n(ks[2], (9, D_HID, D_CODE), 0.05),    "conv3_b": zeros((D_CODE,)),
        "codebook": n(ks[3], (K_CODE, D_CODE), 1.0),
        # Transformer (fused full-width attention projections).
        "tok_emb": n(ks[4], (VOCAB, D_HID), 0.02),
        "pos_emb": n(ks[5], (SEQ, D_HID), 0.02),
        "ln1_g": ones((D_HID,)), "ln1_b": zeros((D_HID,)),
        "ln2_g": ones((D_HID,)), "ln2_b": zeros((D_HID,)),
        "lnf_g": ones((D_HID,)), "lnf_b": zeros((D_HID,)),
        "wq": n(ks[6], (D_HID, D_HID), 0.05), "bq": zeros((D_HID,)),
        "wk": n(ks[7], (D_HID, D_HID), 0.05), "bk": zeros((D_HID,)),
        "wv": n(ks[8], (D_HID, D_HID), 0.05), "bv": zeros((D_HID,)),
        "wo": n(ks[9], (D_HID, D_HID), 0.05), "bo": zeros((D_HID,)),
        "w1": n(ks[10], (D_HID, D_FF), 0.05), "b1": zeros((D_FF,)),
        "w2": n(ks[11], (D_FF, D_HID), 0.05), "b2": zeros((D_HID,)),
        "w_code": n(ks[12], (D_HID, D_CODE), 0.05), "b_code": zeros((D_CODE,)),
    }


@functools.lru_cache(maxsize=None)
def _conv_selection(in_h, in_w, out_h, out_w, k, stride, pad):
    """Per-image 0/1 gather matrices, one per conv tap: (k*k, out_hw, in_hw)."""
    sel = np.zeros((k * k, out_h * out_w, in_h * in_w), np.float32)
    for ki in range(k):
        for kj in range(k):
            t = ki * k + kj
            for oi in range(out_h):
                for oj in range(out_w):
                    ii = oi * stride - pad + ki
                    jj = oj * stride - pad + kj
                    if 0 <= ii < in_h and 0 <= jj < in_w:
                        sel[t, oi * out_w + oj, ii * in_w + jj] = 1.0
    return sel


def pack_params(p):
    """Builds the kernel-ready operands once (outside the traced forward)."""
    vec = np.zeros((NUM_VEC_ROWS, 128), np.float32)
    entries = {
        ROW_C1B: p["conv1_b"], ROW_C2B: p["conv2_b"], ROW_C3B: p["conv3_b"],
        ROW_LN1G: p["ln1_g"], ROW_LN1B: p["ln1_b"],
        ROW_BQ: p["bq"], ROW_BK: p["bk"], ROW_BV: p["bv"], ROW_BO: p["bo"],
        ROW_LN2G: p["ln2_g"], ROW_LN2B: p["ln2_b"],
        ROW_B1: p["b1"], ROW_B2: p["b2"],
        ROW_LNFG: p["lnf_g"], ROW_LNFB: p["lnf_b"], ROW_BC: p["b_code"],
    }
    for r, val in entries.items():
        v = np.asarray(val).reshape(-1)
        vec[r, :v.shape[0]] = v
    cb_pad = np.zeros((K_CODE, 128), np.float32)
    cb_pad[:, :D_CODE] = np.asarray(p["codebook"])
    return {
        "sel2": jnp.asarray(_conv_selection(8, 8, 4, 4, 4, 2, 1)),   # (16, 16, 64)
        "sel3": jnp.asarray(_conv_selection(4, 4, 4, 4, 3, 1, 1)),   # (9, 16, 16)
        "conv1_w": p["conv1_w"], "conv2_w": p["conv2_w"], "conv3_w": p["conv3_w"],
        "tok_emb": p["tok_emb"], "pos_emb": p["pos_emb"],
        "w_attn": jnp.stack([p["wq"], p["wk"], p["wv"], p["wo"]], axis=0),
        "w_ff1": p["w1"], "w_ff2": p["w2"], "w_code": p["w_code"],
        "codebook_pad": jnp.asarray(cb_pad),
        "vec": jnp.asarray(vec),
    }


# ------------------------------ forward pass ---------------------------------

def lg_baseline_forward(packed, image, caption):
    B = image.shape[0]
    assert image.shape[1:] == (C_IN, 16, 16)
    assert caption.shape == (B, SEQ)

    # conv1 patch extraction: one XLA op (feature order matches the random conv1_w;
    # permute if ever loading real PyTorch conv weights).
    patches = jax.lax.conv_general_dilated_patches(
        image.astype(jnp.float32), filter_shape=(4, 4), window_strides=(2, 2),
        padding=((1, 1), (1, 1)), precision=jax.lax.Precision.HIGHEST)
    feat = patches.shape[1]
    h1_hw = patches.shape[2] * patches.shape[3]                       # 8*8
    cols1 = jnp.moveaxis(patches, 1, -1).reshape(B * h1_hw, feat)     # (B*64, 64)
    cap = caption.reshape(B * SEQ, 1).astype(jnp.int32)

    enc_pad, txt_pad = pl.pallas_call(
        functools.partial(_lg_kernel, batch=B),
        out_shape=(jax.ShapeDtypeStruct((B * 16, 128), jnp.float32),
                   jax.ShapeDtypeStruct((B * SEQ, 128), jnp.float32)),
        compiler_params=pltpu.CompilerParams(vmem_limit_bytes=32 * 1024 * 1024),
    )(cols1, cap, packed["sel2"], packed["sel3"],
      packed["conv1_w"], packed["conv2_w"], packed["conv3_w"],
      packed["tok_emb"], packed["pos_emb"],
      packed["w_attn"], packed["w_ff1"], packed["w_ff2"], packed["w_code"],
      packed["codebook_pad"], packed["vec"])

    image_codebook = enc_pad[:, :D_CODE].reshape(B, 4, 4, D_CODE)
    translated_language_codebook = txt_pad[:, :D_CODE].reshape(B, SEQ, D_CODE)
    return image_codebook, translated_language_codebook


# ----------------------------------- main --------------------------------------

if __name__ == "__main__":
    root = jax.random.PRNGKey(0)
    k_img, k_cap, k_par = jax.random.split(root, 3)

    image = jax.random.normal(k_img, (2, C_IN, 16, 16), jnp.float32)   # NCHW like PyTorch
    caption = jax.random.randint(k_cap, (2, SEQ), 0, VOCAB, jnp.int32)
    params = init_params(k_par)
    packed = pack_params(params)                                       # persistent device arrays

    fwd = jax.jit(lg_baseline_forward)
    image_codebook, translated_language_codebook = fwd(packed, image, caption)
    jax.block_until_ready((image_codebook, translated_language_codebook))

    assert image_codebook.shape == (2, 4, 4, D_CODE)
    assert translated_language_codebook.shape == (2, SEQ, D_CODE)
    print("KERNEL_OK")
</pallas_src>

<mosaic_0001>
module attributes {stable_mosaic.version = 11 : i64} {
  func.func @_lg_kernel(%arg0: memref<128x64xf32, #tpu.memory_space<vmem>>, %arg1: memref<16x1xi32, #tpu.memory_space<vmem>>, %arg2: memref<16x16x64xf32, #tpu.memory_space<vmem>>, %arg3: memref<9x16x16xf32, #tpu.memory_space<vmem>>, %arg4: memref<64x32xf32, #tpu.memory_space<vmem>>, %arg5: memref<16x32x32xf32, #tpu.memory_space<vmem>>, %arg6: memref<9x32x16xf32, #tpu.memory_space<vmem>>, %arg7: memref<64x32xf32, #tpu.memory_space<vmem>>, %arg8: memref<8x32xf32, #tpu.memory_space<vmem>>, %arg9: memref<4x32x32xf32, #tpu.memory_space<vmem>>, %arg10: memref<32x128xf32, #tpu.memory_space<vmem>>, %arg11: memref<128x32xf32, #tpu.memory_space<vmem>>, %arg12: memref<32x16xf32, #tpu.memory_space<vmem>>, %arg13: memref<32x128xf32, #tpu.memory_space<vmem>>, %arg14: memref<16x128xf32, #tpu.memory_space<vmem>>, %arg15: memref<32x128xf32, #tpu.memory_space<vmem>>, %arg16: memref<16x128xf32, #tpu.memory_space<vmem>>) attributes {dimension_semantics = [], scalar_prefetch = 0 : i64, scratch_operands = 0 : i64, tpu.core_type = #tpu.core_type<tc>} {
    %c0 = arith.constant 0 : index
    %c0_0 = arith.constant 0 : index
    %0 = vector.load %arg0[%c0, %c0_0] : memref<128x64xf32, #tpu.memory_space<vmem>>, vector<128x64xf32>
    %c0_1 = arith.constant 0 : index
    %c0_2 = arith.constant 0 : index
    %1 = vector.load %arg4[%c0_1, %c0_2] : memref<64x32xf32, #tpu.memory_space<vmem>>, vector<64x32xf32>
    %cst = arith.constant dense<0.000000e+00> : vector<128x32xf32>
    %2 = tpu.matmul %0, %1, %cst {dimension_numbers = #tpu.dot_dimension_numbers<[1], [0], [0], [1], [0, 0, 1, 1], [], []>} : vector<128x64xf32>, vector<64x32xf32>, vector<128x32xf32> -> vector<128x32xf32>
    %c0_3 = arith.constant 0 : index
    %c0_4 = arith.constant 0 : index
    %3 = vector.load %arg14[%c0_3, %c0_4] : memref<16x128xf32, #tpu.memory_space<vmem>>, vector<1x32xf32>
    %4 = vector.broadcast %3 : vector<1x32xf32> to vector<128x32xf32>
    %5 = arith.addf %2, %4 : vector<128x32xf32>
    %cst_5 = arith.constant 0.000000e+00 : f32
    %6 = vector.broadcast %cst_5 : f32 to vector<128x32xf32>
    %7 = arith.maximumf %5, %6 : vector<128x32xf32>
    %c0_6 = arith.constant 0 : index
    %c0_7 = arith.constant 0 : index
    %c0_8 = arith.constant 0 : index
    %8 = vector.load %arg2[%c0_6, %c0_7, %c0_8] : memref<16x16x64xf32, #tpu.memory_space<vmem>>, vector<16x16x64xf32>
    %c0_9 = arith.constant 0 : index
    %c0_10 = arith.constant 0 : index
    %c0_11 = arith.constant 0 : index
    %9 = vector.load %arg5[%c0_9, %c0_10, %c0_11] : memref<16x32x32xf32, #tpu.memory_space<vmem>>, vector<16x32x32xf32>
    %10 = vector.shape_cast %7 : vector<128x32xf32> to vector<2x1x64x32xf32>
    %11 = vector.shape_cast %10 : vector<2x1x64x32xf32> to vector<2x1x64x32xf32>
    %12 = vector.broadcast %11 : vector<2x1x64x32xf32> to vector<2x16x64x32xf32>
    %13 = vector.shape_cast %12 : vector<2x16x64x32xf32> to vector<32x64x32xf32>
    %14 = vector.shape_cast %8 : vector<16x16x64xf32> to vector<1x16x16x64xf32>
    %15 = vector.shape_cast %14 : vector<1x16x16x64xf32> to vector<1x16x16x64xf32>
    %16 = vector.broadcast %15 : vector<1x16x16x64xf32> to vector<2x16x16x64xf32>
    %17 = vector.shape_cast %16 : vector<2x16x16x64xf32> to vector<32x16x64xf32>
    %18 = vector.shape_cast %9 : vector<16x32x32xf32> to vector<1x16x32x32xf32>
    %19 = vector.shape_cast %18 : vector<1x16x32x32xf32> to vector<1x16x32x32xf32>
    %20 = vector.broadcast %19 : vector<1x16x32x32xf32> to vector<2x16x32x32xf32>
    %21 = vector.shape_cast %20 : vector<2x16x32x32xf32> to vector<32x32x32xf32>
    "tpu.trace_start"() <{level = 10 : i32, message = "goi,gic->goc"}> : () -> ()
    %cst_12 = arith.constant dense<0.000000e+00> : vector<32x16x32xf32>
    %22 = tpu.matmul %17, %13, %cst_12 {dimension_numbers = #tpu.dot_dimension_numbers<[2], [1], [1], [2], [0, 0, 0, 1, 1, 2], [0], [0]>} : vector<32x16x64xf32>, vector<32x64x32xf32>, vector<32x16x32xf32> -> vector<32x16x32xf32>
    "tpu.trace_stop"() : () -> ()
    "tpu.trace_start"() <{level = 10 : i32, message = "goc,gcd->god"}> : () -> ()
    %cst_13 = arith.constant dense<0.000000e+00> : vector<32x16x32xf32>
    %23 = tpu.matmul %22, %21, %cst_13 {dimension_numbers = #tpu.dot_dimension_numbers<[2], [1], [1], [2], [0, 0, 0, 1, 1, 2], [0], [0]>} : vector<32x16x32xf32>, vector<32x32x32xf32>, vector<32x16x32xf32> -> vector<32x16x32xf32>
    "tpu.trace_stop"() : () -> ()
    %24 = vector.shape_cast %23 : vector<32x16x32xf32> to vector<2x16x16x32xf32>
    %cst_14 = arith.constant dense<0.000000e+00> : vector<2x16x32xf32>
    %25 = vector.multi_reduction <add>, %24, %cst_14 [1] : vector<2x16x16x32xf32> to vector<2x16x32xf32>
    %26 = vector.shape_cast %25 : vector<2x16x32xf32> to vector<32x32xf32>
    %c1 = arith.constant 1 : index
    %c0_15 = arith.constant 0 : index
    %27 = vector.load %arg14[%c1, %c0_15] : memref<16x128xf32, #tpu.memory_space<vmem>>, vector<1x32xf32>
    %28 = vector.broadcast %27 : vector<1x32xf32> to vector<32x32xf32>
    %29 = arith.addf %26, %28 : vector<32x32xf32>
    %cst_16 = arith.constant 0.000000e+00 : f32
    %30 = vector.broadcast %cst_16 : f32 to vector<32x32xf32>
    %31 = arith.maximumf %29, %30 : vector<32x32xf32>
    %c0_17 = arith.constant 0 : index
    %c0_18 = arith.constant 0 : index
    %c0_19 = arith.constant 0 : index
    %32 = vector.load %arg3[%c0_17, %c0_18, %c0_19] : memref<9x16x16xf32, #tpu.memory_space<vmem>>, vector<9x16x16xf32>
    %c0_20 = arith.constant 0 : index
    %c0_21 = arith.constant 0 : index
    %c0_22 = arith.constant 0 : index
    %33 = vector.load %arg6[%c0_20, %c0_21, %c0_22] : memref<9x32x16xf32, #tpu.memory_space<vmem>>, vector<9x32x16xf32>
    %34 = vector.shape_cast %31 : vector<32x32xf32> to vector<2x1x16x32xf32>
    %35 = vector.shape_cast %34 : vector<2x1x16x32xf32> to vector<2x1x16x32xf32>
    %36 = vector.broadcast %35 : vector<2x1x16x32xf32> to vector<2x9x16x32xf32>
    %37 = vector.shape_cast %36 : vector<2x9x16x32xf32> to vector<18x16x32xf32>
    %38 = vector.shape_cast %32 : vector<9x16x16xf32> to vector<1x9x16x16xf32>
    %39 = vector.shape_cast %38 : vector<1x9x16x16xf32> to vector<1x9x16x16xf32>
    %40 = vector.broadcast %39 : vector<1x9x16x16xf32> to vector<2x9x16x16xf32>
    %41 = vector.shape_cast %40 : vector<2x9x16x16xf32> to vector<18x16x16xf32>
    %42 = vector.shape_cast %33 : vector<9x32x16xf32> to vector<1x9x32x16xf32>
    %43 = vector.shape_cast %42 : vector<1x9x32x16xf32> to vector<1x9x32x16xf32>
    %44 = vector.broadcast %43 : vector<1x9x32x16xf32> to vector<2x9x32x16xf32>
    %45 = vector.shape_cast %44 : vector<2x9x32x16xf32> to vector<18x32x16xf32>
    "tpu.trace_start"() <{level = 10 : i32, message = "goi,gic->goc"}> : () -> ()
    %cst_23 = arith.constant dense<0.000000e+00> : vector<18x16x32xf32>
    %46 = tpu.matmul %41, %37, %cst_23 {dimension_numbers = #tpu.dot_dimension_numbers<[2], [1], [1], [2], [0, 0, 0, 1, 1, 2], [0], [0]>} : vector<18x16x16xf32>, vector<18x16x32xf32>, vector<18x16x32xf32> -> vector<18x16x32xf32>
    "tpu.trace_stop"() : () -> ()
    "tpu.trace_start"() <{level = 10 : i32, message = "goc,gcd->god"}> : () -> ()
    %cst_24 = arith.constant dense<0.000000e+00> : vector<18x16x16xf32>
    %47 = tpu.matmul %46, %45, %cst_24 {dimension_numbers = #tpu.dot_dimension_numbers<[2], [1], [1], [2], [0, 0, 0, 1, 1, 2], [0], [0]>} : vector<18x16x32xf32>, vector<18x32x16xf32>, vector<18x16x16xf32> -> vector<18x16x16xf32>
    "tpu.trace_stop"() : () -> ()
    %48 = vector.shape_cast %47 : vector<18x16x16xf32> to vector<2x9x16x16xf32>
    %cst_25 = arith.constant dense<0.000000e+00> : vector<2x16x16xf32>
    %49 = vector.multi_reduction <add>, %48, %cst_25 [1] : vector<2x9x16x16xf32> to vector<2x16x16xf32>
    %50 = vector.shape_cast %49 : vector<2x16x16xf32> to vector<32x16xf32>
    %c2 = arith.constant 2 : index
    %c0_26 = arith.constant 0 : index
    %51 = vector.load %arg14[%c2, %c0_26] : memref<16x128xf32, #tpu.memory_space<vmem>>, vector<1x16xf32>
    %52 = vector.broadcast %51 : vector<1x16xf32> to vector<32x16xf32>
    %53 = arith.addf %50, %52 : vector<32x16xf32>
    %c0_27 = arith.constant 0 : index
    %c0_28 = arith.constant 0 : index
    %54 = vector.load %arg13[%c0_27, %c0_28] : memref<32x128xf32, #tpu.memory_space<vmem>>, vector<32x128xf32>
    %55 = vector.extract_strided_slice %54 {offsets = [0, 0], sizes = [32, 16], strides = [1, 1]} : vector<32x128xf32> to vector<32x16xf32>
    %56 = tpu.transpose %55, [1, 0] : vector<32x16xf32> -> vector<16x32xf32>
    %57 = arith.mulf %53, %53 : vector<32x16xf32>
    %cst_29 = arith.constant dense<0.000000e+00> : vector<32xf32>
    %58 = vector.multi_reduction <add>, %57, %cst_29 [1] : vector<32x16xf32> to vector<32xf32>
    %59 = vector.shape_cast %58 : vector<32xf32> to vector<32x1xf32>
    %60 = arith.mulf %56, %56 : vector<16x32xf32>
    %cst_30 = arith.constant dense<0.000000e+00> : vector<32xf32>
    %61 = vector.multi_reduction <add>, %60, %cst_30 [0] : vector<16x32xf32> to vector<32xf32>
    %62 = vector.shape_cast %61 : vector<32xf32> to vector<1x32xf32>
    %cst_31 = arith.constant dense<0.000000e+00> : vector<32x32xf32>
    %63 = tpu.matmul %53, %56, %cst_31 {dimension_numbers = #tpu.dot_dimension_numbers<[1], [0], [0], [1], [0, 0, 1, 1], [], []>} : vector<32x16xf32>, vector<16x32xf32>, vector<32x32xf32> -> vector<32x32xf32>
    %cst_32 = arith.constant 2.000000e+00 : f32
    %64 = vector.broadcast %cst_32 : f32 to vector<32x32xf32>
    %65 = arith.mulf %64, %63 : vector<32x32xf32>
    %66 = vector.broadcast %59 : vector<32x1xf32> to vector<32x32xf32>
    %67 = arith.subf %66, %65 : vector<32x32xf32>
    %68 = vector.broadcast %62 : vector<1x32xf32> to vector<32x32xf32>
    %69 = arith.addf %67, %68 : vector<32x32xf32>
    %cst_33 = arith.constant dense<0x7F800000> : vector<32xf32>
    %70 = vector.multi_reduction <minimumf>, %69, %cst_33 [1] : vector<32x32xf32> to vector<32xf32>
    %71 = vector.shape_cast %70 : vector<32xf32> to vector<32x1xf32>
    %72 = tpu.iota {dimensions = array<i32: 1>} : vector<32x32xi32>
    %73 = vector.broadcast %71 : vector<32x1xf32> to vector<32x32xf32>
    %74 = arith.cmpf ole, %69, %73 : vector<32x32xf32>
    %c32_i32 = arith.constant 32 : i32
    %75 = vector.broadcast %c32_i32 : i32 to vector<32x32xi32>
    %76 = arith.select %74, %72, %75 : vector<32x32xi1>, vector<32x32xi32>
    %cst_34 = arith.constant dense<2147483647> : vector<32xi32>
    %77 = vector.multi_reduction <minsi>, %76, %cst_34 [1] : vector<32x32xi32> to vector<32xi32>
    %78 = vector.shape_cast %77 : vector<32xi32> to vector<32x1xi32>
    %79 = vector.broadcast %78 : vector<32x1xi32> to vector<32x32xi32>
    %80 = arith.cmpi eq, %72, %79 : vector<32x32xi32>
    %81 = arith.extui %80 : vector<32x32xi1> to vector<32x32xi32>
    %82 = arith.sitofp %81 : vector<32x32xi32> to vector<32x32xf32>
    %cst_35 = arith.constant dense<0.000000e+00> : vector<32x128xf32>
    %83 = tpu.matmul %82, %54, %cst_35 {dimension_numbers = #tpu.dot_dimension_numbers<[1], [0], [0], [1], [0, 0, 1, 1], [], []>} : vector<32x32xf32>, vector<32x128xf32>, vector<32x128xf32> -> vector<32x128xf32>
    %c0_36 = arith.constant 0 : index
    %c0_37 = arith.constant 0 : index
    %84 = vector.load %arg15[%c0_36, %c0_37] : memref<32x128xf32, #tpu.memory_space<vmem>>, vector<32x128xf32>
    tpu.vector_store %arg15[%c0_36, %c0_37], %83 {strides = array<i32>} : memref<32x128xf32, #tpu.memory_space<vmem>>, vector<32x128xf32>,
    %85 = tpu.iota {dimensions = array<i32: 1>} : vector<16x64xi32>
    %c0_38 = arith.constant 0 : index
    %c0_39 = arith.constant 0 : index
    %86 = vector.load %arg1[%c0_38, %c0_39] : memref<16x1xi32, #tpu.memory_space<vmem>>, vector<16x1xi32>
    %87 = vector.broadcast %86 : vector<16x1xi32> to vector<16x64xi32>
    %88 = arith.cmpi eq, %85, %87 : vector<16x64xi32>
    %89 = arith.extui %88 : vector<16x64xi1> to vector<16x64xi32>
    %90 = arith.sitofp %89 : vector<16x64xi32> to vector<16x64xf32>
    %c0_40 = arith.constant 0 : index
    %c0_41 = arith.constant 0 : index
    %91 = vector.load %arg7[%c0_40, %c0_41] : memref<64x32xf32, #tpu.memory_space<vmem>>, vector<64x32xf32>
    %cst_42 = arith.constant dense<0.000000e+00> : vector<16x32xf32>
    %92 = tpu.matmul %90, %91, %cst_42 {dimension_numbers = #tpu.dot_dimension_numbers<[1], [0], [0], [1], [0, 0, 1, 1], [], []>} : vector<16x64xf32>, vector<64x32xf32>, vector<16x32xf32> -> vector<16x32xf32>
    %c0_43 = arith.constant 0 : index
    %c0_44 = arith.constant 0 : index
    %93 = vector.load %arg8[%c0_43, %c0_44] : memref<8x32xf32, #tpu.memory_space<vmem>>, vector<8x32xf32>
    %94 = vector.shape_cast %93 : vector<8x32xf32> to vector<1x8x32xf32>
    %95 = vector.shape_cast %94 : vector<1x8x32xf32> to vector<1x8x32xf32>
    %96 = vector.broadcast %95 : vector<1x8x32xf32> to vector<2x8x32xf32>
    %97 = vector.shape_cast %96 : vector<2x8x32xf32> to vector<16x32xf32>
    %98 = arith.addf %92, %97 : vector<16x32xf32>
    %c3 = arith.constant 3 : index
    %c0_45 = arith.constant 0 : index
    %99 = vector.load %arg14[%c3, %c0_45] : memref<16x128xf32, #tpu.memory_space<vmem>>, vector<1x32xf32>
    %c4 = arith.constant 4 : index
    %c0_46 = arith.constant 0 : index
    %100 = vector.load %arg14[%c4, %c0_46] : memref<16x128xf32, #tpu.memory_space<vmem>>, vector<1x32xf32>
    %cst_47 = arith.constant dense<0.000000e+00> : vector<16xf32>
    %101 = vector.multi_reduction <add>, %98, %cst_47 [1] : vector<16x32xf32> to vector<16xf32>
    %102 = vector.shape_cast %101 : vector<16xf32> to vector<16x1xf32>
    %cst_48 = arith.constant 3.200000e+01 : f32
    %103 = vector.broadcast %cst_48 : f32 to vector<16x1xf32>
    %104 = arith.divf %102, %103 : vector<16x1xf32>
    %105 = vector.broadcast %104 : vector<16x1xf32> to vector<16x32xf32>
    %106 = arith.subf %98, %105 : vector<16x32xf32>
    %107 = arith.mulf %106, %106 : vector<16x32xf32>
    %cst_49 = arith.constant dense<0.000000e+00> : vector<16xf32>
    %108 = vector.multi_reduction <add>, %107, %cst_49 [1] : vector<16x32xf32> to vector<16xf32>
    %109 = vector.shape_cast %108 : vector<16xf32> to vector<16x1xf32>
    %cst_50 = arith.constant 3.200000e+01 : f32
    %110 = vector.broadcast %cst_50 : f32 to vector<16x1xf32>
    %111 = arith.divf %109, %110 : vector<16x1xf32>
    %112 = vector.broadcast %104 : vector<16x1xf32> to vector<16x32xf32>
    %113 = arith.subf %98, %112 : vector<16x32xf32>
    %cst_51 = arith.constant 9.99999974E-6 : f32
    %114 = vector.broadcast %cst_51 : f32 to vector<16x1xf32>
    %115 = arith.addf %111, %114 : vector<16x1xf32>
    %116 = math.rsqrt %115 : vector<16x1xf32>
    %117 = vector.broadcast %116 : vector<16x1xf32> to vector<16x32xf32>
    %118 = arith.mulf %113, %117 : vector<16x32xf32>
    %119 = vector.broadcast %99 : vector<1x32xf32> to vector<16x32xf32>
    %120 = arith.mulf %118, %119 : vector<16x32xf32>
    %121 = vector.broadcast %100 : vector<1x32xf32> to vector<16x32xf32>
    %122 = arith.addf %120, %121 : vector<16x32xf32>
    %c0_52 = arith.constant 0 : index
    %c0_53 = arith.constant 0 : index
    %c0_54 = arith.constant 0 : index
    %123 = vector.load %arg9[%c0_52, %c0_53, %c0_54] : memref<4x32x32xf32, #tpu.memory_space<vmem>>, vector<1x32x32xf32>
    %124 = vector.shape_cast %123 : vector<1x32x32xf32> to vector<32x32xf32>
    %cst_55 = arith.constant dense<0.000000e+00> : vector<16x32xf32>
    %125 = tpu.matmul %122, %124, %cst_55 {dimension_numbers = #tpu.dot_dimension_numbers<[1], [0], [0], [1], [0, 0, 1, 1], [], []>} : vector<16x32xf32>, vector<32x32xf32>, vector<16x32xf32> -> vector<16x32xf32>
    %c5 = arith.constant 5 : index
    %c0_56 = arith.constant 0 : index
    %126 = vector.load %arg14[%c5, %c0_56] : memref<16x128xf32, #tpu.memory_space<vmem>>, vector<1x32xf32>
    %127 = vector.broadcast %126 : vector<1x32xf32> to vector<16x32xf32>
    %128 = arith.addf %125, %127 : vector<16x32xf32>
    %c1_57 = arith.constant 1 : index
    %c0_58 = arith.constant 0 : index
    %c0_59 = arith.constant 0 : index
    %129 = vector.load %arg9[%c1_57, %c0_58, %c0_59] : memref<4x32x32xf32, #tpu.memory_space<vmem>>, vector<1x32x32xf32>
    %130 = vector.shape_cast %129 : vector<1x32x32xf32> to vector<32x32xf32>
    %cst_60 = arith.constant dense<0.000000e+00> : vector<16x32xf32>
    %131 = tpu.matmul %122, %130, %cst_60 {dimension_numbers = #tpu.dot_dimension_numbers<[1], [0], [0], [1], [0, 0, 1, 1], [], []>} : vector<16x32xf32>, vector<32x32xf32>, vector<16x32xf32> -> vector<16x32xf32>
    %c6 = arith.constant 6 : index
    %c0_61 = arith.constant 0 : index
    %132 = vector.load %arg14[%c6, %c0_61] : memref<16x128xf32, #tpu.memory_space<vmem>>, vector<1x32xf32>
    %133 = vector.broadcast %132 : vector<1x32xf32> to vector<16x32xf32>
    %134 = arith.addf %131, %133 : vector<16x32xf32>
    %c2_62 = arith.constant 2 : index
    %c0_63 = arith.constant 0 : index
    %c0_64 = arith.constant 0 : index
    %135 = vector.load %arg9[%c2_62, %c0_63, %c0_64] : memref<4x32x32xf32, #tpu.memory_space<vmem>>, vector<1x32x32xf32>
    %136 = vector.shape_cast %135 : vector<1x32x32xf32> to vector<32x32xf32>
    %cst_65 = arith.constant dense<0.000000e+00> : vector<16x32xf32>
    %137 = tpu.matmul %122, %136, %cst_65 {dimension_numbers = #tpu.dot_dimension_numbers<[1], [0], [0], [1], [0, 0, 1, 1], [], []>} : vector<16x32xf32>, vector<32x32xf32>, vector<16x32xf32> -> vector<16x32xf32>
    %c7 = arith.constant 7 : index
    %c0_66 = arith.constant 0 : index
    %138 = vector.load %arg14[%c7, %c0_66] : memref<16x128xf32, #tpu.memory_space<vmem>>, vector<1x32xf32>
    %139 = vector.broadcast %138 : vector<1x32xf32> to vector<16x32xf32>
    %140 = arith.addf %137, %139 : vector<16x32xf32>
    %141 = vector.extract_strided_slice %128 {offsets = [0, 0], sizes = [16, 16], strides = [1, 1]} : vector<16x32xf32> to vector<16x16xf32>
    %142 = vector.shape_cast %141 : vector<16x16xf32> to vector<2x8x16xf32>
    %143 = vector.extract_strided_slice %134 {offsets = [0, 0], sizes = [16, 16], strides = [1, 1]} : vector<16x32xf32> to vector<16x16xf32>
    %144 = vector.shape_cast %143 : vector<16x16xf32> to vector<2x8x16xf32>
    %145 = vector.extract_strided_slice %140 {offsets = [0, 0], sizes = [16, 16], strides = [1, 1]} : vector<16x32xf32> to vector<16x16xf32>
    %146 = vector.shape_cast %145 : vector<16x16xf32> to vector<2x8x16xf32>
    "tpu.trace_start"() <{level = 10 : i32, message = "bqe,bke->bqk"}> : () -> ()
    %cst_67 = arith.constant dense<0.000000e+00> : vector<2x8x8xf32>
    %147 = tpu.matmul %142, %144, %cst_67 {dimension_numbers = #tpu.dot_dimension_numbers<[2], [2], [1], [1], [0, 0, 0, 1, 1, 1], [0], [0]>} : vector<2x8x16xf32>, vector<2x8x16xf32>, vector<2x8x8xf32> -> vector<2x8x8xf32>
    "tpu.trace_stop"() : () -> ()
    %cst_68 = arith.constant 2.500000e-01 : f32
    %148 = vector.broadcast %cst_68 : f32 to vector<2x8x8xf32>
    %149 = arith.mulf %147, %148 : vector<2x8x8xf32>
    %cst_69 = arith.constant dense<0xFF800000> : vector<2x8xf32>
    %150 = vector.multi_reduction <maximumf>, %149, %cst_69 [2] : vector<2x8x8xf32> to vector<2x8xf32>
    %151 = vector.shape_cast %150 : vector<2x8xf32> to vector<2x8x1xf32>
    %152 = vector.broadcast %151 : vector<2x8x1xf32> to vector<2x8x8xf32>
    %153 = arith.subf %149, %152 : vector<2x8x8xf32>
    %154 = math.exp %153 : vector<2x8x8xf32>
    %cst_70 = arith.constant dense<0.000000e+00> : vector<2x8xf32>
    %155 = vector.multi_reduction <add>, %154, %cst_70 [2] : vector<2x8x8xf32> to vector<2x8xf32>
    %156 = vector.shape_cast %155 : vector<2x8xf32> to vector<2x8x1xf32>
    %157 = tpu.reciprocal %156 {approx = true} : vector<2x8x1xf32> -> vector<2x8x1xf32>
    %158 = vector.broadcast %157 : vector<2x8x1xf32> to vector<2x8x8xf32>
    %159 = arith.mulf %154, %158 : vector<2x8x8xf32>
    "tpu.trace_start"() <{level = 10 : i32, message = "bqk,bke->bqe"}> : () -> ()
    %cst_71 = arith.constant dense<0.000000e+00> : vector<2x8x16xf32>
    %160 = tpu.matmul %159, %146, %cst_71 {dimension_numbers = #tpu.dot_dimension_numbers<[2], [1], [1], [2], [0, 0, 0, 1, 1, 2], [0], [0]>} : vector<2x8x8xf32>, vector<2x8x16xf32>, vector<2x8x16xf32> -> vector<2x8x16xf32>
    "tpu.trace_stop"() : () -> ()
    %161 = vector.shape_cast %160 : vector<2x8x16xf32> to vector<16x16xf32>
    %162 = vector.extract_strided_slice %128 {offsets = [0, 16], sizes = [16, 16], strides = [1, 1]} : vector<16x32xf32> to vector<16x16xf32>
    %163 = vector.shape_cast %162 : vector<16x16xf32> to vector<2x8x16xf32>
    %164 = vector.extract_strided_slice %134 {offsets = [0, 16], sizes = [16, 16], strides = [1, 1]} : vector<16x32xf32> to vector<16x16xf32>
    %165 = vector.shape_cast %164 : vector<16x16xf32> to vector<2x8x16xf32>
    %166 = vector.extract_strided_slice %140 {offsets = [0, 16], sizes = [16, 16], strides = [1, 1]} : vector<16x32xf32> to vector<16x16xf32>
    %167 = vector.shape_cast %166 : vector<16x16xf32> to vector<2x8x16xf32>
    "tpu.trace_start"() <{level = 10 : i32, message = "bqe,bke->bqk"}> : () -> ()
    %cst_72 = arith.constant dense<0.000000e+00> : vector<2x8x8xf32>
    %168 = tpu.matmul %163, %165, %cst_72 {dimension_numbers = #tpu.dot_dimension_numbers<[2], [2], [1], [1], [0, 0, 0, 1, 1, 1], [0], [0]>} : vector<2x8x16xf32>, vector<2x8x16xf32>, vector<2x8x8xf32> -> vector<2x8x8xf32>
    "tpu.trace_stop"() : () -> ()
    %cst_73 = arith.constant 2.500000e-01 : f32
    %169 = vector.broadcast %cst_73 : f32 to vector<2x8x8xf32>
    %170 = arith.mulf %168, %169 : vector<2x8x8xf32>
    %cst_74 = arith.constant dense<0xFF800000> : vector<2x8xf32>
    %171 = vector.multi_reduction <maximumf>, %170, %cst_74 [2] : vector<2x8x8xf32> to vector<2x8xf32>
    %172 = vector.shape_cast %171 : vector<2x8xf32> to vector<2x8x1xf32>
    %173 = vector.broadcast %172 : vector<2x8x1xf32> to vector<2x8x8xf32>
    %174 = arith.subf %170, %173 : vector<2x8x8xf32>
    %175 = math.exp %174 : vector<2x8x8xf32>
    %cst_75 = arith.constant dense<0.000000e+00> : vector<2x8xf32>
    %176 = vector.multi_reduction <add>, %175, %cst_75 [2] : vector<2x8x8xf32> to vector<2x8xf32>
    %177 = vector.shape_cast %176 : vector<2x8xf32> to vector<2x8x1xf32>
    %178 = tpu.reciprocal %177 {approx = true} : vector<2x8x1xf32> -> vector<2x8x1xf32>
    %179 = vector.broadcast %178 : vector<2x8x1xf32> to vector<2x8x8xf32>
    %180 = arith.mulf %175, %179 : vector<2x8x8xf32>
    "tpu.trace_start"() <{level = 10 : i32, message = "bqk,bke->bqe"}> : () -> ()
    %cst_76 = arith.constant dense<0.000000e+00> : vector<2x8x16xf32>
    %181 = tpu.matmul %180, %167, %cst_76 {dimension_numbers = #tpu.dot_dimension_numbers<[2], [1], [1], [2], [0, 0, 0, 1, 1, 2], [0], [0]>} : vector<2x8x8xf32>, vector<2x8x16xf32>, vector<2x8x16xf32> -> vector<2x8x16xf32>
    "tpu.trace_stop"() : () -> ()
    %182 = vector.shape_cast %181 : vector<2x8x16xf32> to vector<16x16xf32>
    %183 = tpu.concatenate %161, %182 in 1 : vector<16x16xf32>, vector<16x16xf32> -> vector<16x32xf32>
    %c3_77 = arith.constant 3 : index
    %c0_78 = arith.constant 0 : index
    %c0_79 = arith.constant 0 : index
    %184 = vector.load %arg9[%c3_77, %c0_78, %c0_79] : memref<4x32x32xf32, #tpu.memory_space<vmem>>, vector<1x32x32xf32>
    %185 = vector.shape_cast %184 : vector<1x32x32xf32> to vector<32x32xf32>
    %cst_80 = arith.constant dense<0.000000e+00> : vector<16x32xf32>
    %186 = tpu.matmul %183, %185, %cst_80 {dimension_numbers = #tpu.dot_dimension_numbers<[1], [0], [0], [1], [0, 0, 1, 1], [], []>} : vector<16x32xf32>, vector<32x32xf32>, vector<16x32xf32> -> vector<16x32xf32>
    %c8 = arith.constant 8 : index
    %c0_81 = arith.constant 0 : index
    %187 = vector.load %arg14[%c8, %c0_81] : memref<16x128xf32, #tpu.memory_space<vmem>>, vector<1x32xf32>
    %188 = vector.broadcast %187 : vector<1x32xf32> to vector<16x32xf32>
    %189 = arith.addf %186, %188 : vector<16x32xf32>
    %190 = arith.addf %98, %189 : vector<16x32xf32>
    %c9 = arith.constant 9 : index
    %c0_82 = arith.constant 0 : index
    %191 = vector.load %arg14[%c9, %c0_82] : memref<16x128xf32, #tpu.memory_space<vmem>>, vector<1x32xf32>
    %c10 = arith.constant 10 : index
    %c0_83 = arith.constant 0 : index
    %192 = vector.load %arg14[%c10, %c0_83] : memref<16x128xf32, #tpu.memory_space<vmem>>, vector<1x32xf32>
    %cst_84 = arith.constant dense<0.000000e+00> : vector<16xf32>
    %193 = vector.multi_reduction <add>, %190, %cst_84 [1] : vector<16x32xf32> to vector<16xf32>
    %194 = vector.shape_cast %193 : vector<16xf32> to vector<16x1xf32>
    %cst_85 = arith.constant 3.200000e+01 : f32
    %195 = vector.broadcast %cst_85 : f32 to vector<16x1xf32>
    %196 = arith.divf %194, %195 : vector<16x1xf32>
    %197 = vector.broadcast %196 : vector<16x1xf32> to vector<16x32xf32>
    %198 = arith.subf %190, %197 : vector<16x32xf32>
    %199 = arith.mulf %198, %198 : vector<16x32xf32>
    %cst_86 = arith.constant dense<0.000000e+00> : vector<16xf32>
    %200 = vector.multi_reduction <add>, %199, %cst_86 [1] : vector<16x32xf32> to vector<16xf32>
    %201 = vector.shape_cast %200 : vector<16xf32> to vector<16x1xf32>
    %cst_87 = arith.constant 3.200000e+01 : f32
    %202 = vector.broadcast %cst_87 : f32 to vector<16x1xf32>
    %203 = arith.divf %201, %202 : vector<16x1xf32>
    %204 = vector.broadcast %196 : vector<16x1xf32> to vector<16x32xf32>
    %205 = arith.subf %190, %204 : vector<16x32xf32>
    %cst_88 = arith.constant 9.99999974E-6 : f32
    %206 = vector.broadcast %cst_88 : f32 to vector<16x1xf32>
    %207 = arith.addf %203, %206 : vector<16x1xf32>
    %208 = math.rsqrt %207 : vector<16x1xf32>
    %209 = vector.broadcast %208 : vector<16x1xf32> to vector<16x32xf32>
    %210 = arith.mulf %205, %209 : vector<16x32xf32>
    %211 = vector.broadcast %191 : vector<1x32xf32> to vector<16x32xf32>
    %212 = arith.mulf %210, %211 : vector<16x32xf32>
    %213 = vector.broadcast %192 : vector<1x32xf32> to vector<16x32xf32>
    %214 = arith.addf %212, %213 : vector<16x32xf32>
    %c0_89 = arith.constant 0 : index
    %c0_90 = arith.constant 0 : index
    %215 = vector.load %arg10[%c0_89, %c0_90] : memref<32x128xf32, #tpu.memory_space<vmem>>, vector<32x128xf32>
    %cst_91 = arith.constant dense<0.000000e+00> : vector<16x128xf32>
    %216 = tpu.matmul %214, %215, %cst_91 {dimension_numbers = #tpu.dot_dimension_numbers<[1], [0], [0], [1], [0, 0, 1, 1], [], []>} : vector<16x32xf32>, vector<32x128xf32>, vector<16x128xf32> -> vector<16x128xf32>
    %c11 = arith.constant 11 : index
    %c0_92 = arith.constant 0 : index
    %217 = vector.load %arg14[%c11, %c0_92] : memref<16x128xf32, #tpu.memory_space<vmem>>, vector<1x128xf32>
    %218 = vector.broadcast %217 : vector<1x128xf32> to vector<16x128xf32>
    %219 = arith.addf %216, %218 : vector<16x128xf32>
    %cst_93 = arith.constant 0.000000e+00 : f32
    %220 = vector.broadcast %cst_93 : f32 to vector<16x128xf32>
    %221 = arith.maximumf %219, %220 : vector<16x128xf32>
    %c0_94 = arith.constant 0 : index
    %c0_95 = arith.constant 0 : index
    %222 = vector.load %arg11[%c0_94, %c0_95] : memref<128x32xf32, #tpu.memory_space<vmem>>, vector<128x32xf32>
    %cst_96 = arith.constant dense<0.000000e+00> : vector<16x32xf32>
    %223 = tpu.matmul %221, %222, %cst_96 {dimension_numbers = #tpu.dot_dimension_numbers<[1], [0], [0], [1], [0, 0, 1, 1], [], []>} : vector<16x128xf32>, vector<128x32xf32>, vector<16x32xf32> -> vector<16x32xf32>
    %224 = arith.addf %190, %223 : vector<16x32xf32>
    %c12 = arith.constant 12 : index
    %c0_97 = arith.constant 0 : index
    %225 = vector.load %arg14[%c12, %c0_97] : memref<16x128xf32, #tpu.memory_space<vmem>>, vector<1x32xf32>
    %226 = vector.broadcast %225 : vector<1x32xf32> to vector<16x32xf32>
    %227 = arith.addf %224, %226 : vector<16x32xf32>
    %c13 = arith.constant 13 : index
    %c0_98 = arith.constant 0 : index
    %228 = vector.load %arg14[%c13, %c0_98] : memref<16x128xf32, #tpu.memory_space<vmem>>, vector<1x32xf32>
    %c14 = arith.constant 14 : index
    %c0_99 = arith.constant 0 : index
    %229 = vector.load %arg14[%c14, %c0_99] : memref<16x128xf32, #tpu.memory_space<vmem>>, vector<1x32xf32>
    %cst_100 = arith.constant dense<0.000000e+00> : vector<16xf32>
    %230 = vector.multi_reduction <add>, %227, %cst_100 [1] : vector<16x32xf32> to vector<16xf32>
    %231 = vector.shape_cast %230 : vector<16xf32> to vector<16x1xf32>
    %cst_101 = arith.constant 3.200000e+01 : f32
    %232 = vector.broadcast %cst_101 : f32 to vector<16x1xf32>
    %233 = arith.divf %231, %232 : vector<16x1xf32>
    %234 = vector.broadcast %233 : vector<16x1xf32> to vector<16x32xf32>
    %235 = arith.subf %227, %234 : vector<16x32xf32>
    %236 = arith.mulf %235, %235 : vector<16x32xf32>
    %cst_102 = arith.constant dense<0.000000e+00> : vector<16xf32>
    %237 = vector.multi_reduction <add>, %236, %cst_102 [1] : vector<16x32xf32> to vector<16xf32>
    %238 = vector.shape_cast %237 : vector<16xf32> to vector<16x1xf32>
    %cst_103 = arith.constant 3.200000e+01 : f32
    %239 = vector.broadcast %cst_103 : f32 to vector<16x1xf32>
    %240 = arith.divf %238, %239 : vector<16x1xf32>
    %241 = vector.broadcast %233 : vector<16x1xf32> to vector<16x32xf32>
    %242 = arith.subf %227, %241 : vector<16x32xf32>
    %cst_104 = arith.constant 9.99999974E-6 : f32
    %243 = vector.broadcast %cst_104 : f32 to vector<16x1xf32>
    %244 = arith.addf %240, %243 : vector<16x1xf32>
    %245 = math.rsqrt %244 : vector<16x1xf32>
    %246 = vector.broadcast %245 : vector<16x1xf32> to vector<16x32xf32>
    %247 = arith.mulf %242, %246 : vector<16x32xf32>
    %248 = vector.broadcast %228 : vector<1x32xf32> to vector<16x32xf32>
    %249 = arith.mulf %247, %248 : vector<16x32xf32>
    %250 = vector.broadcast %229 : vector<1x32xf32> to vector<16x32xf32>
    %251 = arith.addf %249, %250 : vector<16x32xf32>
    %c0_105 = arith.constant 0 : index
    %c0_106 = arith.constant 0 : index
    %252 = vector.load %arg12[%c0_105, %c0_106] : memref<32x16xf32, #tpu.memory_space<vmem>>, vector<32x16xf32>
    %cst_107 = arith.constant dense<0.000000e+00> : vector<16x16xf32>
    %253 = tpu.matmul %251, %252, %cst_107 {dimension_numbers = #tpu.dot_dimension_numbers<[1], [0], [0], [1], [0, 0, 1, 1], [], []>} : vector<16x32xf32>, vector<32x16xf32>, vector<16x16xf32> -> vector<16x16xf32>
    %c15 = arith.constant 15 : index
    %c0_108 = arith.constant 0 : index
    %254 = vector.load %arg14[%c15, %c0_108] : memref<16x128xf32, #tpu.memory_space<vmem>>, vector<1x16xf32>
    %255 = vector.broadcast %254 : vector<1x16xf32> to vector<16x16xf32>
    %256 = arith.addf %253, %255 : vector<16x16xf32>
    %c0_109 = arith.constant 0 : index
    %c0_110 = arith.constant 0 : index
    %257 = vector.load %arg13[%c0_109, %c0_110] : memref<32x128xf32, #tpu.memory_space<vmem>>, vector<32x128xf32>
    %258 = vector.extract_strided_slice %257 {offsets = [0, 0], sizes = [32, 16], strides = [1, 1]} : vector<32x128xf32> to vector<32x16xf32>
    %259 = tpu.transpose %258, [1, 0] : vector<32x16xf32> -> vector<16x32xf32>
    %260 = arith.mulf %256, %256 : vector<16x16xf32>
    %cst_111 = arith.constant dense<0.000000e+00> : vector<16xf32>
    %261 = vector.multi_reduction <add>, %260, %cst_111 [1] : vector<16x16xf32> to vector<16xf32>
    %262 = vector.shape_cast %261 : vector<16xf32> to vector<16x1xf32>
    %263 = arith.mulf %259, %259 : vector<16x32xf32>
    %cst_112 = arith.constant dense<0.000000e+00> : vector<32xf32>
    %264 = vector.multi_reduction <add>, %263, %cst_112 [0] : vector<16x32xf32> to vector<32xf32>
    %265 = vector.shape_cast %264 : vector<32xf32> to vector<1x32xf32>
    %cst_113 = arith.constant dense<0.000000e+00> : vector<16x32xf32>
    %266 = tpu.matmul %256, %259, %cst_113 {dimension_numbers = #tpu.dot_dimension_numbers<[1], [0], [0], [1], [0, 0, 1, 1], [], []>} : vector<16x16xf32>, vector<16x32xf32>, vector<16x32xf32> -> vector<16x32xf32>
    %cst_114 = arith.constant 2.000000e+00 : f32
    %267 = vector.broadcast %cst_114 : f32 to vector<16x32xf32>
    %268 = arith.mulf %267, %266 : vector<16x32xf32>
    %269 = vector.broadcast %262 : vector<16x1xf32> to vector<16x32xf32>
    %270 = arith.subf %269, %268 : vector<16x32xf32>
    %271 = vector.broadcast %265 : vector<1x32xf32> to vector<16x32xf32>
    %272 = arith.addf %270, %271 : vector<16x32xf32>
    %cst_115 = arith.constant dense<0x7F800000> : vector<16xf32>
    %273 = vector.multi_reduction <minimumf>, %272, %cst_115 [1] : vector<16x32xf32> to vector<16xf32>
    %274 = vector.shape_cast %273 : vector<16xf32> to vector<16x1xf32>
    %275 = tpu.iota {dimensions = array<i32: 1>} : vector<16x32xi32>
    %276 = vector.broadcast %274 : vector<16x1xf32> to vector<16x32xf32>
    %277 = arith.cmpf ole, %272, %276 : vector<16x32xf32>
    %c32_i32_116 = arith.constant 32 : i32
    %278 = vector.broadcast %c32_i32_116 : i32 to vector<16x32xi32>
    %279 = arith.select %277, %275, %278 : vector<16x32xi1>, vector<16x32xi32>
    %cst_117 = arith.constant dense<2147483647> : vector<16xi32>
    %280 = vector.multi_reduction <minsi>, %279, %cst_117 [1] : vector<16x32xi32> to vector<16xi32>
    %281 = vector.shape_cast %280 : vector<16xi32> to vector<16x1xi32>
    %282 = vector.broadcast %281 : vector<16x1xi32> to vector<16x32xi32>
    %283 = arith.cmpi eq, %275, %282 : vector<16x32xi32>
    %284 = arith.extui %283 : vector<16x32xi1> to vector<16x32xi32>
    %285 = arith.sitofp %284 : vector<16x32xi32> to vector<16x32xf32>
    %cst_118 = arith.constant dense<0.000000e+00> : vector<16x128xf32>
    %286 = tpu.matmul %285, %257, %cst_118 {dimension_numbers = #tpu.dot_dimension_numbers<[1], [0], [0], [1], [0, 0, 1, 1], [], []>} : vector<16x32xf32>, vector<32x128xf32>, vector<16x128xf32> -> vector<16x128xf32>
    %c0_119 = arith.constant 0 : index
    %c0_120 = arith.constant 0 : index
    %287 = vector.load %arg16[%c0_119, %c0_120] : memref<16x128xf32, #tpu.memory_space<vmem>>, vector<16x128xf32>
    tpu.vector_store %arg16[%c0_119, %c0_120], %286 {strides = array<i32>} : memref<16x128xf32, #tpu.memory_space<vmem>>, vector<16x128xf32>,
    return
  }
}

</mosaic_0001>

<llo_original>
// kernel: lg_baseline_forward.1
$region0: #{lg_baseline_forward.1}
  #allocation0 [shape = 'u32[]', space=smem, size = 0x4, offset = 0x4, fixed_abs, tag = 'smem constant byte address 0x4 - core index']
  #allocation1 [shape = 'u32[144,128]{1,0:T(1,128)}', space=vmem, size = 0x12000, scoped, tag = 'internal scratch']
  %s0 = inlined_call_operand.vmem [shape: f32[128,64], index: 0, kind: input, shape index: {}]
  %s1 = inlined_call_operand.vmem [shape: s32[16,1], index: 1, kind: input, shape index: {}]
  %s2 = inlined_call_operand.vmem [shape: f32[16,16,64], index: 2, kind: input, shape index: {}]
  %s3 = inlined_call_operand.vmem [shape: f32[9,16,16], index: 3, kind: input, shape index: {}]
  %s4 = inlined_call_operand.vmem [shape: f32[64,32], index: 4, kind: input, shape index: {}]
  %s5 = inlined_call_operand.vmem [shape: f32[16,32,32], index: 5, kind: input, shape index: {}]
  %s6 = inlined_call_operand.vmem [shape: f32[9,32,16], index: 6, kind: input, shape index: {}]
  %s7 = inlined_call_operand.vmem [shape: f32[64,32], index: 7, kind: input, shape index: {}]
  %s8 = inlined_call_operand.vmem [shape: f32[8,32], index: 8, kind: input, shape index: {}]
  %s9 = inlined_call_operand.vmem [shape: f32[4,32,32], index: 9, kind: input, shape index: {}]
  %s10 = inlined_call_operand.vmem [shape: f32[32,128], index: 10, kind: input, shape index: {}]
  %s11 = inlined_call_operand.vmem [shape: f32[128,32], index: 11, kind: input, shape index: {}]
  %s12 = inlined_call_operand.vmem [shape: f32[32,16], index: 12, kind: input, shape index: {}]
  %s13 = inlined_call_operand.vmem [shape: f32[32,128], index: 13, kind: input, shape index: {}]
  %s14 = inlined_call_operand.vmem [shape: f32[16,128], index: 14, kind: input, shape index: {}]
  %s15 = inlined_call_operand.hbm [shape: f32[32,128], index: 15, kind: output, shape index: {0}]
  %s16 = inlined_call_operand.vmem [shape: f32[16,128], index: 16, kind: output, shape index: {1}]
  %17 = xla_tuple %s15, %s16
  %s18 = sld [smem:[#allocation0]]
  $region78: #{lg_baseline_forward.1} parent=0
    _
  %s20 = ssub.s32 1, %s18
  %s21 = scalar_select 0, %s20, %s18
  $region1: #{lg_baseline_forward.1} parent=0
    #allocation2 [shape = 'u8[16384]{0}', space=vmem, size = 0x4000, scoped, tag = 'output window, operand 0, single buffered']
    #allocation3 [shape = 's32[1]{0}', space=sflag, size = 0x4, scoped, tag = 'scoped memory for lg_baseline_forward.1']
    %22 = vsyncpa [#allocation3], 0
    // Predicated region
    $region2: #{lg_baseline_forward.1} parent=1 // pred_check
      _
    $region3: #{lg_baseline_forward.1} parent=1 // pred_check_branch
      %24 = sbr.rel (0) target = $region5
    $region4: #{lg_baseline_forward.1} parent=1 // pred_region
      _
    $region5: #{lg_baseline_forward.1} parent=1 // pred_fallthru
      _
    // Predicated region
    $region6: #{lg_baseline_forward.1} parent=1 // pred_check
      _
    $region7: #{lg_baseline_forward.1} parent=1 // pred_check_branch
      %26 = sbr.rel (0) target = $region9
    $region8: #{lg_baseline_forward.1} parent=1 // pred_region
      _
    $region9: #{lg_baseline_forward.1} parent=1 // pred_fallthru
      _
    // Predicated region
    $region10: #{lg_baseline_forward.1} parent=1 // pred_check
      _
    $region11: #{lg_baseline_forward.1} parent=1 // pred_check_branch
      %28 = sbr.rel (0) target = $region13
    $region12: #{lg_baseline_forward.1} parent=1 // pred_region
      _
    $region13: #{lg_baseline_forward.1} parent=1 // pred_fallthru
      _
    // Predicated region
    $region14: #{lg_baseline_forward.1} parent=1 // pred_check
      _
    $region15: #{lg_baseline_forward.1} parent=1 // pred_check_branch
      %30 = sbr.rel (0) target = $region17
    $region16: #{lg_baseline_forward.1} parent=1 // pred_region
      _
    $region17: #{lg_baseline_forward.1} parent=1 // pred_fallthru
      _
    // Predicated region
    $region18: #{lg_baseline_forward.1} parent=1 // pred_check
      _
    $region19: #{lg_baseline_forward.1} parent=1 // pred_check_branch
      %32 = sbr.rel (0) target = $region21
    $region20: #{lg_baseline_forward.1} parent=1 // pred_region
      _
    $region21: #{lg_baseline_forward.1} parent=1 // pred_fallthru
      _
    // Predicated region
    $region22: #{lg_baseline_forward.1} parent=1 // pred_check
      _
    $region23: #{lg_baseline_forward.1} parent=1 // pred_check_branch
      %34 = sbr.rel (0) target = $region25
    $region24: #{lg_baseline_forward.1} parent=1 // pred_region
      _
    $region25: #{lg_baseline_forward.1} parent=1 // pred_fallthru
      _
    // Predicated region
    $region26: #{lg_baseline_forward.1} parent=1 // pred_check
      _
    $region27: #{lg_baseline_forward.1} parent=1 // pred_check_branch
      %36 = sbr.rel (0) target = $region29
    $region28: #{lg_baseline_forward.1} parent=1 // pred_region
      _
    $region29: #{lg_baseline_forward.1} parent=1 // pred_fallthru
      _
    // Predicated region
    $region30: #{lg_baseline_forward.1} parent=1 // pred_check
      _
    $region31: #{lg_baseline_forward.1} parent=1 // pred_check_branch
      %38 = sbr.rel (0) target = $region33
    $region32: #{lg_baseline_forward.1} parent=1 // pred_region
      _
    $region33: #{lg_baseline_forward.1} parent=1 // pred_fallthru
      _
    // Predicated region
    $region34: #{lg_baseline_forward.1} parent=1 // pred_check
      _
    $region35: #{lg_baseline_forward.1} parent=1 // pred_check_branch
      %40 = sbr.rel (0) target = $region37
    $region36: #{lg_baseline_forward.1} parent=1 // pred_region
      _
    $region37: #{lg_baseline_forward.1} parent=1 // pred_fallthru
      _
    // Predicated region
    $region38: #{lg_baseline_forward.1} parent=1 // pred_check
      _
    $region39: #{lg_baseline_forward.1} parent=1 // pred_check_branch
      %42 = sbr.rel (0) target = $region41
    $region40: #{lg_baseline_forward.1} parent=1 // pred_region
      _
    $region41: #{lg_baseline_forward.1} parent=1 // pred_fallthru
      _
    // Predicated region
    $region42: #{lg_baseline_forward.1} parent=1 // pred_check
      _
    $region43: #{lg_baseline_forward.1} parent=1 // pred_check_branch
      %44 = sbr.rel (0) target = $region45
    $region44: #{lg_baseline_forward.1} parent=1 // pred_region
      _
    $region45: #{lg_baseline_forward.1} parent=1 // pred_fallthru
      _
    // Predicated region
    $region46: #{lg_baseline_forward.1} parent=1 // pred_check
      _
    $region47: #{lg_baseline_forward.1} parent=1 // pred_check_branch
      %46 = sbr.rel (0) target = $region49
    $region48: #{lg_baseline_forward.1} parent=1 // pred_region
      _
    $region49: #{lg_baseline_forward.1} parent=1 // pred_fallthru
      _
    // Predicated region
    $region50: #{lg_baseline_forward.1} parent=1 // pred_check
      _
    $region51: #{lg_baseline_forward.1} parent=1 // pred_check_branch
      %48 = sbr.rel (0) target = $region53
    $region52: #{lg_baseline_forward.1} parent=1 // pred_region
      _
    $region53: #{lg_baseline_forward.1} parent=1 // pred_fallthru
      _
    // Predicated region
    $region54: #{lg_baseline_forward.1} parent=1 // pred_check
      _
    $region55: #{lg_baseline_forward.1} parent=1 // pred_check_branch
      %50 = sbr.rel (0) target = $region57
    $region56: #{lg_baseline_forward.1} parent=1 // pred_region
      _
    $region57: #{lg_baseline_forward.1} parent=1 // pred_fallthru
      _
    // Predicated region
    $region58: #{lg_baseline_forward.1} parent=1 // pred_check
      _
    $region59: #{lg_baseline_forward.1} parent=1 // pred_check_branch
      %52 = sbr.rel (0) target = $region61
    $region60: #{lg_baseline_forward.1} parent=1 // pred_region
      _
    $region61: #{lg_baseline_forward.1} parent=1 // pred_fallthru
      _
    %v53 = vld [vmem:[%s0] sm:$0xff]
    %v54 = vld [vmem:[%s0 + $0x8] sm:$0xff]
    %v55 = vld [vmem:[%s0 + $0x10] sm:$0xff]
    %v56 = vld [vmem:[%s0 + $0x18] sm:$0xff]
    %v57 = vld [vmem:[%s0 + $0x20] sm:$0xff]
    %v58 = vld [vmem:[%s0 + $0x28] sm:$0xff]
    %v59 = vld [vmem:[%s0 + $0x30] sm:$0xff]
    %v60 = vld [vmem:[%s0 + $0x38] sm:$0xff]
    %v61 = vld [vmem:[%s0 + $0x40] sm:$0xff]
    %v62 = vld [vmem:[%s0 + $0x48] sm:$0xff]
    %v63 = vld [vmem:[%s0 + $0x50] sm:$0xff]
    %v64 = vld [vmem:[%s0 + $0x58] sm:$0xff]
    %v65 = vld [vmem:[%s0 + $0x60] sm:$0xff]
    %v66 = vld [vmem:[%s0 + $0x68] sm:$0xff]
    %v67 = vld [vmem:[%s0 + $0x70] sm:$0xff]
    %v68 = vld [vmem:[%s0 + $0x78] sm:$0xff]
    %v69 = vld [vmem:[%s4] sm:$0xff]
    %v70 = vld [vmem:[%s4 + $0x8] sm:$0xff]
    %v71 = vld [vmem:[%s4 + $0x10] sm:$0xff]
    %v72 = vld [vmem:[%s4 + $0x18] sm:$0xff]
    %v73 = vld [vmem:[%s4 + $0x20] sm:$0xff]
    %v74 = vld [vmem:[%s4 + $0x28] sm:$0xff]
    %v75 = vld [vmem:[%s4 + $0x30] sm:$0xff]
    %v76 = vld [vmem:[%s4 + $0x38] sm:$0xff]
    %v77 = vld [vmem:[%s14] sm:$0x1]
    %v78 = vlaneseq
    %v79 = vshrl.u32 %v78, 7
    %v80 = vsub.s32 0, %v79
    %v81 = vrot.slane %v77, %v80
    %vm82 = vcmask 523264
    %v84 = vsel %vm82, %v53, 0
    %v87 = vsel %vm82, %v54, 0
    %v90 = vsel %vm82, %v55, 0
    %v93 = vsel %vm82, %v56, 0
    %v96 = vsel %vm82, %v57, 0
    %v99 = vsel %vm82, %v58, 0
    %v102 = vsel %vm82, %v59, 0
    %v105 = vsel %vm82, %v60, 0
    %v108 = vsel %vm82, %v61, 0
    %v111 = vsel %vm82, %v62, 0
    %v114 = vsel %vm82, %v63, 0
    %v117 = vsel %vm82, %v64, 0
    %v120 = vsel %vm82, %v65, 0
    %v123 = vsel %vm82, %v66, 0
    %v126 = vsel %vm82, %v67, 0
    %v129 = vsel %vm82, %v68, 0
    %131 = vmatprep.subr.mxu0 0.0
    %132 = vmatpush1.msra.mxu0 0.0
    %133 = vmatprep.subr.mxu0 0.0
    %134 = vmatpush1.msra.mxu0 0.0
    %135 = vmatprep.subr.mxu0 0.0
    %136 = vmatpush1.msra.mxu0 0.0
    %137 = vmatprep.subr.mxu0 0.0
    %138 = vmatpush1.msra.mxu0 0.0
    %139 = vmatprep.subr.mxu0 0.0
    %140 = vmatpush1.msra.mxu0 0.0
    %141 = vmatprep.subr.mxu0 0.0
    %142 = vmatpush1.msra.mxu0 0.0
    %143 = vmatprep.subr.mxu0 0.0
    %144 = vmatpush1.msra.mxu0 0.0
    %145 = vmatprep.subr.mxu0 0.0
    %146 = vmatpush1.msra.mxu0 0.0
    %147 = vmatprep.subr.mxu0 0.0
    %148 = vmatpush1.msra.mxu0 %v76
    %149 = vmatprep.subr.mxu0 0.0
    %150 = vmatpush1.msra.mxu0 %v75
    %151 = vmatprep.subr.mxu0 0.0
    %152 = vmatpush1.msra.mxu0 %v74
    %153 = vmatprep.subr.mxu0 0.0
    %154 = vmatpush1.msra.mxu0 %v73
    %155 = vmatprep.subr.mxu0 0.0
    %156 = vmatpush1.msra.mxu0 %v72
    %157 = vmatprep.subr.mxu0 0.0
    %158 = vmatpush1.msra.mxu0 %v71
    %159 = vmatprep.subr.mxu0 0.0
    %160 = vmatpush1.msra.mxu0 %v70
    %161 = vmatprep.subr.mxu0 0.0
    %162 = vmatpush1.msra.mxu0 %v69
    %163 = vmatprep.subr.mxu0 0.0
    %164 = vmatpush2.msra.mxu0 0.0
    %165 = vmatprep.subr.mxu0 0.0
    %166 = vmatpush2.msra.mxu0 0.0
    %167 = vmatprep.subr.mxu0 0.0
    %168 = vmatpush2.msra.mxu0 0.0
    %169 = vmatprep.subr.mxu0 0.0
    %170 = vmatpush2.msra.mxu0 0.0
    %171 = vmatprep.subr.mxu0 0.0
    %172 = vmatpush2.msra.mxu0 0.0
    %173 = vmatprep.subr.mxu0 0.0
    %174 = vmatpush2.msra.mxu0 0.0
    %175 = vmatprep.subr.mxu0 0.0
    %176 = vmatpush2.msra.mxu0 0.0
    %177 = vmatprep.subr.mxu0 0.0
    %178 = vmatpush2.msra.mxu0 0.0
    %179 = vmatprep.subr.mxu0 0.0
    %180 = vmatpush2.msra.mxu0 0.0
    %181 = vmatprep.subr.mxu0 0.0
    %182 = vmatpush2.msra.mxu0 0.0
    %183 = vmatprep.subr.mxu0 0.0
    %184 = vmatpush2.msra.mxu0 0.0
    %185 = vmatprep.subr.mxu0 0.0
    %186 = vmatpush2.msra.mxu0 0.0
    %187 = vmatprep.subr.mxu0 0.0
    %188 = vmatpush2.msra.mxu0 0.0
    %189 = vmatprep.subr.mxu0 0.0
    %190 = vmatpush2.msra.mxu0 0.0
    %191 = vmatprep.subr.mxu0 0.0
    %192 = vmatpush2.msra.mxu0 0.0
    %193 = vmatprep.subr.mxu0 0.0
    %194 = vmatpush2.msra.mxu0 0.0
    %195 = vmatprep.mubr.f32.mxu0 0.0
    %196 = vmatmul.mubr.f32.gmra.mxu0 %v84
    %v197 = vpop.f32.mrf.mxu0
    %v198 = vadd.f32 %v81, %v197
    %v199 = vpop.f32.mrf.mxu0
    %200 = vmatprep.mubr.f32.mxu0 0.0
    %201 = vmatmul.mubr.f32.gmra.mxu0 %v87
    %v202 = vpop.f32.mrf.mxu0
    %v203 = vadd.f32 %v81, %v202
    %v204 = vpop.f32.mrf.mxu0
    %205 = vmatprep.mubr.f32.mxu0 0.0
    %206 = vmatmul.mubr.f32.gmra.mxu0 %v90
    %v207 = vpop.f32.mrf.mxu0
    %v208 = vadd.f32 %v81, %v207
    %v209 = vpop.f32.mrf.mxu0
    %210 = vmatprep.mubr.f32.mxu0 0.0
    %211 = vmatmul.mubr.f32.gmra.mxu0 %v93
    %v212 = vpop.f32.mrf.mxu0
    %v213 = vadd.f32 %v81, %v212
    %v214 = vpop.f32.mrf.mxu0
    %215 = vmatprep.mubr.f32.mxu0 0.0
    %216 = vmatmul.mubr.f32.gmra.mxu0 %v96
    %v217 = vpop.f32.mrf.mxu0
    %v218 = vadd.f32 %v81, %v217
    %v219 = vpop.f32.mrf.mxu0
    %220 = vmatprep.mubr.f32.mxu0 0.0
    %221 = vmatmul.mubr.f32.gmra.mxu0 %v99
    %v222 = vpop.f32.mrf.mxu0
    %v223 = vadd.f32 %v81, %v222
    %v224 = vpop.f32.mrf.mxu0
    %225 = vmatprep.mubr.f32.mxu0 0.0
    %226 = vmatmul.mubr.f32.gmra.mxu0 %v102
    %v227 = vpop.f32.mrf.mxu0
    %v228 = vadd.f32 %v81, %v227
    %v229 = vpop.f32.mrf.mxu0
    %230 = vmatprep.mubr.f32.mxu0 0.0
    %231 = vmatmul.mubr.f32.gmra.mxu0 %v105
    %v232 = vpop.f32.mrf.mxu0
    %v233 = vadd.f32 %v81, %v232
    %v234 = vpop.f32.mrf.mxu0
    %235 = vmatprep.mubr.f32.mxu0 0.0
    %236 = vmatmul.mubr.f32.gmra.mxu0 %v108
    %v237 = vpop.f32.mrf.mxu0
    %v238 = vadd.f32 %v81, %v237
    %v239 = vpop.f32.mrf.mxu0
    %240 = vmatprep.mubr.f32.mxu0 0.0
    %241 = vmatmul.mubr.f32.gmra.mxu0 %v111
    %v242 = vpop.f32.mrf.mxu0
    %v243 = vadd.f32 %v81, %v242
    %v244 = vpop.f32.mrf.mxu0
    %245 = vmatprep.mubr.f32.mxu0 0.0
    %246 = vmatmul.mubr.f32.gmra.mxu0 %v114
    %v247 = vpop.f32.mrf.mxu0
    %v248 = vadd.f32 %v81, %v247
    %v249 = vpop.f32.mrf.mxu0
    %250 = vmatprep.mubr.f32.mxu0 0.0
    %251 = vmatmul.mubr.f32.gmra.mxu0 %v117
    %v252 = vpop.f32.mrf.mxu0
    %v253 = vadd.f32 %v81, %v252
    %v254 = vpop.f32.mrf.mxu0
    %255 = vmatprep.mubr.f32.mxu0 0.0
    %256 = vmatmul.mubr.f32.gmra.mxu0 %v120
    %v257 = vpop.f32.mrf.mxu0
    %v258 = vadd.f32 %v81, %v257
    %v259 = vpop.f32.mrf.mxu0
    %260 = vmatprep.mubr.f32.mxu0 0.0
    %261 = vmatmul.mubr.f32.gmra.mxu0 %v123
    %v262 = vpop.f32.mrf.mxu0
    %v263 = vadd.f32 %v81, %v262
    %v264 = vpop.f32.mrf.mxu0
    %265 = vmatprep.mubr.f32.mxu0 0.0
    %266 = vmatmul.mubr.f32.gmra.mxu0 %v126
    %v267 = vpop.f32.mrf.mxu0
    %v268 = vadd.f32 %v81, %v267
    %v269 = vpop.f32.mrf.mxu0
    %270 = vmatprep.mubr.f32.mxu0 0.0
    %271 = vmatmul.mubr.f32.gmra.mxu0 %v129
    %v272 = vpop.f32.mrf.mxu0
    %v273 = vadd.f32 %v81, %v272
    %v274 = vpop.f32.mrf.mxu0
    %275 = vdwg.mxu0
    %v276 = vmax.f32 %v198, 0.0
    %v277 = vmax.f32 %v203, 0.0
    %v278 = vmax.f32 %v208, 0.0
    %v279 = vmax.f32 %v213, 0.0
    %v280 = vmax.f32 %v218, 0.0
    %v281 = vmax.f32 %v223, 0.0
    %v282 = vmax.f32 %v228, 0.0
    %v283 = vmax.f32 %v233, 0.0
    %v284 = vmax.f32 %v238, 0.0
    %v285 = vmax.f32 %v243, 0.0
    %v286 = vmax.f32 %v248, 0.0
    %v287 = vmax.f32 %v253, 0.0
    %v288 = vmax.f32 %v258, 0.0
    %v289 = vmax.f32 %v263, 0.0
    %v290 = vmax.f32 %v268, 0.0
    %v291 = vmax.f32 %v273, 0.0
    %v292 = vld [vmem:[%s2] sm:$0xff]
    %v293 = vld [vmem:[%s2 + $0x8] sm:$0xff]
    %v294 = vld [vmem:[%s2 + $0x10] sm:$0xff]
    %v295 = vld [vmem:[%s2 + $0x18] sm:$0xff]
    %v296 = vld [vmem:[%s2 + $0x20] sm:$0xff]
    %v297 = vld [vmem:[%s2 + $0x28] sm:$0xff]
    %v298 = vld [vmem:[%s2 + $0x30] sm:$0xff]
    %v299 = vld [vmem:[%s2 + $0x38] sm:$0xff]
    %v300 = vld [vmem:[%s2 + $0x40] sm:$0xff]
    %v301 = vld [vmem:[%s2 + $0x48] sm:$0xff]
    %v302 = vld [vmem:[%s2 + $0x50] sm:$0xff]
    %v303 = vld [vmem:[%s2 + $0x58] sm:$0xff]
    %v304 = vld [vmem:[%s2 + $0x60] sm:$0xff]
    %v305 = vld [vmem:[%s2 + $0x68] sm:$0xff]
    %v306 = vld [vmem:[%s2 + $0x70] sm:$0xff]
    %v307 = vld [vmem:[%s2 + $0x78] sm:$0xff]
    %v308 = vld [vmem:[%s2 + $0x80] sm:$0xff]
    %v309 = vld [vmem:[%s2 + $0x88] sm:$0xff]
    %v310 = vld [vmem:[%s2 + $0x90] sm:$0xff]
    %v311 = vld [vmem:[%s2 + $0x98] sm:$0xff]
    %v312 = vld [vmem:[%s2 + $0xa0] sm:$0xff]
    %v313 = vld [vmem:[%s2 + $0xa8] sm:$0xff]
    %v314 = vld [vmem:[%s2 + $0xb0] sm:$0xff]
    %v315 = vld [vmem:[%s2 + $0xb8] sm:$0xff]
    %v316 = vld [vmem:[%s2 + $0xc0] sm:$0xff]
    %v317 = vld [vmem:[%s2 + $0xc8] sm:$0xff]
    %v318 = vld [vmem:[%s2 + $0xd0] sm:$0xff]
    %v319 = vld [vmem:[%s2 + $0xd8] sm:$0xff]
    %v320 = vld [vmem:[%s2 + $0xe0] sm:$0xff]
    %v321 = vld [vmem:[%s2 + $0xe8] sm:$0xff]
    %v322 = vld [vmem:[%s2 + $0xf0] sm:$0xff]
    %v323 = vld [vmem:[%s2 + $0xf8] sm:$0xff]
    %v324 = vld [vmem:[%s5] sm:$0xff]
    %v325 = vld [vmem:[%s5 + $0x8] sm:$0xff]
    %v326 = vld [vmem:[%s5 + $0x10] sm:$0xff]
    %v327 = vld [vmem:[%s5 + $0x18] sm:$0xff]
    %v328 = vld [vmem:[%s5 + $0x20] sm:$0xff]
    %v329 = vld [vmem:[%s5 + $0x28] sm:$0xff]
    %v330 = vld [vmem:[%s5 + $0x30] sm:$0xff]
    %v331 = vld [vmem:[%s5 + $0x38] sm:$0xff]
    %v332 = vld [vmem:[%s5 + $0x40] sm:$0xff]
    %v333 = vld [vmem:[%s5 + $0x48] sm:$0xff]
    %v334 = vld [vmem:[%s5 + $0x50] sm:$0xff]
    %v335 = vld [vmem:[%s5 + $0x58] sm:$0xff]
    %v336 = vld [vmem:[%s5 + $0x60] sm:$0xff]
    %v337 = vld [vmem:[%s5 + $0x68] sm:$0xff]
    %v338 = vld [vmem:[%s5 + $0x70] sm:$0xff]
    %v339 = vld [vmem:[%s5 + $0x78] sm:$0xff]
    %v340 = vld [vmem:[%s5 + $0x80] sm:$0xff]
    %v341 = vld [vmem:[%s5 + $0x88] sm:$0xff]
    %v342 = vld [vmem:[%s5 + $0x90] sm:$0xff]
    %v343 = vld [vmem:[%s5 + $0x98] sm:$0xff]
    %v344 = vld [vmem:[%s5 + $0xa0] sm:$0xff]
    %v345 = vld [vmem:[%s5 + $0xa8] sm:$0xff]
    %v346 = vld [vmem:[%s5 + $0xb0] sm:$0xff]
    %v347 = vld [vmem:[%s5 + $0xb8] sm:$0xff]
    %v348 = vld [vmem:[%s5 + $0xc0] sm:$0xff]
    %v349 = vld [vmem:[%s5 + $0xc8] sm:$0xff]
    %v350 = vld [vmem:[%s5 + $0xd0] sm:$0xff]
    %v351 = vld [vmem:[%s5 + $0xd8] sm:$0xff]
    %v352 = vld [vmem:[%s5 + $0xe0] sm:$0xff]
    %v353 = vld [vmem:[%s5 + $0xe8] sm:$0xff]
    %v354 = vld [vmem:[%s5 + $0xf0] sm:$0xff]
    %v355 = vld [vmem:[%s5 + $0xf8] sm:$0xff]
    %v356 = vld [vmem:[%s5 + $0x100] sm:$0xff]
    %v357 = vld [vmem:[%s5 + $0x108] sm:$0xff]
    %v358 = vld [vmem:[%s5 + $0x110] sm:$0xff]
    %v359 = vld [vmem:[%s5 + $0x118] sm:$0xff]
    %v360 = vld [vmem:[%s5 + $0x120] sm:$0xff]
    %v361 = vld [vmem:[%s5 + $0x128] sm:$0xff]
    %v362 = vld [vmem:[%s5 + $0x130] sm:$0xff]
    %v363 = vld [vmem:[%s5 + $0x138] sm:$0xff]
    %v364 = vld [vmem:[%s5 + $0x140] sm:$0xff]
    %v365 = vld [vmem:[%s5 + $0x148] sm:$0xff]
    %v366 = vld [vmem:[%s5 + $0x150] sm:$0xff]
    %v367 = vld [vmem:[%s5 + $0x158] sm:$0xff]
    %v368 = vld [vmem:[%s5 + $0x160] sm:$0xff]
    %v369 = vld [vmem:[%s5 + $0x168] sm:$0xff]
    %v370 = vld [vmem:[%s5 + $0x170] sm:$0xff]
    %v371 = vld [vmem:[%s5 + $0x178] sm:$0xff]
    %v372 = vld [vmem:[%s5 + $0x180] sm:$0xff]
    %v373 = vld [vmem:[%s5 + $0x188] sm:$0xff]
    %v374 = vld [vmem:[%s5 + $0x190] sm:$0xff]
    %v375 = vld [vmem:[%s5 + $0x198] sm:$0xff]
    %v376 = vld [vmem:[%s5 + $0x1a0] sm:$0xff]
    %v377 = vld [vmem:[%s5 + $0x1a8] sm:$0xff]
    %v378 = vld [vmem:[%s5 + $0x1b0] sm:$0xff]
    %v379 = vld [vmem:[%s5 + $0x1b8] sm:$0xff]
    %v380 = vld [vmem:[%s5 + $0x1c0] sm:$0xff]
    %v381 = vld [vmem:[%s5 + $0x1c8] sm:$0xff]
    %v382 = vld [vmem:[%s5 + $0x1d0] sm:$0xff]
    %v383 = vld [vmem:[%s5 + $0x1d8] sm:$0xff]
    %v384 = vld [vmem:[%s5 + $0x1e0] sm:$0xff]
    %v385 = vld [vmem:[%s5 + $0x1e8] sm:$0xff]
    %v386 = vld [vmem:[%s5 + $0x1f0] sm:$0xff]
    %v387 = vld [vmem:[%s5 + $0x1f8] sm:$0xff]
    %v389 = vsel %vm82, %v292, 0
    %v392 = vsel %vm82, %v293, 0
    %394 = vmatprep.subr.mxu0 0.0
    %395 = vmatpush1.msra.mxu0 0.0
    %396 = vmatprep.subr.mxu0 0.0
    %397 = vmatpush1.msra.mxu0 0.0
    %398 = vmatprep.subr.mxu0 0.0
    %399 = vmatpush1.msra.mxu0 0.0
    %400 = vmatprep.subr.mxu0 0.0
    %401 = vmatpush1.msra.mxu0 0.0
    %402 = vmatprep.subr.mxu0 0.0
    %403 = vmatpush1.msra.mxu0 0.0
    %404 = vmatprep.subr.mxu0 0.0
    %405 = vmatpush1.msra.mxu0 0.0
    %406 = vmatprep.subr.mxu0 0.0
    %407 = vmatpush1.msra.mxu0 0.0
    %408 = vmatprep.subr.mxu0 0.0
    %409 = vmatpush1.msra.mxu0 0.0
    %410 = vmatprep.subr.mxu0 0.0
    %411 = vmatpush1.msra.mxu0 %v283
    %412 = vmatprep.subr.mxu0 0.0
    %413 = vmatpush1.msra.mxu0 %v282
    %414 = vmatprep.subr.mxu0 0.0
    %415 = vmatpush1.msra.mxu0 %v281
    %416 = vmatprep.subr.mxu0 0.0
    %417 = vmatpush1.msra.mxu0 %v280
    %418 = vmatprep.subr.mxu0 0.0
    %419 = vmatpush1.msra.mxu0 %v279
    %420 = vmatprep.subr.mxu0 0.0
    %421 = vmatpush1.msra.mxu0 %v278
    %422 = vmatprep.subr.mxu0 0.0
    %423 = vmatpush1.msra.mxu0 %v277
    %424 = vmatprep.subr.mxu0 0.0
    %425 = vmatpush1.msra.mxu0 %v276
    %426 = vmatprep.subr.mxu0 0.0
    %427 = vmatpush2.msra.mxu0 0.0
    %428 = vmatprep.subr.mxu0 0.0
    %429 = vmatpush2.msra.mxu0 0.0
    %430 = vmatprep.subr.mxu0 0.0
    %431 = vmatpush2.msra.mxu0 0.0
    %432 = vmatprep.subr.mxu0 0.0
    %433 = vmatpush2.msra.mxu0 0.0
    %434 = vmatprep.subr.mxu0 0.0
    %435 = vmatpush2.msra.mxu0 0.0
    %436 = vmatprep.subr.mxu0 0.0
    %437 = vmatpush2.msra.mxu0 0.0
    %438 = vmatprep.subr.mxu0 0.0
    %439 = vmatpush2.msra.mxu0 0.0
    %440 = vmatprep.subr.mxu0 0.0
    %441 = vmatpush2.msra.mxu0 0.0
    %442 = vmatprep.subr.mxu0 0.0
    %443 = vmatpush2.msra.mxu0 0.0
    %444 = vmatprep.subr.mxu0 0.0
    %445 = vmatpush2.msra.mxu0 0.0
    %446 = vmatprep.subr.mxu0 0.0
    %447 = vmatpush2.msra.mxu0 0.0
    %448 = vmatprep.subr.mxu0 0.0
    %449 = vmatpush2.msra.mxu0 0.0
    %450 = vmatprep.subr.mxu0 0.0
    %451 = vmatpush2.msra.mxu0 0.0
    %452 = vmatprep.subr.mxu0 0.0
    %453 = vmatpush2.msra.mxu0 0.0
    %454 = vmatprep.subr.mxu0 0.0
    %455 = vmatpush2.msra.mxu0 0.0
    %456 = vmatprep.subr.mxu0 0.0
    %457 = vmatpush2.msra.mxu0 0.0
    %458 = vmatprep.mubr.f32.mxu0 0.0
    %459 = vmatmul.mubr.f32.gmra.mxu0 %v389
    %v460 = vpop.f32.mrf.mxu0
    %v461 = vadd.f32 0.0, %v460
    %v462 = vpop.f32.mrf.mxu0
    %463 = vmatprep.mubr.f32.mxu0 0.0
    %464 = vmatmul.mubr.f32.gmra.mxu0 %v392
    %v465 = vpop.f32.mrf.mxu0
    %v466 = vadd.f32 0.0, %v465
    %v467 = vpop.f32.mrf.mxu0
    %468 = vdwg.mxu0
    %v470 = vsel %vm82, %v294, 0
    %v473 = vsel %vm82, %v295, 0
    %475 = vmatprep.subr.mxu0 0.0
    %476 = vmatpush1.msra.mxu0 0.0
    %477 = vmatprep.subr.mxu0 0.0
    %478 = vmatpush1.msra.mxu0 0.0
    %479 = vmatprep.subr.mxu0 0.0
    %480 = vmatpush1.msra.mxu0 0.0
    %481 = vmatprep.subr.mxu0 0.0
    %482 = vmatpush1.msra.mxu0 0.0
    %483 = vmatprep.subr.mxu0 0.0
    %484 = vmatpush1.msra.mxu0 0.0
    %485 = vmatprep.subr.mxu0 0.0
    %486 = vmatpush1.msra.mxu0 0.0
    %487 = vmatprep.subr.mxu0 0.0
    %488 = vmatpush1.msra.mxu0 0.0
    %489 = vmatprep.subr.mxu0 0.0
    %490 = vmatpush1.msra.mxu0 0.0
    %491 = vmatprep.subr.mxu0 0.0
    %492 = vmatpush1.msra.mxu0 %v283
    %493 = vmatprep.subr.mxu0 0.0
    %494 = vmatpush1.msra.mxu0 %v282
    %495 = vmatprep.subr.mxu0 0.0
    %496 = vmatpush1.msra.mxu0 %v281
    %497 = vmatprep.subr.mxu0 0.0
    %498 = vmatpush1.msra.mxu0 %v280
    %499 = vmatprep.subr.mxu0 0.0
    %500 = vmatpush1.msra.mxu0 %v279
    %501 = vmatprep.subr.mxu0 0.0
    %502 = vmatpush1.msra.mxu0 %v278
    %503 = vmatprep.subr.mxu0 0.0
    %504 = vmatpush1.msra.mxu0 %v277
    %505 = vmatprep.subr.mxu0 0.0
    %506 = vmatpush1.msra.mxu0 %v276
    %507 = vmatprep.subr.mxu0 0.0
    %508 = vmatpush2.msra.mxu0 0.0
    %509 = vmatprep.subr.mxu0 0.0
    %510 = vmatpush2.msra.mxu0 0.0
    %511 = vmatprep.subr.mxu0 0.0
    %512 = vmatpush2.msra.mxu0 0.0
    %513 = vmatprep.subr.mxu0 0.0
    %514 = vmatpush2.msra.mxu0 0.0
    %515 = vmatprep.subr.mxu0 0.0
    %516 = vmatpush2.msra.mxu0 0.0
    %517 = vmatprep.subr.mxu0 0.0
    %518 = vmatpush2.msra.mxu0 0.0
    %519 = vmatprep.subr.mxu0 0.0
    %520 = vmatpush2.msra.mxu0 0.0
    %521 = vmatprep.subr.mxu0 0.0
    %522 = vmatpush2.msra.mxu0 0.0
    %523 = vmatprep.subr.mxu0 0.0
    %524 = vmatpush2.msra.mxu0 0.0
    %525 = vmatprep.subr.mxu0 0.0
    %526 = vmatpush2.msra.mxu0 0.0
    %527 = vmatprep.subr.mxu0 0.0
    %528 = vmatpush2.msra.mxu0 0.0
    %529 = vmatprep.subr.mxu0 0.0
    %530 = vmatpush2.msra.mxu0 0.0
    %531 = vmatprep.subr.mxu0 0.0
    %532 = vmatpush2.msra.mxu0 0.0
    %533 = vmatprep.subr.mxu0 0.0
    %534 = vmatpush2.msra.mxu0 0.0
    %535 = vmatprep.subr.mxu0 0.0
    %536 = vmatpush2.msra.mxu0 0.0
    %537 = vmatprep.subr.mxu0 0.0
    %538 = vmatpush2.msra.mxu0 0.0
    %539 = vmatprep.mubr.f32.mxu0 0.0
    %540 = vmatmul.mubr.f32.gmra.mxu0 %v470
    %v541 = vpop.f32.mrf.mxu0
    %v542 = vadd.f32 0.0, %v541
    %v543 = vpop.f32.mrf.mxu0
    %544 = vmatprep.mubr.f32.mxu0 0.0
    %545 = vmatmul.mubr.f32.gmra.mxu0 %v473
    %v546 = vpop.f32.mrf.mxu0
    %v547 = vadd.f32 0.0, %v546
    %v548 = vpop.f32.mrf.mxu0
    %549 = vdwg.mxu0
    %v551 = vsel %vm82, %v296, 0
    %v554 = vsel %vm82, %v297, 0
    %556 = vmatprep.subr.mxu0 0.0
    %557 = vmatpush1.msra.mxu0 0.0
    %558 = vmatprep.subr.mxu0 0.0
    %559 = vmatpush1.msra.mxu0 0.0
    %560 = vmatprep.subr.mxu0 0.0
    %561 = vmatpush1.msra.mxu0 0.0
    %562 = vmatprep.subr.mxu0 0.0
    %563 = vmatpush1.msra.mxu0 0.0
    %564 = vmatprep.subr.mxu0 0.0
    %565 = vmatpush1.msra.mxu0 0.0
    %566 = vmatprep.subr.mxu0 0.0
    %567 = vmatpush1.msra.mxu0 0.0
    %568 = vmatprep.subr.mxu0 0.0
    %569 = vmatpush1.msra.mxu0 0.0
    %570 = vmatprep.subr.mxu0 0.0
    %571 = vmatpush1.msra.mxu0 0.0
    %572 = vmatprep.subr.mxu0 0.0
    %573 = vmatpush1.msra.mxu0 %v283
    %574 = vmatprep.subr.mxu0 0.0
    %575 = vmatpush1.msra.mxu0 %v282
    %576 = vmatprep.subr.mxu0 0.0
    %577 = vmatpush1.msra.mxu0 %v281
    %578 = vmatprep.subr.mxu0 0.0
    %579 = vmatpush1.msra.mxu0 %v280
    %580 = vmatprep.subr.mxu0 0.0
    %581 = vmatpush1.msra.mxu0 %v279
    %582 = vmatprep.subr.mxu0 0.0
    %583 = vmatpush1.msra.mxu0 %v278
    %584 = vmatprep.subr.mxu0 0.0
    %585 = vmatpush1.msra.mxu0 %v277
    %586 = vmatprep.subr.mxu0 0.0
    %587 = vmatpush1.msra.mxu0 %v276
    %588 = vmatprep.subr.mxu0 0.0
    %589 = vmatpush2.msra.mxu0 0.0
    %590 = vmatprep.subr.mxu0 0.0
    %591 = vmatpush2.msra.mxu0 0.0
    %592 = vmatprep.subr.mxu0 0.0
    %593 = vmatpush2.msra.mxu0 0.0
    %594 = vmatprep.subr.mxu0 0.0
    %595 = vmatpush2.msra.mxu0 0.0
    %596 = vmatprep.subr.mxu0 0.0
    %597 = vmatpush2.msra.mxu0 0.0
    %598 = vmatprep.subr.mxu0 0.0
    %599 = vmatpush2.msra.mxu0 0.0
    %600 = vmatprep.subr.mxu0 0.0
    %601 = vmatpush2.msra.mxu0 0.0
    %602 = vmatprep.subr.mxu0 0.0
    %603 = vmatpush2.msra.mxu0 0.0
    %604 = vmatprep.subr.mxu0 0.0
    %605 = vmatpush2.msra.mxu0 0.0
    %606 = vmatprep.subr.mxu0 0.0
    %607 = vmatpush2.msra.mxu0 0.0
    %608 = vmatprep.subr.mxu0 0.0
    %609 = vmatpush2.msra.mxu0 0.0
    %610 = vmatprep.subr.mxu0 0.0
    %611 = vmatpush2.msra.mxu0 0.0
    %612 = vmatprep.subr.mxu0 0.0
    %613 = vmatpush2.msra.mxu0 0.0
    %614 = vmatprep.subr.mxu0 0.0
    %615 = vmatpush2.msra.mxu0 0.0
    %616 = vmatprep.subr.mxu0 0.0
    %617 = vmatpush2.msra.mxu0 0.0
    %618 = vmatprep.subr.mxu0 0.0
    %619 = vmatpush2.msra.mxu0 0.0
    %620 = vmatprep.mubr.f32.mxu0 0.0
    %621 = vmatmul.mubr.f32.gmra.mxu0 %v551
    %v622 = vpop.f32.mrf.mxu0
    %v623 = vadd.f32 0.0, %v622
    %v624 = vpop.f32.mrf.mxu0
    %625 = vmatprep.mubr.f32.mxu0 0.0
    %626 = vmatmul.mubr.f32.gmra.mxu0 %v554
    %v627 = vpop.f32.mrf.mxu0
    %v628 = vadd.f32 0.0, %v627
    %v629 = vpop.f32.mrf.mxu0
    %630 = vdwg.mxu0
    %v632 = vsel %vm82, %v298, 0
    %v635 = vsel %vm82, %v299, 0
    %637 = vmatprep.subr.mxu0 0.0
    %638 = vmatpush1.msra.mxu0 0.0
    %639 = vmatprep.subr.mxu0 0.0
    %640 = vmatpush1.msra.mxu0 0.0
    %641 = vmatprep.subr.mxu0 0.0
    %642 = vmatpush1.msra.mxu0 0.0
    %643 = vmatprep.subr.mxu0 0.0
    %644 = vmatpush1.msra.mxu0 0.0
    %645 = vmatprep.subr.mxu0 0.0
    %646 = vmatpush1.msra.mxu0 0.0
    %647 = vmatprep.subr.mxu0 0.0
    %648 = vmatpush1.msra.mxu0 0.0
    %649 = vmatprep.subr.mxu0 0.0
    %650 = vmatpush1.msra.mxu0 0.0
    %651 = vmatprep.subr.mxu0 0.0
    %652 = vmatpush1.msra.mxu0 0.0
    %653 = vmatprep.subr.mxu0 0.0
    %654 = vmatpush1.msra.mxu0 %v283
    %655 = vmatprep.subr.mxu0 0.0
    %656 = vmatpush1.msra.mxu0 %v282
    %657 = vmatprep.subr.mxu0 0.0
    %658 = vmatpush1.msra.mxu0 %v281
    %659 = vmatprep.subr.mxu0 0.0
    %660 = vmatpush1.msra.mxu0 %v280
    %661 = vmatprep.subr.mxu0 0.0
    %662 = vmatpush1.msra.mxu0 %v279
    %663 = vmatprep.subr.mxu0 0.0
    %664 = vmatpush1.msra.mxu0 %v278
    %665 = vmatprep.subr.mxu0 0.0
    %666 = vmatpush1.msra.mxu0 %v277
    %667 = vmatprep.subr.mxu0 0.0
    %668 = vmatpush1.msra.mxu0 %v276
    %669 = vmatprep.subr.mxu0 0.0
    %670 = vmatpush2.msra.mxu0 0.0
    %671 = vmatprep.subr.mxu0 0.0
    %672 = vmatpush2.msra.mxu0 0.0
    %673 = vmatprep.subr.mxu0 0.0
    %674 = vmatpush2.msra.mxu0 0.0
    %675 = vmatprep.subr.mxu0 0.0
    %676 = vmatpush2.msra.mxu0 0.0
    %677 = vmatprep.subr.mxu0 0.0
    %678 = vmatpush2.msra.mxu0 0.0
    %679 = vmatprep.subr.mxu0 0.0
    %680 = vmatpush2.msra.mxu0 0.0
    %681 = vmatprep.subr.mxu0 0.0
    %682 = vmatpush2.msra.mxu0 0.0
    %683 = vmatprep.subr.mxu0 0.0
    %684 = vmatpush2.msra.mxu0 0.0
    %685 = vmatprep.subr.mxu0 0.0
    %686 = vmatpush2.msra.mxu0 0.0
    %687 = vmatprep.subr.mxu0 0.0
    %688 = vmatpush2.msra.mxu0 0.0
    %689 = vmatprep.subr.mxu0 0.0
    %690 = vmatpush2.msra.mxu0 0.0
    %691 = vmatprep.subr.mxu0 0.0
    %692 = vmatpush2.msra.mxu0 0.0
    %693 = vmatprep.subr.mxu0 0.0
    %694 = vmatpush2.msra.mxu0 0.0
    %695 = vmatprep.subr.mxu0 0.0
    %696 = vmatpush2.msra.mxu0 0.0
    %697 = vmatprep.subr.mxu0 0.0
    %698 = vmatpush2.msra.mxu0 0.0
    %699 = vmatprep.subr.mxu0 0.0
    %700 = vmatpush2.msra.mxu0 0.0
    %701 = vmatprep.mubr.f32.mxu0 0.0
    %702 = vmatmul.mubr.f32.gmra.mxu0 %v632
    %v703 = vpop.f32.mrf.mxu0
    %v704 = vadd.f32 0.0, %v703
    %v705 = vpop.f32.mrf.mxu0
    %706 = vmatprep.mubr.f32.mxu0 0.0
    %707 = vmatmul.mubr.f32.gmra.mxu0 %v635
    %v708 = vpop.f32.mrf.mxu0
    %v709 = vadd.f32 0.0, %v708
    %v710 = vpop.f32.mrf.mxu0
    %711 = vdwg.mxu0
    %v713 = vsel %vm82, %v300, 0
    %v716 = vsel %vm82, %v301, 0
    %718 = vmatprep.subr.mxu0 0.0
    %719 = vmatpush1.msra.mxu0 0.0
    %720 = vmatprep.subr.mxu0 0.0
    %721 = vmatpush1.msra.mxu0 0.0
    %722 = vmatprep.subr.mxu0 0.0
    %723 = vmatpush1.msra.mxu0 0.0
    %724 = vmatprep.subr.mxu0 0.0
    %725 = vmatpush1.msra.mxu0 0.0
    %726 = vmatprep.subr.mxu0 0.0
    %727 = vmatpush1.msra.mxu0 0.0
    %728 = vmatprep.subr.mxu0 0.0
    %729 = vmatpush1.msra.mxu0 0.0
    %730 = vmatprep.subr.mxu0 0.0
    %731 = vmatpush1.msra.mxu0 0.0
    %732 = vmatprep.subr.mxu0 0.0
    %733 = vmatpush1.msra.mxu0 0.0
    %734 = vmatprep.subr.mxu0 0.0
    %735 = vmatpush1.msra.mxu0 %v283
    %736 = vmatprep.subr.mxu0 0.0
    %737 = vmatpush1.msra.mxu0 %v282
    %738 = vmatprep.subr.mxu0 0.0
    %739 = vmatpush1.msra.mxu0 %v281
    %740 = vmatprep.subr.mxu0 0.0
    %741 = vmatpush1.msra.mxu0 %v280
    %742 = vmatprep.subr.mxu0 0.0
    %743 = vmatpush1.msra.mxu0 %v279
    %744 = vmatprep.subr.mxu0 0.0
    %745 = vmatpush1.msra.mxu0 %v278
    %746 = vmatprep.subr.mxu0 0.0
    %747 = vmatpush1.msra.mxu0 %v277
    %748 = vmatprep.subr.mxu0 0.0
    %749 = vmatpush1.msra.mxu0 %v276
    %750 = vmatprep.subr.mxu0 0.0
    %751 = vmatpush2.msra.mxu0 0.0
    %752 = vmatprep.subr.mxu0 0.0
    %753 = vmatpush2.msra.mxu0 0.0
    %754 = vmatprep.subr.mxu0 0.0
    %755 = vmatpush2.msra.mxu0 0.0
    %756 = vmatprep.subr.mxu0 0.0
    %757 = vmatpush2.msra.mxu0 0.0
    %758 = vmatprep.subr.mxu0 0.0
    %759 = vmatpush2.msra.mxu0 0.0
    %760 = vmatprep.subr.mxu0 0.0
    %761 = vmatpush2.msra.mxu0 0.0
    %762 = vmatprep.subr.mxu0 0.0
    %763 = vmatpush2.msra.mxu0 0.0
    %764 = vmatprep.subr.mxu0 0.0
    %765 = vmatpush2.msra.mxu0 0.0
    %766 = vmatprep.subr.mxu0 0.0
    %767 = vmatpush2.msra.mxu0 0.0
    %768 = vmatprep.subr.mxu0 0.0
    %769 = vmatpush2.msra.mxu0 0.0
    %770 = vmatprep.subr.mxu0 0.0
    %771 = vmatpush2.msra.mxu0 0.0
    %772 = vmatprep.subr.mxu0 0.0
    %773 = vmatpush2.msra.mxu0 0.0
    %774 = vmatprep.subr.mxu0 0.0
    %775 = vmatpush2.msra.mxu0 0.0
    %776 = vmatprep.subr.mxu0 0.0
    %777 = vmatpush2.msra.mxu0 0.0
    %778 = vmatprep.subr.mxu0 0.0
    %779 = vmatpush2.msra.mxu0 0.0
    %780 = vmatprep.subr.mxu0 0.0
    %781 = vmatpush2.msra.mxu0 0.0
    %782 = vmatprep.mubr.f32.mxu0 0.0
    %783 = vmatmul.mubr.f32.gmra.mxu0 %v713
    %v784 = vpop.f32.mrf.mxu0
    %v785 = vadd.f32 0.0, %v784
    %v786 = vpop.f32.mrf.mxu0
    %787 = vmatprep.mubr.f32.mxu0 0.0
    %788 = vmatmul.mubr.f32.gmra.mxu0 %v716
    %v789 = vpop.f32.mrf.mxu0
    %v790 = vadd.f32 0.0, %v789
    %v791 = vpop.f32.mrf.mxu0
    %792 = vdwg.mxu0
    %v794 = vsel %vm82, %v302, 0
    %v797 = vsel %vm82, %v303, 0
    %799 = vmatprep.subr.mxu0 0.0
    %800 = vmatpush1.msra.mxu0 0.0
    %801 = vmatprep.subr.mxu0 0.0
    %802 = vmatpush1.msra.mxu0 0.0
    %803 = vmatprep.subr.mxu0 0.0
    %804 = vmatpush1.msra.mxu0 0.0
    %805 = vmatprep.subr.mxu0 0.0
    %806 = vmatpush1.msra.mxu0 0.0
    %807 = vmatprep.subr.mxu0 0.0
    %808 = vmatpush1.msra.mxu0 0.0
    %809 = vmatprep.subr.mxu0 0.0
    %810 = vmatpush1.msra.mxu0 0.0
    %811 = vmatprep.subr.mxu0 0.0
    %812 = vmatpush1.msra.mxu0 0.0
    %813 = vmatprep.subr.mxu0 0.0
    %814 = vmatpush1.msra.mxu0 0.0
    %815 = vmatprep.subr.mxu0 0.0
    %816 = vmatpush1.msra.mxu0 %v283
    %817 = vmatprep.subr.mxu0 0.0
    %818 = vmatpush1.msra.mxu0 %v282
    %819 = vmatprep.subr.mxu0 0.0
    %820 = vmatpush1.msra.mxu0 %v281
    %821 = vmatprep.subr.mxu0 0.0
    %822 = vmatpush1.msra.mxu0 %v280
    %823 = vmatprep.subr.mxu0 0.0
    %824 = vmatpush1.msra.mxu0 %v279
    %825 = vmatprep.subr.mxu0 0.0
    %826 = vmatpush1.msra.mxu0 %v278
    %827 = vmatprep.subr.mxu0 0.0
    %828 = vmatpush1.msra.mxu0 %v277
    %829 = vmatprep.subr.mxu0 0.0
    %830 = vmatpush1.msra.mxu0 %v276
    %831 = vmatprep.subr.mxu0 0.0
    %832 = vmatpush2.msra.mxu0 0.0
    %833 = vmatprep.subr.mxu0 0.0
    %834 = vmatpush2.msra.mxu0 0.0
    %835 = vmatprep.subr.mxu0 0.0
    %836 = vmatpush2.msra.mxu0 0.0
    %837 = vmatprep.subr.mxu0 0.0
    %838 = vmatpush2.msra.mxu0 0.0
    %839 = vmatprep.subr.mxu0 0.0
    %840 = vmatpush2.msra.mxu0 0.0
    %841 = vmatprep.subr.mxu0 0.0
    %842 = vmatpush2.msra.mxu0 0.0
    %843 = vmatprep.subr.mxu0 0.0
    %844 = vmatpush2.msra.mxu0 0.0
    %845 = vmatprep.subr.mxu0 0.0
    %846 = vmatpush2.msra.mxu0 0.0
    %847 = vmatprep.subr.mxu0 0.0
    %848 = vmatpush2.msra.mxu0 0.0
    %849 = vmatprep.subr.mxu0 0.0
    %850 = vmatpush2.msra.mxu0 0.0
    %851 = vmatprep.subr.mxu0 0.0
    %852 = vmatpush2.msra.mxu0 0.0
    %853 = vmatprep.subr.mxu0 0.0
    %854 = vmatpush2.msra.mxu0 0.0
    %855 = vmatprep.subr.mxu0 0.0
    %856 = vmatpush2.msra.mxu0 0.0
    %857 = vmatprep.subr.mxu0 0.0
    %858 = vmatpush2.msra.mxu0 0.0
    %859 = vmatprep.subr.mxu0 0.0
    %860 = vmatpush2.msra.mxu0 0.0
    %861 = vmatprep.subr.mxu0 0.0
    %862 = vmatpush2.msra.mxu0 0.0
    %863 = vmatprep.mubr.f32.mxu0 0.0
    %864 = vmatmul.mubr.f32.gmra.mxu0 %v794
    %v865 = vpop.f32.mrf.mxu0
    %v866 = vadd.f32 0.0, %v865
    %v867 = vpop.f32.mrf.mxu0
    %868 = vmatprep.mubr.f32.mxu0 0.0
    %869 = vmatmul.mubr.f32.gmra.mxu0 %v797
    %v870 = vpop.f32.mrf.mxu0
    %v871 = vadd.f32 0.0, %v870
    %v872 = vpop.f32.mrf.mxu0
    %873 = vdwg.mxu0
    %v875 = vsel %vm82, %v304, 0
    %v878 = vsel %vm82, %v305, 0
    %880 = vmatprep.subr.mxu0 0.0
    %881 = vmatpush1.msra.mxu0 0.0
    %882 = vmatprep.subr.mxu0 0.0
    %883 = vmatpush1.msra.mxu0 0.0
    %884 = vmatprep.subr.mxu0 0.0
    %885 = vmatpush1.msra.mxu0 0.0
    %886 = vmatprep.subr.mxu0 0.0
    %887 = vmatpush1.msra.mxu0 0.0
    %888 = vmatprep.subr.mxu0 0.0
    %889 = vmatpush1.msra.mxu0 0.0
    %890 = vmatprep.subr.mxu0 0.0
    %891 = vmatpush1.msra.mxu0 0.0
    %892 = vmatprep.subr.mxu0 0.0
    %893 = vmatpush1.msra.mxu0 0.0
    %894 = vmatprep.subr.mxu0 0.0
    %895 = vmatpush1.msra.mxu0 0.0
    %896 = vmatprep.subr.mxu0 0.0
    %897 = vmatpush1.msra.mxu0 %v283
    %898 = vmatprep.subr.mxu0 0.0
    %899 = vmatpush1.msra.mxu0 %v282
    %900 = vmatprep.subr.mxu0 0.0
    %901 = vmatpush1.msra.mxu0 %v281
    %902 = vmatprep.subr.mxu0 0.0
    %903 = vmatpush1.msra.mxu0 %v280
    %904 = vmatprep.subr.mxu0 0.0
    %905 = vmatpush1.msra.mxu0 %v279
    %906 = vmatprep.subr.mxu0 0.0
    %907 = vmatpush1.msra.mxu0 %v278
    %908 = vmatprep.subr.mxu0 0.0
    %909 = vmatpush1.msra.mxu0 %v277
    %910 = vmatprep.subr.mxu0 0.0
    %911 = vmatpush1.msra.mxu0 %v276
    %912 = vmatprep.subr.mxu0 0.0
    %913 = vmatpush2.msra.mxu0 0.0
    %914 = vmatprep.subr.mxu0 0.0
    %915 = vmatpush2.msra.mxu0 0.0
    %916 = vmatprep.subr.mxu0 0.0
    %917 = vmatpush2.msra.mxu0 0.0
    %918 = vmatprep.subr.mxu0 0.0
    %919 = vmatpush2.msra.mxu0 0.0
    %920 = vmatprep.subr.mxu0 0.0
    %921 = vmatpush2.msra.mxu0 0.0
    %922 = vmatprep.subr.mxu0 0.0
    %923 = vmatpush2.msra.mxu0 0.0
    %924 = vmatprep.subr.mxu0 0.0
    %925 = vmatpush2.msra.mxu0 0.0
    %926 = vmatprep.subr.mxu0 0.0
    %927 = vmatpush2.msra.mxu0 0.0
    %928 = vmatprep.subr.mxu0 0.0
    %929 = vmatpush2.msra.mxu0 0.0
    %930 = vmatprep.subr.mxu0 0.0
    %931 = vmatpush2.msra.mxu0 0.0
    %932 = vmatprep.subr.mxu0 0.0
    %933 = vmatpush2.msra.mxu0 0.0
    %934 = vmatprep.subr.mxu0 0.0
    %935 = vmatpush2.msra.mxu0 0.0
    %936 = vmatprep.subr.mxu0 0.0
    %937 = vmatpush2.msra.mxu0 0.0
    %938 = vmatprep.subr.mxu0 0.0
    %939 = vmatpush2.msra.mxu0 0.0
    %940 = vmatprep.subr.mxu0 0.0
    %941 = vmatpush2.msra.mxu0 0.0
    %942 = vmatprep.subr.mxu0 0.0
    %943 = vmatpush2.msra.mxu0 0.0
    %944 = vmatprep.mubr.f32.mxu0 0.0
    %945 = vmatmul.mubr.f32.gmra.mxu0 %v875
    %v946 = vpop.f32.mrf.mxu0
    %v947 = vadd.f32 0.0, %v946
    %v948 = vpop.f32.mrf.mxu0
    %949 = vmatprep.mubr.f32.mxu0 0.0
    %950 = vmatmul.mubr.f32.gmra.mxu0 %v878
    %v951 = vpop.f32.mrf.mxu0
    %v952 = vadd.f32 0.0, %v951
    %v953 = vpop.f32.mrf.mxu0
    %954 = vdwg.mxu0
    %v956 = vsel %vm82, %v306, 0
    %v959 = vsel %vm82, %v307, 0
    %961 = vmatprep.subr.mxu0 0.0
    %962 = vmatpush1.msra.mxu0 0.0
    %963 = vmatprep.subr.mxu0 0.0
    %964 = vmatpush1.msra.mxu0 0.0
    %965 = vmatprep.subr.mxu0 0.0
    %966 = vmatpush1.msra.mxu0 0.0
    %967 = vmatprep.subr.mxu0 0.0
    %968 = vmatpush1.msra.mxu0 0.0
    %969 = vmatprep.subr.mxu0 0.0
    %970 = vmatpush1.msra.mxu0 0.0
    %971 = vmatprep.subr.mxu0 0.0
    %972 = vmatpush1.msra.mxu0 0.0
    %973 = vmatprep.subr.mxu0 0.0
    %974 = vmatpush1.msra.mxu0 0.0
    %975 = vmatprep.subr.mxu0 0.0
    %976 = vmatpush1.msra.mxu0 0.0
    %977 = vmatprep.subr.mxu0 0.0
    %978 = vmatpush1.msra.mxu0 %v283
    %979 = vmatprep.subr.mxu0 0.0
    %980 = vmatpush1.msra.mxu0 %v282
    %981 = vmatprep.subr.mxu0 0.0
    %982 = vmatpush1.msra.mxu0 %v281
    %983 = vmatprep.subr.mxu0 0.0
    %984 = vmatpush1.msra.mxu0 %v280
    %985 = vmatprep.subr.mxu0 0.0
    %986 = vmatpush1.msra.mxu0 %v279
    %987 = vmatprep.subr.mxu0 0.0
    %988 = vmatpush1.msra.mxu0 %v278
    %989 = vmatprep.subr.mxu0 0.0
    %990 = vmatpush1.msra.mxu0 %v277
    %991 = vmatprep.subr.mxu0 0.0
    %992 = vmatpush1.msra.mxu0 %v276
    %993 = vmatprep.subr.mxu0 0.0
    %994 = vmatpush2.msra.mxu0 0.0
    %995 = vmatprep.subr.mxu0 0.0
    %996 = vmatpush2.msra.mxu0 0.0
    %997 = vmatprep.subr.mxu0 0.0
    %998 = vmatpush2.msra.mxu0 0.0
    %999 = vmatprep.subr.mxu0 0.0
    %1000 = vmatpush2.msra.mxu0 0.0
    %1001 = vmatprep.subr.mxu0 0.0
    %1002 = vmatpush2.msra.mxu0 0.0
    %1003 = vmatprep.subr.mxu0 0.0
    %1004 = vmatpush2.msra.mxu0 0.0
    %1005 = vmatprep.subr.mxu0 0.0
    %1006 = vmatpush2.msra.mxu0 0.0
    %1007 = vmatprep.subr.mxu0 0.0
    %1008 = vmatpush2.msra.mxu0 0.0
    %1009 = vmatprep.subr.mxu0 0.0
    %1010 = vmatpush2.msra.mxu0 0.0
    %1011 = vmatprep.subr.mxu0 0.0
    %1012 = vmatpush2.msra.mxu0 0.0
    %1013 = vmatprep.subr.mxu0 0.0
    %1014 = vmatpush2.msra.mxu0 0.0
    %1015 = vmatprep.subr.mxu0 0.0
    %1016 = vmatpush2.msra.mxu0 0.0
    %1017 = vmatprep.subr.mxu0 0.0
    %1018 = vmatpush2.msra.mxu0 0.0
    %1019 = vmatprep.subr.mxu0 0.0
    %1020 = vmatpush2.msra.mxu0 0.0
    %1021 = vmatprep.subr.mxu0 0.0
    %1022 = vmatpush2.msra.mxu0 0.0
    %1023 = vmatprep.subr.mxu0 0.0
    %1024 = vmatpush2.msra.mxu0 0.0
    %1025 = vmatprep.mubr.f32.mxu0 0.0
    %1026 = vmatmul.mubr.f32.gmra.mxu0 %v956
    %v1027 = vpop.f32.mrf.mxu0
    %v1028 = vadd.f32 0.0, %v1027
    %v1029 = vpop.f32.mrf.mxu0
    %1030 = vmatprep.mubr.f32.mxu0 0.0
    %1031 = vmatmul.mubr.f32.gmra.mxu0 %v959
    %v1032 = vpop.f32.mrf.mxu0
    %v1033 = vadd.f32 0.0, %v1032
    %v1034 = vpop.f32.mrf.mxu0
    %1035 = vdwg.mxu0
    %v1037 = vsel %vm82, %v308, 0
    %v1040 = vsel %vm82, %v309, 0
    %1042 = vmatprep.subr.mxu0 0.0
    %1043 = vmatpush1.msra.mxu0 0.0
    %1044 = vmatprep.subr.mxu0 0.0
    %1045 = vmatpush1.msra.mxu0 0.0
    %1046 = vmatprep.subr.mxu0 0.0
    %1047 = vmatpush1.msra.mxu0 0.0
    %1048 = vmatprep.subr.mxu0 0.0
    %1049 = vmatpush1.msra.mxu0 0.0
    %1050 = vmatprep.subr.mxu0 0.0
    %1051 = vmatpush1.msra.mxu0 0.0
    %1052 = vmatprep.subr.mxu0 0.0
    %1053 = vmatpush1.msra.mxu0 0.0
    %1054 = vmatprep.subr.mxu0 0.0
    %1055 = vmatpush1.msra.mxu0 0.0
    %1056 = vmatprep.subr.mxu0 0.0
    %1057 = vmatpush1.msra.mxu0 0.0
    %1058 = vmatprep.subr.mxu0 0.0
    %1059 = vmatpush1.msra.mxu0 %v283
    %1060 = vmatprep.subr.mxu0 0.0
    %1061 = vmatpush1.msra.mxu0 %v282
    %1062 = vmatprep.subr.mxu0 0.0
    %1063 = vmatpush1.msra.mxu0 %v281
    %1064 = vmatprep.subr.mxu0 0.0
    %1065 = vmatpush1.msra.mxu0 %v280
    %1066 = vmatprep.subr.mxu0 0.0
    %1067 = vmatpush1.msra.mxu0 %v279
    %1068 = vmatprep.subr.mxu0 0.0
    %1069 = vmatpush1.msra.mxu0 %v278
    %1070 = vmatprep.subr.mxu0 0.0
    %1071 = vmatpush1.msra.mxu0 %v277
    %1072 = vmatprep.subr.mxu0 0.0
    %1073 = vmatpush1.msra.mxu0 %v276
    %1074 = vmatprep.subr.mxu0 0.0
    %1075 = vmatpush2.msra.mxu0 0.0
    %1076 = vmatprep.subr.mxu0 0.0
    %1077 = vmatpush2.msra.mxu0 0.0
    %1078 = vmatprep.subr.mxu0 0.0
    %1079 = vmatpush2.msra.mxu0 0.0
    %1080 = vmatprep.subr.mxu0 0.0
    %1081 = vmatpush2.msra.mxu0 0.0
    %1082 = vmatprep.subr.mxu0 0.0
    %1083 = vmatpush2.msra.mxu0 0.0
    %1084 = vmatprep.subr.mxu0 0.0
    %1085 = vmatpush2.msra.mxu0 0.0
    %1086 = vmatprep.subr.mxu0 0.0
    %1087 = vmatpush2.msra.mxu0 0.0
    %1088 = vmatprep.subr.mxu0 0.0
    %1089 = vmatpush2.msra.mxu0 0.0
    %1090 = vmatprep.subr.mxu0 0.0
    %1091 = vmatpush2.msra.mxu0 0.0
    %1092 = vmatprep.subr.mxu0 0.0
    %1093 = vmatpush2.msra.mxu0 0.0
    %1094 = vmatprep.subr.mxu0 0.0
    %1095 = vmatpush2.msra.mxu0 0.0
    %1096 = vmatprep.subr.mxu0 0.0
    %1097 = vmatpush2.msra.mxu0 0.0
    %1098 = vmatprep.subr.mxu0 0.0
    %1099 = vmatpush2.msra.mxu0 0.0
    %1100 = vmatprep.subr.mxu0 0.0
    %1101 = vmatpush2.msra.mxu0 0.0
    %1102 = vmatprep.subr.mxu0 0.0
    %1103 = vmatpush2.msra.mxu0 0.0
    %1104 = vmatprep.subr.mxu0 0.0
    %1105 = vmatpush2.msra.mxu0 0.0
    %1106 = vmatprep.mubr.f32.mxu0 0.0
    %1107 = vmatmul.mubr.f32.gmra.mxu0 %v1037
    %v1108 = vpop.f32.mrf.mxu0
    %v1109 = vadd.f32 0.0, %v1108
    %v1110 = vpop.f32.mrf.mxu0
    %1111 = vmatprep.mubr.f32.mxu0 0.0
    %1112 = vmatmul.mubr.f32.gmra.mxu0 %v1040
    %v1113 = vpop.f32.mrf.mxu0
    %v1114 = vadd.f32 0.0, %v1113
    %v1115 = vpop.f32.mrf.mxu0
    %1116 = vdwg.mxu0
    %v1118 = vsel %vm82, %v310, 0
    %v1121 = vsel %vm82, %v311, 0
    %1123 = vmatprep.subr.mxu0 0.0
    %1124 = vmatpush1.msra.mxu0 0.0
    %1125 = vmatprep.subr.mxu0 0.0
    %1126 = vmatpush1.msra.mxu0 0.0
    %1127 = vmatprep.subr.mxu0 0.0
    %1128 = vmatpush1.msra.mxu0 0.0
    %1129 = vmatprep.subr.mxu0 0.0
    %1130 = vmatpush1.msra.mxu0 0.0
    %1131 = vmatprep.subr.mxu0 0.0
    %1132 = vmatpush1.msra.mxu0 0.0
    %1133 = vmatprep.subr.mxu0 0.0
    %1134 = vmatpush1.msra.mxu0 0.0
    %1135 = vmatprep.subr.mxu0 0.0
    %1136 = vmatpush1.msra.mxu0 0.0
    %1137 = vmatprep.subr.mxu0 0.0
    %1138 = vmatpush1.msra.mxu0 0.0
    %1139 = vmatprep.subr.mxu0 0.0
    %1140 = vmatpush1.msra.mxu0 %v283
    %1141 = vmatprep.subr.mxu0 0.0
    %1142 = vmatpush1.msra.mxu0 %v282
    %1143 = vmatprep.subr.mxu0 0.0
    %1144 = vmatpush1.msra.mxu0 %v281
    %1145 = vmatprep.subr.mxu0 0.0
    %1146 = vmatpush1.msra.mxu0 %v280
    %1147 = vmatprep.subr.mxu0 0.0
    %1148 = vmatpush1.msra.mxu0 %v279
    %1149 = vmatprep.subr.mxu0 0.0
    %1150 = vmatpush1.msra.mxu0 %v278
    %1151 = vmatprep.subr.mxu0 0.0
    %1152 = vmatpush1.msra.mxu0 %v277
    %1153 = vmatprep.subr.mxu0 0.0
    %1154 = vmatpush1.msra.mxu0 %v276
    %1155 = vmatprep.subr.mxu0 0.0
    %1156 = vmatpush2.msra.mxu0 0.0
    %1157 = vmatprep.subr.mxu0 0.0
    %1158 = vmatpush2.msra.mxu0 0.0
    %1159 = vmatprep.subr.mxu0 0.0
    %1160 = vmatpush2.msra.mxu0 0.0
    %1161 = vmatprep.subr.mxu0 0.0
    %1162 = vmatpush2.msra.mxu0 0.0
    %1163 = vmatprep.subr.mxu0 0.0
    %1164 = vmatpush2.msra.mxu0 0.0
    %1165 = vmatprep.subr.mxu0 0.0
    %1166 = vmatpush2.msra.mxu0 0.0
    %1167 = vmatprep.subr.mxu0 0.0
    %1168 = vmatpush2.msra.mxu0 0.0
    %1169 = vmatprep.subr.mxu0 0.0
    %1170 = vmatpush2.msra.mxu0 0.0
    %1171 = vmatprep.subr.mxu0 0.0
    %1172 = vmatpush2.msra.mxu0 0.0
    %1173 = vmatprep.subr.mxu0 0.0
    %1174 = vmatpush2.msra.mxu0 0.0
    %1175 = vmatprep.subr.mxu0 0.0
    %1176 = vmatpush2.msra.mxu0 0.0
    %1177 = vmatprep.subr.mxu0 0.0
    %1178 = vmatpush2.msra.mxu0 0.0
    %1179 = vmatprep.subr.mxu0 0.0
    %1180 = vmatpush2.msra.mxu0 0.0
    %1181 = vmatprep.subr.mxu0 0.0
    %1182 = vmatpush2.msra.mxu0 0.0
    %1183 = vmatprep.subr.mxu0 0.0
    %1184 = vmatpush2.msra.mxu0 0.0
    %1185 = vmatprep.subr.mxu0 0.0
    %1186 = vmatpush2.msra.mxu0 0.0
    %1187 = vmatprep.mubr.f32.mxu0 0.0
    %1188 = vmatmul.mubr.f32.gmra.mxu0 %v1118
    %v1189 = vpop.f32.mrf.mxu0
    %v1190 = vadd.f32 0.0, %v1189
    %v1191 = vpop.f32.mrf.mxu0
    %1192 = vmatprep.mubr.f32.mxu0 0.0
    %1193 = vmatmul.mubr.f32.gmra.mxu0 %v1121
    %v1194 = vpop.f32.mrf.mxu0
    %v1195 = vadd.f32 0.0, %v1194
    %v1196 = vpop.f32.mrf.mxu0
    %1197 = vdwg.mxu0
    %v1199 = vsel %vm82, %v312, 0
    %v1202 = vsel %vm82, %v313, 0
    %1204 = vmatprep.subr.mxu0 0.0
    %1205 = vmatpush1.msra.mxu0 0.0
    %1206 = vmatprep.subr.mxu0 0.0
    %1207 = vmatpush1.msra.mxu0 0.0
    %1208 = vmatprep.subr.mxu0 0.0
    %1209 = vmatpush1.msra.mxu0 0.0
    %1210 = vmatprep.subr.mxu0 0.0
    %1211 = vmatpush1.msra.mxu0 0.0
    %1212 = vmatprep.subr.mxu0 0.0
    %1213 = vmatpush1.msra.mxu0 0.0
    %1214 = vmatprep.subr.mxu0 0.0
    %1215 = vmatpush1.msra.mxu0 0.0
    %1216 = vmatprep.subr.mxu0 0.0
    %1217 = vmatpush1.msra.mxu0 0.0
    %1218 = vmatprep.subr.mxu0 0.0
    %1219 = vmatpush1.msra.mxu0 0.0
    %1220 = vmatprep.subr.mxu0 0.0
    %1221 = vmatpush1.msra.mxu0 %v283
    %1222 = vmatprep.subr.mxu0 0.0
    %1223 = vmatpush1.msra.mxu0 %v282
    %1224 = vmatprep.subr.mxu0 0.0
    %1225 = vmatpush1.msra.mxu0 %v281
    %1226 = vmatprep.subr.mxu0 0.0
    %1227 = vmatpush1.msra.mxu0 %v280
    %1228 = vmatprep.subr.mxu0 0.0
    %1229 = vmatpush1.msra.mxu0 %v279
    %1230 = vmatprep.subr.mxu0 0.0
    %1231 = vmatpush1.msra.mxu0 %v278
    %1232 = vmatprep.subr.mxu0 0.0
    %1233 = vmatpush1.msra.mxu0 %v277
    %1234 = vmatprep.subr.mxu0 0.0
    %1235 = vmatpush1.msra.mxu0 %v276
    %1236 = vmatprep.subr.mxu0 0.0
    %1237 = vmatpush2.msra.mxu0 0.0
    %1238 = vmatprep.subr.mxu0 0.0
    %1239 = vmatpush2.msra.mxu0 0.0
    %1240 = vmatprep.subr.mxu0 0.0
    %1241 = vmatpush2.msra.mxu0 0.0
    %1242 = vmatprep.subr.mxu0 0.0
    %1243 = vmatpush2.msra.mxu0 0.0
    %1244 = vmatprep.subr.mxu0 0.0
    %1245 = vmatpush2.msra.mxu0 0.0
    %1246 = vmatprep.subr.mxu0 0.0
    %1247 = vmatpush2.msra.mxu0 0.0
    %1248 = vmatprep.subr.mxu0 0.0
    %1249 = vmatpush2.msra.mxu0 0.0
    %1250 = vmatprep.subr.mxu0 0.0
    %1251 = vmatpush2.msra.mxu0 0.0
    %1252 = vmatprep.subr.mxu0 0.0
    %1253 = vmatpush2.msra.mxu0 0.0
    %1254 = vmatprep.subr.mxu0 0.0
    %1255 = vmatpush2.msra.mxu0 0.0
    %1256 = vmatprep.subr.mxu0 0.0
    %1257 = vmatpush2.msra.mxu0 0.0
    %1258 = vmatprep.subr.mxu0 0.0
    %1259 = vmatpush2.msra.mxu0 0.0
    %1260 = vmatprep.subr.mxu0 0.0
    %1261 = vmatpush2.msra.mxu0 0.0
    %1262 = vmatprep.subr.mxu0 0.0
    %1263 = vmatpush2.msra.mxu0 0.0
    %1264 = vmatprep.subr.mxu0 0.0
    %1265 = vmatpush2.msra.mxu0 0.0
    %1266 = vmatprep.subr.mxu0 0.0
    %1267 = vmatpush2.msra.mxu0 0.0
    %1268 = vmatprep.mubr.f32.mxu0 0.0
    %1269 = vmatmul.mubr.f32.gmra.mxu0 %v1199
    %v1270 = vpop.f32.mrf.mxu0
    %v1271 = vadd.f32 0.0, %v1270
    %v1272 = vpop.f32.mrf.mxu0
    %1273 = vmatprep.mubr.f32.mxu0 0.0
    %1274 = vmatmul.mubr.f32.gmra.mxu0 %v1202
    %v1275 = vpop.f32.mrf.mxu0
    %v1276 = vadd.f32 0.0, %v1275
    %v1277 = vpop.f32.mrf.mxu0
    %1278 = vdwg.mxu0
    %v1280 = vsel %vm82, %v314, 0
    %v1283 = vsel %vm82, %v315, 0
    %1285 = vmatprep.subr.mxu0 0.0
    %1286 = vmatpush1.msra.mxu0 0.0
    %1287 = vmatprep.subr.mxu0 0.0
    %1288 = vmatpush1.msra.mxu0 0.0
    %1289 = vmatprep.subr.mxu0 0.0
    %1290 = vmatpush1.msra.mxu0 0.0
    %1291 = vmatprep.subr.mxu0 0.0
    %1292 = vmatpush1.msra.mxu0 0.0
    %1293 = vmatprep.subr.mxu0 0.0
    %1294 = vmatpush1.msra.mxu0 0.0
    %1295 = vmatprep.subr.mxu0 0.0
    %1296 = vmatpush1.msra.mxu0 0.0
    %1297 = vmatprep.subr.mxu0 0.0
    %1298 = vmatpush1.msra.mxu0 0.0
    %1299 = vmatprep.subr.mxu0 0.0
    %1300 = vmatpush1.msra.mxu0 0.0
    %1301 = vmatprep.subr.mxu0 0.0
    %1302 = vmatpush1.msra.mxu0 %v283
    %1303 = vmatprep.subr.mxu0 0.0
    %1304 = vmatpush1.msra.mxu0 %v282
    %1305 = vmatprep.subr.mxu0 0.0
    %1306 = vmatpush1.msra.mxu0 %v281
    %1307 = vmatprep.subr.mxu0 0.0
    %1308 = vmatpush1.msra.mxu0 %v280
    %1309 = vmatprep.subr.mxu0 0.0
    %1310 = vmatpush1.msra.mxu0 %v279
    %1311 = vmatprep.subr.mxu0 0.0
    %1312 = vmatpush1.msra.mxu0 %v278
    %1313 = vmatprep.subr.mxu0 0.0
    %1314 = vmatpush1.msra.mxu0 %v277
    %1315 = vmatprep.subr.mxu0 0.0
    %1316 = vmatpush1.msra.mxu0 %v276
    %1317 = vmatprep.subr.mxu0 0.0
    %1318 = vmatpush2.msra.mxu0 0.0
    %1319 = vmatprep.subr.mxu0 0.0
    %1320 = vmatpush2.msra.mxu0 0.0
    %1321 = vmatprep.subr.mxu0 0.0
    %1322 = vmatpush2.msra.mxu0 0.0
    %1323 = vmatprep.subr.mxu0 0.0
    %1324 = vmatpush2.msra.mxu0 0.0
    %1325 = vmatprep.subr.mxu0 0.0
    %1326 = vmatpush2.msra.mxu0 0.0
    %1327 = vmatprep.subr.mxu0 0.0
    %1328 = vmatpush2.msra.mxu0 0.0
    %1329 = vmatprep.subr.mxu0 0.0
    %1330 = vmatpush2.msra.mxu0 0.0
    %1331 = vmatprep.subr.mxu0 0.0
    %1332 = vmatpush2.msra.mxu0 0.0
    %1333 = vmatprep.subr.mxu0 0.0
    %1334 = vmatpush2.msra.mxu0 0.0
    %1335 = vmatprep.subr.mxu0 0.0
    %1336 = vmatpush2.msra.mxu0 0.0
    %1337 = vmatprep.subr.mxu0 0.0
    %1338 = vmatpush2.msra.mxu0 0.0
    %1339 = vmatprep.subr.mxu0 0.0
    %1340 = vmatpush2.msra.mxu0 0.0
    %1341 = vmatprep.subr.mxu0 0.0
    %1342 = vmatpush2.msra.mxu0 0.0
    %1343 = vmatprep.subr.mxu0 0.0
    %1344 = vmatpush2.msra.mxu0 0.0
    %1345 = vmatprep.subr.mxu0 0.0
    %1346 = vmatpush2.msra.mxu0 0.0
    %1347 = vmatprep.subr.mxu0 0.0
    %1348 = vmatpush2.msra.mxu0 0.0
    %1349 = vmatprep.mubr.f32.mxu0 0.0
    %1350 = vmatmul.mubr.f32.gmra.mxu0 %v1280
    %v1351 = vpop.f32.mrf.mxu0
    %v1352 = vadd.f32 0.0, %v1351
    %v1353 = vpop.f32.mrf.mxu0
    %1354 = vmatprep.mubr.f32.mxu0 0.0
    %1355 = vmatmul.mubr.f32.gmra.mxu0 %v1283
    %v1356 = vpop.f32.mrf.mxu0
    %v1357 = vadd.f32 0.0, %v1356
    %v1358 = vpop.f32.mrf.mxu0
    %1359 = vdwg.mxu0
    %v1361 = vsel %vm82, %v316, 0
    %v1364 = vsel %vm82, %v317, 0
    %1366 = vmatprep.subr.mxu0 0.0
    %1367 = vmatpush1.msra.mxu0 0.0
    %1368 = vmatprep.subr.mxu0 0.0
    %1369 = vmatpush1.msra.mxu0 0.0
    %1370 = vmatprep.subr.mxu0 0.0
    %1371 = vmatpush1.msra.mxu0 0.0
    %1372 = vmatprep.subr.mxu0 0.0
    %1373 = vmatpush1.msra.mxu0 0.0
    %1374 = vmatprep.subr.mxu0 0.0
    %1375 = vmatpush1.msra.mxu0 0.0
    %1376 = vmatprep.subr.mxu0 0.0
    %1377 = vmatpush1.msra.mxu0 0.0
    %1378 = vmatprep.subr.mxu0 0.0
    %1379 = vmatpush1.msra.mxu0 0.0
    %1380 = vmatprep.subr.mxu0 0.0
    %1381 = vmatpush1.msra.mxu0 0.0
    %1382 = vmatprep.subr.mxu0 0.0
    %1383 = vmatpush1.msra.mxu0 %v283
    %1384 = vmatprep.subr.mxu0 0.0
    %1385 = vmatpush1.msra.mxu0 %v282
    %1386 = vmatprep.subr.mxu0 0.0
    %1387 = vmatpush1.msra.mxu0 %v281
    %1388 = vmatprep.subr.mxu0 0.0
    %1389 = vmatpush1.msra.mxu0 %v280
    %1390 = vmatprep.subr.mxu0 0.0
    %1391 = vmatpush1.msra.mxu0 %v279
    %1392 = vmatprep.subr.mxu0 0.0
    %1393 = vmatpush1.msra.mxu0 %v278
    %1394 = vmatprep.subr.mxu0 0.0
    %1395 = vmatpush1.msra.mxu0 %v277
    %1396 = vmatprep.subr.mxu0 0.0
    %1397 = vmatpush1.msra.mxu0 %v276
    %1398 = vmatprep.subr.mxu0 0.0
    %1399 = vmatpush2.msra.mxu0 0.0
    %1400 = vmatprep.subr.mxu0 0.0
    %1401 = vmatpush2.msra.mxu0 0.0
    %1402 = vmatprep.subr.mxu0 0.0
    %1403 = vmatpush2.msra.mxu0 0.0
    %1404 = vmatprep.subr.mxu0 0.0
    %1405 = vmatpush2.msra.mxu0 0.0
    %1406 = vmatprep.subr.mxu0 0.0
    %1407 = vmatpush2.msra.mxu0 0.0
    %1408 = vmatprep.subr.mxu0 0.0
    %1409 = vmatpush2.msra.mxu0 0.0
    %1410 = vmatprep.subr.mxu0 0.0
    %1411 = vmatpush2.msra.mxu0 0.0
    %1412 = vmatprep.subr.mxu0 0.0
    %1413 = vmatpush2.msra.mxu0 0.0
    %1414 = vmatprep.subr.mxu0 0.0
    %1415 = vmatpush2.msra.mxu0 0.0
    %1416 = vmatprep.subr.mxu0 0.0
    %1417 = vmatpush2.msra.mxu0 0.0
    %1418 = vmatprep.subr.mxu0 0.0
    %1419 = vmatpush2.msra.mxu0 0.0
    %1420 = vmatprep.subr.mxu0 0.0
    %1421 = vmatpush2.msra.mxu0 0.0
    %1422 = vmatprep.subr.mxu0 0.0
    %1423 = vmatpush2.msra.mxu0 0.0
    %1424 = vmatprep.subr.mxu0 0.0
    %1425 = vmatpush2.msra.mxu0 0.0
    %1426 = vmatprep.subr.mxu0 0.0
    %1427 = vmatpush2.msra.mxu0 0.0
    %1428 = vmatprep.subr.mxu0 0.0
    %1429 = vmatpush2.msra.mxu0 0.0
    %1430 = vmatprep.mubr.f32.mxu0 0.0
    %1431 = vmatmul.mubr.f32.gmra.mxu0 %v1361
    %v1432 = vpop.f32.mrf.mxu0
    %v1433 = vadd.f32 0.0, %v1432
    %v1434 = vpop.f32.mrf.mxu0
    %1435 = vmatprep.mubr.f32.mxu0 0.0
    %1436 = vmatmul.mubr.f32.gmra.mxu0 %v1364
    %v1437 = vpop.f32.mrf.mxu0
    %v1438 = vadd.f32 0.0, %v1437
    %v1439 = vpop.f32.mrf.mxu0
    %1440 = vdwg.mxu0
    %v1442 = vsel %vm82, %v318, 0
    %v1445 = vsel %vm82, %v319, 0
    %1447 = vmatprep.subr.mxu0 0.0
    %1448 = vmatpush1.msra.mxu0 0.0
    %1449 = vmatprep.subr.mxu0 0.0
    %1450 = vmatpush1.msra.mxu0 0.0
    %1451 = vmatprep.subr.mxu0 0.0
    %1452 = vmatpush1.msra.mxu0 0.0
    %1453 = vmatprep.subr.mxu0 0.0
    %1454 = vmatpush1.msra.mxu0 0.0
    %1455 = vmatprep.subr.mxu0 0.0
    %1456 = vmatpush1.msra.mxu0 0.0
    %1457 = vmatprep.subr.mxu0 0.0
    %1458 = vmatpush1.msra.mxu0 0.0
    %1459 = vmatprep.subr.mxu0 0.0
    %1460 = vmatpush1.msra.mxu0 0.0
    %1461 = vmatprep.subr.mxu0 0.0
    %1462 = vmatpush1.msra.mxu0 0.0
    %1463 = vmatprep.subr.mxu0 0.0
    %1464 = vmatpush1.msra.mxu0 %v283
    %1465 = vmatprep.subr.mxu0 0.0
    %1466 = vmatpush1.msra.mxu0 %v282
    %1467 = vmatprep.subr.mxu0 0.0
    %1468 = vmatpush1.msra.mxu0 %v281
    %1469 = vmatprep.subr.mxu0 0.0
    %1470 = vmatpush1.msra.mxu0 %v280
    %1471 = vmatprep.subr.mxu0 0.0
    %1472 = vmatpush1.msra.mxu0 %v279
    %1473 = vmatprep.subr.mxu0 0.0
    %1474 = vmatpush1.msra.mxu0 %v278
    %1475 = vmatprep.subr.mxu0 0.0
    %1476 = vmatpush1.msra.mxu0 %v277
    %1477 = vmatprep.subr.mxu0 0.0
    %1478 = vmatpush1.msra.mxu0 %v276
    %1479 = vmatprep.subr.mxu0 0.0
    %1480 = vmatpush2.msra.mxu0 0.0
    %1481 = vmatprep.subr.mxu0 0.0
    %1482 = vmatpush2.msra.mxu0 0.0
    %1483 = vmatprep.subr.mxu0 0.0
    %1484 = vmatpush2.msra.mxu0 0.0
    %1485 = vmatprep.subr.mxu0 0.0
    %1486 = vmatpush2.msra.mxu0 0.0
    %1487 = vmatprep.subr.mxu0 0.0
    %1488 = vmatpush2.msra.mxu0 0.0
    %1489 = vmatprep.subr.mxu0 0.0
    %1490 = vmatpush2.msra.mxu0 0.0
    %1491 = vmatprep.subr.mxu0 0.0
    %1492 = vmatpush2.msra.mxu0 0.0
    %1493 = vmatprep.subr.mxu0 0.0
    %1494 = vmatpush2.msra.mxu0 0.0
    %1495 = vmatprep.subr.mxu0 0.0
    %1496 = vmatpush2.msra.mxu0 0.0
    %1497 = vmatprep.subr.mxu0 0.0
    %1498 = vmatpush2.msra.mxu0 0.0
    %1499 = vmatprep.subr.mxu0 0.0
    %1500 = vmatpush2.msra.mxu0 0.0
    %1501 = vmatprep.subr.mxu0 0.0
    %1502 = vmatpush2.msra.mxu0 0.0
    %1503 = vmatprep.subr.mxu0 0.0
    %1504 = vmatpush2.msra.mxu0 0.0
    %1505 = vmatprep.subr.mxu0 0.0
    %1506 = vmatpush2.msra.mxu0 0.0
    %1507 = vmatprep.subr.mxu0 0.0
    %1508 = vmatpush2.msra.mxu0 0.0
    %1509 = vmatprep.subr.mxu0 0.0
    %1510 = vmatpush2.msra.mxu0 0.0
    %1511 = vmatprep.mubr.f32.mxu0 0.0
    %1512 = vmatmul.mubr.f32.gmra.mxu0 %v1442
    %v1513 = vpop.f32.mrf.mxu0
    %v1514 = vadd.f32 0.0, %v1513
    %v1515 = vpop.f32.mrf.mxu0
    %1516 = vmatprep.mubr.f32.mxu0 0.0
    %1517 = vmatmul.mubr.f32.gmra.mxu0 %v1445
    %v1518 = vpop.f32.mrf.mxu0
    %v1519 = vadd.f32 0.0, %v1518
    %v1520 = vpop.f32.mrf.mxu0
    %1521 = vdwg.mxu0
    %v1523 = vsel %vm82, %v320, 0
    %v1526 = vsel %vm82, %v321, 0
    %1528 = vmatprep.subr.mxu0 0.0
    %1529 = vmatpush1.msra.mxu0 0.0
    %1530 = vmatprep.subr.mxu0 0.0
    %1531 = vmatpush1.msra.mxu0 0.0
    %1532 = vmatprep.subr.mxu0 0.0
    %1533 = vmatpush1.msra.mxu0 0.0
    %1534 = vmatprep.subr.mxu0 0.0
    %1535 = vmatpush1.msra.mxu0 0.0
    %1536 = vmatprep.subr.mxu0 0.0
    %1537 = vmatpush1.msra.mxu0 0.0
    %1538 = vmatprep.subr.mxu0 0.0
    %1539 = vmatpush1.msra.mxu0 0.0
    %1540 = vmatprep.subr.mxu0 0.0
    %1541 = vmatpush1.msra.mxu0 0.0
    %1542 = vmatprep.subr.mxu0 0.0
    %1543 = vmatpush1.msra.mxu0 0.0
    %1544 = vmatprep.subr.mxu0 0.0
    %1545 = vmatpush1.msra.mxu0 %v283
    %1546 = vmatprep.subr.mxu0 0.0
    %1547 = vmatpush1.msra.mxu0 %v282
    %1548 = vmatprep.subr.mxu0 0.0
    %1549 = vmatpush1.msra.mxu0 %v281
    %1550 = vmatprep.subr.mxu0 0.0
    %1551 = vmatpush1.msra.mxu0 %v280
    %1552 = vmatprep.subr.mxu0 0.0
    %1553 = vmatpush1.msra.mxu0 %v279
    %1554 = vmatprep.subr.mxu0 0.0
    %1555 = vmatpush1.msra.mxu0 %v278
    %1556 = vmatprep.subr.mxu0 0.0
    %1557 = vmatpush1.msra.mxu0 %v277
    %1558 = vmatprep.subr.mxu0 0.0
    %1559 = vmatpush1.msra.mxu0 %v276
    %1560 = vmatprep.subr.mxu0 0.0
    %1561 = vmatpush2.msra.mxu0 0.0
    %1562 = vmatprep.subr.mxu0 0.0
    %1563 = vmatpush2.msra.mxu0 0.0
    %1564 = vmatprep.subr.mxu0 0.0
    %1565 = vmatpush2.msra.mxu0 0.0
    %1566 = vmatprep.subr.mxu0 0.0
    %1567 = vmatpush2.msra.mxu0 0.0
    %1568 = vmatprep.subr.mxu0 0.0
    %1569 = vmatpush2.msra.mxu0 0.0
    %1570 = vmatprep.subr.mxu0 0.0
    %1571 = vmatpush2.msra.mxu0 0.0
    %1572 = vmatprep.subr.mxu0 0.0
    %1573 = vmatpush2.msra.mxu0 0.0
    %1574 = vmatprep.subr.mxu0 0.0
    %1575 = vmatpush2.msra.mxu0 0.0
    %1576 = vmatprep.subr.mxu0 0.0
    %1577 = vmatpush2.msra.mxu0 0.0
    %1578 = vmatprep.subr.mxu0 0.0
    %1579 = vmatpush2.msra.mxu0 0.0
    %1580 = vmatprep.subr.mxu0 0.0
    %1581 = vmatpush2.msra.mxu0 0.0
    %1582 = vmatprep.subr.mxu0 0.0
    %1583 = vmatpush2.msra.mxu0 0.0
    %1584 = vmatprep.subr.mxu0 0.0
    %1585 = vmatpush2.msra.mxu0 0.0
    %1586 = vmatprep.subr.mxu0 0.0
    %1587 = vmatpush2.msra.mxu0 0.0
    %1588 = vmatprep.subr.mxu0 0.0
    %1589 = vmatpush2.msra.mxu0 0.0
    %1590 = vmatprep.subr.mxu0 0.0
    %1591 = vmatpush2.msra.mxu0 0.0
    %1592 = vmatprep.mubr.f32.mxu0 0.0
    %1593 = vmatmul.mubr.f32.gmra.mxu0 %v1523
    %v1594 = vpop.f32.mrf.mxu0
    %v1595 = vadd.f32 0.0, %v1594
    %v1596 = vpop.f32.mrf.mxu0
    %1597 = vmatprep.mubr.f32.mxu0 0.0
    %1598 = vmatmul.mubr.f32.gmra.mxu0 %v1526
    %v1599 = vpop.f32.mrf.mxu0
    %v1600 = vadd.f32 0.0, %v1599
    %v1601 = vpop.f32.mrf.mxu0
    %1602 = vdwg.mxu0
    %v1604 = vsel %vm82, %v322, 0
    %v1607 = vsel %vm82, %v323, 0
    %1609 = vmatprep.subr.mxu0 0.0
    %1610 = vmatpush1.msra.mxu0 0.0
    %1611 = vmatprep.subr.mxu0 0.0
    %1612 = vmatpush1.msra.mxu0 0.0
    %1613 = vmatprep.subr.mxu0 0.0
    %1614 = vmatpush1.msra.mxu0 0.0
    %1615 = vmatprep.subr.mxu0 0.0
    %1616 = vmatpush1.msra.mxu0 0.0
    %1617 = vmatprep.subr.mxu0 0.0
    %1618 = vmatpush1.msra.mxu0 0.0
    %1619 = vmatprep.subr.mxu0 0.0
    %1620 = vmatpush1.msra.mxu0 0.0
    %1621 = vmatprep.subr.mxu0 0.0
    %1622 = vmatpush1.msra.mxu0 0.0
    %1623 = vmatprep.subr.mxu0 0.0
    %1624 = vmatpush1.msra.mxu0 0.0
    %1625 = vmatprep.subr.mxu0 0.0
    %1626 = vmatpush1.msra.mxu0 %v283
    %1627 = vmatprep.subr.mxu0 0.0
    %1628 = vmatpush1.msra.mxu0 %v282
    %1629 = vmatprep.subr.mxu0 0.0
    %1630 = vmatpush1.msra.mxu0 %v281
    %1631 = vmatprep.subr.mxu0 0.0
    %1632 = vmatpush1.msra.mxu0 %v280
    %1633 = vmatprep.subr.mxu0 0.0
    %1634 = vmatpush1.msra.mxu0 %v279
    %1635 = vmatprep.subr.mxu0 0.0
    %1636 = vmatpush1.msra.mxu0 %v278
    %1637 = vmatprep.subr.mxu0 0.0
    %1638 = vmatpush1.msra.mxu0 %v277
    %1639 = vmatprep.subr.mxu0 0.0
    %1640 = vmatpush1.msra.mxu0 %v276
    %1641 = vmatprep.subr.mxu0 0.0
    %1642 = vmatpush2.msra.mxu0 0.0
    %1643 = vmatprep.subr.mxu0 0.0
    %1644 = vmatpush2.msra.mxu0 0.0
    %1645 = vmatprep.subr.mxu0 0.0
    %1646 = vmatpush2.msra.mxu0 0.0
    %1647 = vmatprep.subr.mxu0 0.0
    %1648 = vmatpush2.msra.mxu0 0.0
    %1649 = vmatprep.subr.mxu0 0.0
    %1650 = vmatpush2.msra.mxu0 0.0
    %1651 = vmatprep.subr.mxu0 0.0
    %1652 = vmatpush2.msra.mxu0 0.0
    %1653 = vmatprep.subr.mxu0 0.0
    %1654 = vmatpush2.msra.mxu0 0.0
    %1655 = vmatprep.subr.mxu0 0.0
    %1656 = vmatpush2.msra.mxu0 0.0
    %1657 = vmatprep.subr.mxu0 0.0
    %1658 = vmatpush2.msra.mxu0 0.0
    %1659 = vmatprep.subr.mxu0 0.0
    %1660 = vmatpush2.msra.mxu0 0.0
    %1661 = vmatprep.subr.mxu0 0.0
    %1662 = vmatpush2.msra.mxu0 0.0
    %1663 = vmatprep.subr.mxu0 0.0
    %1664 = vmatpush2.msra.mxu0 0.0
    %1665 = vmatprep.subr.mxu0 0.0
    %1666 = vmatpush2.msra.mxu0 0.0
    %1667 = vmatprep.subr.mxu0 0.0
    %1668 = vmatpush2.msra.mxu0 0.0
    %1669 = vmatprep.subr.mxu0 0.0
    %1670 = vmatpush2.msra.mxu0 0.0
    %1671 = vmatprep.subr.mxu0 0.0
    %1672 = vmatpush2.msra.mxu0 0.0
    %1673 = vmatprep.mubr.f32.mxu0 0.0
    %1674 = vmatmul.mubr.f32.gmra.mxu0 %v1604
    %v1675 = vpop.f32.mrf.mxu0
    %v1676 = vadd.f32 0.0, %v1675
    %v1677 = vpop.f32.mrf.mxu0
    %1678 = vmatprep.mubr.f32.mxu0 0.0
    %1679 = vmatmul.mubr.f32.gmra.mxu0 %v1607
    %v1680 = vpop.f32.mrf.mxu0
    %v1681 = vadd.f32 0.0, %v1680
    %v1682 = vpop.f32.mrf.mxu0
    %1683 = vdwg.mxu0
    %1684 = vmatprep.subr.mxu0 0.0
    %1685 = vmatpush1.msra.mxu0 0.0
    %1686 = vmatprep.subr.mxu0 0.0
    %1687 = vmatpush1.msra.mxu0 0.0
    %1688 = vmatprep.subr.mxu0 0.0
    %1689 = vmatpush1.msra.mxu0 0.0
    %1690 = vmatprep.subr.mxu0 0.0
    %1691 = vmatpush1.msra.mxu0 0.0
    %1692 = vmatprep.subr.mxu0 0.0
    %1693 = vmatpush1.msra.mxu0 0.0
    %1694 = vmatprep.subr.mxu0 0.0
    %1695 = vmatpush1.msra.mxu0 0.0
    %1696 = vmatprep.subr.mxu0 0.0
    %1697 = vmatpush1.msra.mxu0 0.0
    %1698 = vmatprep.subr.mxu0 0.0
    %1699 = vmatpush1.msra.mxu0 0.0
    %1700 = vmatprep.subr.mxu0 0.0
    %1701 = vmatpush1.msra.mxu0 %v291
    %1702 = vmatprep.subr.mxu0 0.0
    %1703 = vmatpush1.msra.mxu0 %v290
    %1704 = vmatprep.subr.mxu0 0.0
    %1705 = vmatpush1.msra.mxu0 %v289
    %1706 = vmatprep.subr.mxu0 0.0
    %1707 = vmatpush1.msra.mxu0 %v288
    %1708 = vmatprep.subr.mxu0 0.0
    %1709 = vmatpush1.msra.mxu0 %v287
    %1710 = vmatprep.subr.mxu0 0.0
    %1711 = vmatpush1.msra.mxu0 %v286
    %1712 = vmatprep.subr.mxu0 0.0
    %1713 = vmatpush1.msra.mxu0 %v285
    %1714 = vmatprep.subr.mxu0 0.0
    %1715 = vmatpush1.msra.mxu0 %v284
    %1716 = vmatprep.subr.mxu0 0.0
    %1717 = vmatpush2.msra.mxu0 0.0
    %1718 = vmatprep.subr.mxu0 0.0
    %1719 = vmatpush2.msra.mxu0 0.0
    %1720 = vmatprep.subr.mxu0 0.0
    %1721 = vmatpush2.msra.mxu0 0.0
    %1722 = vmatprep.subr.mxu0 0.0
    %1723 = vmatpush2.msra.mxu0 0.0
    %1724 = vmatprep.subr.mxu0 0.0
    %1725 = vmatpush2.msra.mxu0 0.0
    %1726 = vmatprep.subr.mxu0 0.0
    %1727 = vmatpush2.msra.mxu0 0.0
    %1728 = vmatprep.subr.mxu0 0.0
    %1729 = vmatpush2.msra.mxu0 0.0
    %1730 = vmatprep.subr.mxu0 0.0
    %1731 = vmatpush2.msra.mxu0 0.0
    %1732 = vmatprep.subr.mxu0 0.0
    %1733 = vmatpush2.msra.mxu0 0.0
    %1734 = vmatprep.subr.mxu0 0.0
    %1735 = vmatpush2.msra.mxu0 0.0
    %1736 = vmatprep.subr.mxu0 0.0
    %1737 = vmatpush2.msra.mxu0 0.0
    %1738 = vmatprep.subr.mxu0 0.0
    %1739 = vmatpush2.msra.mxu0 0.0
    %1740 = vmatprep.subr.mxu0 0.0
    %1741 = vmatpush2.msra.mxu0 0.0
    %1742 = vmatprep.subr.mxu0 0.0
    %1743 = vmatpush2.msra.mxu0 0.0
    %1744 = vmatprep.subr.mxu0 0.0
    %1745 = vmatpush2.msra.mxu0 0.0
    %1746 = vmatprep.subr.mxu0 0.0
    %1747 = vmatpush2.msra.mxu0 0.0
    %1748 = vmatprep.mubr.f32.mxu0 0.0
    %1749 = vmatmul.mubr.f32.gmra.mxu0 %v389
    %v1750 = vpop.f32.mrf.mxu0
    %v1751 = vadd.f32 0.0, %v1750
    %v1752 = vpop.f32.mrf.mxu0
    %1753 = vmatprep.mubr.f32.mxu0 0.0
    %1754 = vmatmul.mubr.f32.gmra.mxu0 %v392
    %v1755 = vpop.f32.mrf.mxu0
    %v1756 = vadd.f32 0.0, %v1755
    %v1757 = vpop.f32.mrf.mxu0
    %1758 = vdwg.mxu0
    %1759 = vmatprep.subr.mxu0 0.0
    %1760 = vmatpush1.msra.mxu0 0.0
    %1761 = vmatprep.subr.mxu0 0.0
    %1762 = vmatpush1.msra.mxu0 0.0
    %1763 = vmatprep.subr.mxu0 0.0
    %1764 = vmatpush1.msra.mxu0 0.0
    %1765 = vmatprep.subr.mxu0 0.0
    %1766 = vmatpush1.msra.mxu0 0.0
    %1767 = vmatprep.subr.mxu0 0.0
    %1768 = vmatpush1.msra.mxu0 0.0
    %1769 = vmatprep.subr.mxu0 0.0
    %1770 = vmatpush1.msra.mxu0 0.0
    %1771 = vmatprep.subr.mxu0 0.0
    %1772 = vmatpush1.msra.mxu0 0.0
    %1773 = vmatprep.subr.mxu0 0.0
    %1774 = vmatpush1.msra.mxu0 0.0
    %1775 = vmatprep.subr.mxu0 0.0
    %1776 = vmatpush1.msra.mxu0 %v291
    %1777 = vmatprep.subr.mxu0 0.0
    %1778 = vmatpush1.msra.mxu0 %v290
    %1779 = vmatprep.subr.mxu0 0.0
    %1780 = vmatpush1.msra.mxu0 %v289
    %1781 = vmatprep.subr.mxu0 0.0
    %1782 = vmatpush1.msra.mxu0 %v288
    %1783 = vmatprep.subr.mxu0 0.0
    %1784 = vmatpush1.msra.mxu0 %v287
    %1785 = vmatprep.subr.mxu0 0.0
    %1786 = vmatpush1.msra.mxu0 %v286
    %1787 = vmatprep.subr.mxu0 0.0
    %1788 = vmatpush1.msra.mxu0 %v285
    %1789 = vmatprep.subr.mxu0 0.0
    %1790 = vmatpush1.msra.mxu0 %v284
    %1791 = vmatprep.subr.mxu0 0.0
    %1792 = vmatpush2.msra.mxu0 0.0
    %1793 = vmatprep.subr.mxu0 0.0
    %1794 = vmatpush2.msra.mxu0 0.0
    %1795 = vmatprep.subr.mxu0 0.0
    %1796 = vmatpush2.msra.mxu0 0.0
    %1797 = vmatprep.subr.mxu0 0.0
    %1798 = vmatpush2.msra.mxu0 0.0
    %1799 = vmatprep.subr.mxu0 0.0
    %1800 = vmatpush2.msra.mxu0 0.0
    %1801 = vmatprep.subr.mxu0 0.0
    %1802 = vmatpush2.msra.mxu0 0.0
    %1803 = vmatprep.subr.mxu0 0.0
    %1804 = vmatpush2.msra.mxu0 0.0
    %1805 = vmatprep.subr.mxu0 0.0
    %1806 = vmatpush2.msra.mxu0 0.0
    %1807 = vmatprep.subr.mxu0 0.0
    %1808 = vmatpush2.msra.mxu0 0.0
    %1809 = vmatprep.subr.mxu0 0.0
    %1810 = vmatpush2.msra.mxu0 0.0
    %1811 = vmatprep.subr.mxu0 0.0
    %1812 = vmatpush2.msra.mxu0 0.0
    %1813 = vmatprep.subr.mxu0 0.0
    %1814 = vmatpush2.msra.mxu0 0.0
    %1815 = vmatprep.subr.mxu0 0.0
    %1816 = vmatpush2.msra.mxu0 0.0
    %1817 = vmatprep.subr.mxu0 0.0
    %1818 = vmatpush2.msra.mxu0 0.0
    %1819 = vmatprep.subr.mxu0 0.0
    %1820 = vmatpush2.msra.mxu0 0.0
    %1821 = vmatprep.subr.mxu0 0.0
    %1822 = vmatpush2.msra.mxu0 0.0
    %1823 = vmatprep.mubr.f32.mxu0 0.0
    %1824 = vmatmul.mubr.f32.gmra.mxu0 %v470
    %v1825 = vpop.f32.mrf.mxu0
    %v1826 = vadd.f32 0.0, %v1825
    %v1827 = vpop.f32.mrf.mxu0
    %1828 = vmatprep.mubr.f32.mxu0 0.0
    %1829 = vmatmul.mubr.f32.gmra.mxu0 %v473
    %v1830 = vpop.f32.mrf.mxu0
    %v1831 = vadd.f32 0.0, %v1830
    %v1832 = vpop.f32.mrf.mxu0
    %1833 = vdwg.mxu0
    %1834 = vmatprep.subr.mxu0 0.0
    %1835 = vmatpush1.msra.mxu0 0.0
    %1836 = vmatprep.subr.mxu0 0.0
    %1837 = vmatpush1.msra.mxu0 0.0
    %1838 = vmatprep.subr.mxu0 0.0
    %1839 = vmatpush1.msra.mxu0 0.0
    %1840 = vmatprep.subr.mxu0 0.0
    %1841 = vmatpush1.msra.mxu0 0.0
    %1842 = vmatprep.subr.mxu0 0.0
    %1843 = vmatpush1.msra.mxu0 0.0
    %1844 = vmatprep.subr.mxu0 0.0
    %1845 = vmatpush1.msra.mxu0 0.0
    %1846 = vmatprep.subr.mxu0 0.0
    %1847 = vmatpush1.msra.mxu0 0.0
    %1848 = vmatprep.subr.mxu0 0.0
    %1849 = vmatpush1.msra.mxu0 0.0
    %1850 = vmatprep.subr.mxu0 0.0
    %1851 = vmatpush1.msra.mxu0 %v291
    %1852 = vmatprep.subr.mxu0 0.0
    %1853 = vmatpush1.msra.mxu0 %v290
    %1854 = vmatprep.subr.mxu0 0.0
    %1855 = vmatpush1.msra.mxu0 %v289
    %1856 = vmatprep.subr.mxu0 0.0
    %1857 = vmatpush1.msra.mxu0 %v288
    %1858 = vmatprep.subr.mxu0 0.0
    %1859 = vmatpush1.msra.mxu0 %v287
    %1860 = vmatprep.subr.mxu0 0.0
    %1861 = vmatpush1.msra.mxu0 %v286
    %1862 = vmatprep.subr.mxu0 0.0
    %1863 = vmatpush1.msra.mxu0 %v285
    %1864 = vmatprep.subr.mxu0 0.0
    %1865 = vmatpush1.msra.mxu0 %v284
    %1866 = vmatprep.subr.mxu0 0.0
    %1867 = vmatpush2.msra.mxu0 0.0
    %1868 = vmatprep.subr.mxu0 0.0
    %1869 = vmatpush2.msra.mxu0 0.0
    %1870 = vmatprep.subr.mxu0 0.0
    %1871 = vmatpush2.msra.mxu0 0.0
    %1872 = vmatprep.subr.mxu0 0.0
    %1873 = vmatpush2.msra.mxu0 0.0
    %1874 = vmatprep.subr.mxu0 0.0
    %1875 = vmatpush2.msra.mxu0 0.0
    %1876 = vmatprep.subr.mxu0 0.0
    %1877 = vmatpush2.msra.mxu0 0.0
    %1878 = vmatprep.subr.mxu0 0.0
    %1879 = vmatpush2.msra.mxu0 0.0
    %1880 = vmatprep.subr.mxu0 0.0
    %1881 = vmatpush2.msra.mxu0 0.0
    %1882 = vmatprep.subr.mxu0 0.0
    %1883 = vmatpush2.msra.mxu0 0.0
    %1884 = vmatprep.subr.mxu0 0.0
    %1885 = vmatpush2.msra.mxu0 0.0
    %1886 = vmatprep.subr.mxu0 0.0
    %1887 = vmatpush2.msra.mxu0 0.0
    %1888 = vmatprep.subr.mxu0 0.0
    %1889 = vmatpush2.msra.mxu0 0.0
    %1890 = vmatprep.subr.mxu0 0.0
    %1891 = vmatpush2.msra.mxu0 0.0
    %1892 = vmatprep.subr.mxu0 0.0
    %1893 = vmatpush2.msra.mxu0 0.0
    %1894 = vmatprep.subr.mxu0 0.0
    %1895 = vmatpush2.msra.mxu0 0.0
    %1896 = vmatprep.subr.mxu0 0.0
    %1897 = vmatpush2.msra.mxu0 0.0
    %1898 = vmatprep.mubr.f32.mxu0 0.0
    %1899 = vmatmul.mubr.f32.gmra.mxu0 %v551
    %v1900 = vpop.f32.mrf.mxu0
    %v1901 = vadd.f32 0.0, %v1900
    %v1902 = vpop.f32.mrf.mxu0
    %1903 = vmatprep.mubr.f32.mxu0 0.0
    %1904 = vmatmul.mubr.f32.gmra.mxu0 %v554
    %v1905 = vpop.f32.mrf.mxu0
    %v1906 = vadd.f32 0.0, %v1905
    %v1907 = vpop.f32.mrf.mxu0
    %1908 = vdwg.mxu0
    %1909 = vmatprep.subr.mxu0 0.0
    %1910 = vmatpush1.msra.mxu0 0.0
    %1911 = vmatprep.subr.mxu0 0.0
    %1912 = vmatpush1.msra.mxu0 0.0
    %1913 = vmatprep.subr.mxu0 0.0
    %1914 = vmatpush1.msra.mxu0 0.0
    %1915 = vmatprep.subr.mxu0 0.0
    %1916 = vmatpush1.msra.mxu0 0.0
    %1917 = vmatprep.subr.mxu0 0.0
    %1918 = vmatpush1.msra.mxu0 0.0
    %1919 = vmatprep.subr.mxu0 0.0
    %1920 = vmatpush1.msra.mxu0 0.0
    %1921 = vmatprep.subr.mxu0 0.0
    %1922 = vmatpush1.msra.mxu0 0.0
    %1923 = vmatprep.subr.mxu0 0.0
    %1924 = vmatpush1.msra.mxu0 0.0
    %1925 = vmatprep.subr.mxu0 0.0
    %1926 = vmatpush1.msra.mxu0 %v291
    %1927 = vmatprep.subr.mxu0 0.0
    %1928 = vmatpush1.msra.mxu0 %v290
    %1929 = vmatprep.subr.mxu0 0.0
    %1930 = vmatpush1.msra.mxu0 %v289
    %1931 = vmatprep.subr.mxu0 0.0
    %1932 = vmatpush1.msra.mxu0 %v288
    %1933 = vmatprep.subr.mxu0 0.0
    %1934 = vmatpush1.msra.mxu0 %v287
    %1935 = vmatprep.subr.mxu0 0.0
    %1936 = vmatpush1.msra.mxu0 %v286
    %1937 = vmatprep.subr.mxu0 0.0
    %1938 = vmatpush1.msra.mxu0 %v285
    %1939 = vmatprep.subr.mxu0 0.0
    %1940 = vmatpush1.msra.mxu0 %v284
    %1941 = vmatprep.subr.mxu0 0.0
    %1942 = vmatpush2.msra.mxu0 0.0
    %1943 = vmatprep.subr.mxu0 0.0
    %1944 = vmatpush2.msra.mxu0 0.0
    %1945 = vmatprep.subr.mxu0 0.0
    %1946 = vmatpush2.msra.mxu0 0.0
    %1947 = vmatprep.subr.mxu0 0.0
    %1948 = vmatpush2.msra.mxu0 0.0
    %1949 = vmatprep.subr.mxu0 0.0
    %1950 = vmatpush2.msra.mxu0 0.0
    %1951 = vmatprep.subr.mxu0 0.0
    %1952 = vmatpush2.msra.mxu0 0.0
    %1953 = vmatprep.subr.mxu0 0.0
    %1954 = vmatpush2.msra.mxu0 0.0
    %1955 = vmatprep.subr.mxu0 0.0
    %1956 = vmatpush2.msra.mxu0 0.0
    %1957 = vmatprep.subr.mxu0 0.0
    %1958 = vmatpush2.msra.mxu0 0.0
    %1959 = vmatprep.subr.mxu0 0.0
    %1960 = vmatpush2.msra.mxu0 0.0
    %1961 = vmatprep.subr.mxu0 0.0
    %1962 = vmatpush2.msra.mxu0 0.0
    %1963 = vmatprep.subr.mxu0 0.0
    %1964 = vmatpush2.msra.mxu0 0.0
    %1965 = vmatprep.subr.mxu0 0.0
    %1966 = vmatpush2.msra.mxu0 0.0
    %1967 = vmatprep.subr.mxu0 0.0
    %1968 = vmatpush2.msra.mxu0 0.0
    %1969 = vmatprep.subr.mxu0 0.0
    %1970 = vmatpush2.msra.mxu0 0.0
    %1971 = vmatprep.subr.mxu0 0.0
    %1972 = vmatpush2.msra.mxu0 0.0
    %1973 = vmatprep.mubr.f32.mxu0 0.0
    %1974 = vmatmul.mubr.f32.gmra.mxu0 %v632
    %v1975 = vpop.f32.mrf.mxu0
    %v1976 = vadd.f32 0.0, %v1975
    %v1977 = vpop.f32.mrf.mxu0
    %1978 = vmatprep.mubr.f32.mxu0 0.0
    %1979 = vmatmul.mubr.f32.gmra.mxu0 %v635
    %v1980 = vpop.f32.mrf.mxu0
    %v1981 = vadd.f32 0.0, %v1980
    %v1982 = vpop.f32.mrf.mxu0
    %1983 = vdwg.mxu0
    %1984 = vmatprep.subr.mxu0 0.0
    %1985 = vmatpush1.msra.mxu0 0.0
    %1986 = vmatprep.subr.mxu0 0.0
    %1987 = vmatpush1.msra.mxu0 0.0
    %1988 = vmatprep.subr.mxu0 0.0
    %1989 = vmatpush1.msra.mxu0 0.0
    %1990 = vmatprep.subr.mxu0 0.0
    %1991 = vmatpush1.msra.mxu0 0.0
    %1992 = vmatprep.subr.mxu0 0.0
    %1993 = vmatpush1.msra.mxu0 0.0
    %1994 = vmatprep.subr.mxu0 0.0
    %1995 = vmatpush1.msra.mxu0 0.0
    %1996 = vmatprep.subr.mxu0 0.0
    %1997 = vmatpush1.msra.mxu0 0.0
    %1998 = vmatprep.subr.mxu0 0.0
    %1999 = vmatpush1.msra.mxu0 0.0
    %2000 = vmatprep.subr.mxu0 0.0
    %2001 = vmatpush1.msra.mxu0 %v291
    %2002 = vmatprep.subr.mxu0 0.0
    %2003 = vmatpush1.msra.mxu0 %v290
    %2004 = vmatprep.subr.mxu0 0.0
    %2005 = vmatpush1.msra.mxu0 %v289
    %2006 = vmatprep.subr.mxu0 0.0
    %2007 = vmatpush1.msra.mxu0 %v288
    %2008 = vmatprep.subr.mxu0 0.0
    %2009 = vmatpush1.msra.mxu0 %v287
    %2010 = vmatprep.subr.mxu0 0.0
    %2011 = vmatpush1.msra.mxu0 %v286
    %2012 = vmatprep.subr.mxu0 0.0
    %2013 = vmatpush1.msra.mxu0 %v285
    %2014 = vmatprep.subr.mxu0 0.0
    %2015 = vmatpush1.msra.mxu0 %v284
    %2016 = vmatprep.subr.mxu0 0.0
    %2017 = vmatpush2.msra.mxu0 0.0
    %2018 = vmatprep.subr.mxu0 0.0
    %2019 = vmatpush2.msra.mxu0 0.0
    %2020 = vmatprep.subr.mxu0 0.0
    %2021 = vmatpush2.msra.mxu0 0.0
    %2022 = vmatprep.subr.mxu0 0.0
    %2023 = vmatpush2.msra.mxu0 0.0
    %2024 = vmatprep.subr.mxu0 0.0
    %2025 = vmatpush2.msra.mxu0 0.0
    %2026 = vmatprep.subr.mxu0 0.0
    %2027 = vmatpush2.msra.mxu0 0.0
    %2028 = vmatprep.subr.mxu0 0.0
    %2029 = vmatpush2.msra.mxu0 0.0
    %2030 = vmatprep.subr.mxu0 0.0
    %2031 = vmatpush2.msra.mxu0 0.0
    %2032 = vmatprep.subr.mxu0 0.0
    %2033 = vmatpush2.msra.mxu0 0.0
    %2034 = vmatprep.subr.mxu0 0.0
    %2035 = vmatpush2.msra.mxu0 0.0
    %2036 = vmatprep.subr.mxu0 0.0
    %2037 = vmatpush2.msra.mxu0 0.0
    %2038 = vmatprep.subr.mxu0 0.0
    %2039 = vmatpush2.msra.mxu0 0.0
    %2040 = vmatprep.subr.mxu0 0.0
    %2041 = vmatpush2.msra.mxu0 0.0
    %2042 = vmatprep.subr.mxu0 0.0
    %2043 = vmatpush2.msra.mxu0 0.0
    %2044 = vmatprep.subr.mxu0 0.0
    %2045 = vmatpush2.msra.mxu0 0.0
    %2046 = vmatprep.subr.mxu0 0.0
    %2047 = vmatpush2.msra.mxu0 0.0
    %2048 = vmatprep.mubr.f32.mxu0 0.0
    %2049 = vmatmul.mubr.f32.gmra.mxu0 %v713
    %v2050 = vpop.f32.mrf.mxu0
    %v2051 = vadd.f32 0.0, %v2050
    %v2052 = vpop.f32.mrf.mxu0
    %2053 = vmatprep.mubr.f32.mxu0 0.0
    %2054 = vmatmul.mubr.f32.gmra.mxu0 %v716
    %v2055 = vpop.f32.mrf.mxu0
    %v2056 = vadd.f32 0.0, %v2055
    %v2057 = vpop.f32.mrf.mxu0
    %2058 = vdwg.mxu0
    %2059 = vmatprep.subr.mxu0 0.0
    %2060 = vmatpush1.msra.mxu0 0.0
    %2061 = vmatprep.subr.mxu0 0.0
    %2062 = vmatpush1.msra.mxu0 0.0
    %2063 = vmatprep.subr.mxu0 0.0
    %2064 = vmatpush1.msra.mxu0 0.0
    %2065 = vmatprep.subr.mxu0 0.0
    %2066 = vmatpush1.msra.mxu0 0.0
    %2067 = vmatprep.subr.mxu0 0.0
    %2068 = vmatpush1.msra.mxu0 0.0
    %2069 = vmatprep.subr.mxu0 0.0
    %2070 = vmatpush1.msra.mxu0 0.0
    %2071 = vmatprep.subr.mxu0 0.0
    %2072 = vmatpush1.msra.mxu0 0.0
    %2073 = vmatprep.subr.mxu0 0.0
    %2074 = vmatpush1.msra.mxu0 0.0
    %2075 = vmatprep.subr.mxu0 0.0
    %2076 = vmatpush1.msra.mxu0 %v291
    %2077 = vmatprep.subr.mxu0 0.0
    %2078 = vmatpush1.msra.mxu0 %v290
    %2079 = vmatprep.subr.mxu0 0.0
    %2080 = vmatpush1.msra.mxu0 %v289
    %2081 = vmatprep.subr.mxu0 0.0
    %2082 = vmatpush1.msra.mxu0 %v288
    %2083 = vmatprep.subr.mxu0 0.0
    %2084 = vmatpush1.msra.mxu0 %v287
    %2085 = vmatprep.subr.mxu0 0.0
    %2086 = vmatpush1.msra.mxu0 %v286
    %2087 = vmatprep.subr.mxu0 0.0
    %2088 = vmatpush1.msra.mxu0 %v285
    %2089 = vmatprep.subr.mxu0 0.0
    %2090 = vmatpush1.msra.mxu0 %v284
    %2091 = vmatprep.subr.mxu0 0.0
    %2092 = vmatpush2.msra.mxu0 0.0
    %2093 = vmatprep.subr.mxu0 0.0
    %2094 = vmatpush2.msra.mxu0 0.0
    %2095 = vmatprep.subr.mxu0 0.0
    %2096 = vmatpush2.msra.mxu0 0.0
    %2097 = vmatprep.subr.mxu0 0.0
    %2098 = vmatpush2.msra.mxu0 0.0
    %2099 = vmatprep.subr.mxu0 0.0
    %2100 = vmatpush2.msra.mxu0 0.0
    %2101 = vmatprep.subr.mxu0 0.0
    %2102 = vmatpush2.msra.mxu0 0.0
    %2103 = vmatprep.subr.mxu0 0.0
    %2104 = vmatpush2.msra.mxu0 0.0
    %2105 = vmatprep.subr.mxu0 0.0
    %2106 = vmatpush2.msra.mxu0 0.0
    %2107 = vmatprep.subr.mxu0 0.0
    %2108 = vmatpush2.msra.mxu0 0.0
    %2109 = vmatprep.subr.mxu0 0.0
    %2110 = vmatpush2.msra.mxu0 0.0
    %2111 = vmatprep.subr.mxu0 0.0
    %2112 = vmatpush2.msra.mxu0 0.0
    %2113 = vmatprep.subr.mxu0 0.0
    %2114 = vmatpush2.msra.mxu0 0.0
    %2115 = vmatprep.subr.mxu0 0.0
    %2116 = vmatpush2.msra.mxu0 0.0
    %2117 = vmatprep.subr.mxu0 0.0
    %2118 = vmatpush2.msra.mxu0 0.0
    %2119 = vmatprep.subr.mxu0 0.0
    %2120 = vmatpush2.msra.mxu0 0.0
    %2121 = vmatprep.subr.mxu0 0.0
    %2122 = vmatpush2.msra.mxu0 0.0
    %2123 = vmatprep.mubr.f32.mxu0 0.0
    %2124 = vmatmul.mubr.f32.gmra.mxu0 %v794
    %v2125 = vpop.f32.mrf.mxu0
    %v2126 = vadd.f32 0.0, %v2125
    %v2127 = vpop.f32.mrf.mxu0
    %2128 = vmatprep.mubr.f32.mxu0 0.0
    %2129 = vmatmul.mubr.f32.gmra.mxu0 %v797
    %v2130 = vpop.f32.mrf.mxu0
    %v2131 = vadd.f32 0.0, %v2130
    %v2132 = vpop.f32.mrf.mxu0
    %2133 = vdwg.mxu0
    %2134 = vmatprep.subr.mxu0 0.0
    %2135 = vmatpush1.msra.mxu0 0.0
    %2136 = vmatprep.subr.mxu0 0.0
    %2137 = vmatpush1.msra.mxu0 0.0
    %2138 = vmatprep.subr.mxu0 0.0
    %2139 = vmatpush1.msra.mxu0 0.0
    %2140 = vmatprep.subr.mxu0 0.0
    %2141 = vmatpush1.msra.mxu0 0.0
    %2142 = vmatprep.subr.mxu0 0.0
    %2143 = vmatpush1.msra.mxu0 0.0
    %2144 = vmatprep.subr.mxu0 0.0
    %2145 = vmatpush1.msra.mxu0 0.0
    %2146 = vmatprep.subr.mxu0 0.0
    %2147 = vmatpush1.msra.mxu0 0.0
    %2148 = vmatprep.subr.mxu0 0.0
    %2149 = vmatpush1.msra.mxu0 0.0
    %2150 = vmatprep.subr.mxu0 0.0
    %2151 = vmatpush1.msra.mxu0 %v291
    %2152 = vmatprep.subr.mxu0 0.0
    %2153 = vmatpush1.msra.mxu0 %v290
    %2154 = vmatprep.subr.mxu0 0.0
    %2155 = vmatpush1.msra.mxu0 %v289
    %2156 = vmatprep.subr.mxu0 0.0
    %2157 = vmatpush1.msra.mxu0 %v288
    %2158 = vmatprep.subr.mxu0 0.0
    %2159 = vmatpush1.msra.mxu0 %v287
    %2160 = vmatprep.subr.mxu0 0.0
    %2161 = vmatpush1.msra.mxu0 %v286
    %2162 = vmatprep.subr.mxu0 0.0
    %2163 = vmatpush1.msra.mxu0 %v285
    %2164 = vmatprep.subr.mxu0 0.0
    %2165 = vmatpush1.msra.mxu0 %v284
    %2166 = vmatprep.subr.mxu0 0.0
    %2167 = vmatpush2.msra.mxu0 0.0
    %2168 = vmatprep.subr.mxu0 0.0
    %2169 = vmatpush2.msra.mxu0 0.0
    %2170 = vmatprep.subr.mxu0 0.0
    %2171 = vmatpush2.msra.mxu0 0.0
    %2172 = vmatprep.subr.mxu0 0.0
    %2173 = vmatpush2.msra.mxu0 0.0
    %2174 = vmatprep.subr.mxu0 0.0
    %2175 = vmatpush2.msra.mxu0 0.0
    %2176 = vmatprep.subr.mxu0 0.0
    %2177 = vmatpush2.msra.mxu0 0.0
    %2178 = vmatprep.subr.mxu0 0.0
    %2179 = vmatpush2.msra.mxu0 0.0
    %2180 = vmatprep.subr.mxu0 0.0
    %2181 = vmatpush2.msra.mxu0 0.0
    %2182 = vmatprep.subr.mxu0 0.0
    %2183 = vmatpush2.msra.mxu0 0.0
    %2184 = vmatprep.subr.mxu0 0.0
    %2185 = vmatpush2.msra.mxu0 0.0
    %2186 = vmatprep.subr.mxu0 0.0
    %2187 = vmatpush2.msra.mxu0 0.0
    %2188 = vmatprep.subr.mxu0 0.0
    %2189 = vmatpush2.msra.mxu0 0.0
    %2190 = vmatprep.subr.mxu0 0.0
    %2191 = vmatpush2.msra.mxu0 0.0
    %2192 = vmatprep.subr.mxu0 0.0
    %2193 = vmatpush2.msra.mxu0 0.0
    %2194 = vmatprep.subr.mxu0 0.0
    %2195 = vmatpush2.msra.mxu0 0.0
    %2196 = vmatprep.subr.mxu0 0.0
    %2197 = vmatpush2.msra.mxu0 0.0
    %2198 = vmatprep.mubr.f32.mxu0 0.0
    %2199 = vmatmul.mubr.f32.gmra.mxu0 %v875
    %v2200 = vpop.f32.mrf.mxu0
    %v2201 = vadd.f32 0.0, %v2200
    %v2202 = vpop.f32.mrf.mxu0
    %2203 = vmatprep.mubr.f32.mxu0 0.0
    %2204 = vmatmul.mubr.f32.gmra.mxu0 %v878
    %v2205 = vpop.f32.mrf.mxu0
    %v2206 = vadd.f32 0.0, %v2205
    %v2207 = vpop.f32.mrf.mxu0
    %2208 = vdwg.mxu0
    %2209 = vmatprep.subr.mxu0 0.0
    %2210 = vmatpush1.msra.mxu0 0.0
    %2211 = vmatprep.subr.mxu0 0.0
    %2212 = vmatpush1.msra.mxu0 0.0
    %2213 = vmatprep.subr.mxu0 0.0
    %2214 = vmatpush1.msra.mxu0 0.0
    %2215 = vmatprep.subr.mxu0 0.0
    %2216 = vmatpush1.msra.mxu0 0.0
    %2217 = vmatprep.subr.mxu0 0.0
    %2218 = vmatpush1.msra.mxu0 0.0
    %2219 = vmatprep.subr.mxu0 0.0
    %2220 = vmatpush1.msra.mxu0 0.0
    %2221 = vmatprep.subr.mxu0 0.0
    %2222 = vmatpush1.msra.mxu0 0.0
    %2223 = vmatprep.subr.mxu0 0.0
    %2224 = vmatpush1.msra.mxu0 0.0
    %2225 = vmatprep.subr.mxu0 0.0
    %2226 = vmatpush1.msra.mxu0 %v291
    %2227 = vmatprep.subr.mxu0 0.0
    %2228 = vmatpush1.msra.mxu0 %v290
    %2229 = vmatprep.subr.mxu0 0.0
    %2230 = vmatpush1.msra.mxu0 %v289
    %2231 = vmatprep.subr.mxu0 0.0
    %2232 = vmatpush1.msra.mxu0 %v288
    %2233 = vmatprep.subr.mxu0 0.0
    %2234 = vmatpush1.msra.mxu0 %v287
    %2235 = vmatprep.subr.mxu0 0.0
    %2236 = vmatpush1.msra.mxu0 %v286
    %2237 = vmatprep.subr.mxu0 0.0
    %2238 = vmatpush1.msra.mxu0 %v285
    %2239 = vmatprep.subr.mxu0 0.0
    %2240 = vmatpush1.msra.mxu0 %v284
    %2241 = vmatprep.subr.mxu0 0.0
    %2242 = vmatpush2.msra.mxu0 0.0
    %2243 = vmatprep.subr.mxu0 0.0
    %2244 = vmatpush2.msra.mxu0 0.0
    %2245 = vmatprep.subr.mxu0 0.0
    %2246 = vmatpush2.msra.mxu0 0.0
    %2247 = vmatprep.subr.mxu0 0.0
    %2248 = vmatpush2.msra.mxu0 0.0
    %2249 = vmatprep.subr.mxu0 0.0
    %2250 = vmatpush2.msra.mxu0 0.0
    %2251 = vmatprep.subr.mxu0 0.0
    %2252 = vmatpush2.msra.mxu0 0.0
    %2253 = vmatprep.subr.mxu0 0.0
    %2254 = vmatpush2.msra.mxu0 0.0
    %2255 = vmatprep.subr.mxu0 0.0
    %2256 = vmatpush2.msra.mxu0 0.0
    %2257 = vmatprep.subr.mxu0 0.0
    %2258 = vmatpush2.msra.mxu0 0.0
    %2259 = vmatprep.subr.mxu0 0.0
    %2260 = vmatpush2.msra.mxu0 0.0
    %2261 = vmatprep.subr.mxu0 0.0
    %2262 = vmatpush2.msra.mxu0 0.0
    %2263 = vmatprep.subr.mxu0 0.0
    %2264 = vmatpush2.msra.mxu0 0.0
    %2265 = vmatprep.subr.mxu0 0.0
    %2266 = vmatpush2.msra.mxu0 0.0
    %2267 = vmatprep.subr.mxu0 0.0
    %2268 = vmatpush2.msra.mxu0 0.0
    %2269 = vmatprep.subr.mxu0 0.0
    %2270 = vmatpush2.msra.mxu0 0.0
    %2271 = vmatprep.subr.mxu0 0.0
    %2272 = vmatpush2.msra.mxu0 0.0
    %2273 = vmatprep.mubr.f32.mxu0 0.0
    %2274 = vmatmul.mubr.f32.gmra.mxu0 %v956
    %v2275 = vpop.f32.mrf.mxu0
    %v2276 = vadd.f32 0.0, %v2275
    %v2277 = vpop.f32.mrf.mxu0
    %2278 = vmatprep.mubr.f32.mxu0 0.0
    %2279 = vmatmul.mubr.f32.gmra.mxu0 %v959
    %v2280 = vpop.f32.mrf.mxu0
    %v2281 = vadd.f32 0.0, %v2280
    %v2282 = vpop.f32.mrf.mxu0
    %2283 = vdwg.mxu0
    %2284 = vmatprep.subr.mxu0 0.0
    %2285 = vmatpush1.msra.mxu0 0.0
    %2286 = vmatprep.subr.mxu0 0.0
    %2287 = vmatpush1.msra.mxu0 0.0
    %2288 = vmatprep.subr.mxu0 0.0
    %2289 = vmatpush1.msra.mxu0 0.0
    %2290 = vmatprep.subr.mxu0 0.0
    %2291 = vmatpush1.msra.mxu0 0.0
    %2292 = vmatprep.subr.mxu0 0.0
    %2293 = vmatpush1.msra.mxu0 0.0
    %2294 = vmatprep.subr.mxu0 0.0
    %2295 = vmatpush1.msra.mxu0 0.0
    %2296 = vmatprep.subr.mxu0 0.0
    %2297 = vmatpush1.msra.mxu0 0.0
    %2298 = vmatprep.subr.mxu0 0.0
    %2299 = vmatpush1.msra.mxu0 0.0
    %2300 = vmatprep.subr.mxu0 0.0
    %2301 = vmatpush1.msra.mxu0 %v291
    %2302 = vmatprep.subr.mxu0 0.0
    %2303 = vmatpush1.msra.mxu0 %v290
    %2304 = vmatprep.subr.mxu0 0.0
    %2305 = vmatpush1.msra.mxu0 %v289
    %2306 = vmatprep.subr.mxu0 0.0
    %2307 = vmatpush1.msra.mxu0 %v288
    %2308 = vmatprep.subr.mxu0 0.0
    %2309 = vmatpush1.msra.mxu0 %v287
    %2310 = vmatprep.subr.mxu0 0.0
    %2311 = vmatpush1.msra.mxu0 %v286
    %2312 = vmatprep.subr.mxu0 0.0
    %2313 = vmatpush1.msra.mxu0 %v285
    %2314 = vmatprep.subr.mxu0 0.0
    %2315 = vmatpush1.msra.mxu0 %v284
    %2316 = vmatprep.subr.mxu0 0.0
    %2317 = vmatpush2.msra.mxu0 0.0
    %2318 = vmatprep.subr.mxu0 0.0
    %2319 = vmatpush2.msra.mxu0 0.0
    %2320 = vmatprep.subr.mxu0 0.0
    %2321 = vmatpush2.msra.mxu0 0.0
    %2322 = vmatprep.subr.mxu0 0.0
    %2323 = vmatpush2.msra.mxu0 0.0
    %2324 = vmatprep.subr.mxu0 0.0
    %2325 = vmatpush2.msra.mxu0 0.0
    %2326 = vmatprep.subr.mxu0 0.0
    %2327 = vmatpush2.msra.mxu0 0.0
    %2328 = vmatprep.subr.mxu0 0.0
    %2329 = vmatpush2.msra.mxu0 0.0
    %2330 = vmatprep.subr.mxu0 0.0
    %2331 = vmatpush2.msra.mxu0 0.0
    %2332 = vmatprep.subr.mxu0 0.0
    %2333 = vmatpush2.msra.mxu0 0.0
    %2334 = vmatprep.subr.mxu0 0.0
    %2335 = vmatpush2.msra.mxu0 0.0
    %2336 = vmatprep.subr.mxu0 0.0
    %2337 = vmatpush2.msra.mxu0 0.0
    %2338 = vmatprep.subr.mxu0 0.0
    %2339 = vmatpush2.msra.mxu0 0.0
    %2340 = vmatprep.subr.mxu0 0.0
    %2341 = vmatpush2.msra.mxu0 0.0
    %2342 = vmatprep.subr.mxu0 0.0
    %2343 = vmatpush2.msra.mxu0 0.0
    %2344 = vmatprep.subr.mxu0 0.0
    %2345 = vmatpush2.msra.mxu0 0.0
    %2346 = vmatprep.subr.mxu0 0.0
    %2347 = vmatpush2.msra.mxu0 0.0
    %2348 = vmatprep.mubr.f32.mxu0 0.0
    %2349 = vmatmul.mubr.f32.gmra.mxu0 %v1037
    %v2350 = vpop.f32.mrf.mxu0
    %v2351 = vadd.f32 0.0, %v2350
    %v2352 = vpop.f32.mrf.mxu0
    %2353 = vmatprep.mubr.f32.mxu0 0.0
    %2354 = vmatmul.mubr.f32.gmra.mxu0 %v1040
    %v2355 = vpop.f32.mrf.mxu0
    %v2356 = vadd.f32 0.0, %v2355
    %v2357 = vpop.f32.mrf.mxu0
    %2358 = vdwg.mxu0
    %2359 = vmatprep.subr.mxu0 0.0
    %2360 = vmatpush1.msra.mxu0 0.0
    %2361 = vmatprep.subr.mxu0 0.0
    %2362 = vmatpush1.msra.mxu0 0.0
    %2363 = vmatprep.subr.mxu0 0.0
    %2364 = vmatpush1.msra.mxu0 0.0
    %2365 = vmatprep.subr.mxu0 0.0
    %2366 = vmatpush1.msra.mxu0 0.0
    %2367 = vmatprep.subr.mxu0 0.0
    %2368 = vmatpush1.msra.mxu0 0.0
    %2369 = vmatprep.subr.mxu0 0.0
    %2370 = vmatpush1.msra.mxu0 0.0
    %2371 = vmatprep.subr.mxu0 0.0
    %2372 = vmatpush1.msra.mxu0 0.0
    %2373 = vmatprep.subr.mxu0 0.0
    %2374 = vmatpush1.msra.mxu0 0.0
    %2375 = vmatprep.subr.mxu0 0.0
    %2376 = vmatpush1.msra.mxu0 %v291
    %2377 = vmatprep.subr.mxu0 0.0
    %2378 = vmatpush1.msra.mxu0 %v290
    %2379 = vmatprep.subr.mxu0 0.0
    %2380 = vmatpush1.msra.mxu0 %v289
    %2381 = vmatprep.subr.mxu0 0.0
    %2382 = vmatpush1.msra.mxu0 %v288
    %2383 = vmatprep.subr.mxu0 0.0
    %2384 = vmatpush1.msra.mxu0 %v287
    %2385 = vmatprep.subr.mxu0 0.0
    %2386 = vmatpush1.msra.mxu0 %v286
    %2387 = vmatprep.subr.mxu0 0.0
    %2388 = vmatpush1.msra.mxu0 %v285
    %2389 = vmatprep.subr.mxu0 0.0
    %2390 = vmatpush1.msra.mxu0 %v284
    %2391 = vmatprep.subr.mxu0 0.0
    %2392 = vmatpush2.msra.mxu0 0.0
    %2393 = vmatprep.subr.mxu0 0.0
    %2394 = vmatpush2.msra.mxu0 0.0
    %2395 = vmatprep.subr.mxu0 0.0
    %2396 = vmatpush2.msra.mxu0 0.0
    %2397 = vmatprep.subr.mxu0 0.0
    %2398 = vmatpush2.msra.mxu0 0.0
    %2399 = vmatprep.subr.mxu0 0.0
    %2400 = vmatpush2.msra.mxu0 0.0
    %2401 = vmatprep.subr.mxu0 0.0
    %2402 = vmatpush2.msra.mxu0 0.0
    %2403 = vmatprep.subr.mxu0 0.0
    %2404 = vmatpush2.msra.mxu0 0.0
    %2405 = vmatprep.subr.mxu0 0.0
    %2406 = vmatpush2.msra.mxu0 0.0
    %2407 = vmatprep.subr.mxu0 0.0
    %2408 = vmatpush2.msra.mxu0 0.0
    %2409 = vmatprep.subr.mxu0 0.0
    %2410 = vmatpush2.msra.mxu0 0.0
    %2411 = vmatprep.subr.mxu0 0.0
    %2412 = vmatpush2.msra.mxu0 0.0
    %2413 = vmatprep.subr.mxu0 0.0
    %2414 = vmatpush2.msra.mxu0 0.0
    %2415 = vmatprep.subr.mxu0 0.0
    %2416 = vmatpush2.msra.mxu0 0.0
    %2417 = vmatprep.subr.mxu0 0.0
    %2418 = vmatpush2.msra.mxu0 0.0
    %2419 = vmatprep.subr.mxu0 0.0
    %2420 = vmatpush2.msra.mxu0 0.0
    %2421 = vmatprep.subr.mxu0 0.0
    %2422 = vmatpush2.msra.mxu0 0.0
    %2423 = vmatprep.mubr.f32.mxu0 0.0
    %2424 = vmatmul.mubr.f32.gmra.mxu0 %v1118
    %v2425 = vpop.f32.mrf.mxu0
    %v2426 = vadd.f32 0.0, %v2425
    %v2427 = vpop.f32.mrf.mxu0
    %2428 = vmatprep.mubr.f32.mxu0 0.0
    %2429 = vmatmul.mubr.f32.gmra.mxu0 %v1121
    %v2430 = vpop.f32.mrf.mxu0
    %v2431 = vadd.f32 0.0, %v2430
    %v2432 = vpop.f32.mrf.mxu0
    %2433 = vdwg.mxu0
    %2434 = vmatprep.subr.mxu0 0.0
    %2435 = vmatpush1.msra.mxu0 0.0
    %2436 = vmatprep.subr.mxu0 0.0
    %2437 = vmatpush1.msra.mxu0 0.0
    %2438 = vmatprep.subr.mxu0 0.0
    %2439 = vmatpush1.msra.mxu0 0.0
    %2440 = vmatprep.subr.mxu0 0.0
    %2441 = vmatpush1.msra.mxu0 0.0
    %2442 = vmatprep.subr.mxu0 0.0
    %2443 = vmatpush1.msra.mxu0 0.0
    %2444 = vmatprep.subr.mxu0 0.0
    %2445 = vmatpush1.msra.mxu0 0.0
    %2446 = vmatprep.subr.mxu0 0.0
    %2447 = vmatpush1.msra.mxu0 0.0
    %2448 = vmatprep.subr.mxu0 0.0
    %2449 = vmatpush1.msra.mxu0 0.0
    %2450 = vmatprep.subr.mxu0 0.0
    %2451 = vmatpush1.msra.mxu0 %v291
    %2452 = vmatprep.subr.mxu0 0.0
    %2453 = vmatpush1.msra.mxu0 %v290
    %2454 = vmatprep.subr.mxu0 0.0
    %2455 = vmatpush1.msra.mxu0 %v289
    %2456 = vmatprep.subr.mxu0 0.0
    %2457 = vmatpush1.msra.mxu0 %v288
    %2458 = vmatprep.subr.mxu0 0.0
    %2459 = vmatpush1.msra.mxu0 %v287
    %2460 = vmatprep.subr.mxu0 0.0
    %2461 = vmatpush1.msra.mxu0 %v286
    %2462 = vmatprep.subr.mxu0 0.0
    %2463 = vmatpush1.msra.mxu0 %v285
    %2464 = vmatprep.subr.mxu0 0.0
    %2465 = vmatpush1.msra.mxu0 %v284
    %2466 = vmatprep.subr.mxu0 0.0
    %2467 = vmatpush2.msra.mxu0 0.0
    %2468 = vmatprep.subr.mxu0 0.0
    %2469 = vmatpush2.msra.mxu0 0.0
    %2470 = vmatprep.subr.mxu0 0.0
    %2471 = vmatpush2.msra.mxu0 0.0
    %2472 = vmatprep.subr.mxu0 0.0
    %2473 = vmatpush2.msra.mxu0 0.0
    %2474 = vmatprep.subr.mxu0 0.0
    %2475 = vmatpush2.msra.mxu0 0.0
    %2476 = vmatprep.subr.mxu0 0.0
    %2477 = vmatpush2.msra.mxu0 0.0
    %2478 = vmatprep.subr.mxu0 0.0
    %2479 = vmatpush2.msra.mxu0 0.0
    %2480 = vmatprep.subr.mxu0 0.0
    %2481 = vmatpush2.msra.mxu0 0.0
    %2482 = vmatprep.subr.mxu0 0.0
    %2483 = vmatpush2.msra.mxu0 0.0
    %2484 = vmatprep.subr.mxu0 0.0
    %2485 = vmatpush2.msra.mxu0 0.0
    %2486 = vmatprep.subr.mxu0 0.0
    %2487 = vmatpush2.msra.mxu0 0.0
    %2488 = vmatprep.subr.mxu0 0.0
    %2489 = vmatpush2.msra.mxu0 0.0
    %2490 = vmatprep.subr.mxu0 0.0
    %2491 = vmatpush2.msra.mxu0 0.0
    %2492 = vmatprep.subr.mxu0 0.0
    %2493 = vmatpush2.msra.mxu0 0.0
    %2494 = vmatprep.subr.mxu0 0.0
    %2495 = vmatpush2.msra.mxu0 0.0
    %2496 = vmatprep.subr.mxu0 0.0
    %2497 = vmatpush2.msra.mxu0 0.0
    %2498 = vmatprep.mubr.f32.mxu0 0.0
    %2499 = vmatmul.mubr.f32.gmra.mxu0 %v1199
    %v2500 = vpop.f32.mrf.mxu0
    %v2501 = vadd.f32 0.0, %v2500
    %v2502 = vpop.f32.mrf.mxu0
    %2503 = vmatprep.mubr.f32.mxu0 0.0
    %2504 = vmatmul.mubr.f32.gmra.mxu0 %v1202
    %v2505 = vpop.f32.mrf.mxu0
    %v2506 = vadd.f32 0.0, %v2505
    %v2507 = vpop.f32.mrf.mxu0
    %2508 = vdwg.mxu0
    %2509 = vmatprep.subr.mxu0 0.0
    %2510 = vmatpush1.msra.mxu0 0.0
    %2511 = vmatprep.subr.mxu0 0.0
    %2512 = vmatpush1.msra.mxu0 0.0
    %2513 = vmatprep.subr.mxu0 0.0
    %2514 = vmatpush1.msra.mxu0 0.0
    %2515 = vmatprep.subr.mxu0 0.0
    %2516 = vmatpush1.msra.mxu0 0.0
    %2517 = vmatprep.subr.mxu0 0.0
    %2518 = vmatpush1.msra.mxu0 0.0
    %2519 = vmatprep.subr.mxu0 0.0
    %2520 = vmatpush1.msra.mxu0 0.0
    %2521 = vmatprep.subr.mxu0 0.0
    %2522 = vmatpush1.msra.mxu0 0.0
    %2523 = vmatprep.subr.mxu0 0.0
    %2524 = vmatpush1.msra.mxu0 0.0
    %2525 = vmatprep.subr.mxu0 0.0
    %2526 = vmatpush1.msra.mxu0 %v291
    %2527 = vmatprep.subr.mxu0 0.0
    %2528 = vmatpush1.msra.mxu0 %v290
    %2529 = vmatprep.subr.mxu0 0.0
    %2530 = vmatpush1.msra.mxu0 %v289
    %2531 = vmatprep.subr.mxu0 0.0
    %2532 = vmatpush1.msra.mxu0 %v288
    %2533 = vmatprep.subr.mxu0 0.0
    %2534 = vmatpush1.msra.mxu0 %v287
    %2535 = vmatprep.subr.mxu0 0.0
    %2536 = vmatpush1.msra.mxu0 %v286
    %2537 = vmatprep.subr.mxu0 0.0
    %2538 = vmatpush1.msra.mxu0 %v285
    %2539 = vmatprep.subr.mxu0 0.0
    %2540 = vmatpush1.msra.mxu0 %v284
    %2541 = vmatprep.subr.mxu0 0.0
    %2542 = vmatpush2.msra.mxu0 0.0
    %2543 = vmatprep.subr.mxu0 0.0
    %2544 = vmatpush2.msra.mxu0 0.0
    %2545 = vmatprep.subr.mxu0 0.0
    %2546 = vmatpush2.msra.mxu0 0.0
    %2547 = vmatprep.subr.mxu0 0.0
    %2548 = vmatpush2.msra.mxu0 0.0
    %2549 = vmatprep.subr.mxu0 0.0
    %2550 = vmatpush2.msra.mxu0 0.0
    %2551 = vmatprep.subr.mxu0 0.0
    %2552 = vmatpush2.msra.mxu0 0.0
    %2553 = vmatprep.subr.mxu0 0.0
    %2554 = vmatpush2.msra.mxu0 0.0
    %2555 = vmatprep.subr.mxu0 0.0
    %2556 = vmatpush2.msra.mxu0 0.0
    %2557 = vmatprep.subr.mxu0 0.0
    %2558 = vmatpush2.msra.mxu0 0.0
    %2559 = vmatprep.subr.mxu0 0.0
    %2560 = vmatpush2.msra.mxu0 0.0
    %2561 = vmatprep.subr.mxu0 0.0
    %2562 = vmatpush2.msra.mxu0 0.0
    %2563 = vmatprep.subr.mxu0 0.0
    %2564 = vmatpush2.msra.mxu0 0.0
    %2565 = vmatprep.subr.mxu0 0.0
    %2566 = vmatpush2.msra.mxu0 0.0
    %2567 = vmatprep.subr.mxu0 0.0
    %2568 = vmatpush2.msra.mxu0 0.0
    %2569 = vmatprep.subr.mxu0 0.0
    %2570 = vmatpush2.msra.mxu0 0.0
    %2571 = vmatprep.subr.mxu0 0.0
    %2572 = vmatpush2.msra.mxu0 0.0
    %2573 = vmatprep.mubr.f32.mxu0 0.0
    %2574 = vmatmul.mubr.f32.gmra.mxu0 %v1280
    %v2575 = vpop.f32.mrf.mxu0
    %v2576 = vadd.f32 0.0, %v2575
    %v2577 = vpop.f32.mrf.mxu0
    %2578 = vmatprep.mubr.f32.mxu0 0.0
    %2579 = vmatmul.mubr.f32.gmra.mxu0 %v1283
    %v2580 = vpop.f32.mrf.mxu0
    %v2581 = vadd.f32 0.0, %v2580
    %v2582 = vpop.f32.mrf.mxu0
    %2583 = vdwg.mxu0
    %2584 = vmatprep.subr.mxu0 0.0
    %2585 = vmatpush1.msra.mxu0 0.0
    %2586 = vmatprep.subr.mxu0 0.0
    %2587 = vmatpush1.msra.mxu0 0.0
    %2588 = vmatprep.subr.mxu0 0.0
    %2589 = vmatpush1.msra.mxu0 0.0
    %2590 = vmatprep.subr.mxu0 0.0
    %2591 = vmatpush1.msra.mxu0 0.0
    %2592 = vmatprep.subr.mxu0 0.0
    %2593 = vmatpush1.msra.mxu0 0.0
    %2594 = vmatprep.subr.mxu0 0.0
    %2595 = vmatpush1.msra.mxu0 0.0
    %2596 = vmatprep.subr.mxu0 0.0
    %2597 = vmatpush1.msra.mxu0 0.0
    %2598 = vmatprep.subr.mxu0 0.0
    %2599 = vmatpush1.msra.mxu0 0.0
    %2600 = vmatprep.subr.mxu0 0.0
    %2601 = vmatpush1.msra.mxu0 %v291
    %2602 = vmatprep.subr.mxu0 0.0
    %2603 = vmatpush1.msra.mxu0 %v290
    %2604 = vmatprep.subr.mxu0 0.0
    %2605 = vmatpush1.msra.mxu0 %v289
    %2606 = vmatprep.subr.mxu0 0.0
    %2607 = vmatpush1.msra.mxu0 %v288
    %2608 = vmatprep.subr.mxu0 0.0
    %2609 = vmatpush1.msra.mxu0 %v287
    %2610 = vmatprep.subr.mxu0 0.0
    %2611 = vmatpush1.msra.mxu0 %v286
    %2612 = vmatprep.subr.mxu0 0.0
    %2613 = vmatpush1.msra.mxu0 %v285
    %2614 = vmatprep.subr.mxu0 0.0
    %2615 = vmatpush1.msra.mxu0 %v284
    %2616 = vmatprep.subr.mxu0 0.0
    %2617 = vmatpush2.msra.mxu0 0.0
    %2618 = vmatprep.subr.mxu0 0.0
    %2619 = vmatpush2.msra.mxu0 0.0
    %2620 = vmatprep.subr.mxu0 0.0
    %2621 = vmatpush2.msra.mxu0 0.0
    %2622 = vmatprep.subr.mxu0 0.0
    %2623 = vmatpush2.msra.mxu0 0.0
    %2624 = vmatprep.subr.mxu0 0.0
    %2625 = vmatpush2.msra.mxu0 0.0
    %2626 = vmatprep.subr.mxu0 0.0
    %2627 = vmatpush2.msra.mxu0 0.0
    %2628 = vmatprep.subr.mxu0 0.0
    %2629 = vmatpush2.msra.mxu0 0.0
    %2630 = vmatprep.subr.mxu0 0.0
    %2631 = vmatpush2.msra.mxu0 0.0
    %2632 = vmatprep.subr.mxu0 0.0
    %2633 = vmatpush2.msra.mxu0 0.0
    %2634 = vmatprep.subr.mxu0 0.0
    %2635 = vmatpush2.msra.mxu0 0.0
    %2636 = vmatprep.subr.mxu0 0.0
    %2637 = vmatpush2.msra.mxu0 0.0
    %2638 = vmatprep.subr.mxu0 0.0
    %2639 = vmatpush2.msra.mxu0 0.0
    %2640 = vmatprep.subr.mxu0 0.0
    %2641 = vmatpush2.msra.mxu0 0.0
    %2642 = vmatprep.subr.mxu0 0.0
    %2643 = vmatpush2.msra.mxu0 0.0
    %2644 = vmatprep.subr.mxu0 0.0
    %2645 = vmatpush2.msra.mxu0 0.0
    %2646 = vmatprep.subr.mxu0 0.0
    %2647 = vmatpush2.msra.mxu0 0.0
    %2648 = vmatprep.mubr.f32.mxu0 0.0
    %2649 = vmatmul.mubr.f32.gmra.mxu0 %v1361
    %v2650 = vpop.f32.mrf.mxu0
    %v2651 = vadd.f32 0.0, %v2650
    %v2652 = vpop.f32.mrf.mxu0
    %2653 = vmatprep.mubr.f32.mxu0 0.0
    %2654 = vmatmul.mubr.f32.gmra.mxu0 %v1364
    %v2655 = vpop.f32.mrf.mxu0
    %v2656 = vadd.f32 0.0, %v2655
    %v2657 = vpop.f32.mrf.mxu0
    %2658 = vdwg.mxu0
    %2659 = vmatprep.subr.mxu0 0.0
    %2660 = vmatpush1.msra.mxu0 0.0
    %2661 = vmatprep.subr.mxu0 0.0
    %2662 = vmatpush1.msra.mxu0 0.0
    %2663 = vmatprep.subr.mxu0 0.0
    %2664 = vmatpush1.msra.mxu0 0.0
    %2665 = vmatprep.subr.mxu0 0.0
    %2666 = vmatpush1.msra.mxu0 0.0
    %2667 = vmatprep.subr.mxu0 0.0
    %2668 = vmatpush1.msra.mxu0 0.0
    %2669 = vmatprep.subr.mxu0 0.0
    %2670 = vmatpush1.msra.mxu0 0.0
    %2671 = vmatprep.subr.mxu0 0.0
    %2672 = vmatpush1.msra.mxu0 0.0
    %2673 = vmatprep.subr.mxu0 0.0
    %2674 = vmatpush1.msra.mxu0 0.0
    %2675 = vmatprep.subr.mxu0 0.0
    %2676 = vmatpush1.msra.mxu0 %v291
    %2677 = vmatprep.subr.mxu0 0.0
    %2678 = vmatpush1.msra.mxu0 %v290
    %2679 = vmatprep.subr.mxu0 0.0
    %2680 = vmatpush1.msra.mxu0 %v289
    %2681 = vmatprep.subr.mxu0 0.0
    %2682 = vmatpush1.msra.mxu0 %v288
    %2683 = vmatprep.subr.mxu0 0.0
    %2684 = vmatpush1.msra.mxu0 %v287
    %2685 = vmatprep.subr.mxu0 0.0
    %2686 = vmatpush1.msra.mxu0 %v286
    %2687 = vmatprep.subr.mxu0 0.0
    %2688 = vmatpush1.msra.mxu0 %v285
    %2689 = vmatprep.subr.mxu0 0.0
    %2690 = vmatpush1.msra.mxu0 %v284
    %2691 = vmatprep.subr.mxu0 0.0
    %2692 = vmatpush2.msra.mxu0 0.0
    %2693 = vmatprep.subr.mxu0 0.0
    %2694 = vmatpush2.msra.mxu0 0.0
    %2695 = vmatprep.subr.mxu0 0.0
    %2696 = vmatpush2.msra.mxu0 0.0
    %2697 = vmatprep.subr.mxu0 0.0
    %2698 = vmatpush2.msra.mxu0 0.0
    %2699 = vmatprep.subr.mxu0 0.0
    %2700 = vmatpush2.msra.mxu0 0.0
    %2701 = vmatprep.subr.mxu0 0.0
    %2702 = vmatpush2.msra.mxu0 0.0
    %2703 = vmatprep.subr.mxu0 0.0
    %2704 = vmatpush2.msra.mxu0 0.0
    %2705 = vmatprep.subr.mxu0 0.0
    %2706 = vmatpush2.msra.mxu0 0.0
    %2707 = vmatprep.subr.mxu0 0.0
    %2708 = vmatpush2.msra.mxu0 0.0
    %2709 = vmatprep.subr.mxu0 0.0
    %2710 = vmatpush2.msra.mxu0 0.0
    %2711 = vmatprep.subr.mxu0 0.0
    %2712 = vmatpush2.msra.mxu0 0.0
    %2713 = vmatprep.subr.mxu0 0.0
    %2714 = vmatpush2.msra.mxu0 0.0
    %2715 = vmatprep.subr.mxu0 0.0
    %2716 = vmatpush2.msra.mxu0 0.0
    %2717 = vmatprep.subr.mxu0 0.0
    %2718 = vmatpush2.msra.mxu0 0.0
    %2719 = vmatprep.subr.mxu0 0.0
    %2720 = vmatpush2.msra.mxu0 0.0
    %2721 = vmatprep.subr.mxu0 0.0
    %2722 = vmatpush2.msra.mxu0 0.0
    %2723 = vmatprep.mubr.f32.mxu0 0.0
    %2724 = vmatmul.mubr.f32.gmra.mxu0 %v1442
    %v2725 = vpop.f32.mrf.mxu0
    %v2726 = vadd.f32 0.0, %v2725
    %v2727 = vpop.f32.mrf.mxu0
    %2728 = vmatprep.mubr.f32.mxu0 0.0
    %2729 = vmatmul.mubr.f32.gmra.mxu0 %v1445
    %v2730 = vpop.f32.mrf.mxu0
    %v2731 = vadd.f32 0.0, %v2730
    %v2732 = vpop.f32.mrf.mxu0
    %2733 = vdwg.mxu0
    %2734 = vmatprep.subr.mxu0 0.0
    %2735 = vmatpush1.msra.mxu0 0.0
    %2736 = vmatprep.subr.mxu0 0.0
    %2737 = vmatpush1.msra.mxu0 0.0
    %2738 = vmatprep.subr.mxu0 0.0
    %2739 = vmatpush1.msra.mxu0 0.0
    %2740 = vmatprep.subr.mxu0 0.0
    %2741 = vmatpush1.msra.mxu0 0.0
    %2742 = vmatprep.subr.mxu0 0.0
    %2743 = vmatpush1.msra.mxu0 0.0
    %2744 = vmatprep.subr.mxu0 0.0
    %2745 = vmatpush1.msra.mxu0 0.0
    %2746 = vmatprep.subr.mxu0 0.0
    %2747 = vmatpush1.msra.mxu0 0.0
    %2748 = vmatprep.subr.mxu0 0.0
    %2749 = vmatpush1.msra.mxu0 0.0
    %2750 = vmatprep.subr.mxu0 0.0
    %2751 = vmatpush1.msra.mxu0 %v291
    %2752 = vmatprep.subr.mxu0 0.0
    %2753 = vmatpush1.msra.mxu0 %v290
    %2754 = vmatprep.subr.mxu0 0.0
    %2755 = vmatpush1.msra.mxu0 %v289
    %2756 = vmatprep.subr.mxu0 0.0
    %2757 = vmatpush1.msra.mxu0 %v288
    %2758 = vmatprep.subr.mxu0 0.0
    %2759 = vmatpush1.msra.mxu0 %v287
    %2760 = vmatprep.subr.mxu0 0.0
    %2761 = vmatpush1.msra.mxu0 %v286
    %2762 = vmatprep.subr.mxu0 0.0
    %2763 = vmatpush1.msra.mxu0 %v285
    %2764 = vmatprep.subr.mxu0 0.0
    %2765 = vmatpush1.msra.mxu0 %v284
    %2766 = vmatprep.subr.mxu0 0.0
    %2767 = vmatpush2.msra.mxu0 0.0
    %2768 = vmatprep.subr.mxu0 0.0
    %2769 = vmatpush2.msra.mxu0 0.0
    %2770 = vmatprep.subr.mxu0 0.0
    %2771 = vmatpush2.msra.mxu0 0.0
    %2772 = vmatprep.subr.mxu0 0.0
    %2773 = vmatpush2.msra.mxu0 0.0
    %2774 = vmatprep.subr.mxu0 0.0
    %2775 = vmatpush2.msra.mxu0 0.0
    %2776 = vmatprep.subr.mxu0 0.0
    %2777 = vmatpush2.msra.mxu0 0.0
    %2778 = vmatprep.subr.mxu0 0.0
    %2779 = vmatpush2.msra.mxu0 0.0
    %2780 = vmatprep.subr.mxu0 0.0
    %2781 = vmatpush2.msra.mxu0 0.0
    %2782 = vmatprep.subr.mxu0 0.0
    %2783 = vmatpush2.msra.mxu0 0.0
    %2784 = vmatprep.subr.mxu0 0.0
    %2785 = vmatpush2.msra.mxu0 0.0
    %2786 = vmatprep.subr.mxu0 0.0
    %2787 = vmatpush2.msra.mxu0 0.0
    %2788 = vmatprep.subr.mxu0 0.0
    %2789 = vmatpush2.msra.mxu0 0.0
    %2790 = vmatprep.subr.mxu0 0.0
    %2791 = vmatpush2.msra.mxu0 0.0
    %2792 = vmatprep.subr.mxu0 0.0
    %2793 = vmatpush2.msra.mxu0 0.0
    %2794 = vmatprep.subr.mxu0 0.0
    %2795 = vmatpush2.msra.mxu0 0.0
    %2796 = vmatprep.subr.mxu0 0.0
    %2797 = vmatpush2.msra.mxu0 0.0
    %2798 = vmatprep.mubr.f32.mxu0 0.0
    %2799 = vmatmul.mubr.f32.gmra.mxu0 %v1523
    %v2800 = vpop.f32.mrf.mxu0
    %v2801 = vadd.f32 0.0, %v2800
    %v2802 = vpop.f32.mrf.mxu0
    %2803 = vmatprep.mubr.f32.mxu0 0.0
    %2804 = vmatmul.mubr.f32.gmra.mxu0 %v1526
    %v2805 = vpop.f32.mrf.mxu0
    %v2806 = vadd.f32 0.0, %v2805
    %v2807 = vpop.f32.mrf.mxu0
    %2808 = vdwg.mxu0
    %2809 = vmatprep.subr.mxu0 0.0
    %2810 = vmatpush1.msra.mxu0 0.0
    %2811 = vmatprep.subr.mxu0 0.0
    %2812 = vmatpush1.msra.mxu0 0.0
    %2813 = vmatprep.subr.mxu0 0.0
    %2814 = vmatpush1.msra.mxu0 0.0
    %2815 = vmatprep.subr.mxu0 0.0
    %2816 = vmatpush1.msra.mxu0 0.0
    %2817 = vmatprep.subr.mxu0 0.0
    %2818 = vmatpush1.msra.mxu0 0.0
    %2819 = vmatprep.subr.mxu0 0.0
    %2820 = vmatpush1.msra.mxu0 0.0
    %2821 = vmatprep.subr.mxu0 0.0
    %2822 = vmatpush1.msra.mxu0 0.0
    %2823 = vmatprep.subr.mxu0 0.0
    %2824 = vmatpush1.msra.mxu0 0.0
    %2825 = vmatprep.subr.mxu0 0.0
    %2826 = vmatpush1.msra.mxu0 %v291
    %2827 = vmatprep.subr.mxu0 0.0
    %2828 = vmatpush1.msra.mxu0 %v290
    %2829 = vmatprep.subr.mxu0 0.0
    %2830 = vmatpush1.msra.mxu0 %v289
    %2831 = vmatprep.subr.mxu0 0.0
    %2832 = vmatpush1.msra.mxu0 %v288
    %2833 = vmatprep.subr.mxu0 0.0
    %2834 = vmatpush1.msra.mxu0 %v287
    %2835 = vmatprep.subr.mxu0 0.0
    %2836 = vmatpush1.msra.mxu0 %v286
    %2837 = vmatprep.subr.mxu0 0.0
    %2838 = vmatpush1.msra.mxu0 %v285
    %2839 = vmatprep.subr.mxu0 0.0
    %2840 = vmatpush1.msra.mxu0 %v284
    %2841 = vmatprep.subr.mxu0 0.0
    %2842 = vmatpush2.msra.mxu0 0.0
    %2843 = vmatprep.subr.mxu0 0.0
    %2844 = vmatpush2.msra.mxu0 0.0
    %2845 = vmatprep.subr.mxu0 0.0
    %2846 = vmatpush2.msra.mxu0 0.0
    %2847 = vmatprep.subr.mxu0 0.0
    %2848 = vmatpush2.msra.mxu0 0.0
    %2849 = vmatprep.subr.mxu0 0.0
    %2850 = vmatpush2.msra.mxu0 0.0
    %2851 = vmatprep.subr.mxu0 0.0
    %2852 = vmatpush2.msra.mxu0 0.0
    %2853 = vmatprep.subr.mxu0 0.0
    %2854 = vmatpush2.msra.mxu0 0.0
    %2855 = vmatprep.subr.mxu0 0.0
    %2856 = vmatpush2.msra.mxu0 0.0
    %2857 = vmatprep.subr.mxu0 0.0
    %2858 = vmatpush2.msra.mxu0 0.0
    %2859 = vmatprep.subr.mxu0 0.0
    %2860 = vmatpush2.msra.mxu0 0.0
    %2861 = vmatprep.subr.mxu0 0.0
    %2862 = vmatpush2.msra.mxu0 0.0
    %2863 = vmatprep.subr.mxu0 0.0
    %2864 = vmatpush2.msra.mxu0 0.0
    %2865 = vmatprep.subr.mxu0 0.0
    %2866 = vmatpush2.msra.mxu0 0.0
    %2867 = vmatprep.subr.mxu0 0.0
    %2868 = vmatpush2.msra.mxu0 0.0
    %2869 = vmatprep.subr.mxu0 0.0
    %2870 = vmatpush2.msra.mxu0 0.0
    %2871 = vmatprep.subr.mxu0 0.0
    %2872 = vmatpush2.msra.mxu0 0.0
    %2873 = vmatprep.mubr.f32.mxu0 0.0
    %2874 = vmatmul.mubr.f32.gmra.mxu0 %v1604
    %v2875 = vpop.f32.mrf.mxu0
    %v2876 = vadd.f32 0.0, %v2875
    %v2877 = vpop.f32.mrf.mxu0
    %2878 = vmatprep.mubr.f32.mxu0 0.0
    %2879 = vmatmul.mubr.f32.gmra.mxu0 %v1607
    %v2880 = vpop.f32.mrf.mxu0
    %v2881 = vadd.f32 0.0, %v2880
    %v2882 = vpop.f32.mrf.mxu0
    %2883 = vdwg.mxu0
    %vm2884 = vcmask 261120
    %v2886 = vsel %vm2884, %v461, 0
    %v2889 = vsel %vm2884, %v466, 0
    %2891 = vmatprep.subr.mxu0 0.0
    %2892 = vmatpush1.msra.mxu0 0.0
    %2893 = vmatprep.subr.mxu0 0.0
    %2894 = vmatpush1.msra.mxu0 0.0
    %2895 = vmatprep.subr.mxu0 0.0
    %2896 = vmatpush1.msra.mxu0 0.0
    %2897 = vmatprep.subr.mxu0 0.0
    %2898 = vmatpush1.msra.mxu0 0.0
    %2899 = vmatprep.subr.mxu0 0.0
    %2900 = vmatpush1.msra.mxu0 0.0
    %2901 = vmatprep.subr.mxu0 0.0
    %2902 = vmatpush1.msra.mxu0 0.0
    %2903 = vmatprep.subr.mxu0 0.0
    %2904 = vmatpush1.msra.mxu0 0.0
    %2905 = vmatprep.subr.mxu0 0.0
    %2906 = vmatpush1.msra.mxu0 0.0
    %2907 = vmatprep.subr.mxu0 0.0
    %2908 = vmatpush1.msra.mxu0 0.0
    %2909 = vmatprep.subr.mxu0 0.0
    %2910 = vmatpush1.msra.mxu0 0.0
    %2911 = vmatprep.subr.mxu0 0.0
    %2912 = vmatpush1.msra.mxu0 0.0
    %2913 = vmatprep.subr.mxu0 0.0
    %2914 = vmatpush1.msra.mxu0 0.0
    %2915 = vmatprep.subr.mxu0 0.0
    %2916 = vmatpush1.msra.mxu0 %v327
    %2917 = vmatprep.subr.mxu0 0.0
    %2918 = vmatpush1.msra.mxu0 %v326
    %2919 = vmatprep.subr.mxu0 0.0
    %2920 = vmatpush1.msra.mxu0 %v325
    %2921 = vmatprep.subr.mxu0 0.0
    %2922 = vmatpush1.msra.mxu0 %v324
    %2923 = vmatprep.subr.mxu0 0.0
    %2924 = vmatpush2.msra.mxu0 0.0
    %2925 = vmatprep.subr.mxu0 0.0
    %2926 = vmatpush2.msra.mxu0 0.0
    %2927 = vmatprep.subr.mxu0 0.0
    %2928 = vmatpush2.msra.mxu0 0.0
    %2929 = vmatprep.subr.mxu0 0.0
    %2930 = vmatpush2.msra.mxu0 0.0
    %2931 = vmatprep.subr.mxu0 0.0
    %2932 = vmatpush2.msra.mxu0 0.0
    %2933 = vmatprep.subr.mxu0 0.0
    %2934 = vmatpush2.msra.mxu0 0.0
    %2935 = vmatprep.subr.mxu0 0.0
    %2936 = vmatpush2.msra.mxu0 0.0
    %2937 = vmatprep.subr.mxu0 0.0
    %2938 = vmatpush2.msra.mxu0 0.0
    %2939 = vmatprep.subr.mxu0 0.0
    %2940 = vmatpush2.msra.mxu0 0.0
    %2941 = vmatprep.subr.mxu0 0.0
    %2942 = vmatpush2.msra.mxu0 0.0
    %2943 = vmatprep.subr.mxu0 0.0
    %2944 = vmatpush2.msra.mxu0 0.0
    %2945 = vmatprep.subr.mxu0 0.0
    %2946 = vmatpush2.msra.mxu0 0.0
    %2947 = vmatprep.subr.mxu0 0.0
    %2948 = vmatpush2.msra.mxu0 0.0
    %2949 = vmatprep.subr.mxu0 0.0
    %2950 = vmatpush2.msra.mxu0 0.0
    %2951 = vmatprep.subr.mxu0 0.0
    %2952 = vmatpush2.msra.mxu0 0.0
    %2953 = vmatprep.subr.mxu0 0.0
    %2954 = vmatpush2.msra.mxu0 0.0
    %2955 = vmatprep.mubr.f32.mxu0 0.0
    %2956 = vmatmul.mubr.f32.gmra.mxu0 %v2886
    %v2957 = vpop.f32.mrf.mxu0
    %v2958 = vadd.f32 0.0, %v2957
    %v2959 = vpop.f32.mrf.mxu0
    %2960 = vmatprep.mubr.f32.mxu0 0.0
    %2961 = vmatmul.mubr.f32.gmra.mxu0 %v2889
    %v2962 = vpop.f32.mrf.mxu0
    %v2963 = vadd.f32 0.0, %v2962
    %v2964 = vpop.f32.mrf.mxu0
    %2965 = vdwg.mxu0
    %v2967 = vsel %vm2884, %v542, 0
    %v2970 = vsel %vm2884, %v547, 0
    %2972 = vmatprep.subr.mxu0 0.0
    %2973 = vmatpush1.msra.mxu0 0.0
    %2974 = vmatprep.subr.mxu0 0.0
    %2975 = vmatpush1.msra.mxu0 0.0
    %2976 = vmatprep.subr.mxu0 0.0
    %2977 = vmatpush1.msra.mxu0 0.0
    %2978 = vmatprep.subr.mxu0 0.0
    %2979 = vmatpush1.msra.mxu0 0.0
    %2980 = vmatprep.subr.mxu0 0.0
    %2981 = vmatpush1.msra.mxu0 0.0
    %2982 = vmatprep.subr.mxu0 0.0
    %2983 = vmatpush1.msra.mxu0 0.0
    %2984 = vmatprep.subr.mxu0 0.0
    %2985 = vmatpush1.msra.mxu0 0.0
    %2986 = vmatprep.subr.mxu0 0.0
    %2987 = vmatpush1.msra.mxu0 0.0
    %2988 = vmatprep.subr.mxu0 0.0
    %2989 = vmatpush1.msra.mxu0 0.0
    %2990 = vmatprep.subr.mxu0 0.0
    %2991 = vmatpush1.msra.mxu0 0.0
    %2992 = vmatprep.subr.mxu0 0.0
    %2993 = vmatpush1.msra.mxu0 0.0
    %2994 = vmatprep.subr.mxu0 0.0
    %2995 = vmatpush1.msra.mxu0 0.0
    %2996 = vmatprep.subr.mxu0 0.0
    %2997 = vmatpush1.msra.mxu0 %v331
    %2998 = vmatprep.subr.mxu0 0.0
    %2999 = vmatpush1.msra.mxu0 %v330
    %3000 = vmatprep.subr.mxu0 0.0
    %3001 = vmatpush1.msra.mxu0 %v329
    %3002 = vmatprep.subr.mxu0 0.0
    %3003 = vmatpush1.msra.mxu0 %v328
    %3004 = vmatprep.subr.mxu0 0.0
    %3005 = vmatpush2.msra.mxu0 0.0
    %3006 = vmatprep.subr.mxu0 0.0
    %3007 = vmatpush2.msra.mxu0 0.0
    %3008 = vmatprep.subr.mxu0 0.0
    %3009 = vmatpush2.msra.mxu0 0.0
    %3010 = vmatprep.subr.mxu0 0.0
    %3011 = vmatpush2.msra.mxu0 0.0
    %3012 = vmatprep.subr.mxu0 0.0
    %3013 = vmatpush2.msra.mxu0 0.0
    %3014 = vmatprep.subr.mxu0 0.0
    %3015 = vmatpush2.msra.mxu0 0.0
    %3016 = vmatprep.subr.mxu0 0.0
    %3017 = vmatpush2.msra.mxu0 0.0
    %3018 = vmatprep.subr.mxu0 0.0
    %3019 = vmatpush2.msra.mxu0 0.0
    %3020 = vmatprep.subr.mxu0 0.0
    %3021 = vmatpush2.msra.mxu0 0.0
    %3022 = vmatprep.subr.mxu0 0.0
    %3023 = vmatpush2.msra.mxu0 0.0
    %3024 = vmatprep.subr.mxu0 0.0
    %3025 = vmatpush2.msra.mxu0 0.0
    %3026 = vmatprep.subr.mxu0 0.0
    %3027 = vmatpush2.msra.mxu0 0.0
    %3028 = vmatprep.subr.mxu0 0.0
    %3029 = vmatpush2.msra.mxu0 0.0
    %3030 = vmatprep.subr.mxu0 0.0
    %3031 = vmatpush2.msra.mxu0 0.0
    %3032 = vmatprep.subr.mxu0 0.0
    %3033 = vmatpush2.msra.mxu0 0.0
    %3034 = vmatprep.subr.mxu0 0.0
    %3035 = vmatpush2.msra.mxu0 0.0
    %3036 = vmatprep.mubr.f32.mxu0 0.0
    %3037 = vmatmul.mubr.f32.gmra.mxu0 %v2967
    %v3038 = vpop.f32.mrf.mxu0
    %v3039 = vadd.f32 0.0, %v3038
    %v3040 = vpop.f32.mrf.mxu0
    %3041 = vmatprep.mubr.f32.mxu0 0.0
    %3042 = vmatmul.mubr.f32.gmra.mxu0 %v2970
    %v3043 = vpop.f32.mrf.mxu0
    %v3044 = vadd.f32 0.0, %v3043
    %v3045 = vpop.f32.mrf.mxu0
    %3046 = vdwg.mxu0
    %v3048 = vsel %vm2884, %v623, 0
    %v3051 = vsel %vm2884, %v628, 0
    %3053 = vmatprep.subr.mxu0 0.0
    %3054 = vmatpush1.msra.mxu0 0.0
    %3055 = vmatprep.subr.mxu0 0.0
    %3056 = vmatpush1.msra.mxu0 0.0
    %3057 = vmatprep.subr.mxu0 0.0
    %3058 = vmatpush1.msra.mxu0 0.0
    %3059 = vmatprep.subr.mxu0 0.0
    %3060 = vmatpush1.msra.mxu0 0.0
    %3061 = vmatprep.subr.mxu0 0.0
    %3062 = vmatpush1.msra.mxu0 0.0
    %3063 = vmatprep.subr.mxu0 0.0
    %3064 = vmatpush1.msra.mxu0 0.0
    %3065 = vmatprep.subr.mxu0 0.0
    %3066 = vmatpush1.msra.mxu0 0.0
    %3067 = vmatprep.subr.mxu0 0.0
    %3068 = vmatpush1.msra.mxu0 0.0
    %3069 = vmatprep.subr.mxu0 0.0
    %3070 = vmatpush1.msra.mxu0 0.0
    %3071 = vmatprep.subr.mxu0 0.0
    %3072 = vmatpush1.msra.mxu0 0.0
    %3073 = vmatprep.subr.mxu0 0.0
    %3074 = vmatpush1.msra.mxu0 0.0
    %3075 = vmatprep.subr.mxu0 0.0
    %3076 = vmatpush1.msra.mxu0 0.0
    %3077 = vmatprep.subr.mxu0 0.0
    %3078 = vmatpush1.msra.mxu0 %v335
    %3079 = vmatprep.subr.mxu0 0.0
    %3080 = vmatpush1.msra.mxu0 %v334
    %3081 = vmatprep.subr.mxu0 0.0
    %3082 = vmatpush1.msra.mxu0 %v333
    %3083 = vmatprep.subr.mxu0 0.0
    %3084 = vmatpush1.msra.mxu0 %v332
    %3085 = vmatprep.subr.mxu0 0.0
    %3086 = vmatpush2.msra.mxu0 0.0
    %3087 = vmatprep.subr.mxu0 0.0
    %3088 = vmatpush2.msra.mxu0 0.0
    %3089 = vmatprep.subr.mxu0 0.0
    %3090 = vmatpush2.msra.mxu0 0.0
    %3091 = vmatprep.subr.mxu0 0.0
    %3092 = vmatpush2.msra.mxu0 0.0
    %3093 = vmatprep.subr.mxu0 0.0
    %3094 = vmatpush2.msra.mxu0 0.0
    %3095 = vmatprep.subr.mxu0 0.0
    %3096 = vmatpush2.msra.mxu0 0.0
    %3097 = vmatprep.subr.mxu0 0.0
    %3098 = vmatpush2.msra.mxu0 0.0
    %3099 = vmatprep.subr.mxu0 0.0
    %3100 = vmatpush2.msra.mxu0 0.0
    %3101 = vmatprep.subr.mxu0 0.0
    %3102 = vmatpush2.msra.mxu0 0.0
    %3103 = vmatprep.subr.mxu0 0.0
    %3104 = vmatpush2.msra.mxu0 0.0
    %3105 = vmatprep.subr.mxu0 0.0
    %3106 = vmatpush2.msra.mxu0 0.0
    %3107 = vmatprep.subr.mxu0 0.0
    %3108 = vmatpush2.msra.mxu0 0.0
    %3109 = vmatprep.subr.mxu0 0.0
    %3110 = vmatpush2.msra.mxu0 0.0
    %3111 = vmatprep.subr.mxu0 0.0
    %3112 = vmatpush2.msra.mxu0 0.0
    %3113 = vmatprep.subr.mxu0 0.0
    %3114 = vmatpush2.msra.mxu0 0.0
    %3115 = vmatprep.subr.mxu0 0.0
    %3116 = vmatpush2.msra.mxu0 0.0
    %3117 = vmatprep.mubr.f32.mxu0 0.0
    %3118 = vmatmul.mubr.f32.gmra.mxu0 %v3048
    %v3119 = vpop.f32.mrf.mxu0
    %v3120 = vadd.f32 0.0, %v3119
    %v3121 = vpop.f32.mrf.mxu0
    %3122 = vmatprep.mubr.f32.mxu0 0.0
    %3123 = vmatmul.mubr.f32.gmra.mxu0 %v3051
    %v3124 = vpop.f32.mrf.mxu0
    %v3125 = vadd.f32 0.0, %v3124
    %v3126 = vpop.f32.mrf.mxu0
    %3127 = vdwg.mxu0
    %v3129 = vsel %vm2884, %v704, 0
    %v3132 = vsel %vm2884, %v709, 0
    %3134 = vmatprep.subr.mxu0 0.0
    %3135 = vmatpush1.msra.mxu0 0.0
    %3136 = vmatprep.subr.mxu0 0.0
    %3137 = vmatpush1.msra.mxu0 0.0
    %3138 = vmatprep.subr.mxu0 0.0
    %3139 = vmatpush1.msra.mxu0 0.0
    %3140 = vmatprep.subr.mxu0 0.0
    %3141 = vmatpush1.msra.mxu0 0.0
    %3142 = vmatprep.subr.mxu0 0.0
    %3143 = vmatpush1.msra.mxu0 0.0
    %3144 = vmatprep.subr.mxu0 0.0
    %3145 = vmatpush1.msra.mxu0 0.0
    %3146 = vmatprep.subr.mxu0 0.0
    %3147 = vmatpush1.msra.mxu0 0.0
    %3148 = vmatprep.subr.mxu0 0.0
    %3149 = vmatpush1.msra.mxu0 0.0
    %3150 = vmatprep.subr.mxu0 0.0
    %3151 = vmatpush1.msra.mxu0 0.0
    %3152 = vmatprep.subr.mxu0 0.0
    %3153 = vmatpush1.msra.mxu0 0.0
    %3154 = vmatprep.subr.mxu0 0.0
    %3155 = vmatpush1.msra.mxu0 0.0
    %3156 = vmatprep.subr.mxu0 0.0
    %3157 = vmatpush1.msra.mxu0 0.0
    %3158 = vmatprep.subr.mxu0 0.0
    %3159 = vmatpush1.msra.mxu0 %v339
    %3160 = vmatprep.subr.mxu0 0.0
    %3161 = vmatpush1.msra.mxu0 %v338
    %3162 = vmatprep.subr.mxu0 0.0
    %3163 = vmatpush1.msra.mxu0 %v337
    %3164 = vmatprep.subr.mxu0 0.0
    %3165 = vmatpush1.msra.mxu0 %v336
    %3166 = vmatprep.subr.mxu0 0.0
    %3167 = vmatpush2.msra.mxu0 0.0
    %3168 = vmatprep.subr.mxu0 0.0
    %3169 = vmatpush2.msra.mxu0 0.0
    %3170 = vmatprep.subr.mxu0 0.0
    %3171 = vmatpush2.msra.mxu0 0.0
    %3172 = vmatprep.subr.mxu0 0.0
    %3173 = vmatpush2.msra.mxu0 0.0
    %3174 = vmatprep.subr.mxu0 0.0
    %3175 = vmatpush2.msra.mxu0 0.0
    %3176 = vmatprep.subr.mxu0 0.0
    %3177 = vmatpush2.msra.mxu0 0.0
    %3178 = vmatprep.subr.mxu0 0.0
    %3179 = vmatpush2.msra.mxu0 0.0
    %3180 = vmatprep.subr.mxu0 0.0
    %3181 = vmatpush2.msra.mxu0 0.0
    %3182 = vmatprep.subr.mxu0 0.0
    %3183 = vmatpush2.msra.mxu0 0.0
    %3184 = vmatprep.subr.mxu0 0.0
    %3185 = vmatpush2.msra.mxu0 0.0
    %3186 = vmatprep.subr.mxu0 0.0
    %3187 = vmatpush2.msra.mxu0 0.0
    %3188 = vmatprep.subr.mxu0 0.0
    %3189 = vmatpush2.msra.mxu0 0.0
    %3190 = vmatprep.subr.mxu0 0.0
    %3191 = vmatpush2.msra.mxu0 0.0
    %3192 = vmatprep.subr.mxu0 0.0
    %3193 = vmatpush2.msra.mxu0 0.0
    %3194 = vmatprep.subr.mxu0 0.0
    %3195 = vmatpush2.msra.mxu0 0.0
    %3196 = vmatprep.subr.mxu0 0.0
    %3197 = vmatpush2.msra.mxu0 0.0
    %3198 = vmatprep.mubr.f32.mxu0 0.0
    %3199 = vmatmul.mubr.f32.gmra.mxu0 %v3129
    %v3200 = vpop.f32.mrf.mxu0
    %v3201 = vadd.f32 0.0, %v3200
    %v3202 = vpop.f32.mrf.mxu0
    %3203 = vmatprep.mubr.f32.mxu0 0.0
    %3204 = vmatmul.mubr.f32.gmra.mxu0 %v3132
    %v3205 = vpop.f32.mrf.mxu0
    %v3206 = vadd.f32 0.0, %v3205
    %v3207 = vpop.f32.mrf.mxu0
    %3208 = vdwg.mxu0
    %v3210 = vsel %vm2884, %v785, 0
    %v3213 = vsel %vm2884, %v790, 0
    %3215 = vmatprep.subr.mxu0 0.0
    %3216 = vmatpush1.msra.mxu0 0.0
    %3217 = vmatprep.subr.mxu0 0.0
    %3218 = vmatpush1.msra.mxu0 0.0
    %3219 = vmatprep.subr.mxu0 0.0
    %3220 = vmatpush1.msra.mxu0 0.0
    %3221 = vmatprep.subr.mxu0 0.0
    %3222 = vmatpush1.msra.mxu0 0.0
    %3223 = vmatprep.subr.mxu0 0.0
    %3224 = vmatpush1.msra.mxu0 0.0
    %3225 = vmatprep.subr.mxu0 0.0
    %3226 = vmatpush1.msra.mxu0 0.0
    %3227 = vmatprep.subr.mxu0 0.0
    %3228 = vmatpush1.msra.mxu0 0.0
    %3229 = vmatprep.subr.mxu0 0.0
    %3230 = vmatpush1.msra.mxu0 0.0
    %3231 = vmatprep.subr.mxu0 0.0
    %3232 = vmatpush1.msra.mxu0 0.0
    %3233 = vmatprep.subr.mxu0 0.0
    %3234 = vmatpush1.msra.mxu0 0.0
    %3235 = vmatprep.subr.mxu0 0.0
    %3236 = vmatpush1.msra.mxu0 0.0
    %3237 = vmatprep.subr.mxu0 0.0
    %3238 = vmatpush1.msra.mxu0 0.0
    %3239 = vmatprep.subr.mxu0 0.0
    %3240 = vmatpush1.msra.mxu0 %v343
    %3241 = vmatprep.subr.mxu0 0.0
    %3242 = vmatpush1.msra.mxu0 %v342
    %3243 = vmatprep.subr.mxu0 0.0
    %3244 = vmatpush1.msra.mxu0 %v341
    %3245 = vmatprep.subr.mxu0 0.0
    %3246 = vmatpush1.msra.mxu0 %v340
    %3247 = vmatprep.subr.mxu0 0.0
    %3248 = vmatpush2.msra.mxu0 0.0
    %3249 = vmatprep.subr.mxu0 0.0
    %3250 = vmatpush2.msra.mxu0 0.0
    %3251 = vmatprep.subr.mxu0 0.0
    %3252 = vmatpush2.msra.mxu0 0.0
    %3253 = vmatprep.subr.mxu0 0.0
    %3254 = vmatpush2.msra.mxu0 0.0
    %3255 = vmatprep.subr.mxu0 0.0
    %3256 = vmatpush2.msra.mxu0 0.0
    %3257 = vmatprep.subr.mxu0 0.0
    %3258 = vmatpush2.msra.mxu0 0.0
    %3259 = vmatprep.subr.mxu0 0.0
    %3260 = vmatpush2.msra.mxu0 0.0
    %3261 = vmatprep.subr.mxu0 0.0
    %3262 = vmatpush2.msra.mxu0 0.0
    %3263 = vmatprep.subr.mxu0 0.0
    %3264 = vmatpush2.msra.mxu0 0.0
    %3265 = vmatprep.subr.mxu0 0.0
    %3266 = vmatpush2.msra.mxu0 0.0
    %3267 = vmatprep.subr.mxu0 0.0
    %3268 = vmatpush2.msra.mxu0 0.0
    %3269 = vmatprep.subr.mxu0 0.0
    %3270 = vmatpush2.msra.mxu0 0.0
    %3271 = vmatprep.subr.mxu0 0.0
    %3272 = vmatpush2.msra.mxu0 0.0
    %3273 = vmatprep.subr.mxu0 0.0
    %3274 = vmatpush2.msra.mxu0 0.0
    %3275 = vmatprep.subr.mxu0 0.0
    %3276 = vmatpush2.msra.mxu0 0.0
    %3277 = vmatprep.subr.mxu0 0.0
    %3278 = vmatpush2.msra.mxu0 0.0
    %3279 = vmatprep.mubr.f32.mxu0 0.0
    %3280 = vmatmul.mubr.f32.gmra.mxu0 %v3210
    %v3281 = vpop.f32.mrf.mxu0
    %v3282 = vadd.f32 0.0, %v3281
    %v3283 = vpop.f32.mrf.mxu0
    %3284 = vmatprep.mubr.f32.mxu0 0.0
    %3285 = vmatmul.mubr.f32.gmra.mxu0 %v3213
    %v3286 = vpop.f32.mrf.mxu0
    %v3287 = vadd.f32 0.0, %v3286
    %v3288 = vpop.f32.mrf.mxu0
    %3289 = vdwg.mxu0
    %v3291 = vsel %vm2884, %v866, 0
    %v3294 = vsel %vm2884, %v871, 0
    %3296 = vmatprep.subr.mxu0 0.0
    %3297 = vmatpush1.msra.mxu0 0.0
    %3298 = vmatprep.subr.mxu0 0.0
    %3299 = vmatpush1.msra.mxu0 0.0
    %3300 = vmatprep.subr.mxu0 0.0
    %3301 = vmatpush1.msra.mxu0 0.0
    %3302 = vmatprep.subr.mxu0 0.0
    %3303 = vmatpush1.msra.mxu0 0.0
    %3304 = vmatprep.subr.mxu0 0.0
    %3305 = vmatpush1.msra.mxu0 0.0
    %3306 = vmatprep.subr.mxu0 0.0
    %3307 = vmatpush1.msra.mxu0 0.0
    %3308 = vmatprep.subr.mxu0 0.0
    %3309 = vmatpush1.msra.mxu0 0.0
    %3310 = vmatprep.subr.mxu0 0.0
    %3311 = vmatpush1.msra.mxu0 0.0
    %3312 = vmatprep.subr.mxu0 0.0
    %3313 = vmatpush1.msra.mxu0 0.0
    %3314 = vmatprep.subr.mxu0 0.0
    %3315 = vmatpush1.msra.mxu0 0.0
    %3316 = vmatprep.subr.mxu0 0.0
    %3317 = vmatpush1.msra.mxu0 0.0
    %3318 = vmatprep.subr.mxu0 0.0
    %3319 = vmatpush1.msra.mxu0 0.0
    %3320 = vmatprep.subr.mxu0 0.0
    %3321 = vmatpush1.msra.mxu0 %v347
    %3322 = vmatprep.subr.mxu0 0.0
    %3323 = vmatpush1.msra.mxu0 %v346
    %3324 = vmatprep.subr.mxu0 0.0
    %3325 = vmatpush1.msra.mxu0 %v345
    %3326 = vmatprep.subr.mxu0 0.0
    %3327 = vmatpush1.msra.mxu0 %v344
    %3328 = vmatprep.subr.mxu0 0.0
    %3329 = vmatpush2.msra.mxu0 0.0
    %3330 = vmatprep.subr.mxu0 0.0
    %3331 = vmatpush2.msra.mxu0 0.0
    %3332 = vmatprep.subr.mxu0 0.0
    %3333 = vmatpush2.msra.mxu0 0.0
    %3334 = vmatprep.subr.mxu0 0.0
    %3335 = vmatpush2.msra.mxu0 0.0
    %3336 = vmatprep.subr.mxu0 0.0
    %3337 = vmatpush2.msra.mxu0 0.0
    %3338 = vmatprep.subr.mxu0 0.0
    %3339 = vmatpush2.msra.mxu0 0.0
    %3340 = vmatprep.subr.mxu0 0.0
    %3341 = vmatpush2.msra.mxu0 0.0
    %3342 = vmatprep.subr.mxu0 0.0
    %3343 = vmatpush2.msra.mxu0 0.0
    %3344 = vmatprep.subr.mxu0 0.0
    %3345 = vmatpush2.msra.mxu0 0.0
    %3346 = vmatprep.subr.mxu0 0.0
    %3347 = vmatpush2.msra.mxu0 0.0
    %3348 = vmatprep.subr.mxu0 0.0
    %3349 = vmatpush2.msra.mxu0 0.0
    %3350 = vmatprep.subr.mxu0 0.0
    %3351 = vmatpush2.msra.mxu0 0.0
    %3352 = vmatprep.subr.mxu0 0.0
    %3353 = vmatpush2.msra.mxu0 0.0
    %3354 = vmatprep.subr.mxu0 0.0
    %3355 = vmatpush2.msra.mxu0 0.0
    %3356 = vmatprep.subr.mxu0 0.0
    %3357 = vmatpush2.msra.mxu0 0.0
    %3358 = vmatprep.subr.mxu0 0.0
    %3359 = vmatpush2.msra.mxu0 0.0
    %3360 = vmatprep.mubr.f32.mxu0 0.0
    %3361 = vmatmul.mubr.f32.gmra.mxu0 %v3291
    %v3362 = vpop.f32.mrf.mxu0
    %v3363 = vadd.f32 0.0, %v3362
    %v3364 = vpop.f32.mrf.mxu0
    %3365 = vmatprep.mubr.f32.mxu0 0.0
    %3366 = vmatmul.mubr.f32.gmra.mxu0 %v3294
    %v3367 = vpop.f32.mrf.mxu0
    %v3368 = vadd.f32 0.0, %v3367
    %v3369 = vpop.f32.mrf.mxu0
    %3370 = vdwg.mxu0
    %v3372 = vsel %vm2884, %v947, 0
    %v3375 = vsel %vm2884, %v952, 0
    %3377 = vmatprep.subr.mxu0 0.0
    %3378 = vmatpush1.msra.mxu0 0.0
    %3379 = vmatprep.subr.mxu0 0.0
    %3380 = vmatpush1.msra.mxu0 0.0
    %3381 = vmatprep.subr.mxu0 0.0
    %3382 = vmatpush1.msra.mxu0 0.0
    %3383 = vmatprep.subr.mxu0 0.0
    %3384 = vmatpush1.msra.mxu0 0.0
    %3385 = vmatprep.subr.mxu0 0.0
    %3386 = vmatpush1.msra.mxu0 0.0
    %3387 = vmatprep.subr.mxu0 0.0
    %3388 = vmatpush1.msra.mxu0 0.0
    %3389 = vmatprep.subr.mxu0 0.0
    %3390 = vmatpush1.msra.mxu0 0.0
    %3391 = vmatprep.subr.mxu0 0.0
    %3392 = vmatpush1.msra.mxu0 0.0
    %3393 = vmatprep.subr.mxu0 0.0
    %3394 = vmatpush1.msra.mxu0 0.0
    %3395 = vmatprep.subr.mxu0 0.0
    %3396 = vmatpush1.msra.mxu0 0.0
    %3397 = vmatprep.subr.mxu0 0.0
    %3398 = vmatpush1.msra.mxu0 0.0
    %3399 = vmatprep.subr.mxu0 0.0
    %3400 = vmatpush1.msra.mxu0 0.0
    %3401 = vmatprep.subr.mxu0 0.0
    %3402 = vmatpush1.msra.mxu0 %v351
    %3403 = vmatprep.subr.mxu0 0.0
    %3404 = vmatpush1.msra.mxu0 %v350
    %3405 = vmatprep.subr.mxu0 0.0
    %3406 = vmatpush1.msra.mxu0 %v349
    %3407 = vmatprep.subr.mxu0 0.0
    %3408 = vmatpush1.msra.mxu0 %v348
    %3409 = vmatprep.subr.mxu0 0.0
    %3410 = vmatpush2.msra.mxu0 0.0
    %3411 = vmatprep.subr.mxu0 0.0
    %3412 = vmatpush2.msra.mxu0 0.0
    %3413 = vmatprep.subr.mxu0 0.0
    %3414 = vmatpush2.msra.mxu0 0.0
    %3415 = vmatprep.subr.mxu0 0.0
    %3416 = vmatpush2.msra.mxu0 0.0
    %3417 = vmatprep.subr.mxu0 0.0
    %3418 = vmatpush2.msra.mxu0 0.0
    %3419 = vmatprep.subr.mxu0 0.0
    %3420 = vmatpush2.msra.mxu0 0.0
    %3421 = vmatprep.subr.mxu0 0.0
    %3422 = vmatpush2.msra.mxu0 0.0
    %3423 = vmatprep.subr.mxu0 0.0
    %3424 = vmatpush2.msra.mxu0 0.0
    %3425 = vmatprep.subr.mxu0 0.0
    %3426 = vmatpush2.msra.mxu0 0.0
    %3427 = vmatprep.subr.mxu0 0.0
    %3428 = vmatpush2.msra.mxu0 0.0
    %3429 = vmatprep.subr.mxu0 0.0
    %3430 = vmatpush2.msra.mxu0 0.0
    %3431 = vmatprep.subr.mxu0 0.0
    %3432 = vmatpush2.msra.mxu0 0.0
    %3433 = vmatprep.subr.mxu0 0.0
    %3434 = vmatpush2.msra.mxu0 0.0
    %3435 = vmatprep.subr.mxu0 0.0
    %3436 = vmatpush2.msra.mxu0 0.0
    %3437 = vmatprep.subr.mxu0 0.0
    %3438 = vmatpush2.msra.mxu0 0.0
    %3439 = vmatprep.subr.mxu0 0.0
    %3440 = vmatpush2.msra.mxu0 0.0
    %3441 = vmatprep.mubr.f32.mxu0 0.0
    %3442 = vmatmul.mubr.f32.gmra.mxu0 %v3372
    %v3443 = vpop.f32.mrf.mxu0
    %v3444 = vadd.f32 0.0, %v3443
    %v3445 = vpop.f32.mrf.mxu0
    %3446 = vmatprep.mubr.f32.mxu0 0.0
    %3447 = vmatmul.mubr.f32.gmra.mxu0 %v3375
    %v3448 = vpop.f32.mrf.mxu0
    %v3449 = vadd.f32 0.0, %v3448
    %v3450 = vpop.f32.mrf.mxu0
    %3451 = vdwg.mxu0
    %v3453 = vsel %vm2884, %v1028, 0
    %v3456 = vsel %vm2884, %v1033, 0
    %3458 = vmatprep.subr.mxu0 0.0
    %3459 = vmatpush1.msra.mxu0 0.0
    %3460 = vmatprep.subr.mxu0 0.0
    %3461 = vmatpush1.msra.mxu0 0.0
    %3462 = vmatprep.subr.mxu0 0.0
    %3463 = vmatpush1.msra.mxu0 0.0
    %3464 = vmatprep.subr.mxu0 0.0
    %3465 = vmatpush1.msra.mxu0 0.0
    %3466 = vmatprep.subr.mxu0 0.0
    %3467 = vmatpush1.msra.mxu0 0.0
    %3468 = vmatprep.subr.mxu0 0.0
    %3469 = vmatpush1.msra.mxu0 0.0
    %3470 = vmatprep.subr.mxu0 0.0
    %3471 = vmatpush1.msra.mxu0 0.0
    %3472 = vmatprep.subr.mxu0 0.0
    %3473 = vmatpush1.msra.mxu0 0.0
    %3474 = vmatprep.subr.mxu0 0.0
    %3475 = vmatpush1.msra.mxu0 0.0
    %3476 = vmatprep.subr.mxu0 0.0
    %3477 = vmatpush1.msra.mxu0 0.0
    %3478 = vmatprep.subr.mxu0 0.0
    %3479 = vmatpush1.msra.mxu0 0.0
    %3480 = vmatprep.subr.mxu0 0.0
    %3481 = vmatpush1.msra.mxu0 0.0
    %3482 = vmatprep.subr.mxu0 0.0
    %3483 = vmatpush1.msra.mxu0 %v355
    %3484 = vmatprep.subr.mxu0 0.0
    %3485 = vmatpush1.msra.mxu0 %v354
    %3486 = vmatprep.subr.mxu0 0.0
    %3487 = vmatpush1.msra.mxu0 %v353
    %3488 = vmatprep.subr.mxu0 0.0
    %3489 = vmatpush1.msra.mxu0 %v352
    %3490 = vmatprep.subr.mxu0 0.0
    %3491 = vmatpush2.msra.mxu0 0.0
    %3492 = vmatprep.subr.mxu0 0.0
    %3493 = vmatpush2.msra.mxu0 0.0
    %3494 = vmatprep.subr.mxu0 0.0
    %3495 = vmatpush2.msra.mxu0 0.0
    %3496 = vmatprep.subr.mxu0 0.0
    %3497 = vmatpush2.msra.mxu0 0.0
    %3498 = vmatprep.subr.mxu0 0.0
    %3499 = vmatpush2.msra.mxu0 0.0
    %3500 = vmatprep.subr.mxu0 0.0
    %3501 = vmatpush2.msra.mxu0 0.0
    %3502 = vmatprep.subr.mxu0 0.0
    %3503 = vmatpush2.msra.mxu0 0.0
    %3504 = vmatprep.subr.mxu0 0.0
    %3505 = vmatpush2.msra.mxu0 0.0
    %3506 = vmatprep.subr.mxu0 0.0
    %3507 = vmatpush2.msra.mxu0 0.0
    %3508 = vmatprep.subr.mxu0 0.0
    %3509 = vmatpush2.msra.mxu0 0.0
    %3510 = vmatprep.subr.mxu0 0.0
    %3511 = vmatpush2.msra.mxu0 0.0
    %3512 = vmatprep.subr.mxu0 0.0
    %3513 = vmatpush2.msra.mxu0 0.0
    %3514 = vmatprep.subr.mxu0 0.0
    %3515 = vmatpush2.msra.mxu0 0.0
    %3516 = vmatprep.subr.mxu0 0.0
    %3517 = vmatpush2.msra.mxu0 0.0
    %3518 = vmatprep.subr.mxu0 0.0
    %3519 = vmatpush2.msra.mxu0 0.0
    %3520 = vmatprep.subr.mxu0 0.0
    %3521 = vmatpush2.msra.mxu0 0.0
    %3522 = vmatprep.mubr.f32.mxu0 0.0
    %3523 = vmatmul.mubr.f32.gmra.mxu0 %v3453
    %v3524 = vpop.f32.mrf.mxu0
    %v3525 = vadd.f32 0.0, %v3524
    %v3526 = vpop.f32.mrf.mxu0
    %3527 = vmatprep.mubr.f32.mxu0 0.0
    %3528 = vmatmul.mubr.f32.gmra.mxu0 %v3456
    %v3529 = vpop.f32.mrf.mxu0
    %v3530 = vadd.f32 0.0, %v3529
    %v3531 = vpop.f32.mrf.mxu0
    %3532 = vdwg.mxu0
    %v3534 = vsel %vm2884, %v1109, 0
    %v3537 = vsel %vm2884, %v1114, 0
    %3539 = vmatprep.subr.mxu0 0.0
    %3540 = vmatpush1.msra.mxu0 0.0
    %3541 = vmatprep.subr.mxu0 0.0
    %3542 = vmatpush1.msra.mxu0 0.0
    %3543 = vmatprep.subr.mxu0 0.0
    %3544 = vmatpush1.msra.mxu0 0.0
    %3545 = vmatprep.subr.mxu0 0.0
    %3546 = vmatpush1.msra.mxu0 0.0
    %3547 = vmatprep.subr.mxu0 0.0
    %3548 = vmatpush1.msra.mxu0 0.0
    %3549 = vmatprep.subr.mxu0 0.0
    %3550 = vmatpush1.msra.mxu0 0.0
    %3551 = vmatprep.subr.mxu0 0.0
    %3552 = vmatpush1.msra.mxu0 0.0
    %3553 = vmatprep.subr.mxu0 0.0
    %3554 = vmatpush1.msra.mxu0 0.0
    %3555 = vmatprep.subr.mxu0 0.0
    %3556 = vmatpush1.msra.mxu0 0.0
    %3557 = vmatprep.subr.mxu0 0.0
    %3558 = vmatpush1.msra.mxu0 0.0
    %3559 = vmatprep.subr.mxu0 0.0
    %3560 = vmatpush1.msra.mxu0 0.0
    %3561 = vmatprep.subr.mxu0 0.0
    %3562 = vmatpush1.msra.mxu0 0.0
    %3563 = vmatprep.subr.mxu0 0.0
    %3564 = vmatpush1.msra.mxu0 %v359
    %3565 = vmatprep.subr.mxu0 0.0
    %3566 = vmatpush1.msra.mxu0 %v358
    %3567 = vmatprep.subr.mxu0 0.0
    %3568 = vmatpush1.msra.mxu0 %v357
    %3569 = vmatprep.subr.mxu0 0.0
    %3570 = vmatpush1.msra.mxu0 %v356
    %3571 = vmatprep.subr.mxu0 0.0
    %3572 = vmatpush2.msra.mxu0 0.0
    %3573 = vmatprep.subr.mxu0 0.0
    %3574 = vmatpush2.msra.mxu0 0.0
    %3575 = vmatprep.subr.mxu0 0.0
    %3576 = vmatpush2.msra.mxu0 0.0
    %3577 = vmatprep.subr.mxu0 0.0
    %3578 = vmatpush2.msra.mxu0 0.0
    %3579 = vmatprep.subr.mxu0 0.0
    %3580 = vmatpush2.msra.mxu0 0.0
    %3581 = vmatprep.subr.mxu0 0.0
    %3582 = vmatpush2.msra.mxu0 0.0
    %3583 = vmatprep.subr.mxu0 0.0
    %3584 = vmatpush2.msra.mxu0 0.0
    %3585 = vmatprep.subr.mxu0 0.0
    %3586 = vmatpush2.msra.mxu0 0.0
    %3587 = vmatprep.subr.mxu0 0.0
    %3588 = vmatpush2.msra.mxu0 0.0
    %3589 = vmatprep.subr.mxu0 0.0
    %3590 = vmatpush2.msra.mxu0 0.0
    %3591 = vmatprep.subr.mxu0 0.0
    %3592 = vmatpush2.msra.mxu0 0.0
    %3593 = vmatprep.subr.mxu0 0.0
    %3594 = vmatpush2.msra.mxu0 0.0
    %3595 = vmatprep.subr.mxu0 0.0
    %3596 = vmatpush2.msra.mxu0 0.0
    %3597 = vmatprep.subr.mxu0 0.0
    %3598 = vmatpush2.msra.mxu0 0.0
    %3599 = vmatprep.subr.mxu0 0.0
    %3600 = vmatpush2.msra.mxu0 0.0
    %3601 = vmatprep.subr.mxu0 0.0
    %3602 = vmatpush2.msra.mxu0 0.0
    %3603 = vmatprep.mubr.f32.mxu0 0.0
    %3604 = vmatmul.mubr.f32.gmra.mxu0 %v3534
    %v3605 = vpop.f32.mrf.mxu0
    %v3606 = vadd.f32 0.0, %v3605
    %v3607 = vpop.f32.mrf.mxu0
    %3608 = vmatprep.mubr.f32.mxu0 0.0
    %3609 = vmatmul.mubr.f32.gmra.mxu0 %v3537
    %v3610 = vpop.f32.mrf.mxu0
    %v3611 = vadd.f32 0.0, %v3610
    %v3612 = vpop.f32.mrf.mxu0
    %3613 = vdwg.mxu0
    %v3615 = vsel %vm2884, %v1190, 0
    %v3618 = vsel %vm2884, %v1195, 0
    %3620 = vmatprep.subr.mxu0 0.0
    %3621 = vmatpush1.msra.mxu0 0.0
    %3622 = vmatprep.subr.mxu0 0.0
    %3623 = vmatpush1.msra.mxu0 0.0
    %3624 = vmatprep.subr.mxu0 0.0
    %3625 = vmatpush1.msra.mxu0 0.0
    %3626 = vmatprep.subr.mxu0 0.0
    %3627 = vmatpush1.msra.mxu0 0.0
    %3628 = vmatprep.subr.mxu0 0.0
    %3629 = vmatpush1.msra.mxu0 0.0
    %3630 = vmatprep.subr.mxu0 0.0
    %3631 = vmatpush1.msra.mxu0 0.0
    %3632 = vmatprep.subr.mxu0 0.0
    %3633 = vmatpush1.msra.mxu0 0.0
    %3634 = vmatprep.subr.mxu0 0.0
    %3635 = vmatpush1.msra.mxu0 0.0
    %3636 = vmatprep.subr.mxu0 0.0
    %3637 = vmatpush1.msra.mxu0 0.0
    %3638 = vmatprep.subr.mxu0 0.0
    %3639 = vmatpush1.msra.mxu0 0.0
    %3640 = vmatprep.subr.mxu0 0.0
    %3641 = vmatpush1.msra.mxu0 0.0
    %3642 = vmatprep.subr.mxu0 0.0
    %3643 = vmatpush1.msra.mxu0 0.0
    %3644 = vmatprep.subr.mxu0 0.0
    %3645 = vmatpush1.msra.mxu0 %v363
    %3646 = vmatprep.subr.mxu0 0.0
    %3647 = vmatpush1.msra.mxu0 %v362
    %3648 = vmatprep.subr.mxu0 0.0
    %3649 = vmatpush1.msra.mxu0 %v361
    %3650 = vmatprep.subr.mxu0 0.0
    %3651 = vmatpush1.msra.mxu0 %v360
    %3652 = vmatprep.subr.mxu0 0.0
    %3653 = vmatpush2.msra.mxu0 0.0
    %3654 = vmatprep.subr.mxu0 0.0
    %3655 = vmatpush2.msra.mxu0 0.0
    %3656 = vmatprep.subr.mxu0 0.0
    %3657 = vmatpush2.msra.mxu0 0.0
    %3658 = vmatprep.subr.mxu0 0.0
    %3659 = vmatpush2.msra.mxu0 0.0
    %3660 = vmatprep.subr.mxu0 0.0
    %3661 = vmatpush2.msra.mxu0 0.0
    %3662 = vmatprep.subr.mxu0 0.0
    %3663 = vmatpush2.msra.mxu0 0.0
    %3664 = vmatprep.subr.mxu0 0.0
    %3665 = vmatpush2.msra.mxu0 0.0
    %3666 = vmatprep.subr.mxu0 0.0
    %3667 = vmatpush2.msra.mxu0 0.0
    %3668 = vmatprep.subr.mxu0 0.0
    %3669 = vmatpush2.msra.mxu0 0.0
    %3670 = vmatprep.subr.mxu0 0.0
    %3671 = vmatpush2.msra.mxu0 0.0
    %3672 = vmatprep.subr.mxu0 0.0
    %3673 = vmatpush2.msra.mxu0 0.0
    %3674 = vmatprep.subr.mxu0 0.0
    %3675 = vmatpush2.msra.mxu0 0.0
    %3676 = vmatprep.subr.mxu0 0.0
    %3677 = vmatpush2.msra.mxu0 0.0
    %3678 = vmatprep.subr.mxu0 0.0
    %3679 = vmatpush2.msra.mxu0 0.0
    %3680 = vmatprep.subr.mxu0 0.0
    %3681 = vmatpush2.msra.mxu0 0.0
    %3682 = vmatprep.subr.mxu0 0.0
    %3683 = vmatpush2.msra.mxu0 0.0
    %3684 = vmatprep.mubr.f32.mxu0 0.0
    %3685 = vmatmul.mubr.f32.gmra.mxu0 %v3615
    %v3686 = vpop.f32.mrf.mxu0
    %v3687 = vadd.f32 0.0, %v3686
    %v3688 = vpop.f32.mrf.mxu0
    %3689 = vmatprep.mubr.f32.mxu0 0.0
    %3690 = vmatmul.mubr.f32.gmra.mxu0 %v3618
    %v3691 = vpop.f32.mrf.mxu0
    %v3692 = vadd.f32 0.0, %v3691
    %v3693 = vpop.f32.mrf.mxu0
    %3694 = vdwg.mxu0
    %v3696 = vsel %vm2884, %v1271, 0
    %v3699 = vsel %vm2884, %v1276, 0
    %3701 = vmatprep.subr.mxu0 0.0
    %3702 = vmatpush1.msra.mxu0 0.0
    %3703 = vmatprep.subr.mxu0 0.0
    %3704 = vmatpush1.msra.mxu0 0.0
    %3705 = vmatprep.subr.mxu0 0.0
    %3706 = vmatpush1.msra.mxu0 0.0
    %3707 = vmatprep.subr.mxu0 0.0
    %3708 = vmatpush1.msra.mxu0 0.0
    %3709 = vmatprep.subr.mxu0 0.0
    %3710 = vmatpush1.msra.mxu0 0.0
    %3711 = vmatprep.subr.mxu0 0.0
    %3712 = vmatpush1.msra.mxu0 0.0
    %3713 = vmatprep.subr.mxu0 0.0
    %3714 = vmatpush1.msra.mxu0 0.0
    %3715 = vmatprep.subr.mxu0 0.0
    %3716 = vmatpush1.msra.mxu0 0.0
    %3717 = vmatprep.subr.mxu0 0.0
    %3718 = vmatpush1.msra.mxu0 0.0
    %3719 = vmatprep.subr.mxu0 0.0
    %3720 = vmatpush1.msra.mxu0 0.0
    %3721 = vmatprep.subr.mxu0 0.0
    %3722 = vmatpush1.msra.mxu0 0.0
    %3723 = vmatprep.subr.mxu0 0.0
    %3724 = vmatpush1.msra.mxu0 0.0
    %3725 = vmatprep.subr.mxu0 0.0
    %3726 = vmatpush1.msra.mxu0 %v367
    %3727 = vmatprep.subr.mxu0 0.0
    %3728 = vmatpush1.msra.mxu0 %v366
    %3729 = vmatprep.subr.mxu0 0.0
    %3730 = vmatpush1.msra.mxu0 %v365
    %3731 = vmatprep.subr.mxu0 0.0
    %3732 = vmatpush1.msra.mxu0 %v364
    %3733 = vmatprep.subr.mxu0 0.0
    %3734 = vmatpush2.msra.mxu0 0.0
    %3735 = vmatprep.subr.mxu0 0.0
    %3736 = vmatpush2.msra.mxu0 0.0
    %3737 = vmatprep.subr.mxu0 0.0
    %3738 = vmatpush2.msra.mxu0 0.0
    %3739 = vmatprep.subr.mxu0 0.0
    %3740 = vmatpush2.msra.mxu0 0.0
    %3741 = vmatprep.subr.mxu0 0.0
    %3742 = vmatpush2.msra.mxu0 0.0
    %3743 = vmatprep.subr.mxu0 0.0
    %3744 = vmatpush2.msra.mxu0 0.0
    %3745 = vmatprep.subr.mxu0 0.0
    %3746 = vmatpush2.msra.mxu0 0.0
    %3747 = vmatprep.subr.mxu0 0.0
    %3748 = vmatpush2.msra.mxu0 0.0
    %3749 = vmatprep.subr.mxu0 0.0
    %3750 = vmatpush2.msra.mxu0 0.0
    %3751 = vmatprep.subr.mxu0 0.0
    %3752 = vmatpush2.msra.mxu0 0.0
    %3753 = vmatprep.subr.mxu0 0.0
    %3754 = vmatpush2.msra.mxu0 0.0
    %3755 = vmatprep.subr.mxu0 0.0
    %3756 = vmatpush2.msra.mxu0 0.0
    %3757 = vmatprep.subr.mxu0 0.0
    %3758 = vmatpush2.msra.mxu0 0.0
    %3759 = vmatprep.subr.mxu0 0.0
    %3760 = vmatpush2.msra.mxu0 0.0
    %3761 = vmatprep.subr.mxu0 0.0
    %3762 = vmatpush2.msra.mxu0 0.0
    %3763 = vmatprep.subr.mxu0 0.0
    %3764 = vmatpush2.msra.mxu0 0.0
    %3765 = vmatprep.mubr.f32.mxu0 0.0
    %3766 = vmatmul.mubr.f32.gmra.mxu0 %v3696
    %v3767 = vpop.f32.mrf.mxu0
    %v3768 = vadd.f32 0.0, %v3767
    %v3769 = vpop.f32.mrf.mxu0
    %3770 = vmatprep.mubr.f32.mxu0 0.0
    %3771 = vmatmul.mubr.f32.gmra.mxu0 %v3699
    %v3772 = vpop.f32.mrf.mxu0
    %v3773 = vadd.f32 0.0, %v3772
    %v3774 = vpop.f32.mrf.mxu0
    %3775 = vdwg.mxu0
    %v3777 = vsel %vm2884, %v1352, 0
    %v3780 = vsel %vm2884, %v1357, 0
    %3782 = vmatprep.subr.mxu0 0.0
    %3783 = vmatpush1.msra.mxu0 0.0
    %3784 = vmatprep.subr.mxu0 0.0
    %3785 = vmatpush1.msra.mxu0 0.0
    %3786 = vmatprep.subr.mxu0 0.0
    %3787 = vmatpush1.msra.mxu0 0.0
    %3788 = vmatprep.subr.mxu0 0.0
    %3789 = vmatpush1.msra.mxu0 0.0
    %3790 = vmatprep.subr.mxu0 0.0
    %3791 = vmatpush1.msra.mxu0 0.0
    %3792 = vmatprep.subr.mxu0 0.0
    %3793 = vmatpush1.msra.mxu0 0.0
    %3794 = vmatprep.subr.mxu0 0.0
    %3795 = vmatpush1.msra.mxu0 0.0
    %3796 = vmatprep.subr.mxu0 0.0
    %3797 = vmatpush1.msra.mxu0 0.0
    %3798 = vmatprep.subr.mxu0 0.0
    %3799 = vmatpush1.msra.mxu0 0.0
    %3800 = vmatprep.subr.mxu0 0.0
    %3801 = vmatpush1.msra.mxu0 0.0
    %3802 = vmatprep.subr.mxu0 0.0
    %3803 = vmatpush1.msra.mxu0 0.0
    %3804 = vmatprep.subr.mxu0 0.0
    %3805 = vmatpush1.msra.mxu0 0.0
    %3806 = vmatprep.subr.mxu0 0.0
    %3807 = vmatpush1.msra.mxu0 %v371
    %3808 = vmatprep.subr.mxu0 0.0
    %3809 = vmatpush1.msra.mxu0 %v370
    %3810 = vmatprep.subr.mxu0 0.0
    %3811 = vmatpush1.msra.mxu0 %v369
    %3812 = vmatprep.subr.mxu0 0.0
    %3813 = vmatpush1.msra.mxu0 %v368
    %3814 = vmatprep.subr.mxu0 0.0
    %3815 = vmatpush2.msra.mxu0 0.0
    %3816 = vmatprep.subr.mxu0 0.0
    %3817 = vmatpush2.msra.mxu0 0.0
    %3818 = vmatprep.subr.mxu0 0.0
    %3819 = vmatpush2.msra.mxu0 0.0
    %3820 = vmatprep.subr.mxu0 0.0
    %3821 = vmatpush2.msra.mxu0 0.0
    %3822 = vmatprep.subr.mxu0 0.0
    %3823 = vmatpush2.msra.mxu0 0.0
    %3824 = vmatprep.subr.mxu0 0.0
    %3825 = vmatpush2.msra.mxu0 0.0
    %3826 = vmatprep.subr.mxu0 0.0
    %3827 = vmatpush2.msra.mxu0 0.0
    %3828 = vmatprep.subr.mxu0 0.0
    %3829 = vmatpush2.msra.mxu0 0.0
    %3830 = vmatprep.subr.mxu0 0.0
    %3831 = vmatpush2.msra.mxu0 0.0
    %3832 = vmatprep.subr.mxu0 0.0
    %3833 = vmatpush2.msra.mxu0 0.0
    %3834 = vmatprep.subr.mxu0 0.0
    %3835 = vmatpush2.msra.mxu0 0.0
    %3836 = vmatprep.subr.mxu0 0.0
    %3837 = vmatpush2.msra.mxu0 0.0
    %3838 = vmatprep.subr.mxu0 0.0
    %3839 = vmatpush2.msra.mxu0 0.0
    %3840 = vmatprep.subr.mxu0 0.0
    %3841 = vmatpush2.msra.mxu0 0.0
    %3842 = vmatprep.subr.mxu0 0.0
    %3843 = vmatpush2.msra.mxu0 0.0
    %3844 = vmatprep.subr.mxu0 0.0
    %3845 = vmatpush2.msra.mxu0 0.0
    %3846 = vmatprep.mubr.f32.mxu0 0.0
    %3847 = vmatmul.mubr.f32.gmra.mxu0 %v3777
    %v3848 = vpop.f32.mrf.mxu0
    %v3849 = vadd.f32 0.0, %v3848
    %v3850 = vpop.f32.mrf.mxu0
    %3851 = vmatprep.mubr.f32.mxu0 0.0
    %3852 = vmatmul.mubr.f32.gmra.mxu0 %v3780
    %v3853 = vpop.f32.mrf.mxu0
    %v3854 = vadd.f32 0.0, %v3853
    %v3855 = vpop.f32.mrf.mxu0
    %3856 = vdwg.mxu0
    %v3858 = vsel %vm2884, %v1433, 0
    %v3861 = vsel %vm2884, %v1438, 0
    %3863 = vmatprep.subr.mxu0 0.0
    %3864 = vmatpush1.msra.mxu0 0.0
    %3865 = vmatprep.subr.mxu0 0.0
    %3866 = vmatpush1.msra.mxu0 0.0
    %3867 = vmatprep.subr.mxu0 0.0
    %3868 = vmatpush1.msra.mxu0 0.0
    %3869 = vmatprep.subr.mxu0 0.0
    %3870 = vmatpush1.msra.mxu0 0.0
    %3871 = vmatprep.subr.mxu0 0.0
    %3872 = vmatpush1.msra.mxu0 0.0
    %3873 = vmatprep.subr.mxu0 0.0
    %3874 = vmatpush1.msra.mxu0 0.0
    %3875 = vmatprep.subr.mxu0 0.0
    %3876 = vmatpush1.msra.mxu0 0.0
    %3877 = vmatprep.subr.mxu0 0.0
    %3878 = vmatpush1.msra.mxu0 0.0
    %3879 = vmatprep.subr.mxu0 0.0
    %3880 = vmatpush1.msra.mxu0 0.0
    %3881 = vmatprep.subr.mxu0 0.0
    %3882 = vmatpush1.msra.mxu0 0.0
    %3883 = vmatprep.subr.mxu0 0.0
    %3884 = vmatpush1.msra.mxu0 0.0
    %3885 = vmatprep.subr.mxu0 0.0
    %3886 = vmatpush1.msra.mxu0 0.0
    %3887 = vmatprep.subr.mxu0 0.0
    %3888 = vmatpush1.msra.mxu0 %v375
    %3889 = vmatprep.subr.mxu0 0.0
    %3890 = vmatpush1.msra.mxu0 %v374
    %3891 = vmatprep.subr.mxu0 0.0
    %3892 = vmatpush1.msra.mxu0 %v373
    %3893 = vmatprep.subr.mxu0 0.0
    %3894 = vmatpush1.msra.mxu0 %v372
    %3895 = vmatprep.subr.mxu0 0.0
    %3896 = vmatpush2.msra.mxu0 0.0
    %3897 = vmatprep.subr.mxu0 0.0
    %3898 = vmatpush2.msra.mxu0 0.0
    %3899 = vmatprep.subr.mxu0 0.0
    %3900 = vmatpush2.msra.mxu0 0.0
    %3901 = vmatprep.subr.mxu0 0.0
    %3902 = vmatpush2.msra.mxu0 0.0
    %3903 = vmatprep.subr.mxu0 0.0
    %3904 = vmatpush2.msra.mxu0 0.0
    %3905 = vmatprep.subr.mxu0 0.0
    %3906 = vmatpush2.msra.mxu0 0.0
    %3907 = vmatprep.subr.mxu0 0.0
    %3908 = vmatpush2.msra.mxu0 0.0
    %3909 = vmatprep.subr.mxu0 0.0
    %3910 = vmatpush2.msra.mxu0 0.0
    %3911 = vmatprep.subr.mxu0 0.0
    %3912 = vmatpush2.msra.mxu0 0.0
    %3913 = vmatprep.subr.mxu0 0.0
    %3914 = vmatpush2.msra.mxu0 0.0
    %3915 = vmatprep.subr.mxu0 0.0
    %3916 = vmatpush2.msra.mxu0 0.0
    %3917 = vmatprep.subr.mxu0 0.0
    %3918 = vmatpush2.msra.mxu0 0.0
    %3919 = vmatprep.subr.mxu0 0.0
    %3920 = vmatpush2.msra.mxu0 0.0
    %3921 = vmatprep.subr.mxu0 0.0
    %3922 = vmatpush2.msra.mxu0 0.0
    %3923 = vmatprep.subr.mxu0 0.0
    %3924 = vmatpush2.msra.mxu0 0.0
    %3925 = vmatprep.subr.mxu0 0.0
    %3926 = vmatpush2.msra.mxu0 0.0
    %3927 = vmatprep.mubr.f32.mxu0 0.0
    %3928 = vmatmul.mubr.f32.gmra.mxu0 %v3858
    %v3929 = vpop.f32.mrf.mxu0
    %v3930 = vadd.f32 0.0, %v3929
    %v3931 = vpop.f32.mrf.mxu0
    %3932 = vmatprep.mubr.f32.mxu0 0.0
    %3933 = vmatmul.mubr.f32.gmra.mxu0 %v3861
    %v3934 = vpop.f32.mrf.mxu0
    %v3935 = vadd.f32 0.0, %v3934
    %v3936 = vpop.f32.mrf.mxu0
    %3937 = vdwg.mxu0
    %v3939 = vsel %vm2884, %v1514, 0
    %v3942 = vsel %vm2884, %v1519, 0
    %3944 = vmatprep.subr.mxu0 0.0
    %3945 = vmatpush1.msra.mxu0 0.0
    %3946 = vmatprep.subr.mxu0 0.0
    %3947 = vmatpush1.msra.mxu0 0.0
    %3948 = vmatprep.subr.mxu0 0.0
    %3949 = vmatpush1.msra.mxu0 0.0
    %3950 = vmatprep.subr.mxu0 0.0
    %3951 = vmatpush1.msra.mxu0 0.0
    %3952 = vmatprep.subr.mxu0 0.0
    %3953 = vmatpush1.msra.mxu0 0.0
    %3954 = vmatprep.subr.mxu0 0.0
    %3955 = vmatpush1.msra.mxu0 0.0
    %3956 = vmatprep.subr.mxu0 0.0
    %3957 = vmatpush1.msra.mxu0 0.0
    %3958 = vmatprep.subr.mxu0 0.0
    %3959 = vmatpush1.msra.mxu0 0.0
    %3960 = vmatprep.subr.mxu0 0.0
    %3961 = vmatpush1.msra.mxu0 0.0
    %3962 = vmatprep.subr.mxu0 0.0
    %3963 = vmatpush1.msra.mxu0 0.0
    %3964 = vmatprep.subr.mxu0 0.0
    %3965 = vmatpush1.msra.mxu0 0.0
    %3966 = vmatprep.subr.mxu0 0.0
    %3967 = vmatpush1.msra.mxu0 0.0
    %3968 = vmatprep.subr.mxu0 0.0
    %3969 = vmatpush1.msra.mxu0 %v379
    %3970 = vmatprep.subr.mxu0 0.0
    %3971 = vmatpush1.msra.mxu0 %v378
    %3972 = vmatprep.subr.mxu0 0.0
    %3973 = vmatpush1.msra.mxu0 %v377
    %3974 = vmatprep.subr.mxu0 0.0
    %3975 = vmatpush1.msra.mxu0 %v376
    %3976 = vmatprep.subr.mxu0 0.0
    %3977 = vmatpush2.msra.mxu0 0.0
    %3978 = vmatprep.subr.mxu0 0.0
    %3979 = vmatpush2.msra.mxu0 0.0
    %3980 = vmatprep.subr.mxu0 0.0
    %3981 = vmatpush2.msra.mxu0 0.0
    %3982 = vmatprep.subr.mxu0 0.0
    %3983 = vmatpush2.msra.mxu0 0.0
    %3984 = vmatprep.subr.mxu0 0.0
    %3985 = vmatpush2.msra.mxu0 0.0
    %3986 = vmatprep.subr.mxu0 0.0
    %3987 = vmatpush2.msra.mxu0 0.0
    %3988 = vmatprep.subr.mxu0 0.0
    %3989 = vmatpush2.msra.mxu0 0.0
    %3990 = vmatprep.subr.mxu0 0.0
    %3991 = vmatpush2.msra.mxu0 0.0
    %3992 = vmatprep.subr.mxu0 0.0
    %3993 = vmatpush2.msra.mxu0 0.0
    %3994 = vmatprep.subr.mxu0 0.0
    %3995 = vmatpush2.msra.mxu0 0.0
    %3996 = vmatprep.subr.mxu0 0.0
    %3997 = vmatpush2.msra.mxu0 0.0
    %3998 = vmatprep.subr.mxu0 0.0
    %3999 = vmatpush2.msra.mxu0 0.0
    %4000 = vmatprep.subr.mxu0 0.0
    %4001 = vmatpush2.msra.mxu0 0.0
    %4002 = vmatprep.subr.mxu0 0.0
    %4003 = vmatpush2.msra.mxu0 0.0
    %4004 = vmatprep.subr.mxu0 0.0
    %4005 = vmatpush2.msra.mxu0 0.0
    %4006 = vmatprep.subr.mxu0 0.0
    %4007 = vmatpush2.msra.mxu0 0.0
    %4008 = vmatprep.mubr.f32.mxu0 0.0
    %4009 = vmatmul.mubr.f32.gmra.mxu0 %v3939
    %v4010 = vpop.f32.mrf.mxu0
    %v4011 = vadd.f32 0.0, %v4010
    %v4012 = vpop.f32.mrf.mxu0
    %4013 = vmatprep.mubr.f32.mxu0 0.0
    %4014 = vmatmul.mubr.f32.gmra.mxu0 %v3942
    %v4015 = vpop.f32.mrf.mxu0
    %v4016 = vadd.f32 0.0, %v4015
    %v4017 = vpop.f32.mrf.mxu0
    %4018 = vdwg.mxu0
    %v4020 = vsel %vm2884, %v1595, 0
    %v4023 = vsel %vm2884, %v1600, 0
    %4025 = vmatprep.subr.mxu0 0.0
    %4026 = vmatpush1.msra.mxu0 0.0
    %4027 = vmatprep.subr.mxu0 0.0
    %4028 = vmatpush1.msra.mxu0 0.0
    %4029 = vmatprep.subr.mxu0 0.0
    %4030 = vmatpush1.msra.mxu0 0.0
    %4031 = vmatprep.subr.mxu0 0.0
    %4032 = vmatpush1.msra.mxu0 0.0
    %4033 = vmatprep.subr.mxu0 0.0
    %4034 = vmatpush1.msra.mxu0 0.0
    %4035 = vmatprep.subr.mxu0 0.0
    %4036 = vmatpush1.msra.mxu0 0.0
    %4037 = vmatprep.subr.mxu0 0.0
    %4038 = vmatpush1.msra.mxu0 0.0
    %4039 = vmatprep.subr.mxu0 0.0
    %4040 = vmatpush1.msra.mxu0 0.0
    %4041 = vmatprep.subr.mxu0 0.0
    %4042 = vmatpush1.msra.mxu0 0.0
    %4043 = vmatprep.subr.mxu0 0.0
    %4044 = vmatpush1.msra.mxu0 0.0
    %4045 = vmatprep.subr.mxu0 0.0
    %4046 = vmatpush1.msra.mxu0 0.0
    %4047 = vmatprep.subr.mxu0 0.0
    %4048 = vmatpush1.msra.mxu0 0.0
    %4049 = vmatprep.subr.mxu0 0.0
    %4050 = vmatpush1.msra.mxu0 %v383
    %4051 = vmatprep.subr.mxu0 0.0
    %4052 = vmatpush1.msra.mxu0 %v382
    %4053 = vmatprep.subr.mxu0 0.0
    %4054 = vmatpush1.msra.mxu0 %v381
    %4055 = vmatprep.subr.mxu0 0.0
    %4056 = vmatpush1.msra.mxu0 %v380
    %4057 = vmatprep.subr.mxu0 0.0
    %4058 = vmatpush2.msra.mxu0 0.0
    %4059 = vmatprep.subr.mxu0 0.0
    %4060 = vmatpush2.msra.mxu0 0.0
    %4061 = vmatprep.subr.mxu0 0.0
    %4062 = vmatpush2.msra.mxu0 0.0
    %4063 = vmatprep.subr.mxu0 0.0
    %4064 = vmatpush2.msra.mxu0 0.0
    %4065 = vmatprep.subr.mxu0 0.0
    %4066 = vmatpush2.msra.mxu0 0.0
    %4067 = vmatprep.subr.mxu0 0.0
    %4068 = vmatpush2.msra.mxu0 0.0
    %4069 = vmatprep.subr.mxu0 0.0
    %4070 = vmatpush2.msra.mxu0 0.0
    %4071 = vmatprep.subr.mxu0 0.0
    %4072 = vmatpush2.msra.mxu0 0.0
    %4073 = vmatprep.subr.mxu0 0.0
    %4074 = vmatpush2.msra.mxu0 0.0
    %4075 = vmatprep.subr.mxu0 0.0
    %4076 = vmatpush2.msra.mxu0 0.0
    %4077 = vmatprep.subr.mxu0 0.0
    %4078 = vmatpush2.msra.mxu0 0.0
    %4079 = vmatprep.subr.mxu0 0.0
    %4080 = vmatpush2.msra.mxu0 0.0
    %4081 = vmatprep.subr.mxu0 0.0
    %4082 = vmatpush2.msra.mxu0 0.0
    %4083 = vmatprep.subr.mxu0 0.0
    %4084 = vmatpush2.msra.mxu0 0.0
    %4085 = vmatprep.subr.mxu0 0.0
    %4086 = vmatpush2.msra.mxu0 0.0
    %4087 = vmatprep.subr.mxu0 0.0
    %4088 = vmatpush2.msra.mxu0 0.0
    %4089 = vmatprep.mubr.f32.mxu0 0.0
    %4090 = vmatmul.mubr.f32.gmra.mxu0 %v4020
    %v4091 = vpop.f32.mrf.mxu0
    %v4092 = vadd.f32 0.0, %v4091
    %v4093 = vpop.f32.mrf.mxu0
    %4094 = vmatprep.mubr.f32.mxu0 0.0
    %4095 = vmatmul.mubr.f32.gmra.mxu0 %v4023
    %v4096 = vpop.f32.mrf.mxu0
    %v4097 = vadd.f32 0.0, %v4096
    %v4098 = vpop.f32.mrf.mxu0
    %4099 = vdwg.mxu0
    %v4101 = vsel %vm2884, %v1676, 0
    %v4104 = vsel %vm2884, %v1681, 0
    %4106 = vmatprep.subr.mxu0 0.0
    %4107 = vmatpush1.msra.mxu0 0.0
    %4108 = vmatprep.subr.mxu0 0.0
    %4109 = vmatpush1.msra.mxu0 0.0
    %4110 = vmatprep.subr.mxu0 0.0
    %4111 = vmatpush1.msra.mxu0 0.0
    %4112 = vmatprep.subr.mxu0 0.0
    %4113 = vmatpush1.msra.mxu0 0.0
    %4114 = vmatprep.subr.mxu0 0.0
    %4115 = vmatpush1.msra.mxu0 0.0
    %4116 = vmatprep.subr.mxu0 0.0
    %4117 = vmatpush1.msra.mxu0 0.0
    %4118 = vmatprep.subr.mxu0 0.0
    %4119 = vmatpush1.msra.mxu0 0.0
    %4120 = vmatprep.subr.mxu0 0.0
    %4121 = vmatpush1.msra.mxu0 0.0
    %4122 = vmatprep.subr.mxu0 0.0
    %4123 = vmatpush1.msra.mxu0 0.0
    %4124 = vmatprep.subr.mxu0 0.0
    %4125 = vmatpush1.msra.mxu0 0.0
    %4126 = vmatprep.subr.mxu0 0.0
    %4127 = vmatpush1.msra.mxu0 0.0
    %4128 = vmatprep.subr.mxu0 0.0
    %4129 = vmatpush1.msra.mxu0 0.0
    %4130 = vmatprep.subr.mxu0 0.0
    %4131 = vmatpush1.msra.mxu0 %v387
    %4132 = vmatprep.subr.mxu0 0.0
    %4133 = vmatpush1.msra.mxu0 %v386
    %4134 = vmatprep.subr.mxu0 0.0
    %4135 = vmatpush1.msra.mxu0 %v385
    %4136 = vmatprep.subr.mxu0 0.0
    %4137 = vmatpush1.msra.mxu0 %v384
    %4138 = vmatprep.subr.mxu0 0.0
    %4139 = vmatpush2.msra.mxu0 0.0
    %4140 = vmatprep.subr.mxu0 0.0
    %4141 = vmatpush2.msra.mxu0 0.0
    %4142 = vmatprep.subr.mxu0 0.0
    %4143 = vmatpush2.msra.mxu0 0.0
    %4144 = vmatprep.subr.mxu0 0.0
    %4145 = vmatpush2.msra.mxu0 0.0
    %4146 = vmatprep.subr.mxu0 0.0
    %4147 = vmatpush2.msra.mxu0 0.0
    %4148 = vmatprep.subr.mxu0 0.0
    %4149 = vmatpush2.msra.mxu0 0.0
    %4150 = vmatprep.subr.mxu0 0.0
    %4151 = vmatpush2.msra.mxu0 0.0
    %4152 = vmatprep.subr.mxu0 0.0
    %4153 = vmatpush2.msra.mxu0 0.0
    %4154 = vmatprep.subr.mxu0 0.0
    %4155 = vmatpush2.msra.mxu0 0.0
    %4156 = vmatprep.subr.mxu0 0.0
    %4157 = vmatpush2.msra.mxu0 0.0
    %4158 = vmatprep.subr.mxu0 0.0
    %4159 = vmatpush2.msra.mxu0 0.0
    %4160 = vmatprep.subr.mxu0 0.0
    %4161 = vmatpush2.msra.mxu0 0.0
    %4162 = vmatprep.subr.mxu0 0.0
    %4163 = vmatpush2.msra.mxu0 0.0
    %4164 = vmatprep.subr.mxu0 0.0
    %4165 = vmatpush2.msra.mxu0 0.0
    %4166 = vmatprep.subr.mxu0 0.0
    %4167 = vmatpush2.msra.mxu0 0.0
    %4168 = vmatprep.subr.mxu0 0.0
    %4169 = vmatpush2.msra.mxu0 0.0
    %4170 = vmatprep.mubr.f32.mxu0 0.0
    %4171 = vmatmul.mubr.f32.gmra.mxu0 %v4101
    %v4172 = vpop.f32.mrf.mxu0
    %v4173 = vadd.f32 0.0, %v4172
    %v4174 = vpop.f32.mrf.mxu0
    %4175 = vmatprep.mubr.f32.mxu0 0.0
    %4176 = vmatmul.mubr.f32.gmra.mxu0 %v4104
    %v4177 = vpop.f32.mrf.mxu0
    %v4178 = vadd.f32 0.0, %v4177
    %v4179 = vpop.f32.mrf.mxu0
    %4180 = vdwg.mxu0
    %v4182 = vsel %vm2884, %v1751, 0
    %v4185 = vsel %vm2884, %v1756, 0
    %4187 = vmatprep.subr.mxu0 0.0
    %4188 = vmatpush1.msra.mxu0 0.0
    %4189 = vmatprep.subr.mxu0 0.0
    %4190 = vmatpush1.msra.mxu0 0.0
    %4191 = vmatprep.subr.mxu0 0.0
    %4192 = vmatpush1.msra.mxu0 0.0
    %4193 = vmatprep.subr.mxu0 0.0
    %4194 = vmatpush1.msra.mxu0 0.0
    %4195 = vmatprep.subr.mxu0 0.0
    %4196 = vmatpush1.msra.mxu0 0.0
    %4197 = vmatprep.subr.mxu0 0.0
    %4198 = vmatpush1.msra.mxu0 0.0
    %4199 = vmatprep.subr.mxu0 0.0
    %4200 = vmatpush1.msra.mxu0 0.0
    %4201 = vmatprep.subr.mxu0 0.0
    %4202 = vmatpush1.msra.mxu0 0.0
    %4203 = vmatprep.subr.mxu0 0.0
    %4204 = vmatpush1.msra.mxu0 0.0
    %4205 = vmatprep.subr.mxu0 0.0
    %4206 = vmatpush1.msra.mxu0 0.0
    %4207 = vmatprep.subr.mxu0 0.0
    %4208 = vmatpush1.msra.mxu0 0.0
    %4209 = vmatprep.subr.mxu0 0.0
    %4210 = vmatpush1.msra.mxu0 0.0
    %4211 = vmatprep.subr.mxu0 0.0
    %4212 = vmatpush1.msra.mxu0 %v327
    %4213 = vmatprep.subr.mxu0 0.0
    %4214 = vmatpush1.msra.mxu0 %v326
    %4215 = vmatprep.subr.mxu0 0.0
    %4216 = vmatpush1.msra.mxu0 %v325
    %4217 = vmatprep.subr.mxu0 0.0
    %4218 = vmatpush1.msra.mxu0 %v324
    %4219 = vmatprep.subr.mxu0 0.0
    %4220 = vmatpush2.msra.mxu0 0.0
    %4221 = vmatprep.subr.mxu0 0.0
    %4222 = vmatpush2.msra.mxu0 0.0
    %4223 = vmatprep.subr.mxu0 0.0
    %4224 = vmatpush2.msra.mxu0 0.0
    %4225 = vmatprep.subr.mxu0 0.0
    %4226 = vmatpush2.msra.mxu0 0.0
    %4227 = vmatprep.subr.mxu0 0.0
    %4228 = vmatpush2.msra.mxu0 0.0
    %4229 = vmatprep.subr.mxu0 0.0
    %4230 = vmatpush2.msra.mxu0 0.0
    %4231 = vmatprep.subr.mxu0 0.0
    %4232 = vmatpush2.msra.mxu0 0.0
    %4233 = vmatprep.subr.mxu0 0.0
    %4234 = vmatpush2.msra.mxu0 0.0
    %4235 = vmatprep.subr.mxu0 0.0
    %4236 = vmatpush2.msra.mxu0 0.0
    %4237 = vmatprep.subr.mxu0 0.0
    %4238 = vmatpush2.msra.mxu0 0.0
    %4239 = vmatprep.subr.mxu0 0.0
    %4240 = vmatpush2.msra.mxu0 0.0
    %4241 = vmatprep.subr.mxu0 0.0
    %4242 = vmatpush2.msra.mxu0 0.0
    %4243 = vmatprep.subr.mxu0 0.0
    %4244 = vmatpush2.msra.mxu0 0.0
    %4245 = vmatprep.subr.mxu0 0.0
    %4246 = vmatpush2.msra.mxu0 0.0
    %4247 = vmatprep.subr.mxu0 0.0
    %4248 = vmatpush2.msra.mxu0 0.0
    %4249 = vmatprep.subr.mxu0 0.0
    %4250 = vmatpush2.msra.mxu0 0.0
    %4251 = vmatprep.mubr.f32.mxu0 0.0
    %4252 = vmatmul.mubr.f32.gmra.mxu0 %v4182
    %v4253 = vpop.f32.mrf.mxu0
    %v4254 = vadd.f32 0.0, %v4253
    %v4255 = vpop.f32.mrf.mxu0
    %4256 = vmatprep.mubr.f32.mxu0 0.0
    %4257 = vmatmul.mubr.f32.gmra.mxu0 %v4185
    %v4258 = vpop.f32.mrf.mxu0
    %v4259 = vadd.f32 0.0, %v4258
    %v4260 = vpop.f32.mrf.mxu0
    %4261 = vdwg.mxu0
    %v4263 = vsel %vm2884, %v1826, 0
    %v4266 = vsel %vm2884, %v1831, 0
    %4268 = vmatprep.subr.mxu0 0.0
    %4269 = vmatpush1.msra.mxu0 0.0
    %4270 = vmatprep.subr.mxu0 0.0
    %4271 = vmatpush1.msra.mxu0 0.0
    %4272 = vmatprep.subr.mxu0 0.0
    %4273 = vmatpush1.msra.mxu0 0.0
    %4274 = vmatprep.subr.mxu0 0.0
    %4275 = vmatpush1.msra.mxu0 0.0
    %4276 = vmatprep.subr.mxu0 0.0
    %4277 = vmatpush1.msra.mxu0 0.0
    %4278 = vmatprep.subr.mxu0 0.0
    %4279 = vmatpush1.msra.mxu0 0.0
    %4280 = vmatprep.subr.mxu0 0.0
    %4281 = vmatpush1.msra.mxu0 0.0
    %4282 = vmatprep.subr.mxu0 0.0
    %4283 = vmatpush1.msra.mxu0 0.0
    %4284 = vmatprep.subr.mxu0 0.0
    %4285 = vmatpush1.msra.mxu0 0.0
    %4286 = vmatprep.subr.mxu0 0.0
    %4287 = vmatpush1.msra.mxu0 0.0
    %4288 = vmatprep.subr.mxu0 0.0
    %4289 = vmatpush1.msra.mxu0 0.0
    %4290 = vmatprep.subr.mxu0 0.0
    %4291 = vmatpush1.msra.mxu0 0.0
    %4292 = vmatprep.subr.mxu0 0.0
    %4293 = vmatpush1.msra.mxu0 %v331
    %4294 = vmatprep.subr.mxu0 0.0
    %4295 = vmatpush1.msra.mxu0 %v330
    %4296 = vmatprep.subr.mxu0 0.0
    %4297 = vmatpush1.msra.mxu0 %v329
    %4298 = vmatprep.subr.mxu0 0.0
    %4299 = vmatpush1.msra.mxu0 %v328
    %4300 = vmatprep.subr.mxu0 0.0
    %4301 = vmatpush2.msra.mxu0 0.0
    %4302 = vmatprep.subr.mxu0 0.0
    %4303 = vmatpush2.msra.mxu0 0.0
    %4304 = vmatprep.subr.mxu0 0.0
    %4305 = vmatpush2.msra.mxu0 0.0
    %4306 = vmatprep.subr.mxu0 0.0
    %4307 = vmatpush2.msra.mxu0 0.0
    %4308 = vmatprep.subr.mxu0 0.0
    %4309 = vmatpush2.msra.mxu0 0.0
    %4310 = vmatprep.subr.mxu0 0.0
    %4311 = vmatpush2.msra.mxu0 0.0
    %4312 = vmatprep.subr.mxu0 0.0
    %4313 = vmatpush2.msra.mxu0 0.0
    %4314 = vmatprep.subr.mxu0 0.0
    %4315 = vmatpush2.msra.mxu0 0.0
    %4316 = vmatprep.subr.mxu0 0.0
    %4317 = vmatpush2.msra.mxu0 0.0
    %4318 = vmatprep.subr.mxu0 0.0
    %4319 = vmatpush2.msra.mxu0 0.0
    %4320 = vmatprep.subr.mxu0 0.0
    %4321 = vmatpush2.msra.mxu0 0.0
    %4322 = vmatprep.subr.mxu0 0.0
    %4323 = vmatpush2.msra.mxu0 0.0
    %4324 = vmatprep.subr.mxu0 0.0
    %4325 = vmatpush2.msra.mxu0 0.0
    %4326 = vmatprep.subr.mxu0 0.0
    %4327 = vmatpush2.msra.mxu0 0.0
    %4328 = vmatprep.subr.mxu0 0.0
    %4329 = vmatpush2.msra.mxu0 0.0
    %4330 = vmatprep.subr.mxu0 0.0
    %4331 = vmatpush2.msra.mxu0 0.0
    %4332 = vmatprep.mubr.f32.mxu0 0.0
    %4333 = vmatmul.mubr.f32.gmra.mxu0 %v4263
    %v4334 = vpop.f32.mrf.mxu0
    %v4335 = vadd.f32 0.0, %v4334
    %v4336 = vpop.f32.mrf.mxu0
    %4337 = vmatprep.mubr.f32.mxu0 0.0
    %4338 = vmatmul.mubr.f32.gmra.mxu0 %v4266
    %v4339 = vpop.f32.mrf.mxu0
    %v4340 = vadd.f32 0.0, %v4339
    %v4341 = vpop.f32.mrf.mxu0
    %4342 = vdwg.mxu0
    %v4344 = vsel %vm2884, %v1901, 0
    %v4347 = vsel %vm2884, %v1906, 0
    %4349 = vmatprep.subr.mxu0 0.0
    %4350 = vmatpush1.msra.mxu0 0.0
    %4351 = vmatprep.subr.mxu0 0.0
    %4352 = vmatpush1.msra.mxu0 0.0
    %4353 = vmatprep.subr.mxu0 0.0
    %4354 = vmatpush1.msra.mxu0 0.0
    %4355 = vmatprep.subr.mxu0 0.0
    %4356 = vmatpush1.msra.mxu0 0.0
    %4357 = vmatprep.subr.mxu0 0.0
    %4358 = vmatpush1.msra.mxu0 0.0
    %4359 = vmatprep.subr.mxu0 0.0
    %4360 = vmatpush1.msra.mxu0 0.0
    %4361 = vmatprep.subr.mxu0 0.0
    %4362 = vmatpush1.msra.mxu0 0.0
    %4363 = vmatprep.subr.mxu0 0.0
    %4364 = vmatpush1.msra.mxu0 0.0
    %4365 = vmatprep.subr.mxu0 0.0
    %4366 = vmatpush1.msra.mxu0 0.0
    %4367 = vmatprep.subr.mxu0 0.0
    %4368 = vmatpush1.msra.mxu0 0.0
    %4369 = vmatprep.subr.mxu0 0.0
    %4370 = vmatpush1.msra.mxu0 0.0
    %4371 = vmatprep.subr.mxu0 0.0
    %4372 = vmatpush1.msra.mxu0 0.0
    %4373 = vmatprep.subr.mxu0 0.0
    %4374 = vmatpush1.msra.mxu0 %v335
    %4375 = vmatprep.subr.mxu0 0.0
    %4376 = vmatpush1.msra.mxu0 %v334
    %4377 = vmatprep.subr.mxu0 0.0
    %4378 = vmatpush1.msra.mxu0 %v333
    %4379 = vmatprep.subr.mxu0 0.0
    %4380 = vmatpush1.msra.mxu0 %v332
    %4381 = vmatprep.subr.mxu0 0.0
    %4382 = vmatpush2.msra.mxu0 0.0
    %4383 = vmatprep.subr.mxu0 0.0
    %4384 = vmatpush2.msra.mxu0 0.0
    %4385 = vmatprep.subr.mxu0 0.0
    %4386 = vmatpush2.msra.mxu0 0.0
    %4387 = vmatprep.subr.mxu0 0.0
    %4388 = vmatpush2.msra.mxu0 0.0
    %4389 = vmatprep.subr.mxu0 0.0
    %4390 = vmatpush2.msra.mxu0 0.0
    %4391 = vmatprep.subr.mxu0 0.0
    %4392 = vmatpush2.msra.mxu0 0.0
    %4393 = vmatprep.subr.mxu0 0.0
    %4394 = vmatpush2.msra.mxu0 0.0
    %4395 = vmatprep.subr.mxu0 0.0
    %4396 = vmatpush2.msra.mxu0 0.0
    %4397 = vmatprep.subr.mxu0 0.0
    %4398 = vmatpush2.msra.mxu0 0.0
    %4399 = vmatprep.subr.mxu0 0.0
    %4400 = vmatpush2.msra.mxu0 0.0
    %4401 = vmatprep.subr.mxu0 0.0
    %4402 = vmatpush2.msra.mxu0 0.0
    %4403 = vmatprep.subr.mxu0 0.0
    %4404 = vmatpush2.msra.mxu0 0.0
    %4405 = vmatprep.subr.mxu0 0.0
    %4406 = vmatpush2.msra.mxu0 0.0
    %4407 = vmatprep.subr.mxu0 0.0
    %4408 = vmatpush2.msra.mxu0 0.0
    %4409 = vmatprep.subr.mxu0 0.0
    %4410 = vmatpush2.msra.mxu0 0.0
    %4411 = vmatprep.subr.mxu0 0.0
    %4412 = vmatpush2.msra.mxu0 0.0
    %4413 = vmatprep.mubr.f32.mxu0 0.0
    %4414 = vmatmul.mubr.f32.gmra.mxu0 %v4344
    %v4415 = vpop.f32.mrf.mxu0
    %v4416 = vadd.f32 0.0, %v4415
    %v4417 = vpop.f32.mrf.mxu0
    %4418 = vmatprep.mubr.f32.mxu0 0.0
    %4419 = vmatmul.mubr.f32.gmra.mxu0 %v4347
    %v4420 = vpop.f32.mrf.mxu0
    %v4421 = vadd.f32 0.0, %v4420
    %v4422 = vpop.f32.mrf.mxu0
    %4423 = vdwg.mxu0
    %v4425 = vsel %vm2884, %v1976, 0
    %v4428 = vsel %vm2884, %v1981, 0
    %4430 = vmatprep.subr.mxu0 0.0
    %4431 = vmatpush1.msra.mxu0 0.0
    %4432 = vmatprep.subr.mxu0 0.0
    %4433 = vmatpush1.msra.mxu0 0.0
    %4434 = vmatprep.subr.mxu0 0.0
    %4435 = vmatpush1.msra.mxu0 0.0
    %4436 = vmatprep.subr.mxu0 0.0
    %4437 = vmatpush1.msra.mxu0 0.0
    %4438 = vmatprep.subr.mxu0 0.0
    %4439 = vmatpush1.msra.mxu0 0.0
    %4440 = vmatprep.subr.mxu0 0.0
    %4441 = vmatpush1.msra.mxu0 0.0
    %4442 = vmatprep.subr.mxu0 0.0
    %4443 = vmatpush1.msra.mxu0 0.0
    %4444 = vmatprep.subr.mxu0 0.0
    %4445 = vmatpush1.msra.mxu0 0.0
    %4446 = vmatprep.subr.mxu0 0.0
    %4447 = vmatpush1.msra.mxu0 0.0
    %4448 = vmatprep.subr.mxu0 0.0
    %4449 = vmatpush1.msra.mxu0 0.0
    %4450 = vmatprep.subr.mxu0 0.0
    %4451 = vmatpush1.msra.mxu0 0.0
    %4452 = vmatprep.subr.mxu0 0.0
    %4453 = vmatpush1.msra.mxu0 0.0
    %4454 = vmatprep.subr.mxu0 0.0
    %4455 = vmatpush1.msra.mxu0 %v339
    %4456 = vmatprep.subr.mxu0 0.0
    %4457 = vmatpush1.msra.mxu0 %v338
    %4458 = vmatprep.subr.mxu0 0.0
    %4459 = vmatpush1.msra.mxu0 %v337
    %4460 = vmatprep.subr.mxu0 0.0
    %4461 = vmatpush1.msra.mxu0 %v336
    %4462 = vmatprep.subr.mxu0 0.0
    %4463 = vmatpush2.msra.mxu0 0.0
    %4464 = vmatprep.subr.mxu0 0.0
    %4465 = vmatpush2.msra.mxu0 0.0
    %4466 = vmatprep.subr.mxu0 0.0
    %4467 = vmatpush2.msra.mxu0 0.0
    %4468 = vmatprep.subr.mxu0 0.0
    %4469 = vmatpush2.msra.mxu0 0.0
    %4470 = vmatprep.subr.mxu0 0.0
    %4471 = vmatpush2.msra.mxu0 0.0
    %4472 = vmatprep.subr.mxu0 0.0
    %4473 = vmatpush2.msra.mxu0 0.0
    %4474 = vmatprep.subr.mxu0 0.0
    %4475 = vmatpush2.msra.mxu0 0.0
    %4476 = vmatprep.subr.mxu0 0.0
    %4477 = vmatpush2.msra.mxu0 0.0
    %4478 = vmatprep.subr.mxu0 0.0
    %4479 = vmatpush2.msra.mxu0 0.0
    %4480 = vmatprep.subr.mxu0 0.0
    %4481 = vmatpush2.msra.mxu0 0.0
    %4482 = vmatprep.subr.mxu0 0.0
    %4483 = vmatpush2.msra.mxu0 0.0
    %4484 = vmatprep.subr.mxu0 0.0
    %4485 = vmatpush2.msra.mxu0 0.0
    %4486 = vmatprep.subr.mxu0 0.0
    %4487 = vmatpush2.msra.mxu0 0.0
    %4488 = vmatprep.subr.mxu0 0.0
    %4489 = vmatpush2.msra.mxu0 0.0
    %4490 = vmatprep.subr.mxu0 0.0
    %4491 = vmatpush2.msra.mxu0 0.0
    %4492 = vmatprep.subr.mxu0 0.0
    %4493 = vmatpush2.msra.mxu0 0.0
    %4494 = vmatprep.mubr.f32.mxu0 0.0
    %4495 = vmatmul.mubr.f32.gmra.mxu0 %v4425
    %v4496 = vpop.f32.mrf.mxu0
    %v4497 = vadd.f32 0.0, %v4496
    %v4498 = vpop.f32.mrf.mxu0
    %4499 = vmatprep.mubr.f32.mxu0 0.0
    %4500 = vmatmul.mubr.f32.gmra.mxu0 %v4428
    %v4501 = vpop.f32.mrf.mxu0
    %v4502 = vadd.f32 0.0, %v4501
    %v4503 = vpop.f32.mrf.mxu0
    %4504 = vdwg.mxu0
    %v4506 = vsel %vm2884, %v2051, 0
    %v4509 = vsel %vm2884, %v2056, 0
    %4511 = vmatprep.subr.mxu0 0.0
    %4512 = vmatpush1.msra.mxu0 0.0
    %4513 = vmatprep.subr.mxu0 0.0
    %4514 = vmatpush1.msra.mxu0 0.0
    %4515 = vmatprep.subr.mxu0 0.0
    %4516 = vmatpush1.msra.mxu0 0.0
    %4517 = vmatprep.subr.mxu0 0.0
    %4518 = vmatpush1.msra.mxu0 0.0
    %4519 = vmatprep.subr.mxu0 0.0
    %4520 = vmatpush1.msra.mxu0 0.0
    %4521 = vmatprep.subr.mxu0 0.0
    %4522 = vmatpush1.msra.mxu0 0.0
    %4523 = vmatprep.subr.mxu0 0.0
    %4524 = vmatpush1.msra.mxu0 0.0
    %4525 = vmatprep.subr.mxu0 0.0
    %4526 = vmatpush1.msra.mxu0 0.0
    %4527 = vmatprep.subr.mxu0 0.0
    %4528 = vmatpush1.msra.mxu0 0.0
    %4529 = vmatprep.subr.mxu0 0.0
    %4530 = vmatpush1.msra.mxu0 0.0
    %4531 = vmatprep.subr.mxu0 0.0
    %4532 = vmatpush1.msra.mxu0 0.0
    %4533 = vmatprep.subr.mxu0 0.0
    %4534 = vmatpush1.msra.mxu0 0.0
    %4535 = vmatprep.subr.mxu0 0.0
    %4536 = vmatpush1.msra.mxu0 %v343
    %4537 = vmatprep.subr.mxu0 0.0
    %4538 = vmatpush1.msra.mxu0 %v342
    %4539 = vmatprep.subr.mxu0 0.0
    %4540 = vmatpush1.msra.mxu0 %v341
    %4541 = vmatprep.subr.mxu0 0.0
    %4542 = vmatpush1.msra.mxu0 %v340
    %4543 = vmatprep.subr.mxu0 0.0
    %4544 = vmatpush2.msra.mxu0 0.0
    %4545 = vmatprep.subr.mxu0 0.0
    %4546 = vmatpush2.msra.mxu0 0.0
    %4547 = vmatprep.subr.mxu0 0.0
    %4548 = vmatpush2.msra.mxu0 0.0
    %4549 = vmatprep.subr.mxu0 0.0
    %4550 = vmatpush2.msra.mxu0 0.0
    %4551 = vmatprep.subr.mxu0 0.0
    %4552 = vmatpush2.msra.mxu0 0.0
    %4553 = vmatprep.subr.mxu0 0.0
    %4554 = vmatpush2.msra.mxu0 0.0
    %4555 = vmatprep.subr.mxu0 0.0
    %4556 = vmatpush2.msra.mxu0 0.0
    %4557 = vmatprep.subr.mxu0 0.0
    %4558 = vmatpush2.msra.mxu0 0.0
    %4559 = vmatprep.subr.mxu0 0.0
    %4560 = vmatpush2.msra.mxu0 0.0
    %4561 = vmatprep.subr.mxu0 0.0
    %4562 = vmatpush2.msra.mxu0 0.0
    %4563 = vmatprep.subr.mxu0 0.0
    %4564 = vmatpush2.msra.mxu0 0.0
    %4565 = vmatprep.subr.mxu0 0.0
    %4566 = vmatpush2.msra.mxu0 0.0
    %4567 = vmatprep.subr.mxu0 0.0
    %4568 = vmatpush2.msra.mxu0 0.0
    %4569 = vmatprep.subr.mxu0 0.0
    %4570 = vmatpush2.msra.mxu0 0.0
    %4571 = vmatprep.subr.mxu0 0.0
    %4572 = vmatpush2.msra.mxu0 0.0
    %4573 = vmatprep.subr.mxu0 0.0
    %4574 = vmatpush2.msra.mxu0 0.0
    %4575 = vmatprep.mubr.f32.mxu0 0.0
    %4576 = vmatmul.mubr.f32.gmra.mxu0 %v4506
    %v4577 = vpop.f32.mrf.mxu0
    %v4578 = vadd.f32 0.0, %v4577
    %v4579 = vpop.f32.mrf.mxu0
    %4580 = vmatprep.mubr.f32.mxu0 0.0
    %4581 = vmatmul.mubr.f32.gmra.mxu0 %v4509
    %v4582 = vpop.f32.mrf.mxu0
    %v4583 = vadd.f32 0.0, %v4582
    %v4584 = vpop.f32.mrf.mxu0
    %4585 = vdwg.mxu0
    %v4587 = vsel %vm2884, %v2126, 0
    %v4590 = vsel %vm2884, %v2131, 0
    %4592 = vmatprep.subr.mxu0 0.0
    %4593 = vmatpush1.msra.mxu0 0.0
    %4594 = vmatprep.subr.mxu0 0.0
    %4595 = vmatpush1.msra.mxu0 0.0
    %4596 = vmatprep.subr.mxu0 0.0
    %4597 = vmatpush1.msra.mxu0 0.0
    %4598 = vmatprep.subr.mxu0 0.0
    %4599 = vmatpush1.msra.mxu0 0.0
    %4600 = vmatprep.subr.mxu0 0.0
    %4601 = vmatpush1.msra.mxu0 0.0
    %4602 = vmatprep.subr.mxu0 0.0
    %4603 = vmatpush1.msra.mxu0 0.0
    %4604 = vmatprep.subr.mxu0 0.0
    %4605 = vmatpush1.msra.mxu0 0.0
    %4606 = vmatprep.subr.mxu0 0.0
    %4607 = vmatpush1.msra.mxu0 0.0
    %4608 = vmatprep.subr.mxu0 0.0
    %4609 = vmatpush1.msra.mxu0 0.0
    %4610 = vmatprep.subr.mxu0 0.0
    %4611 = vmatpush1.msra.mxu0 0.0
    %4612 = vmatprep.subr.mxu0 0.0
    %4613 = vmatpush1.msra.mxu0 0.0
    %4614 = vmatprep.subr.mxu0 0.0
    %4615 = vmatpush1.msra.mxu0 0.0
    %4616 = vmatprep.subr.mxu0 0.0
    %4617 = vmatpush1.msra.mxu0 %v347
    %4618 = vmatprep.subr.mxu0 0.0
    %4619 = vmatpush1.msra.mxu0 %v346
    %4620 = vmatprep.subr.mxu0 0.0
    %4621 = vmatpush1.msra.mxu0 %v345
    %4622 = vmatprep.subr.mxu0 0.0
    %4623 = vmatpush1.msra.mxu0 %v344
    %4624 = vmatprep.subr.mxu0 0.0
    %4625 = vmatpush2.msra.mxu0 0.0
    %4626 = vmatprep.subr.mxu0 0.0
    %4627 = vmatpush2.msra.mxu0 0.0
    %4628 = vmatprep.subr.mxu0 0.0
    %4629 = vmatpush2.msra.mxu0 0.0
    %4630 = vmatprep.subr.mxu0 0.0
    %4631 = vmatpush2.msra.mxu0 0.0
    %4632 = vmatprep.subr.mxu0 0.0
    %4633 = vmatpush2.msra.mxu0 0.0
    %4634 = vmatprep.subr.mxu0 0.0
    %4635 = vmatpush2.msra.mxu0 0.0
    %4636 = vmatprep.subr.mxu0 0.0
    %4637 = vmatpush2.msra.mxu0 0.0
    %4638 = vmatprep.subr.mxu0 0.0
    %4639 = vmatpush2.msra.mxu0 0.0
    %4640 = vmatprep.subr.mxu0 0.0
    %4641 = vmatpush2.msra.mxu0 0.0
    %4642 = vmatprep.subr.mxu0 0.0
    %4643 = vmatpush2.msra.mxu0 0.0
    %4644 = vmatprep.subr.mxu0 0.0
    %4645 = vmatpush2.msra.mxu0 0.0
    %4646 = vmatprep.subr.mxu0 0.0
    %4647 = vmatpush2.msra.mxu0 0.0
    %4648 = vmatprep.subr.mxu0 0.0
    %4649 = vmatpush2.msra.mxu0 0.0
    %4650 = vmatprep.subr.mxu0 0.0
    %4651 = vmatpush2.msra.mxu0 0.0
    %4652 = vmatprep.subr.mxu0 0.0
    %4653 = vmatpush2.msra.mxu0 0.0
    %4654 = vmatprep.subr.mxu0 0.0
    %4655 = vmatpush2.msra.mxu0 0.0
    %4656 = vmatprep.mubr.f32.mxu0 0.0
    %4657 = vmatmul.mubr.f32.gmra.mxu0 %v4587
    %v4658 = vpop.f32.mrf.mxu0
    %v4659 = vadd.f32 0.0, %v4658
    %v4660 = vpop.f32.mrf.mxu0
    %4661 = vmatprep.mubr.f32.mxu0 0.0
    %4662 = vmatmul.mubr.f32.gmra.mxu0 %v4590
    %v4663 = vpop.f32.mrf.mxu0
    %v4664 = vadd.f32 0.0, %v4663
    %v4665 = vpop.f32.mrf.mxu0
    %4666 = vdwg.mxu0
    %v4668 = vsel %vm2884, %v2201, 0
    %v4671 = vsel %vm2884, %v2206, 0
    %4673 = vmatprep.subr.mxu0 0.0
    %4674 = vmatpush1.msra.mxu0 0.0
    %4675 = vmatprep.subr.mxu0 0.0
    %4676 = vmatpush1.msra.mxu0 0.0
    %4677 = vmatprep.subr.mxu0 0.0
    %4678 = vmatpush1.msra.mxu0 0.0
    %4679 = vmatprep.subr.mxu0 0.0
    %4680 = vmatpush1.msra.mxu0 0.0
    %4681 = vmatprep.subr.mxu0 0.0
    %4682 = vmatpush1.msra.mxu0 0.0
    %4683 = vmatprep.subr.mxu0 0.0
    %4684 = vmatpush1.msra.mxu0 0.0
    %4685 = vmatprep.subr.mxu0 0.0
    %4686 = vmatpush1.msra.mxu0 0.0
    %4687 = vmatprep.subr.mxu0 0.0
    %4688 = vmatpush1.msra.mxu0 0.0
    %4689 = vmatprep.subr.mxu0 0.0
    %4690 = vmatpush1.msra.mxu0 0.0
    %4691 = vmatprep.subr.mxu0 0.0
    %4692 = vmatpush1.msra.mxu0 0.0
    %4693 = vmatprep.subr.mxu0 0.0
    %4694 = vmatpush1.msra.mxu0 0.0
    %4695 = vmatprep.subr.mxu0 0.0
    %4696 = vmatpush1.msra.mxu0 0.0
    %4697 = vmatprep.subr.mxu0 0.0
    %4698 = vmatpush1.msra.mxu0 %v351
    %4699 = vmatprep.subr.mxu0 0.0
    %4700 = vmatpush1.msra.mxu0 %v350
    %4701 = vmatprep.subr.mxu0 0.0
    %4702 = vmatpush1.msra.mxu0 %v349
    %4703 = vmatprep.subr.mxu0 0.0
    %4704 = vmatpush1.msra.mxu0 %v348
    %4705 = vmatprep.subr.mxu0 0.0
    %4706 = vmatpush2.msra.mxu0 0.0
    %4707 = vmatprep.subr.mxu0 0.0
    %4708 = vmatpush2.msra.mxu0 0.0
    %4709 = vmatprep.subr.mxu0 0.0
    %4710 = vmatpush2.msra.mxu0 0.0
    %4711 = vmatprep.subr.mxu0 0.0
    %4712 = vmatpush2.msra.mxu0 0.0
    %4713 = vmatprep.subr.mxu0 0.0
    %4714 = vmatpush2.msra.mxu0 0.0
    %4715 = vmatprep.subr.mxu0 0.0
    %4716 = vmatpush2.msra.mxu0 0.0
    %4717 = vmatprep.subr.mxu0 0.0
    %4718 = vmatpush2.msra.mxu0 0.0
    %4719 = vmatprep.subr.mxu0 0.0
    %4720 = vmatpush2.msra.mxu0 0.0
    %4721 = vmatprep.subr.mxu0 0.0
    %4722 = vmatpush2.msra.mxu0 0.0
    %4723 = vmatprep.subr.mxu0 0.0
    %4724 = vmatpush2.msra.mxu0 0.0
    %4725 = vmatprep.subr.mxu0 0.0
    %4726 = vmatpush2.msra.mxu0 0.0
    %4727 = vmatprep.subr.mxu0 0.0
    %4728 = vmatpush2.msra.mxu0 0.0
    %4729 = vmatprep.subr.mxu0 0.0
    %4730 = vmatpush2.msra.mxu0 0.0
    %4731 = vmatprep.subr.mxu0 0.0
    %4732 = vmatpush2.msra.mxu0 0.0
    %4733 = vmatprep.subr.mxu0 0.0
    %4734 = vmatpush2.msra.mxu0 0.0
    %4735 = vmatprep.subr.mxu0 0.0
    %4736 = vmatpush2.msra.mxu0 0.0
    %4737 = vmatprep.mubr.f32.mxu0 0.0
    %4738 = vmatmul.mubr.f32.gmra.mxu0 %v4668
    %v4739 = vpop.f32.mrf.mxu0
    %v4740 = vadd.f32 0.0, %v4739
    %v4741 = vpop.f32.mrf.mxu0
    %4742 = vmatprep.mubr.f32.mxu0 0.0
    %4743 = vmatmul.mubr.f32.gmra.mxu0 %v4671
    %v4744 = vpop.f32.mrf.mxu0
    %v4745 = vadd.f32 0.0, %v4744
    %v4746 = vpop.f32.mrf.mxu0
    %4747 = vdwg.mxu0
    %v4749 = vsel %vm2884, %v2276, 0
    %v4752 = vsel %vm2884, %v2281, 0
    %4754 = vmatprep.subr.mxu0 0.0
    %4755 = vmatpush1.msra.mxu0 0.0
    %4756 = vmatprep.subr.mxu0 0.0
    %4757 = vmatpush1.msra.mxu0 0.0
    %4758 = vmatprep.subr.mxu0 0.0
    %4759 = vmatpush1.msra.mxu0 0.0
    %4760 = vmatprep.subr.mxu0 0.0
    %4761 = vmatpush1.msra.mxu0 0.0
    %4762 = vmatprep.subr.mxu0 0.0
    %4763 = vmatpush1.msra.mxu0 0.0
    %4764 = vmatprep.subr.mxu0 0.0
    %4765 = vmatpush1.msra.mxu0 0.0
    %4766 = vmatprep.subr.mxu0 0.0
    %4767 = vmatpush1.msra.mxu0 0.0
    %4768 = vmatprep.subr.mxu0 0.0
    %4769 = vmatpush1.msra.mxu0 0.0
    %4770 = vmatprep.subr.mxu0 0.0
    %4771 = vmatpush1.msra.mxu0 0.0
    %4772 = vmatprep.subr.mxu0 0.0
    %4773 = vmatpush1.msra.mxu0 0.0
    %4774 = vmatprep.subr.mxu0 0.0
    %4775 = vmatpush1.msra.mxu0 0.0
    %4776 = vmatprep.subr.mxu0 0.0
    %4777 = vmatpush1.msra.mxu0 0.0
    %4778 = vmatprep.subr.mxu0 0.0
    %4779 = vmatpush1.msra.mxu0 %v355
    %4780 = vmatprep.subr.mxu0 0.0
    %4781 = vmatpush1.msra.mxu0 %v354
    %4782 = vmatprep.subr.mxu0 0.0
    %4783 = vmatpush1.msra.mxu0 %v353
    %4784 = vmatprep.subr.mxu0 0.0
    %4785 = vmatpush1.msra.mxu0 %v352
    %4786 = vmatprep.subr.mxu0 0.0
    %4787 = vmatpush2.msra.mxu0 0.0
    %4788 = vmatprep.subr.mxu0 0.0
    %4789 = vmatpush2.msra.mxu0 0.0
    %4790 = vmatprep.subr.mxu0 0.0
    %4791 = vmatpush2.msra.mxu0 0.0
    %4792 = vmatprep.subr.mxu0 0.0
    %4793 = vmatpush2.msra.mxu0 0.0
    %4794 = vmatprep.subr.mxu0 0.0
    %4795 = vmatpush2.msra.mxu0 0.0
    %4796 = vmatprep.subr.mxu0 0.0
    %4797 = vmatpush2.msra.mxu0 0.0
    %4798 = vmatprep.subr.mxu0 0.0
    %4799 = vmatpush2.msra.mxu0 0.0
    %4800 = vmatprep.subr.mxu0 0.0
    %4801 = vmatpush2.msra.mxu0 0.0
    %4802 = vmatprep.subr.mxu0 0.0
    %4803 = vmatpush2.msra.mxu0 0.0
    %4804 = vmatprep.subr.mxu0 0.0
    %4805 = vmatpush2.msra.mxu0 0.0
    %4806 = vmatprep.subr.mxu0 0.0
    %4807 = vmatpush2.msra.mxu0 0.0
    %4808 = vmatprep.subr.mxu0 0.0
    %4809 = vmatpush2.msra.mxu0 0.0
    %4810 = vmatprep.subr.mxu0 0.0
    %4811 = vmatpush2.msra.mxu0 0.0
    %4812 = vmatprep.subr.mxu0 0.0
    %4813 = vmatpush2.msra.mxu0 0.0
    %4814 = vmatprep.subr.mxu0 0.0
    %4815 = vmatpush2.msra.mxu0 0.0
    %4816 = vmatprep.subr.mxu0 0.0
    %4817 = vmatpush2.msra.mxu0 0.0
    %4818 = vmatprep.mubr.f32.mxu0 0.0
    %4819 = vmatmul.mubr.f32.gmra.mxu0 %v4749
    %v4820 = vpop.f32.mrf.mxu0
    %v4821 = vadd.f32 0.0, %v4820
    %v4822 = vpop.f32.mrf.mxu0
    %4823 = vmatprep.mubr.f32.mxu0 0.0
    %4824 = vmatmul.mubr.f32.gmra.mxu0 %v4752
    %v4825 = vpop.f32.mrf.mxu0
    %v4826 = vadd.f32 0.0, %v4825
    %v4827 = vpop.f32.mrf.mxu0
    %4828 = vdwg.mxu0
    %v4830 = vsel %vm2884, %v2351, 0
    %v4833 = vsel %vm2884, %v2356, 0
    %4835 = vmatprep.subr.mxu0 0.0
    %4836 = vmatpush1.msra.mxu0 0.0
    %4837 = vmatprep.subr.mxu0 0.0
    %4838 = vmatpush1.msra.mxu0 0.0
    %4839 = vmatprep.subr.mxu0 0.0
    %4840 = vmatpush1.msra.mxu0 0.0
    %4841 = vmatprep.subr.mxu0 0.0
    %4842 = vmatpush1.msra.mxu0 0.0
    %4843 = vmatprep.subr.mxu0 0.0
    %4844 = vmatpush1.msra.mxu0 0.0
    %4845 = vmatprep.subr.mxu0 0.0
    %4846 = vmatpush1.msra.mxu0 0.0
    %4847 = vmatprep.subr.mxu0 0.0
    %4848 = vmatpush1.msra.mxu0 0.0
    %4849 = vmatprep.subr.mxu0 0.0
    %4850 = vmatpush1.msra.mxu0 0.0
    %4851 = vmatprep.subr.mxu0 0.0
    %4852 = vmatpush1.msra.mxu0 0.0
    %4853 = vmatprep.subr.mxu0 0.0
    %4854 = vmatpush1.msra.mxu0 0.0
    %4855 = vmatprep.subr.mxu0 0.0
    %4856 = vmatpush1.msra.mxu0 0.0
    %4857 = vmatprep.subr.mxu0 0.0
    %4858 = vmatpush1.msra.mxu0 0.0
    %4859 = vmatprep.subr.mxu0 0.0
    %4860 = vmatpush1.msra.mxu0 %v359
    %4861 = vmatprep.subr.mxu0 0.0
    %4862 = vmatpush1.msra.mxu0 %v358
    %4863 = vmatprep.subr.mxu0 0.0
    %4864 = vmatpush1.msra.mxu0 %v357
    %4865 = vmatprep.subr.mxu0 0.0
    %4866 = vmatpush1.msra.mxu0 %v356
    %4867 = vmatprep.subr.mxu0 0.0
    %4868 = vmatpush2.msra.mxu0 0.0
    %4869 = vmatprep.subr.mxu0 0.0
    %4870 = vmatpush2.msra.mxu0 0.0
    %4871 = vmatprep.subr.mxu0 0.0
    %4872 = vmatpush2.msra.mxu0 0.0
    %4873 = vmatprep.subr.mxu0 0.0
    %4874 = vmatpush2.msra.mxu0 0.0
    %4875 = vmatprep.subr.mxu0 0.0
    %4876 = vmatpush2.msra.mxu0 0.0
    %4877 = vmatprep.subr.mxu0 0.0
    %4878 = vmatpush2.msra.mxu0 0.0
    %4879 = vmatprep.subr.mxu0 0.0
    %4880 = vmatpush2.msra.mxu0 0.0
    %4881 = vmatprep.subr.mxu0 0.0
    %4882 = vmatpush2.msra.mxu0 0.0
    %4883 = vmatprep.subr.mxu0 0.0
    %4884 = vmatpush2.msra.mxu0 0.0
    %4885 = vmatprep.subr.mxu0 0.0
    %4886 = vmatpush2.msra.mxu0 0.0
    %4887 = vmatprep.subr.mxu0 0.0
    %4888 = vmatpush2.msra.mxu0 0.0
    %4889 = vmatprep.subr.mxu0 0.0
    %4890 = vmatpush2.msra.mxu0 0.0
    %4891 = vmatprep.subr.mxu0 0.0
    %4892 = vmatpush2.msra.mxu0 0.0
    %4893 = vmatprep.subr.mxu0 0.0
    %4894 = vmatpush2.msra.mxu0 0.0
    %4895 = vmatprep.subr.mxu0 0.0
    %4896 = vmatpush2.msra.mxu0 0.0
    %4897 = vmatprep.subr.mxu0 0.0
    %4898 = vmatpush2.msra.mxu0 0.0
    %4899 = vmatprep.mubr.f32.mxu0 0.0
    %4900 = vmatmul.mubr.f32.gmra.mxu0 %v4830
    %v4901 = vpop.f32.mrf.mxu0
    %v4902 = vadd.f32 0.0, %v4901
    %v4903 = vpop.f32.mrf.mxu0
    %4904 = vmatprep.mubr.f32.mxu0 0.0
    %4905 = vmatmul.mubr.f32.gmra.mxu0 %v4833
    %v4906 = vpop.f32.mrf.mxu0
    %v4907 = vadd.f32 0.0, %v4906
    %v4908 = vpop.f32.mrf.mxu0
    %4909 = vdwg.mxu0
    %v4911 = vsel %vm2884, %v2426, 0
    %v4914 = vsel %vm2884, %v2431, 0
    %4916 = vmatprep.subr.mxu0 0.0
    %4917 = vmatpush1.msra.mxu0 0.0
    %4918 = vmatprep.subr.mxu0 0.0
    %4919 = vmatpush1.msra.mxu0 0.0
    %4920 = vmatprep.subr.mxu0 0.0
    %4921 = vmatpush1.msra.mxu0 0.0
    %4922 = vmatprep.subr.mxu0 0.0
    %4923 = vmatpush1.msra.mxu0 0.0
    %4924 = vmatprep.subr.mxu0 0.0
    %4925 = vmatpush1.msra.mxu0 0.0
    %4926 = vmatprep.subr.mxu0 0.0
    %4927 = vmatpush1.msra.mxu0 0.0
    %4928 = vmatprep.subr.mxu0 0.0
    %4929 = vmatpush1.msra.mxu0 0.0
    %4930 = vmatprep.subr.mxu0 0.0
    %4931 = vmatpush1.msra.mxu0 0.0
    %4932 = vmatprep.subr.mxu0 0.0
    %4933 = vmatpush1.msra.mxu0 0.0
    %4934 = vmatprep.subr.mxu0 0.0
    %4935 = vmatpush1.msra.mxu0 0.0
    %4936 = vmatprep.subr.mxu0 0.0
    %4937 = vmatpush1.msra.mxu0 0.0
    %4938 = vmatprep.subr.mxu0 0.0
    %4939 = vmatpush1.msra.mxu0 0.0
    %4940 = vmatprep.subr.mxu0 0.0
    %4941 = vmatpush1.msra.mxu0 %v363
    %4942 = vmatprep.subr.mxu0 0.0
    %4943 = vmatpush1.msra.mxu0 %v362
    %4944 = vmatprep.subr.mxu0 0.0
    %4945 = vmatpush1.msra.mxu0 %v361
    %4946 = vmatprep.subr.mxu0 0.0
    %4947 = vmatpush1.msra.mxu0 %v360
    %4948 = vmatprep.subr.mxu0 0.0
    %4949 = vmatpush2.msra.mxu0 0.0
    %4950 = vmatprep.subr.mxu0 0.0
    %4951 = vmatpush2.msra.mxu0 0.0
    %4952 = vmatprep.subr.mxu0 0.0
    %4953 = vmatpush2.msra.mxu0 0.0
    %4954 = vmatprep.subr.mxu0 0.0
    %4955 = vmatpush2.msra.mxu0 0.0
    %4956 = vmatprep.subr.mxu0 0.0
    %4957 = vmatpush2.msra.mxu0 0.0
    %4958 = vmatprep.subr.mxu0 0.0
    %4959 = vmatpush2.msra.mxu0 0.0
    %4960 = vmatprep.subr.mxu0 0.0
    %4961 = vmatpush2.msra.mxu0 0.0
    %4962 = vmatprep.subr.mxu0 0.0
    %4963 = vmatpush2.msra.mxu0 0.0
    %4964 = vmatprep.subr.mxu0 0.0
    %4965 = vmatpush2.msra.mxu0 0.0
    %4966 = vmatprep.subr.mxu0 0.0
    %4967 = vmatpush2.msra.mxu0 0.0
    %4968 = vmatprep.subr.mxu0 0.0
    %4969 = vmatpush2.msra.mxu0 0.0
    %4970 = vmatprep.subr.mxu0 0.0
    %4971 = vmatpush2.msra.mxu0 0.0
    %4972 = vmatprep.subr.mxu0 0.0
    %4973 = vmatpush2.msra.mxu0 0.0
    %4974 = vmatprep.subr.mxu0 0.0
    %4975 = vmatpush2.msra.mxu0 0.0
    %4976 = vmatprep.subr.mxu0 0.0
    %4977 = vmatpush2.msra.mxu0 0.0
    %4978 = vmatprep.subr.mxu0 0.0
    %4979 = vmatpush2.msra.mxu0 0.0
    %4980 = vmatprep.mubr.f32.mxu0 0.0
    %4981 = vmatmul.mubr.f32.gmra.mxu0 %v4911
    %v4982 = vpop.f32.mrf.mxu0
    %v4983 = vadd.f32 0.0, %v4982
    %v4984 = vpop.f32.mrf.mxu0
    %4985 = vmatprep.mubr.f32.mxu0 0.0
    %4986 = vmatmul.mubr.f32.gmra.mxu0 %v4914
    %v4987 = vpop.f32.mrf.mxu0
    %v4988 = vadd.f32 0.0, %v4987
    %v4989 = vpop.f32.mrf.mxu0
    %4990 = vdwg.mxu0
    %v4992 = vsel %vm2884, %v2501, 0
    %v4995 = vsel %vm2884, %v2506, 0
    %4997 = vmatprep.subr.mxu0 0.0
    %4998 = vmatpush1.msra.mxu0 0.0
    %4999 = vmatprep.subr.mxu0 0.0
    %5000 = vmatpush1.msra.mxu0 0.0
    %5001 = vmatprep.subr.mxu0 0.0
    %5002 = vmatpush1.msra.mxu0 0.0
    %5003 = vmatprep.subr.mxu0 0.0
    %5004 = vmatpush1.msra.mxu0 0.0
    %5005 = vmatprep.subr.mxu0 0.0
    %5006 = vmatpush1.msra.mxu0 0.0
    %5007 = vmatprep.subr.mxu0 0.0
    %5008 = vmatpush1.msra.mxu0 0.0
    %5009 = vmatprep.subr.mxu0 0.0
    %5010 = vmatpush1.msra.mxu0 0.0
    %5011 = vmatprep.subr.mxu0 0.0
    %5012 = vmatpush1.msra.mxu0 0.0
    %5013 = vmatprep.subr.mxu0 0.0
    %5014 = vmatpush1.msra.mxu0 0.0
    %5015 = vmatprep.subr.mxu0 0.0
    %5016 = vmatpush1.msra.mxu0 0.0
    %5017 = vmatprep.subr.mxu0 0.0
    %5018 = vmatpush1.msra.mxu0 0.0
    %5019 = vmatprep.subr.mxu0 0.0
    %5020 = vmatpush1.msra.mxu0 0.0
    %5021 = vmatprep.subr.mxu0 0.0
    %5022 = vmatpush1.msra.mxu0 %v367
    %5023 = vmatprep.subr.mxu0 0.0
    %5024 = vmatpush1.msra.mxu0 %v366
    %5025 = vmatprep.subr.mxu0 0.0
    %5026 = vmatpush1.msra.mxu0 %v365
    %5027 = vmatprep.subr.mxu0 0.0
    %5028 = vmatpush1.msra.mxu0 %v364
    %5029 = vmatprep.subr.mxu0 0.0
    %5030 = vmatpush2.msra.mxu0 0.0
    %5031 = vmatprep.subr.mxu0 0.0
    %5032 = vmatpush2.msra.mxu0 0.0
    %5033 = vmatprep.subr.mxu0 0.0
    %5034 = vmatpush2.msra.mxu0 0.0
    %5035 = vmatprep.subr.mxu0 0.0
    %5036 = vmatpush2.msra.mxu0 0.0
    %5037 = vmatprep.subr.mxu0 0.0
    %5038 = vmatpush2.msra.mxu0 0.0
    %5039 = vmatprep.subr.mxu0 0.0
    %5040 = vmatpush2.msra.mxu0 0.0
    %5041 = vmatprep.subr.mxu0 0.0
    %5042 = vmatpush2.msra.mxu0 0.0
    %5043 = vmatprep.subr.mxu0 0.0
    %5044 = vmatpush2.msra.mxu0 0.0
    %5045 = vmatprep.subr.mxu0 0.0
    %5046 = vmatpush2.msra.mxu0 0.0
    %5047 = vmatprep.subr.mxu0 0.0
    %5048 = vmatpush2.msra.mxu0 0.0
    %5049 = vmatprep.subr.mxu0 0.0
    %5050 = vmatpush2.msra.mxu0 0.0
    %5051 = vmatprep.subr.mxu0 0.0
    %5052 = vmatpush2.msra.mxu0 0.0
    %5053 = vmatprep.subr.mxu0 0.0
    %5054 = vmatpush2.msra.mxu0 0.0
    %5055 = vmatprep.subr.mxu0 0.0
    %5056 = vmatpush2.msra.mxu0 0.0
    %5057 = vmatprep.subr.mxu0 0.0
    %5058 = vmatpush2.msra.mxu0 0.0
    %5059 = vmatprep.subr.mxu0 0.0
    %5060 = vmatpush2.msra.mxu0 0.0
    %5061 = vmatprep.mubr.f32.mxu0 0.0
    %5062 = vmatmul.mubr.f32.gmra.mxu0 %v4992
    %v5063 = vpop.f32.mrf.mxu0
    %v5064 = vadd.f32 0.0, %v5063
    %v5065 = vpop.f32.mrf.mxu0
    %5066 = vmatprep.mubr.f32.mxu0 0.0
    %5067 = vmatmul.mubr.f32.gmra.mxu0 %v4995
    %v5068 = vpop.f32.mrf.mxu0
    %v5069 = vadd.f32 0.0, %v5068
    %v5070 = vpop.f32.mrf.mxu0
    %5071 = vdwg.mxu0
    %v5073 = vsel %vm2884, %v2576, 0
    %v5076 = vsel %vm2884, %v2581, 0
    %5078 = vmatprep.subr.mxu0 0.0
    %5079 = vmatpush1.msra.mxu0 0.0
    %5080 = vmatprep.subr.mxu0 0.0
    %5081 = vmatpush1.msra.mxu0 0.0
    %5082 = vmatprep.subr.mxu0 0.0
    %5083 = vmatpush1.msra.mxu0 0.0
    %5084 = vmatprep.subr.mxu0 0.0
    %5085 = vmatpush1.msra.mxu0 0.0
    %5086 = vmatprep.subr.mxu0 0.0
    %5087 = vmatpush1.msra.mxu0 0.0
    %5088 = vmatprep.subr.mxu0 0.0
    %5089 = vmatpush1.msra.mxu0 0.0
    %5090 = vmatprep.subr.mxu0 0.0
    %5091 = vmatpush1.msra.mxu0 0.0
    %5092 = vmatprep.subr.mxu0 0.0
    %5093 = vmatpush1.msra.mxu0 0.0
    %5094 = vmatprep.subr.mxu0 0.0
    %5095 = vmatpush1.msra.mxu0 0.0
    %5096 = vmatprep.subr.mxu0 0.0
    %5097 = vmatpush1.msra.mxu0 0.0
    %5098 = vmatprep.subr.mxu0 0.0
    %5099 = vmatpush1.msra.mxu0 0.0
    %5100 = vmatprep.subr.mxu0 0.0
    %5101 = vmatpush1.msra.mxu0 0.0
    %5102 = vmatprep.subr.mxu0 0.0
    %5103 = vmatpush1.msra.mxu0 %v371
    %5104 = vmatprep.subr.mxu0 0.0
    %5105 = vmatpush1.msra.mxu0 %v370
    %5106 = vmatprep.subr.mxu0 0.0
    %5107 = vmatpush1.msra.mxu0 %v369
    %5108 = vmatprep.subr.mxu0 0.0
    %5109 = vmatpush1.msra.mxu0 %v368
    %5110 = vmatprep.subr.mxu0 0.0
    %5111 = vmatpush2.msra.mxu0 0.0
    %5112 = vmatprep.subr.mxu0 0.0
    %5113 = vmatpush2.msra.mxu0 0.0
    %5114 = vmatprep.subr.mxu0 0.0
    %5115 = vmatpush2.msra.mxu0 0.0
    %5116 = vmatprep.subr.mxu0 0.0
    %5117 = vmatpush2.msra.mxu0 0.0
    %5118 = vmatprep.subr.mxu0 0.0
    %5119 = vmatpush2.msra.mxu0 0.0
    %5120 = vmatprep.subr.mxu0 0.0
    %5121 = vmatpush2.msra.mxu0 0.0
    %5122 = vmatprep.subr.mxu0 0.0
    %5123 = vmatpush2.msra.mxu0 0.0
    %5124 = vmatprep.subr.mxu0 0.0
    %5125 = vmatpush2.msra.mxu0 0.0
    %5126 = vmatprep.subr.mxu0 0.0
    %5127 = vmatpush2.msra.mxu0 0.0
    %5128 = vmatprep.subr.mxu0 0.0
    %5129 = vmatpush2.msra.mxu0 0.0
    %5130 = vmatprep.subr.mxu0 0.0
    %5131 = vmatpush2.msra.mxu0 0.0
    %5132 = vmatprep.subr.mxu0 0.0
    %5133 = vmatpush2.msra.mxu0 0.0
    %5134 = vmatprep.subr.mxu0 0.0
    %5135 = vmatpush2.msra.mxu0 0.0
    %5136 = vmatprep.subr.mxu0 0.0
    %5137 = vmatpush2.msra.mxu0 0.0
    %5138 = vmatprep.subr.mxu0 0.0
    %5139 = vmatpush2.msra.mxu0 0.0
    %5140 = vmatprep.subr.mxu0 0.0
    %5141 = vmatpush2.msra.mxu0 0.0
    %5142 = vmatprep.mubr.f32.mxu0 0.0
    %5143 = vmatmul.mubr.f32.gmra.mxu0 %v5073
    %v5144 = vpop.f32.mrf.mxu0
    %v5145 = vadd.f32 0.0, %v5144
    %v5146 = vpop.f32.mrf.mxu0
    %5147 = vmatprep.mubr.f32.mxu0 0.0
    %5148 = vmatmul.mubr.f32.gmra.mxu0 %v5076
    %v5149 = vpop.f32.mrf.mxu0
    %v5150 = vadd.f32 0.0, %v5149
    %v5151 = vpop.f32.mrf.mxu0
    %5152 = vdwg.mxu0
    %v5154 = vsel %vm2884, %v2651, 0
    %v5157 = vsel %vm2884, %v2656, 0
    %5159 = vmatprep.subr.mxu0 0.0
    %5160 = vmatpush1.msra.mxu0 0.0
    %5161 = vmatprep.subr.mxu0 0.0
    %5162 = vmatpush1.msra.mxu0 0.0
    %5163 = vmatprep.subr.mxu0 0.0
    %5164 = vmatpush1.msra.mxu0 0.0
    %5165 = vmatprep.subr.mxu0 0.0
    %5166 = vmatpush1.msra.mxu0 0.0
    %5167 = vmatprep.subr.mxu0 0.0
    %5168 = vmatpush1.msra.mxu0 0.0
    %5169 = vmatprep.subr.mxu0 0.0
    %5170 = vmatpush1.msra.mxu0 0.0
    %5171 = vmatprep.subr.mxu0 0.0
    %5172 = vmatpush1.msra.mxu0 0.0
    %5173 = vmatprep.subr.mxu0 0.0
    %5174 = vmatpush1.msra.mxu0 0.0
    %5175 = vmatprep.subr.mxu0 0.0
    %5176 = vmatpush1.msra.mxu0 0.0
    %5177 = vmatprep.subr.mxu0 0.0
    %5178 = vmatpush1.msra.mxu0 0.0
    %5179 = vmatprep.subr.mxu0 0.0
    %5180 = vmatpush1.msra.mxu0 0.0
    %5181 = vmatprep.subr.mxu0 0.0
    %5182 = vmatpush1.msra.mxu0 0.0
    %5183 = vmatprep.subr.mxu0 0.0
    %5184 = vmatpush1.msra.mxu0 %v375
    %5185 = vmatprep.subr.mxu0 0.0
    %5186 = vmatpush1.msra.mxu0 %v374
    %5187 = vmatprep.subr.mxu0 0.0
    %5188 = vmatpush1.msra.mxu0 %v373
    %5189 = vmatprep.subr.mxu0 0.0
    %5190 = vmatpush1.msra.mxu0 %v372
    %5191 = vmatprep.subr.mxu0 0.0
    %5192 = vmatpush2.msra.mxu0 0.0
    %5193 = vmatprep.subr.mxu0 0.0
    %5194 = vmatpush2.msra.mxu0 0.0
    %5195 = vmatprep.subr.mxu0 0.0
    %5196 = vmatpush2.msra.mxu0 0.0
    %5197 = vmatprep.subr.mxu0 0.0
    %5198 = vmatpush2.msra.mxu0 0.0
    %5199 = vmatprep.subr.mxu0 0.0
    %5200 = vmatpush2.msra.mxu0 0.0
    %5201 = vmatprep.subr.mxu0 0.0
    %5202 = vmatpush2.msra.mxu0 0.0
    %5203 = vmatprep.subr.mxu0 0.0
    %5204 = vmatpush2.msra.mxu0 0.0
    %5205 = vmatprep.subr.mxu0 0.0
    %5206 = vmatpush2.msra.mxu0 0.0
    %5207 = vmatprep.subr.mxu0 0.0
    %5208 = vmatpush2.msra.mxu0 0.0
    %5209 = vmatprep.subr.mxu0 0.0
    %5210 = vmatpush2.msra.mxu0 0.0
    %5211 = vmatprep.subr.mxu0 0.0
    %5212 = vmatpush2.msra.mxu0 0.0
    %5213 = vmatprep.subr.mxu0 0.0
    %5214 = vmatpush2.msra.mxu0 0.0
    %5215 = vmatprep.subr.mxu0 0.0
    %5216 = vmatpush2.msra.mxu0 0.0
    %5217 = vmatprep.subr.mxu0 0.0
    %5218 = vmatpush2.msra.mxu0 0.0
    %5219 = vmatprep.subr.mxu0 0.0
    %5220 = vmatpush2.msra.mxu0 0.0
    %5221 = vmatprep.subr.mxu0 0.0
    %5222 = vmatpush2.msra.mxu0 0.0
    %5223 = vmatprep.mubr.f32.mxu0 0.0
    %5224 = vmatmul.mubr.f32.gmra.mxu0 %v5154
    %v5225 = vpop.f32.mrf.mxu0
    %v5226 = vadd.f32 0.0, %v5225
    %v5227 = vpop.f32.mrf.mxu0
    %5228 = vmatprep.mubr.f32.mxu0 0.0
    %5229 = vmatmul.mubr.f32.gmra.mxu0 %v5157
    %v5230 = vpop.f32.mrf.mxu0
    %v5231 = vadd.f32 0.0, %v5230
    %v5232 = vpop.f32.mrf.mxu0
    %5233 = vdwg.mxu0
    %v5235 = vsel %vm2884, %v2726, 0
    %v5238 = vsel %vm2884, %v2731, 0
    %5240 = vmatprep.subr.mxu0 0.0
    %5241 = vmatpush1.msra.mxu0 0.0
    %5242 = vmatprep.subr.mxu0 0.0
    %5243 = vmatpush1.msra.mxu0 0.0
    %5244 = vmatprep.subr.mxu0 0.0
    %5245 = vmatpush1.msra.mxu0 0.0
    %5246 = vmatprep.subr.mxu0 0.0
    %5247 = vmatpush1.msra.mxu0 0.0
    %5248 = vmatprep.subr.mxu0 0.0
    %5249 = vmatpush1.msra.mxu0 0.0
    %5250 = vmatprep.subr.mxu0 0.0
    %5251 = vmatpush1.msra.mxu0 0.0
    %5252 = vmatprep.subr.mxu0 0.0
    %5253 = vmatpush1.msra.mxu0 0.0
    %5254 = vmatprep.subr.mxu0 0.0
    %5255 = vmatpush1.msra.mxu0 0.0
    %5256 = vmatprep.subr.mxu0 0.0
    %5257 = vmatpush1.msra.mxu0 0.0
    %5258 = vmatprep.subr.mxu0 0.0
    %5259 = vmatpush1.msra.mxu0 0.0
    %5260 = vmatprep.subr.mxu0 0.0
    %5261 = vmatpush1.msra.mxu0 0.0
    %5262 = vmatprep.subr.mxu0 0.0
    %5263 = vmatpush1.msra.mxu0 0.0
    %5264 = vmatprep.subr.mxu0 0.0
    %5265 = vmatpush1.msra.mxu0 %v379
    %5266 = vmatprep.subr.mxu0 0.0
    %5267 = vmatpush1.msra.mxu0 %v378
    %5268 = vmatprep.subr.mxu0 0.0
    %5269 = vmatpush1.msra.mxu0 %v377
    %5270 = vmatprep.subr.mxu0 0.0
    %5271 = vmatpush1.msra.mxu0 %v376
    %5272 = vmatprep.subr.mxu0 0.0
    %5273 = vmatpush2.msra.mxu0 0.0
    %5274 = vmatprep.subr.mxu0 0.0
    %5275 = vmatpush2.msra.mxu0 0.0
    %5276 = vmatprep.subr.mxu0 0.0
    %5277 = vmatpush2.msra.mxu0 0.0
    %5278 = vmatprep.subr.mxu0 0.0
    %5279 = vmatpush2.msra.mxu0 0.0
    %5280 = vmatprep.subr.mxu0 0.0
    %5281 = vmatpush2.msra.mxu0 0.0
    %5282 = vmatprep.subr.mxu0 0.0
    %5283 = vmatpush2.msra.mxu0 0.0
    %5284 = vmatprep.subr.mxu0 0.0
    %5285 = vmatpush2.msra.mxu0 0.0
    %5286 = vmatprep.subr.mxu0 0.0
    %5287 = vmatpush2.msra.mxu0 0.0
    %5288 = vmatprep.subr.mxu0 0.0
    %5289 = vmatpush2.msra.mxu0 0.0
    %5290 = vmatprep.subr.mxu0 0.0
    %5291 = vmatpush2.msra.mxu0 0.0
    %5292 = vmatprep.subr.mxu0 0.0
    %5293 = vmatpush2.msra.mxu0 0.0
    %5294 = vmatprep.subr.mxu0 0.0
    %5295 = vmatpush2.msra.mxu0 0.0
    %5296 = vmatprep.subr.mxu0 0.0
    %5297 = vmatpush2.msra.mxu0 0.0
    %5298 = vmatprep.subr.mxu0 0.0
    %5299 = vmatpush2.msra.mxu0 0.0
    %5300 = vmatprep.subr.mxu0 0.0
    %5301 = vmatpush2.msra.mxu0 0.0
    %5302 = vmatprep.subr.mxu0 0.0
    %5303 = vmatpush2.msra.mxu0 0.0
    %5304 = vmatprep.mubr.f32.mxu0 0.0
    %5305 = vmatmul.mubr.f32.gmra.mxu0 %v5235
    %v5306 = vpop.f32.mrf.mxu0
    %v5307 = vadd.f32 0.0, %v5306
    %v5308 = vpop.f32.mrf.mxu0
    %5309 = vmatprep.mubr.f32.mxu0 0.0
    %5310 = vmatmul.mubr.f32.gmra.mxu0 %v5238
    %v5311 = vpop.f32.mrf.mxu0
    %v5312 = vadd.f32 0.0, %v5311
    %v5313 = vpop.f32.mrf.mxu0
    %5314 = vdwg.mxu0
    %v5316 = vsel %vm2884, %v2801, 0
    %v5319 = vsel %vm2884, %v2806, 0
    %5321 = vmatprep.subr.mxu0 0.0
    %5322 = vmatpush1.msra.mxu0 0.0
    %5323 = vmatprep.subr.mxu0 0.0
    %5324 = vmatpush1.msra.mxu0 0.0
    %5325 = vmatprep.subr.mxu0 0.0
    %5326 = vmatpush1.msra.mxu0 0.0
    %5327 = vmatprep.subr.mxu0 0.0
    %5328 = vmatpush1.msra.mxu0 0.0
    %5329 = vmatprep.subr.mxu0 0.0
    %5330 = vmatpush1.msra.mxu0 0.0
    %5331 = vmatprep.subr.mxu0 0.0
    %5332 = vmatpush1.msra.mxu0 0.0
    %5333 = vmatprep.subr.mxu0 0.0
    %5334 = vmatpush1.msra.mxu0 0.0
    %5335 = vmatprep.subr.mxu0 0.0
    %5336 = vmatpush1.msra.mxu0 0.0
    %5337 = vmatprep.subr.mxu0 0.0
    %5338 = vmatpush1.msra.mxu0 0.0
    %5339 = vmatprep.subr.mxu0 0.0
    %5340 = vmatpush1.msra.mxu0 0.0
    %5341 = vmatprep.subr.mxu0 0.0
    %5342 = vmatpush1.msra.mxu0 0.0
    %5343 = vmatprep.subr.mxu0 0.0
    %5344 = vmatpush1.msra.mxu0 0.0
    %5345 = vmatprep.subr.mxu0 0.0
    %5346 = vmatpush1.msra.mxu0 %v383
    %5347 = vmatprep.subr.mxu0 0.0
    %5348 = vmatpush1.msra.mxu0 %v382
    %5349 = vmatprep.subr.mxu0 0.0
    %5350 = vmatpush1.msra.mxu0 %v381
    %5351 = vmatprep.subr.mxu0 0.0
    %5352 = vmatpush1.msra.mxu0 %v380
    %5353 = vmatprep.subr.mxu0 0.0
    %5354 = vmatpush2.msra.mxu0 0.0
    %5355 = vmatprep.subr.mxu0 0.0
    %5356 = vmatpush2.msra.mxu0 0.0
    %5357 = vmatprep.subr.mxu0 0.0
    %5358 = vmatpush2.msra.mxu0 0.0
    %5359 = vmatprep.subr.mxu0 0.0
    %5360 = vmatpush2.msra.mxu0 0.0
    %5361 = vmatprep.subr.mxu0 0.0
    %5362 = vmatpush2.msra.mxu0 0.0
    %5363 = vmatprep.subr.mxu0 0.0
    %5364 = vmatpush2.msra.mxu0 0.0
    %5365 = vmatprep.subr.mxu0 0.0
    %5366 = vmatpush2.msra.mxu0 0.0
    %5367 = vmatprep.subr.mxu0 0.0
    %5368 = vmatpush2.msra.mxu0 0.0
    %5369 = vmatprep.subr.mxu0 0.0
    %5370 = vmatpush2.msra.mxu0 0.0
    %5371 = vmatprep.subr.mxu0 0.0
    %5372 = vmatpush2.msra.mxu0 0.0
    %5373 = vmatprep.subr.mxu0 0.0
    %5374 = vmatpush2.msra.mxu0 0.0
    %5375 = vmatprep.subr.mxu0 0.0
    %5376 = vmatpush2.msra.mxu0 0.0
    %5377 = vmatprep.subr.mxu0 0.0
    %5378 = vmatpush2.msra.mxu0 0.0
    %5379 = vmatprep.subr.mxu0 0.0
    %5380 = vmatpush2.msra.mxu0 0.0
    %5381 = vmatprep.subr.mxu0 0.0
    %5382 = vmatpush2.msra.mxu0 0.0
    %5383 = vmatprep.subr.mxu0 0.0
    %5384 = vmatpush2.msra.mxu0 0.0
    %5385 = vmatprep.mubr.f32.mxu0 0.0
    %5386 = vmatmul.mubr.f32.gmra.mxu0 %v5316
    %v5387 = vpop.f32.mrf.mxu0
    %v5388 = vadd.f32 0.0, %v5387
    %v5389 = vpop.f32.mrf.mxu0
    %5390 = vmatprep.mubr.f32.mxu0 0.0
    %5391 = vmatmul.mubr.f32.gmra.mxu0 %v5319
    %v5392 = vpop.f32.mrf.mxu0
    %v5393 = vadd.f32 0.0, %v5392
    %v5394 = vpop.f32.mrf.mxu0
    %5395 = vdwg.mxu0
    %v5397 = vsel %vm2884, %v2876, 0
    %v5400 = vsel %vm2884, %v2881, 0
    %5402 = vmatprep.subr.mxu0 0.0
    %5403 = vmatpush1.msra.mxu0 0.0
    %5404 = vmatprep.subr.mxu0 0.0
    %5405 = vmatpush1.msra.mxu0 0.0
    %5406 = vmatprep.subr.mxu0 0.0
    %5407 = vmatpush1.msra.mxu0 0.0
    %5408 = vmatprep.subr.mxu0 0.0
    %5409 = vmatpush1.msra.mxu0 0.0
    %5410 = vmatprep.subr.mxu0 0.0
    %5411 = vmatpush1.msra.mxu0 0.0
    %5412 = vmatprep.subr.mxu0 0.0
    %5413 = vmatpush1.msra.mxu0 0.0
    %5414 = vmatprep.subr.mxu0 0.0
    %5415 = vmatpush1.msra.mxu0 0.0
    %5416 = vmatprep.subr.mxu0 0.0
    %5417 = vmatpush1.msra.mxu0 0.0
    %5418 = vmatprep.subr.mxu0 0.0
    %5419 = vmatpush1.msra.mxu0 0.0
    %5420 = vmatprep.subr.mxu0 0.0
    %5421 = vmatpush1.msra.mxu0 0.0
    %5422 = vmatprep.subr.mxu0 0.0
    %5423 = vmatpush1.msra.mxu0 0.0
    %5424 = vmatprep.subr.mxu0 0.0
    %5425 = vmatpush1.msra.mxu0 0.0
    %5426 = vmatprep.subr.mxu0 0.0
    %5427 = vmatpush1.msra.mxu0 %v387
    %5428 = vmatprep.subr.mxu0 0.0
    %5429 = vmatpush1.msra.mxu0 %v386
    %5430 = vmatprep.subr.mxu0 0.0
    %5431 = vmatpush1.msra.mxu0 %v385
    %5432 = vmatprep.subr.mxu0 0.0
    %5433 = vmatpush1.msra.mxu0 %v384
    %5434 = vmatprep.subr.mxu0 0.0
    %5435 = vmatpush2.msra.mxu0 0.0
    %5436 = vmatprep.subr.mxu0 0.0
    %5437 = vmatpush2.msra.mxu0 0.0
    %5438 = vmatprep.subr.mxu0 0.0
    %5439 = vmatpush2.msra.mxu0 0.0
    %5440 = vmatprep.subr.mxu0 0.0
    %5441 = vmatpush2.msra.mxu0 0.0
    %5442 = vmatprep.subr.mxu0 0.0
    %5443 = vmatpush2.msra.mxu0 0.0
    %5444 = vmatprep.subr.mxu0 0.0
    %5445 = vmatpush2.msra.mxu0 0.0
    %5446 = vmatprep.subr.mxu0 0.0
    %5447 = vmatpush2.msra.mxu0 0.0
    %5448 = vmatprep.subr.mxu0 0.0
    %5449 = vmatpush2.msra.mxu0 0.0
    %5450 = vmatprep.subr.mxu0 0.0
    %5451 = vmatpush2.msra.mxu0 0.0
    %5452 = vmatprep.subr.mxu0 0.0
    %5453 = vmatpush2.msra.mxu0 0.0
    %5454 = vmatprep.subr.mxu0 0.0
    %5455 = vmatpush2.msra.mxu0 0.0
    %5456 = vmatprep.subr.mxu0 0.0
    %5457 = vmatpush2.msra.mxu0 0.0
    %5458 = vmatprep.subr.mxu0 0.0
    %5459 = vmatpush2.msra.mxu0 0.0
    %5460 = vmatprep.subr.mxu0 0.0
    %5461 = vmatpush2.msra.mxu0 0.0
    %5462 = vmatprep.subr.mxu0 0.0
    %5463 = vmatpush2.msra.mxu0 0.0
    %5464 = vmatprep.subr.mxu0 0.0
    %5465 = vmatpush2.msra.mxu0 0.0
    %5466 = vmatprep.mubr.f32.mxu0 0.0
    %5467 = vmatmul.mubr.f32.gmra.mxu0 %v5397
    %v5468 = vpop.f32.mrf.mxu0
    %v5469 = vadd.f32 0.0, %v5468
    %v5470 = vpop.f32.mrf.mxu0
    %5471 = vmatprep.mubr.f32.mxu0 0.0
    %5472 = vmatmul.mubr.f32.gmra.mxu0 %v5400
    %v5473 = vpop.f32.mrf.mxu0
    %v5474 = vadd.f32 0.0, %v5473
    %v5475 = vpop.f32.mrf.mxu0
    %5476 = vdwg.mxu0
    %v5477 = vsel %vm2884, %v2958, 0.0
    %v5478 = vsel %vm2884, %v3039, 0.0
    %v5479 = vadd.f32 %v5477, %v5478
    %v5480 = vsel %vm2884, %v3120, 0.0
    %v5481 = vadd.f32 %v5479, %v5480
    %v5482 = vsel %vm2884, %v3201, 0.0
    %v5483 = vadd.f32 %v5481, %v5482
    %v5484 = vsel %vm2884, %v3282, 0.0
    %v5485 = vadd.f32 %v5483, %v5484
    %v5486 = vsel %vm2884, %v3363, 0.0
    %v5487 = vadd.f32 %v5485, %v5486
    %v5488 = vsel %vm2884, %v3444, 0.0
    %v5489 = vadd.f32 %v5487, %v5488
    %v5490 = vsel %vm2884, %v3525, 0.0
    %v5491 = vadd.f32 %v5489, %v5490
    %v5492 = vsel %vm2884, %v3606, 0.0
    %v5493 = vadd.f32 %v5491, %v5492
    %v5494 = vsel %vm2884, %v3687, 0.0
    %v5495 = vadd.f32 %v5493, %v5494
    %v5496 = vsel %vm2884, %v3768, 0.0
    %v5497 = vadd.f32 %v5495, %v5496
    %v5498 = vsel %vm2884, %v3849, 0.0
    %v5499 = vadd.f32 %v5497, %v5498
    %v5500 = vsel %vm2884, %v3930, 0.0
    %v5501 = vadd.f32 %v5499, %v5500
    %v5502 = vsel %vm2884, %v4011, 0.0
    %v5503 = vadd.f32 %v5501, %v5502
    %v5504 = vsel %vm2884, %v4092, 0.0
    %v5505 = vadd.f32 %v5503, %v5504
    %v5506 = vsel %vm2884, %v4173, 0.0
    %v5507 = vadd.f32 %v5505, %v5506
    %v5508 = vsel %vm2884, %v2963, 0.0
    %v5509 = vsel %vm2884, %v3044, 0.0
    %v5510 = vadd.f32 %v5508, %v5509
    %v5511 = vsel %vm2884, %v3125, 0.0
    %v5512 = vadd.f32 %v5510, %v5511
    %v5513 = vsel %vm2884, %v3206, 0.0
    %v5514 = vadd.f32 %v5512, %v5513
    %v5515 = vsel %vm2884, %v3287, 0.0
    %v5516 = vadd.f32 %v5514, %v5515
    %v5517 = vsel %vm2884, %v3368, 0.0
    %v5518 = vadd.f32 %v5516, %v5517
    %v5519 = vsel %vm2884, %v3449, 0.0
    %v5520 = vadd.f32 %v5518, %v5519
    %v5521 = vsel %vm2884, %v3530, 0.0
    %v5522 = vadd.f32 %v5520, %v5521
    %v5523 = vsel %vm2884, %v3611, 0.0
    %v5524 = vadd.f32 %v5522, %v5523
    %v5525 = vsel %vm2884, %v3692, 0.0
    %v5526 = vadd.f32 %v5524, %v5525
    %v5527 = vsel %vm2884, %v3773, 0.0
    %v5528 = vadd.f32 %v5526, %v5527
    %v5529 = vsel %vm2884, %v3854, 0.0
    %v5530 = vadd.f32 %v5528, %v5529
    %v5531 = vsel %vm2884, %v3935, 0.0
    %v5532 = vadd.f32 %v5530, %v5531
    %v5533 = vsel %vm2884, %v4016, 0.0
    %v5534 = vadd.f32 %v5532, %v5533
    %v5535 = vsel %vm2884, %v4097, 0.0
    %v5536 = vadd.f32 %v5534, %v5535
    %v5537 = vsel %vm2884, %v4178, 0.0
    %v5538 = vadd.f32 %v5536, %v5537
    %v5539 = vsel %vm2884, %v4254, 0.0
    %v5540 = vsel %vm2884, %v4335, 0.0
    %v5541 = vadd.f32 %v5539, %v5540
    %v5542 = vsel %vm2884, %v4416, 0.0
    %v5543 = vadd.f32 %v5541, %v5542
    %v5544 = vsel %vm2884, %v4497, 0.0
    %v5545 = vadd.f32 %v5543, %v5544
    %v5546 = vsel %vm2884, %v4578, 0.0
    %v5547 = vadd.f32 %v5545, %v5546
    %v5548 = vsel %vm2884, %v4659, 0.0
    %v5549 = vadd.f32 %v5547, %v5548
    %v5550 = vsel %vm2884, %v4740, 0.0
    %v5551 = vadd.f32 %v5549, %v5550
    %v5552 = vsel %vm2884, %v4821, 0.0
    %v5553 = vadd.f32 %v5551, %v5552
    %v5554 = vsel %vm2884, %v4902, 0.0
    %v5555 = vadd.f32 %v5553, %v5554
    %v5556 = vsel %vm2884, %v4983, 0.0
    %v5557 = vadd.f32 %v5555, %v5556
    %v5558 = vsel %vm2884, %v5064, 0.0
    %v5559 = vadd.f32 %v5557, %v5558
    %v5560 = vsel %vm2884, %v5145, 0.0
    %v5561 = vadd.f32 %v5559, %v5560
    %v5562 = vsel %vm2884, %v5226, 0.0
    %v5563 = vadd.f32 %v5561, %v5562
    %v5564 = vsel %vm2884, %v5307, 0.0
    %v5565 = vadd.f32 %v5563, %v5564
    %v5566 = vsel %vm2884, %v5388, 0.0
    %v5567 = vadd.f32 %v5565, %v5566
    %v5568 = vsel %vm2884, %v5469, 0.0
    %v5569 = vadd.f32 %v5567, %v5568
    %v5570 = vsel %vm2884, %v4259, 0.0
    %v5571 = vsel %vm2884, %v4340, 0.0
    %v5572 = vadd.f32 %v5570, %v5571
    %v5573 = vsel %vm2884, %v4421, 0.0
    %v5574 = vadd.f32 %v5572, %v5573
    %v5575 = vsel %vm2884, %v4502, 0.0
    %v5576 = vadd.f32 %v5574, %v5575
    %v5577 = vsel %vm2884, %v4583, 0.0
    %v5578 = vadd.f32 %v5576, %v5577
    %v5579 = vsel %vm2884, %v4664, 0.0
    %v5580 = vadd.f32 %v5578, %v5579
    %v5581 = vsel %vm2884, %v4745, 0.0
    %v5582 = vadd.f32 %v5580, %v5581
    %v5583 = vsel %vm2884, %v4826, 0.0
    %v5584 = vadd.f32 %v5582, %v5583
    %v5585 = vsel %vm2884, %v4907, 0.0
    %v5586 = vadd.f32 %v5584, %v5585
    %v5587 = vsel %vm2884, %v4988, 0.0
    %v5588 = vadd.f32 %v5586, %v5587
    %v5589 = vsel %vm2884, %v5069, 0.0
    %v5590 = vadd.f32 %v5588, %v5589
    %v5591 = vsel %vm2884, %v5150, 0.0
    %v5592 = vadd.f32 %v5590, %v5591
    %v5593 = vsel %vm2884, %v5231, 0.0
    %v5594 = vadd.f32 %v5592, %v5593
    %v5595 = vsel %vm2884, %v5312, 0.0
    %v5596 = vadd.f32 %v5594, %v5595
    %v5597 = vsel %vm2884, %v5393, 0.0
    %v5598 = vadd.f32 %v5596, %v5597
    %v5599 = vsel %vm2884, %v5474, 0.0
    %v5600 = vadd.f32 %v5598, %v5599
    %v5601 = vld [vmem:[%s14 + $0x1] sm:$0x1]
    %v5602 = vlaneseq
    %v5603 = vshrl.u32 %v5602, 7
    %v5604 = vsub.s32 0, %v5603
    %v5605 = vrot.slane %v5601, %v5604
    %v5606 = vadd.f32 %v5507, %v5605
    %v5607 = vadd.f32 %v5538, %v5605
    %v5608 = vadd.f32 %v5569, %v5605
    %v5609 = vadd.f32 %v5600, %v5605
    %v5610 = vmax.f32 %v5606, 0.0
    %v5611 = vmax.f32 %v5607, 0.0
    %v5612 = vmax.f32 %v5608, 0.0
    %v5613 = vmax.f32 %v5609, 0.0
    %v5614 = vld [vmem:[%s3] sm:$0xff]
    %v5615 = vld [vmem:[%s3 + $0x8] sm:$0xff]
    %v5616 = vld [vmem:[%s3 + $0x10] sm:$0xff]
    %v5617 = vld [vmem:[%s3 + $0x18] sm:$0xff]
    %v5618 = vld [vmem:[%s3 + $0x20] sm:$0xff]
    %v5619 = vld [vmem:[%s3 + $0x28] sm:$0xff]
    %v5620 = vld [vmem:[%s3 + $0x30] sm:$0xff]
    %v5621 = vld [vmem:[%s3 + $0x38] sm:$0xff]
    %v5622 = vld [vmem:[%s3 + $0x40] sm:$0xff]
    %v5623 = vld [vmem:[%s3 + $0x48] sm:$0xff]
    %v5624 = vld [vmem:[%s3 + $0x50] sm:$0xff]
    %v5625 = vld [vmem:[%s3 + $0x58] sm:$0xff]
    %v5626 = vld [vmem:[%s3 + $0x60] sm:$0xff]
    %v5627 = vld [vmem:[%s3 + $0x68] sm:$0xff]
    %v5628 = vld [vmem:[%s3 + $0x70] sm:$0xff]
    %v5629 = vld [vmem:[%s3 + $0x78] sm:$0xff]
    %v5630 = vld [vmem:[%s3 + $0x80] sm:$0xff]
    %v5631 = vld [vmem:[%s3 + $0x88] sm:$0xff]
    %v5632 = vld [vmem:[%s6] sm:$0xff]
    %v5633 = vld [vmem:[%s6 + $0x8] sm:$0xff]
    %v5634 = vld [vmem:[%s6 + $0x10] sm:$0xff]
    %v5635 = vld [vmem:[%s6 + $0x18] sm:$0xff]
    %v5636 = vld [vmem:[%s6 + $0x20] sm:$0xff]
    %v5637 = vld [vmem:[%s6 + $0x28] sm:$0xff]
    %v5638 = vld [vmem:[%s6 + $0x30] sm:$0xff]
    %v5639 = vld [vmem:[%s6 + $0x38] sm:$0xff]
    %v5640 = vld [vmem:[%s6 + $0x40] sm:$0xff]
    %v5641 = vld [vmem:[%s6 + $0x48] sm:$0xff]
    %v5642 = vld [vmem:[%s6 + $0x50] sm:$0xff]
    %v5643 = vld [vmem:[%s6 + $0x58] sm:$0xff]
    %v5644 = vld [vmem:[%s6 + $0x60] sm:$0xff]
    %v5645 = vld [vmem:[%s6 + $0x68] sm:$0xff]
    %v5646 = vld [vmem:[%s6 + $0x70] sm:$0xff]
    %v5647 = vld [vmem:[%s6 + $0x78] sm:$0xff]
    %v5648 = vld [vmem:[%s6 + $0x80] sm:$0xff]
    %v5649 = vld [vmem:[%s6 + $0x88] sm:$0xff]
    %v5650 = vld [vmem:[%s6 + $0x90] sm:$0xff]
    %v5651 = vld [vmem:[%s6 + $0x98] sm:$0xff]
    %v5652 = vld [vmem:[%s6 + $0xa0] sm:$0xff]
    %v5653 = vld [vmem:[%s6 + $0xa8] sm:$0xff]
    %v5654 = vld [vmem:[%s6 + $0xb0] sm:$0xff]
    %v5655 = vld [vmem:[%s6 + $0xb8] sm:$0xff]
    %v5656 = vld [vmem:[%s6 + $0xc0] sm:$0xff]
    %v5657 = vld [vmem:[%s6 + $0xc8] sm:$0xff]
    %v5658 = vld [vmem:[%s6 + $0xd0] sm:$0xff]
    %v5659 = vld [vmem:[%s6 + $0xd8] sm:$0xff]
    %v5660 = vld [vmem:[%s6 + $0xe0] sm:$0xff]
    %v5661 = vld [vmem:[%s6 + $0xe8] sm:$0xff]
    %v5662 = vld [vmem:[%s6 + $0xf0] sm:$0xff]
    %v5663 = vld [vmem:[%s6 + $0xf8] sm:$0xff]
    %v5664 = vld [vmem:[%s6 + $0x100] sm:$0xff]
    %v5665 = vld [vmem:[%s6 + $0x108] sm:$0xff]
    %v5666 = vld [vmem:[%s6 + $0x110] sm:$0xff]
    %v5667 = vld [vmem:[%s6 + $0x118] sm:$0xff]
    %vm5668 = vcmask 130048
    %v5670 = vsel %vm5668, %v5614, 0
    %v5673 = vsel %vm5668, %v5615, 0
    %5675 = vmatprep.subr.mxu0 0.0
    %5676 = vmatpush1.msra.mxu0 0.0
    %5677 = vmatprep.subr.mxu0 0.0
    %5678 = vmatpush1.msra.mxu0 0.0
    %5679 = vmatprep.subr.mxu0 0.0
    %5680 = vmatpush1.msra.mxu0 0.0
    %5681 = vmatprep.subr.mxu0 0.0
    %5682 = vmatpush1.msra.mxu0 0.0
    %5683 = vmatprep.subr.mxu0 0.0
    %5684 = vmatpush1.msra.mxu0 0.0
    %5685 = vmatprep.subr.mxu0 0.0
    %5686 = vmatpush1.msra.mxu0 0.0
    %5687 = vmatprep.subr.mxu0 0.0
    %5688 = vmatpush1.msra.mxu0 0.0
    %5689 = vmatprep.subr.mxu0 0.0
    %5690 = vmatpush1.msra.mxu0 0.0
    %5691 = vmatprep.subr.mxu0 0.0
    %5692 = vmatpush1.msra.mxu0 0.0
    %5693 = vmatprep.subr.mxu0 0.0
    %5694 = vmatpush1.msra.mxu0 0.0
    %5695 = vmatprep.subr.mxu0 0.0
    %5696 = vmatpush1.msra.mxu0 0.0
    %5697 = vmatprep.subr.mxu0 0.0
    %5698 = vmatpush1.msra.mxu0 0.0
    %5699 = vmatprep.subr.mxu0 0.0
    %5700 = vmatpush1.msra.mxu0 0.0
    %5701 = vmatprep.subr.mxu0 0.0
    %5702 = vmatpush1.msra.mxu0 0.0
    %5703 = vmatprep.subr.mxu0 0.0
    %5704 = vmatpush1.msra.mxu0 %v5611
    %5705 = vmatprep.subr.mxu0 0.0
    %5706 = vmatpush1.msra.mxu0 %v5610
    %5707 = vmatprep.subr.mxu0 0.0
    %5708 = vmatpush2.msra.mxu0 0.0
    %5709 = vmatprep.subr.mxu0 0.0
    %5710 = vmatpush2.msra.mxu0 0.0
    %5711 = vmatprep.subr.mxu0 0.0
    %5712 = vmatpush2.msra.mxu0 0.0
    %5713 = vmatprep.subr.mxu0 0.0
    %5714 = vmatpush2.msra.mxu0 0.0
    %5715 = vmatprep.subr.mxu0 0.0
    %5716 = vmatpush2.msra.mxu0 0.0
    %5717 = vmatprep.subr.mxu0 0.0
    %5718 = vmatpush2.msra.mxu0 0.0
    %5719 = vmatprep.subr.mxu0 0.0
    %5720 = vmatpush2.msra.mxu0 0.0
    %5721 = vmatprep.subr.mxu0 0.0
    %5722 = vmatpush2.msra.mxu0 0.0
    %5723 = vmatprep.subr.mxu0 0.0
    %5724 = vmatpush2.msra.mxu0 0.0
    %5725 = vmatprep.subr.mxu0 0.0
    %5726 = vmatpush2.msra.mxu0 0.0
    %5727 = vmatprep.subr.mxu0 0.0
    %5728 = vmatpush2.msra.mxu0 0.0
    %5729 = vmatprep.subr.mxu0 0.0
    %5730 = vmatpush2.msra.mxu0 0.0
    %5731 = vmatprep.subr.mxu0 0.0
    %5732 = vmatpush2.msra.mxu0 0.0
    %5733 = vmatprep.subr.mxu0 0.0
    %5734 = vmatpush2.msra.mxu0 0.0
    %5735 = vmatprep.subr.mxu0 0.0
    %5736 = vmatpush2.msra.mxu0 0.0
    %5737 = vmatprep.subr.mxu0 0.0
    %5738 = vmatpush2.msra.mxu0 0.0
    %5739 = vmatprep.mubr.f32.mxu0 0.0
    %5740 = vmatmul.mubr.f32.gmra.mxu0 %v5670
    %v5741 = vpop.f32.mrf.mxu0
    %v5742 = vadd.f32 0.0, %v5741
    %v5743 = vpop.f32.mrf.mxu0
    %5744 = vmatprep.mubr.f32.mxu0 0.0
    %5745 = vmatmul.mubr.f32.gmra.mxu0 %v5673
    %v5746 = vpop.f32.mrf.mxu0
    %v5747 = vadd.f32 0.0, %v5746
    %v5748 = vpop.f32.mrf.mxu0
    %5749 = vdwg.mxu0
    %v5751 = vsel %vm5668, %v5616, 0
    %v5754 = vsel %vm5668, %v5617, 0
    %5756 = vmatprep.subr.mxu0 0.0
    %5757 = vmatpush1.msra.mxu0 0.0
    %5758 = vmatprep.subr.mxu0 0.0
    %5759 = vmatpush1.msra.mxu0 0.0
    %5760 = vmatprep.subr.mxu0 0.0
    %5761 = vmatpush1.msra.mxu0 0.0
    %5762 = vmatprep.subr.mxu0 0.0
    %5763 = vmatpush1.msra.mxu0 0.0
    %5764 = vmatprep.subr.mxu0 0.0
    %5765 = vmatpush1.msra.mxu0 0.0
    %5766 = vmatprep.subr.mxu0 0.0
    %5767 = vmatpush1.msra.mxu0 0.0
    %5768 = vmatprep.subr.mxu0 0.0
    %5769 = vmatpush1.msra.mxu0 0.0
    %5770 = vmatprep.subr.mxu0 0.0
    %5771 = vmatpush1.msra.mxu0 0.0
    %5772 = vmatprep.subr.mxu0 0.0
    %5773 = vmatpush1.msra.mxu0 0.0
    %5774 = vmatprep.subr.mxu0 0.0
    %5775 = vmatpush1.msra.mxu0 0.0
    %5776 = vmatprep.subr.mxu0 0.0
    %5777 = vmatpush1.msra.mxu0 0.0
    %5778 = vmatprep.subr.mxu0 0.0
    %5779 = vmatpush1.msra.mxu0 0.0
    %5780 = vmatprep.subr.mxu0 0.0
    %5781 = vmatpush1.msra.mxu0 0.0
    %5782 = vmatprep.subr.mxu0 0.0
    %5783 = vmatpush1.msra.mxu0 0.0
    %5784 = vmatprep.subr.mxu0 0.0
    %5785 = vmatpush1.msra.mxu0 %v5611
    %5786 = vmatprep.subr.mxu0 0.0
    %5787 = vmatpush1.msra.mxu0 %v5610
    %5788 = vmatprep.subr.mxu0 0.0
    %5789 = vmatpush2.msra.mxu0 0.0
    %5790 = vmatprep.subr.mxu0 0.0
    %5791 = vmatpush2.msra.mxu0 0.0
    %5792 = vmatprep.subr.mxu0 0.0
    %5793 = vmatpush2.msra.mxu0 0.0
    %5794 = vmatprep.subr.mxu0 0.0
    %5795 = vmatpush2.msra.mxu0 0.0
    %5796 = vmatprep.subr.mxu0 0.0
    %5797 = vmatpush2.msra.mxu0 0.0
    %5798 = vmatprep.subr.mxu0 0.0
    %5799 = vmatpush2.msra.mxu0 0.0
    %5800 = vmatprep.subr.mxu0 0.0
    %5801 = vmatpush2.msra.mxu0 0.0
    %5802 = vmatprep.subr.mxu0 0.0
    %5803 = vmatpush2.msra.mxu0 0.0
    %5804 = vmatprep.subr.mxu0 0.0
    %5805 = vmatpush2.msra.mxu0 0.0
    %5806 = vmatprep.subr.mxu0 0.0
    %5807 = vmatpush2.msra.mxu0 0.0
    %5808 = vmatprep.subr.mxu0 0.0
    %5809 = vmatpush2.msra.mxu0 0.0
    %5810 = vmatprep.subr.mxu0 0.0
    %5811 = vmatpush2.msra.mxu0 0.0
    %5812 = vmatprep.subr.mxu0 0.0
    %5813 = vmatpush2.msra.mxu0 0.0
    %5814 = vmatprep.subr.mxu0 0.0
    %5815 = vmatpush2.msra.mxu0 0.0
    %5816 = vmatprep.subr.mxu0 0.0
    %5817 = vmatpush2.msra.mxu0 0.0
    %5818 = vmatprep.subr.mxu0 0.0
    %5819 = vmatpush2.msra.mxu0 0.0
    %5820 = vmatprep.mubr.f32.mxu0 0.0
    %5821 = vmatmul.mubr.f32.gmra.mxu0 %v5751
    %v5822 = vpop.f32.mrf.mxu0
    %v5823 = vadd.f32 0.0, %v5822
    %v5824 = vpop.f32.mrf.mxu0
    %5825 = vmatprep.mubr.f32.mxu0 0.0
    %5826 = vmatmul.mubr.f32.gmra.mxu0 %v5754
    %v5827 = vpop.f32.mrf.mxu0
    %v5828 = vadd.f32 0.0, %v5827
    %v5829 = vpop.f32.mrf.mxu0
    %5830 = vdwg.mxu0
    %v5832 = vsel %vm5668, %v5618, 0
    %v5835 = vsel %vm5668, %v5619, 0
    %5837 = vmatprep.subr.mxu0 0.0
    %5838 = vmatpush1.msra.mxu0 0.0
    %5839 = vmatprep.subr.mxu0 0.0
    %5840 = vmatpush1.msra.mxu0 0.0
    %5841 = vmatprep.subr.mxu0 0.0
    %5842 = vmatpush1.msra.mxu0 0.0
    %5843 = vmatprep.subr.mxu0 0.0
    %5844 = vmatpush1.msra.mxu0 0.0
    %5845 = vmatprep.subr.mxu0 0.0
    %5846 = vmatpush1.msra.mxu0 0.0
    %5847 = vmatprep.subr.mxu0 0.0
    %5848 = vmatpush1.msra.mxu0 0.0
    %5849 = vmatprep.subr.mxu0 0.0
    %5850 = vmatpush1.msra.mxu0 0.0
    %5851 = vmatprep.subr.mxu0 0.0
    %5852 = vmatpush1.msra.mxu0 0.0
    %5853 = vmatprep.subr.mxu0 0.0
    %5854 = vmatpush1.msra.mxu0 0.0
    %5855 = vmatprep.subr.mxu0 0.0
    %5856 = vmatpush1.msra.mxu0 0.0
    %5857 = vmatprep.subr.mxu0 0.0
    %5858 = vmatpush1.msra.mxu0 0.0
    %5859 = vmatprep.subr.mxu0 0.0
    %5860 = vmatpush1.msra.mxu0 0.0
    %5861 = vmatprep.subr.mxu0 0.0
    %5862 = vmatpush1.msra.mxu0 0.0
    %5863 = vmatprep.subr.mxu0 0.0
    %5864 = vmatpush1.msra.mxu0 0.0
    %5865 = vmatprep.subr.mxu0 0.0
    %5866 = vmatpush1.msra.mxu0 %v5611
    %5867 = vmatprep.subr.mxu0 0.0
    %5868 = vmatpush1.msra.mxu0 %v5610
    %5869 = vmatprep.subr.mxu0 0.0
    %5870 = vmatpush2.msra.mxu0 0.0
    %5871 = vmatprep.subr.mxu0 0.0
    %5872 = vmatpush2.msra.mxu0 0.0
    %5873 = vmatprep.subr.mxu0 0.0
    %5874 = vmatpush2.msra.mxu0 0.0
    %5875 = vmatprep.subr.mxu0 0.0
    %5876 = vmatpush2.msra.mxu0 0.0
    %5877 = vmatprep.subr.mxu0 0.0
    %5878 = vmatpush2.msra.mxu0 0.0
    %5879 = vmatprep.subr.mxu0 0.0
    %5880 = vmatpush2.msra.mxu0 0.0
    %5881 = vmatprep.subr.mxu0 0.0
    %5882 = vmatpush2.msra.mxu0 0.0
    %5883 = vmatprep.subr.mxu0 0.0
    %5884 = vmatpush2.msra.mxu0 0.0
    %5885 = vmatprep.subr.mxu0 0.0
    %5886 = vmatpush2.msra.mxu0 0.0
    %5887 = vmatprep.subr.mxu0 0.0
    %5888 = vmatpush2.msra.mxu0 0.0
    %5889 = vmatprep.subr.mxu0 0.0
    %5890 = vmatpush2.msra.mxu0 0.0
    %5891 = vmatprep.subr.mxu0 0.0
    %5892 = vmatpush2.msra.mxu0 0.0
    %5893 = vmatprep.subr.mxu0 0.0
    %5894 = vmatpush2.msra.mxu0 0.0
    %5895 = vmatprep.subr.mxu0 0.0
    %5896 = vmatpush2.msra.mxu0 0.0
    %5897 = vmatprep.subr.mxu0 0.0
    %5898 = vmatpush2.msra.mxu0 0.0
    %5899 = vmatprep.subr.mxu0 0.0
    %5900 = vmatpush2.msra.mxu0 0.0
    %5901 = vmatprep.mubr.f32.mxu0 0.0
    %5902 = vmatmul.mubr.f32.gmra.mxu0 %v5832
    %v5903 = vpop.f32.mrf.mxu0
    %v5904 = vadd.f32 0.0, %v5903
    %v5905 = vpop.f32.mrf.mxu0
    %5906 = vmatprep.mubr.f32.mxu0 0.0
    %5907 = vmatmul.mubr.f32.gmra.mxu0 %v5835
    %v5908 = vpop.f32.mrf.mxu0
    %v5909 = vadd.f32 0.0, %v5908
    %v5910 = vpop.f32.mrf.mxu0
    %5911 = vdwg.mxu0
    %v5913 = vsel %vm5668, %v5620, 0
    %v5916 = vsel %vm5668, %v5621, 0
    %5918 = vmatprep.subr.mxu0 0.0
    %5919 = vmatpush1.msra.mxu0 0.0
    %5920 = vmatprep.subr.mxu0 0.0
    %5921 = vmatpush1.msra.mxu0 0.0
    %5922 = vmatprep.subr.mxu0 0.0
    %5923 = vmatpush1.msra.mxu0 0.0
    %5924 = vmatprep.subr.mxu0 0.0
    %5925 = vmatpush1.msra.mxu0 0.0
    %5926 = vmatprep.subr.mxu0 0.0
    %5927 = vmatpush1.msra.mxu0 0.0
    %5928 = vmatprep.subr.mxu0 0.0
    %5929 = vmatpush1.msra.mxu0 0.0
    %5930 = vmatprep.subr.mxu0 0.0
    %5931 = vmatpush1.msra.mxu0 0.0
    %5932 = vmatprep.subr.mxu0 0.0
    %5933 = vmatpush1.msra.mxu0 0.0
    %5934 = vmatprep.subr.mxu0 0.0
    %5935 = vmatpush1.msra.mxu0 0.0
    %5936 = vmatprep.subr.mxu0 0.0
    %5937 = vmatpush1.msra.mxu0 0.0
    %5938 = vmatprep.subr.mxu0 0.0
    %5939 = vmatpush1.msra.mxu0 0.0
    %5940 = vmatprep.subr.mxu0 0.0
    %5941 = vmatpush1.msra.mxu0 0.0
    %5942 = vmatprep.subr.mxu0 0.0
    %5943 = vmatpush1.msra.mxu0 0.0
    %5944 = vmatprep.subr.mxu0 0.0
    %5945 = vmatpush1.msra.mxu0 0.0
    %5946 = vmatprep.subr.mxu0 0.0
    %5947 = vmatpush1.msra.mxu0 %v5611
    %5948 = vmatprep.subr.mxu0 0.0
    %5949 = vmatpush1.msra.mxu0 %v5610
    %5950 = vmatprep.subr.mxu0 0.0
    %5951 = vmatpush2.msra.mxu0 0.0
    %5952 = vmatprep.subr.mxu0 0.0
    %5953 = vmatpush2.msra.mxu0 0.0
    %5954 = vmatprep.subr.mxu0 0.0
    %5955 = vmatpush2.msra.mxu0 0.0
    %5956 = vmatprep.subr.mxu0 0.0
    %5957 = vmatpush2.msra.mxu0 0.0
    %5958 = vmatprep.subr.mxu0 0.0
    %5959 = vmatpush2.msra.mxu0 0.0
    %5960 = vmatprep.subr.mxu0 0.0
    %5961 = vmatpush2.msra.mxu0 0.0
    %5962 = vmatprep.subr.mxu0 0.0
    %5963 = vmatpush2.msra.mxu0 0.0
    %5964 = vmatprep.subr.mxu0 0.0
    %5965 = vmatpush2.msra.mxu0 0.0
    %5966 = vmatprep.subr.mxu0 0.0
    %5967 = vmatpush2.msra.mxu0 0.0
    %5968 = vmatprep.subr.mxu0 0.0
    %5969 = vmatpush2.msra.mxu0 0.0
    %5970 = vmatprep.subr.mxu0 0.0
    %5971 = vmatpush2.msra.mxu0 0.0
    %5972 = vmatprep.subr.mxu0 0.0
    %5973 = vmatpush2.msra.mxu0 0.0
    %5974 = vmatprep.subr.mxu0 0.0
    %5975 = vmatpush2.msra.mxu0 0.0
    %5976 = vmatprep.subr.mxu0 0.0
    %5977 = vmatpush2.msra.mxu0 0.0
    %5978 = vmatprep.subr.mxu0 0.0
    %5979 = vmatpush2.msra.mxu0 0.0
    %5980 = vmatprep.subr.mxu0 0.0
    %5981 = vmatpush2.msra.mxu0 0.0
    %5982 = vmatprep.mubr.f32.mxu0 0.0
    %5983 = vmatmul.mubr.f32.gmra.mxu0 %v5913
    %v5984 = vpop.f32.mrf.mxu0
    %v5985 = vadd.f32 0.0, %v5984
    %v5986 = vpop.f32.mrf.mxu0
    %5987 = vmatprep.mubr.f32.mxu0 0.0
    %5988 = vmatmul.mubr.f32.gmra.mxu0 %v5916
    %v5989 = vpop.f32.mrf.mxu0
    %v5990 = vadd.f32 0.0, %v5989
    %v5991 = vpop.f32.mrf.mxu0
    %5992 = vdwg.mxu0
    %v5994 = vsel %vm5668, %v5622, 0
    %v5997 = vsel %vm5668, %v5623, 0
    %5999 = vmatprep.subr.mxu0 0.0
    %6000 = vmatpush1.msra.mxu0 0.0
    %6001 = vmatprep.subr.mxu0 0.0
    %6002 = vmatpush1.msra.mxu0 0.0
    %6003 = vmatprep.subr.mxu0 0.0
    %6004 = vmatpush1.msra.mxu0 0.0
    %6005 = vmatprep.subr.mxu0 0.0
    %6006 = vmatpush1.msra.mxu0 0.0
    %6007 = vmatprep.subr.mxu0 0.0
    %6008 = vmatpush1.msra.mxu0 0.0
    %6009 = vmatprep.subr.mxu0 0.0
    %6010 = vmatpush1.msra.mxu0 0.0
    %6011 = vmatprep.subr.mxu0 0.0
    %6012 = vmatpush1.msra.mxu0 0.0
    %6013 = vmatprep.subr.mxu0 0.0
    %6014 = vmatpush1.msra.mxu0 0.0
    %6015 = vmatprep.subr.mxu0 0.0
    %6016 = vmatpush1.msra.mxu0 0.0
    %6017 = vmatprep.subr.mxu0 0.0
    %6018 = vmatpush1.msra.mxu0 0.0
    %6019 = vmatprep.subr.mxu0 0.0
    %6020 = vmatpush1.msra.mxu0 0.0
    %6021 = vmatprep.subr.mxu0 0.0
    %6022 = vmatpush1.msra.mxu0 0.0
    %6023 = vmatprep.subr.mxu0 0.0
    %6024 = vmatpush1.msra.mxu0 0.0
    %6025 = vmatprep.subr.mxu0 0.0
    %6026 = vmatpush1.msra.mxu0 0.0
    %6027 = vmatprep.subr.mxu0 0.0
    %6028 = vmatpush1.msra.mxu0 %v5611
    %6029 = vmatprep.subr.mxu0 0.0
    %6030 = vmatpush1.msra.mxu0 %v5610
    %6031 = vmatprep.subr.mxu0 0.0
    %6032 = vmatpush2.msra.mxu0 0.0
    %6033 = vmatprep.subr.mxu0 0.0
    %6034 = vmatpush2.msra.mxu0 0.0
    %6035 = vmatprep.subr.mxu0 0.0
    %6036 = vmatpush2.msra.mxu0 0.0
    %6037 = vmatprep.subr.mxu0 0.0
    %6038 = vmatpush2.msra.mxu0 0.0
    %6039 = vmatprep.subr.mxu0 0.0
    %6040 = vmatpush2.msra.mxu0 0.0
    %6041 = vmatprep.subr.mxu0 0.0
    %6042 = vmatpush2.msra.mxu0 0.0
    %6043 = vmatprep.subr.mxu0 0.0
    %6044 = vmatpush2.msra.mxu0 0.0
    %6045 = vmatprep.subr.mxu0 0.0
    %6046 = vmatpush2.msra.mxu0 0.0
    %6047 = vmatprep.subr.mxu0 0.0
    %6048 = vmatpush2.msra.mxu0 0.0
    %6049 = vmatprep.subr.mxu0 0.0
    %6050 = vmatpush2.msra.mxu0 0.0
    %6051 = vmatprep.subr.mxu0 0.0
    %6052 = vmatpush2.msra.mxu0 0.0
    %6053 = vmatprep.subr.mxu0 0.0
    %6054 = vmatpush2.msra.mxu0 0.0
    %6055 = vmatprep.subr.mxu0 0.0
    %6056 = vmatpush2.msra.mxu0 0.0
    %6057 = vmatprep.subr.mxu0 0.0
    %6058 = vmatpush2.msra.mxu0 0.0
    %6059 = vmatprep.subr.mxu0 0.0
    %6060 = vmatpush2.msra.mxu0 0.0
    %6061 = vmatprep.subr.mxu0 0.0
    %6062 = vmatpush2.msra.mxu0 0.0
    %6063 = vmatprep.mubr.f32.mxu0 0.0
    %6064 = vmatmul.mubr.f32.gmra.mxu0 %v5994
    %v6065 = vpop.f32.mrf.mxu0
    %v6066 = vadd.f32 0.0, %v6065
    %v6067 = vpop.f32.mrf.mxu0
    %6068 = vmatprep.mubr.f32.mxu0 0.0
    %6069 = vmatmul.mubr.f32.gmra.mxu0 %v5997
    %v6070 = vpop.f32.mrf.mxu0
    %v6071 = vadd.f32 0.0, %v6070
    %v6072 = vpop.f32.mrf.mxu0
    %6073 = vdwg.mxu0
    %v6075 = vsel %vm5668, %v5624, 0
    %v6078 = vsel %vm5668, %v5625, 0
    %6080 = vmatprep.subr.mxu0 0.0
    %6081 = vmatpush1.msra.mxu0 0.0
    %6082 = vmatprep.subr.mxu0 0.0
    %6083 = vmatpush1.msra.mxu0 0.0
    %6084 = vmatprep.subr.mxu0 0.0
    %6085 = vmatpush1.msra.mxu0 0.0
    %6086 = vmatprep.subr.mxu0 0.0
    %6087 = vmatpush1.msra.mxu0 0.0
    %6088 = vmatprep.subr.mxu0 0.0
    %6089 = vmatpush1.msra.mxu0 0.0
    %6090 = vmatprep.subr.mxu0 0.0
    %6091 = vmatpush1.msra.mxu0 0.0
    %6092 = vmatprep.subr.mxu0 0.0
    %6093 = vmatpush1.msra.mxu0 0.0
    %6094 = vmatprep.subr.mxu0 0.0
    %6095 = vmatpush1.msra.mxu0 0.0
    %6096 = vmatprep.subr.mxu0 0.0
    %6097 = vmatpush1.msra.mxu0 0.0
    %6098 = vmatprep.subr.mxu0 0.0
    %6099 = vmatpush1.msra.mxu0 0.0
    %6100 = vmatprep.subr.mxu0 0.0
    %6101 = vmatpush1.msra.mxu0 0.0
    %6102 = vmatprep.subr.mxu0 0.0
    %6103 = vmatpush1.msra.mxu0 0.0
    %6104 = vmatprep.subr.mxu0 0.0
    %6105 = vmatpush1.msra.mxu0 0.0
    %6106 = vmatprep.subr.mxu0 0.0
    %6107 = vmatpush1.msra.mxu0 0.0
    %6108 = vmatprep.subr.mxu0 0.0
    %6109 = vmatpush1.msra.mxu0 %v5611
    %6110 = vmatprep.subr.mxu0 0.0
    %6111 = vmatpush1.msra.mxu0 %v5610
    %6112 = vmatprep.subr.mxu0 0.0
    %6113 = vmatpush2.msra.mxu0 0.0
    %6114 = vmatprep.subr.mxu0 0.0
    %6115 = vmatpush2.msra.mxu0 0.0
    %6116 = vmatprep.subr.mxu0 0.0
    %6117 = vmatpush2.msra.mxu0 0.0
    %6118 = vmatprep.subr.mxu0 0.0
    %6119 = vmatpush2.msra.mxu0 0.0
    %6120 = vmatprep.subr.mxu0 0.0
    %6121 = vmatpush2.msra.mxu0 0.0
    %6122 = vmatprep.subr.mxu0 0.0
    %6123 = vmatpush2.msra.mxu0 0.0
    %6124 = vmatprep.subr.mxu0 0.0
    %6125 = vmatpush2.msra.mxu0 0.0
    %6126 = vmatprep.subr.mxu0 0.0
    %6127 = vmatpush2.msra.mxu0 0.0
    %6128 = vmatprep.subr.mxu0 0.0
    %6129 = vmatpush2.msra.mxu0 0.0
    %6130 = vmatprep.subr.mxu0 0.0
    %6131 = vmatpush2.msra.mxu0 0.0
    %6132 = vmatprep.subr.mxu0 0.0
    %6133 = vmatpush2.msra.mxu0 0.0
    %6134 = vmatprep.subr.mxu0 0.0
    %6135 = vmatpush2.msra.mxu0 0.0
    %6136 = vmatprep.subr.mxu0 0.0
    %6137 = vmatpush2.msra.mxu0 0.0
    %6138 = vmatprep.subr.mxu0 0.0
    %6139 = vmatpush2.msra.mxu0 0.0
    %6140 = vmatprep.subr.mxu0 0.0
    %6141 = vmatpush2.msra.mxu0 0.0
    %6142 = vmatprep.subr.mxu0 0.0
    %6143 = vmatpush2.msra.mxu0 0.0
    %6144 = vmatprep.mubr.f32.mxu0 0.0
    %6145 = vmatmul.mubr.f32.gmra.mxu0 %v6075
    %v6146 = vpop.f32.mrf.mxu0
    %v6147 = vadd.f32 0.0, %v6146
    %v6148 = vpop.f32.mrf.mxu0
    %6149 = vmatprep.mubr.f32.mxu0 0.0
    %6150 = vmatmul.mubr.f32.gmra.mxu0 %v6078
    %v6151 = vpop.f32.mrf.mxu0
    %v6152 = vadd.f32 0.0, %v6151
    %v6153 = vpop.f32.mrf.mxu0
    %6154 = vdwg.mxu0
    %v6156 = vsel %vm5668, %v5626, 0
    %v6159 = vsel %vm5668, %v5627, 0
    %6161 = vmatprep.subr.mxu0 0.0
    %6162 = vmatpush1.msra.mxu0 0.0
    %6163 = vmatprep.subr.mxu0 0.0
    %6164 = vmatpush1.msra.mxu0 0.0
    %6165 = vmatprep.subr.mxu0 0.0
    %6166 = vmatpush1.msra.mxu0 0.0
    %6167 = vmatprep.subr.mxu0 0.0
    %6168 = vmatpush1.msra.mxu0 0.0
    %6169 = vmatprep.subr.mxu0 0.0
    %6170 = vmatpush1.msra.mxu0 0.0
    %6171 = vmatprep.subr.mxu0 0.0
    %6172 = vmatpush1.msra.mxu0 0.0
    %6173 = vmatprep.subr.mxu0 0.0
    %6174 = vmatpush1.msra.mxu0 0.0
    %6175 = vmatprep.subr.mxu0 0.0
    %6176 = vmatpush1.msra.mxu0 0.0
    %6177 = vmatprep.subr.mxu0 0.0
    %6178 = vmatpush1.msra.mxu0 0.0
    %6179 = vmatprep.subr.mxu0 0.0
    %6180 = vmatpush1.msra.mxu0 0.0
    %6181 = vmatprep.subr.mxu0 0.0
    %6182 = vmatpush1.msra.mxu0 0.0
    %6183 = vmatprep.subr.mxu0 0.0
    %6184 = vmatpush1.msra.mxu0 0.0
    %6185 = vmatprep.subr.mxu0 0.0
    %6186 = vmatpush1.msra.mxu0 0.0
    %6187 = vmatprep.subr.mxu0 0.0
    %6188 = vmatpush1.msra.mxu0 0.0
    %6189 = vmatprep.subr.mxu0 0.0
    %6190 = vmatpush1.msra.mxu0 %v5611
    %6191 = vmatprep.subr.mxu0 0.0
    %6192 = vmatpush1.msra.mxu0 %v5610
    %6193 = vmatprep.subr.mxu0 0.0
    %6194 = vmatpush2.msra.mxu0 0.0
    %6195 = vmatprep.subr.mxu0 0.0
    %6196 = vmatpush2.msra.mxu0 0.0
    %6197 = vmatprep.subr.mxu0 0.0
    %6198 = vmatpush2.msra.mxu0 0.0
    %6199 = vmatprep.subr.mxu0 0.0
    %6200 = vmatpush2.msra.mxu0 0.0
    %6201 = vmatprep.subr.mxu0 0.0
    %6202 = vmatpush2.msra.mxu0 0.0
    %6203 = vmatprep.subr.mxu0 0.0
    %6204 = vmatpush2.msra.mxu0 0.0
    %6205 = vmatprep.subr.mxu0 0.0
    %6206 = vmatpush2.msra.mxu0 0.0
    %6207 = vmatprep.subr.mxu0 0.0
    %6208 = vmatpush2.msra.mxu0 0.0
    %6209 = vmatprep.subr.mxu0 0.0
    %6210 = vmatpush2.msra.mxu0 0.0
    %6211 = vmatprep.subr.mxu0 0.0
    %6212 = vmatpush2.msra.mxu0 0.0
    %6213 = vmatprep.subr.mxu0 0.0
    %6214 = vmatpush2.msra.mxu0 0.0
    %6215 = vmatprep.subr.mxu0 0.0
    %6216 = vmatpush2.msra.mxu0 0.0
    %6217 = vmatprep.subr.mxu0 0.0
    %6218 = vmatpush2.msra.mxu0 0.0
    %6219 = vmatprep.subr.mxu0 0.0
    %6220 = vmatpush2.msra.mxu0 0.0
    %6221 = vmatprep.subr.mxu0 0.0
    %6222 = vmatpush2.msra.mxu0 0.0
    %6223 = vmatprep.subr.mxu0 0.0
    %6224 = vmatpush2.msra.mxu0 0.0
    %6225 = vmatprep.mubr.f32.mxu0 0.0
    %6226 = vmatmul.mubr.f32.gmra.mxu0 %v6156
    %v6227 = vpop.f32.mrf.mxu0
    %v6228 = vadd.f32 0.0, %v6227
    %v6229 = vpop.f32.mrf.mxu0
    %6230 = vmatprep.mubr.f32.mxu0 0.0
    %6231 = vmatmul.mubr.f32.gmra.mxu0 %v6159
    %v6232 = vpop.f32.mrf.mxu0
    %v6233 = vadd.f32 0.0, %v6232
    %v6234 = vpop.f32.mrf.mxu0
    %6235 = vdwg.mxu0
    %v6237 = vsel %vm5668, %v5628, 0
    %v6240 = vsel %vm5668, %v5629, 0
    %6242 = vmatprep.subr.mxu0 0.0
    %6243 = vmatpush1.msra.mxu0 0.0
    %6244 = vmatprep.subr.mxu0 0.0
    %6245 = vmatpush1.msra.mxu0 0.0
    %6246 = vmatprep.subr.mxu0 0.0
    %6247 = vmatpush1.msra.mxu0 0.0
    %6248 = vmatprep.subr.mxu0 0.0
    %6249 = vmatpush1.msra.mxu0 0.0
    %6250 = vmatprep.subr.mxu0 0.0
    %6251 = vmatpush1.msra.mxu0 0.0
    %6252 = vmatprep.subr.mxu0 0.0
    %6253 = vmatpush1.msra.mxu0 0.0
    %6254 = vmatprep.subr.mxu0 0.0
    %6255 = vmatpush1.msra.mxu0 0.0
    %6256 = vmatprep.subr.mxu0 0.0
    %6257 = vmatpush1.msra.mxu0 0.0
    %6258 = vmatprep.subr.mxu0 0.0
    %6259 = vmatpush1.msra.mxu0 0.0
    %6260 = vmatprep.subr.mxu0 0.0
    %6261 = vmatpush1.msra.mxu0 0.0
    %6262 = vmatprep.subr.mxu0 0.0
    %6263 = vmatpush1.msra.mxu0 0.0
    %6264 = vmatprep.subr.mxu0 0.0
    %6265 = vmatpush1.msra.mxu0 0.0
    %6266 = vmatprep.subr.mxu0 0.0
    %6267 = vmatpush1.msra.mxu0 0.0
    %6268 = vmatprep.subr.mxu0 0.0
    %6269 = vmatpush1.msra.mxu0 0.0
    %6270 = vmatprep.subr.mxu0 0.0
    %6271 = vmatpush1.msra.mxu0 %v5611
    %6272 = vmatprep.subr.mxu0 0.0
    %6273 = vmatpush1.msra.mxu0 %v5610
    %6274 = vmatprep.subr.mxu0 0.0
    %6275 = vmatpush2.msra.mxu0 0.0
    %6276 = vmatprep.subr.mxu0 0.0
    %6277 = vmatpush2.msra.mxu0 0.0
    %6278 = vmatprep.subr.mxu0 0.0
    %6279 = vmatpush2.msra.mxu0 0.0
    %6280 = vmatprep.subr.mxu0 0.0
    %6281 = vmatpush2.msra.mxu0 0.0
    %6282 = vmatprep.subr.mxu0 0.0
    %6283 = vmatpush2.msra.mxu0 0.0
    %6284 = vmatprep.subr.mxu0 0.0
    %6285 = vmatpush2.msra.mxu0 0.0
    %6286 = vmatprep.subr.mxu0 0.0
    %6287 = vmatpush2.msra.mxu0 0.0
    %6288 = vmatprep.subr.mxu0 0.0
    %6289 = vmatpush2.msra.mxu0 0.0
    %6290 = vmatprep.subr.mxu0 0.0
    %6291 = vmatpush2.msra.mxu0 0.0
    %6292 = vmatprep.subr.mxu0 0.0
    %6293 = vmatpush2.msra.mxu0 0.0
    %6294 = vmatprep.subr.mxu0 0.0
    %6295 = vmatpush2.msra.mxu0 0.0
    %6296 = vmatprep.subr.mxu0 0.0
    %6297 = vmatpush2.msra.mxu0 0.0
    %6298 = vmatprep.subr.mxu0 0.0
    %6299 = vmatpush2.msra.mxu0 0.0
    %6300 = vmatprep.subr.mxu0 0.0
    %6301 = vmatpush2.msra.mxu0 0.0
    %6302 = vmatprep.subr.mxu0 0.0
    %6303 = vmatpush2.msra.mxu0 0.0
    %6304 = vmatprep.subr.mxu0 0.0
    %6305 = vmatpush2.msra.mxu0 0.0
    %6306 = vmatprep.mubr.f32.mxu0 0.0
    %6307 = vmatmul.mubr.f32.gmra.mxu0 %v6237
    %v6308 = vpop.f32.mrf.mxu0
    %v6309 = vadd.f32 0.0, %v6308
    %v6310 = vpop.f32.mrf.mxu0
    %6311 = vmatprep.mubr.f32.mxu0 0.0
    %6312 = vmatmul.mubr.f32.gmra.mxu0 %v6240
    %v6313 = vpop.f32.mrf.mxu0
    %v6314 = vadd.f32 0.0, %v6313
    %v6315 = vpop.f32.mrf.mxu0
    %6316 = vdwg.mxu0
    %v6318 = vsel %vm5668, %v5630, 0
    %v6321 = vsel %vm5668, %v5631, 0
    %6323 = vmatprep.subr.mxu0 0.0
    %6324 = vmatpush1.msra.mxu0 0.0
    %6325 = vmatprep.subr.mxu0 0.0
    %6326 = vmatpush1.msra.mxu0 0.0
    %6327 = vmatprep.subr.mxu0 0.0
    %6328 = vmatpush1.msra.mxu0 0.0
    %6329 = vmatprep.subr.mxu0 0.0
    %6330 = vmatpush1.msra.mxu0 0.0
    %6331 = vmatprep.subr.mxu0 0.0
    %6332 = vmatpush1.msra.mxu0 0.0
    %6333 = vmatprep.subr.mxu0 0.0
    %6334 = vmatpush1.msra.mxu0 0.0
    %6335 = vmatprep.subr.mxu0 0.0
    %6336 = vmatpush1.msra.mxu0 0.0
    %6337 = vmatprep.subr.mxu0 0.0
    %6338 = vmatpush1.msra.mxu0 0.0
    %6339 = vmatprep.subr.mxu0 0.0
    %6340 = vmatpush1.msra.mxu0 0.0
    %6341 = vmatprep.subr.mxu0 0.0
    %6342 = vmatpush1.msra.mxu0 0.0
    %6343 = vmatprep.subr.mxu0 0.0
    %6344 = vmatpush1.msra.mxu0 0.0
    %6345 = vmatprep.subr.mxu0 0.0
    %6346 = vmatpush1.msra.mxu0 0.0
    %6347 = vmatprep.subr.mxu0 0.0
    %6348 = vmatpush1.msra.mxu0 0.0
    %6349 = vmatprep.subr.mxu0 0.0
    %6350 = vmatpush1.msra.mxu0 0.0
    %6351 = vmatprep.subr.mxu0 0.0
    %6352 = vmatpush1.msra.mxu0 %v5611
    %6353 = vmatprep.subr.mxu0 0.0
    %6354 = vmatpush1.msra.mxu0 %v5610
    %6355 = vmatprep.subr.mxu0 0.0
    %6356 = vmatpush2.msra.mxu0 0.0
    %6357 = vmatprep.subr.mxu0 0.0
    %6358 = vmatpush2.msra.mxu0 0.0
    %6359 = vmatprep.subr.mxu0 0.0
    %6360 = vmatpush2.msra.mxu0 0.0
    %6361 = vmatprep.subr.mxu0 0.0
    %6362 = vmatpush2.msra.mxu0 0.0
    %6363 = vmatprep.subr.mxu0 0.0
    %6364 = vmatpush2.msra.mxu0 0.0
    %6365 = vmatprep.subr.mxu0 0.0
    %6366 = vmatpush2.msra.mxu0 0.0
    %6367 = vmatprep.subr.mxu0 0.0
    %6368 = vmatpush2.msra.mxu0 0.0
    %6369 = vmatprep.subr.mxu0 0.0
    %6370 = vmatpush2.msra.mxu0 0.0
    %6371 = vmatprep.subr.mxu0 0.0
    %6372 = vmatpush2.msra.mxu0 0.0
    %6373 = vmatprep.subr.mxu0 0.0
    %6374 = vmatpush2.msra.mxu0 0.0
    %6375 = vmatprep.subr.mxu0 0.0
    %6376 = vmatpush2.msra.mxu0 0.0
    %6377 = vmatprep.subr.mxu0 0.0
    %6378 = vmatpush2.msra.mxu0 0.0
    %6379 = vmatprep.subr.mxu0 0.0
    %6380 = vmatpush2.msra.mxu0 0.0
    %6381 = vmatprep.subr.mxu0 0.0
    %6382 = vmatpush2.msra.mxu0 0.0
    %6383 = vmatprep.subr.mxu0 0.0
    %6384 = vmatpush2.msra.mxu0 0.0
    %6385 = vmatprep.subr.mxu0 0.0
    %6386 = vmatpush2.msra.mxu0 0.0
    %6387 = vmatprep.mubr.f32.mxu0 0.0
    %6388 = vmatmul.mubr.f32.gmra.mxu0 %v6318
    %v6389 = vpop.f32.mrf.mxu0
    %v6390 = vadd.f32 0.0, %v6389
    %v6391 = vpop.f32.mrf.mxu0
    %6392 = vmatprep.mubr.f32.mxu0 0.0
    %6393 = vmatmul.mubr.f32.gmra.mxu0 %v6321
    %v6394 = vpop.f32.mrf.mxu0
    %v6395 = vadd.f32 0.0, %v6394
    %v6396 = vpop.f32.mrf.mxu0
    %6397 = vdwg.mxu0
    %6398 = vmatprep.subr.mxu0 0.0
    %6399 = vmatpush1.msra.mxu0 0.0
    %6400 = vmatprep.subr.mxu0 0.0
    %6401 = vmatpush1.msra.mxu0 0.0
    %6402 = vmatprep.subr.mxu0 0.0
    %6403 = vmatpush1.msra.mxu0 0.0
    %6404 = vmatprep.subr.mxu0 0.0
    %6405 = vmatpush1.msra.mxu0 0.0
    %6406 = vmatprep.subr.mxu0 0.0
    %6407 = vmatpush1.msra.mxu0 0.0
    %6408 = vmatprep.subr.mxu0 0.0
    %6409 = vmatpush1.msra.mxu0 0.0
    %6410 = vmatprep.subr.mxu0 0.0
    %6411 = vmatpush1.msra.mxu0 0.0
    %6412 = vmatprep.subr.mxu0 0.0
    %6413 = vmatpush1.msra.mxu0 0.0
    %6414 = vmatprep.subr.mxu0 0.0
    %6415 = vmatpush1.msra.mxu0 0.0
    %6416 = vmatprep.subr.mxu0 0.0
    %6417 = vmatpush1.msra.mxu0 0.0
    %6418 = vmatprep.subr.mxu0 0.0
    %6419 = vmatpush1.msra.mxu0 0.0
    %6420 = vmatprep.subr.mxu0 0.0
    %6421 = vmatpush1.msra.mxu0 0.0
    %6422 = vmatprep.subr.mxu0 0.0
    %6423 = vmatpush1.msra.mxu0 0.0
    %6424 = vmatprep.subr.mxu0 0.0
    %6425 = vmatpush1.msra.mxu0 0.0
    %6426 = vmatprep.subr.mxu0 0.0
    %6427 = vmatpush1.msra.mxu0 %v5613
    %6428 = vmatprep.subr.mxu0 0.0
    %6429 = vmatpush1.msra.mxu0 %v5612
    %6430 = vmatprep.subr.mxu0 0.0
    %6431 = vmatpush2.msra.mxu0 0.0
    %6432 = vmatprep.subr.mxu0 0.0
    %6433 = vmatpush2.msra.mxu0 0.0
    %6434 = vmatprep.subr.mxu0 0.0
    %6435 = vmatpush2.msra.mxu0 0.0
    %6436 = vmatprep.subr.mxu0 0.0
    %6437 = vmatpush2.msra.mxu0 0.0
    %6438 = vmatprep.subr.mxu0 0.0
    %6439 = vmatpush2.msra.mxu0 0.0
    %6440 = vmatprep.subr.mxu0 0.0
    %6441 = vmatpush2.msra.mxu0 0.0
    %6442 = vmatprep.subr.mxu0 0.0
    %6443 = vmatpush2.msra.mxu0 0.0
    %6444 = vmatprep.subr.mxu0 0.0
    %6445 = vmatpush2.msra.mxu0 0.0
    %6446 = vmatprep.subr.mxu0 0.0
    %6447 = vmatpush2.msra.mxu0 0.0
    %6448 = vmatprep.subr.mxu0 0.0
    %6449 = vmatpush2.msra.mxu0 0.0
    %6450 = vmatprep.subr.mxu0 0.0
    %6451 = vmatpush2.msra.mxu0 0.0
    %6452 = vmatprep.subr.mxu0 0.0
    %6453 = vmatpush2.msra.mxu0 0.0
    %6454 = vmatprep.subr.mxu0 0.0
    %6455 = vmatpush2.msra.mxu0 0.0
    %6456 = vmatprep.subr.mxu0 0.0
    %6457 = vmatpush2.msra.mxu0 0.0
    %6458 = vmatprep.subr.mxu0 0.0
    %6459 = vmatpush2.msra.mxu0 0.0
    %6460 = vmatprep.subr.mxu0 0.0
    %6461 = vmatpush2.msra.mxu0 0.0
    %6462 = vmatprep.mubr.f32.mxu0 0.0
    %6463 = vmatmul.mubr.f32.gmra.mxu0 %v5670
    %v6464 = vpop.f32.mrf.mxu0
    %v6465 = vadd.f32 0.0, %v6464
    %v6466 = vpop.f32.mrf.mxu0
    %6467 = vmatprep.mubr.f32.mxu0 0.0
    %6468 = vmatmul.mubr.f32.gmra.mxu0 %v5673
    %v6469 = vpop.f32.mrf.mxu0
    %v6470 = vadd.f32 0.0, %v6469
    %v6471 = vpop.f32.mrf.mxu0
    %6472 = vdwg.mxu0
    %6473 = vmatprep.subr.mxu0 0.0
    %6474 = vmatpush1.msra.mxu0 0.0
    %6475 = vmatprep.subr.mxu0 0.0
    %6476 = vmatpush1.msra.mxu0 0.0
    %6477 = vmatprep.subr.mxu0 0.0
    %6478 = vmatpush1.msra.mxu0 0.0
    %6479 = vmatprep.subr.mxu0 0.0
    %6480 = vmatpush1.msra.mxu0 0.0
    %6481 = vmatprep.subr.mxu0 0.0
    %6482 = vmatpush1.msra.mxu0 0.0
    %6483 = vmatprep.subr.mxu0 0.0
    %6484 = vmatpush1.msra.mxu0 0.0
    %6485 = vmatprep.subr.mxu0 0.0
    %6486 = vmatpush1.msra.mxu0 0.0
    %6487 = vmatprep.subr.mxu0 0.0
    %6488 = vmatpush1.msra.mxu0 0.0
    %6489 = vmatprep.subr.mxu0 0.0
    %6490 = vmatpush1.msra.mxu0 0.0
    %6491 = vmatprep.subr.mxu0 0.0
    %6492 = vmatpush1.msra.mxu0 0.0
    %6493 = vmatprep.subr.mxu0 0.0
    %6494 = vmatpush1.msra.mxu0 0.0
    %6495 = vmatprep.subr.mxu0 0.0
    %6496 = vmatpush1.msra.mxu0 0.0
    %6497 = vmatprep.subr.mxu0 0.0
    %6498 = vmatpush1.msra.mxu0 0.0
    %6499 = vmatprep.subr.mxu0 0.0
    %6500 = vmatpush1.msra.mxu0 0.0
    %6501 = vmatprep.subr.mxu0 0.0
    %6502 = vmatpush1.msra.mxu0 %v5613
    %6503 = vmatprep.subr.mxu0 0.0
    %6504 = vmatpush1.msra.mxu0 %v5612
    %6505 = vmatprep.subr.mxu0 0.0
    %6506 = vmatpush2.msra.mxu0 0.0
    %6507 = vmatprep.subr.mxu0 0.0
    %6508 = vmatpush2.msra.mxu0 0.0
    %6509 = vmatprep.subr.mxu0 0.0
    %6510 = vmatpush2.msra.mxu0 0.0
    %6511 = vmatprep.subr.mxu0 0.0
    %6512 = vmatpush2.msra.mxu0 0.0
    %6513 = vmatprep.subr.mxu0 0.0
    %6514 = vmatpush2.msra.mxu0 0.0
    %6515 = vmatprep.subr.mxu0 0.0
    %6516 = vmatpush2.msra.mxu0 0.0
    %6517 = vmatprep.subr.mxu0 0.0
    %6518 = vmatpush2.msra.mxu0 0.0
    %6519 = vmatprep.subr.mxu0 0.0
    %6520 = vmatpush2.msra.mxu0 0.0
    %6521 = vmatprep.subr.mxu0 0.0
    %6522 = vmatpush2.msra.mxu0 0.0
    %6523 = vmatprep.subr.mxu0 0.0
    %6524 = vmatpush2.msra.mxu0 0.0
    %6525 = vmatprep.subr.mxu0 0.0
    %6526 = vmatpush2.msra.mxu0 0.0
    %6527 = vmatprep.subr.mxu0 0.0
    %6528 = vmatpush2.msra.mxu0 0.0
    %6529 = vmatprep.subr.mxu0 0.0
    %6530 = vmatpush2.msra.mxu0 0.0
    %6531 = vmatprep.subr.mxu0 0.0
    %6532 = vmatpush2.msra.mxu0 0.0
    %6533 = vmatprep.subr.mxu0 0.0
    %6534 = vmatpush2.msra.mxu0 0.0
    %6535 = vmatprep.subr.mxu0 0.0
    %6536 = vmatpush2.msra.mxu0 0.0
    %6537 = vmatprep.mubr.f32.mxu0 0.0
    %6538 = vmatmul.mubr.f32.gmra.mxu0 %v5751
    %v6539 = vpop.f32.mrf.mxu0
    %v6540 = vadd.f32 0.0, %v6539
    %v6541 = vpop.f32.mrf.mxu0
    %6542 = vmatprep.mubr.f32.mxu0 0.0
    %6543 = vmatmul.mubr.f32.gmra.mxu0 %v5754
    %v6544 = vpop.f32.mrf.mxu0
    %v6545 = vadd.f32 0.0, %v6544
    %v6546 = vpop.f32.mrf.mxu0
    %6547 = vdwg.mxu0
    %6548 = vmatprep.subr.mxu0 0.0
    %6549 = vmatpush1.msra.mxu0 0.0
    %6550 = vmatprep.subr.mxu0 0.0
    %6551 = vmatpush1.msra.mxu0 0.0
    %6552 = vmatprep.subr.mxu0 0.0
    %6553 = vmatpush1.msra.mxu0 0.0
    %6554 = vmatprep.subr.mxu0 0.0
    %6555 = vmatpush1.msra.mxu0 0.0
    %6556 = vmatprep.subr.mxu0 0.0
    %6557 = vmatpush1.msra.mxu0 0.0
    %6558 = vmatprep.subr.mxu0 0.0
    %6559 = vmatpush1.msra.mxu0 0.0
    %6560 = vmatprep.subr.mxu0 0.0
    %6561 = vmatpush1.msra.mxu0 0.0
    %6562 = vmatprep.subr.mxu0 0.0
    %6563 = vmatpush1.msra.mxu0 0.0
    %6564 = vmatprep.subr.mxu0 0.0
    %6565 = vmatpush1.msra.mxu0 0.0
    %6566 = vmatprep.subr.mxu0 0.0
    %6567 = vmatpush1.msra.mxu0 0.0
    %6568 = vmatprep.subr.mxu0 0.0
    %6569 = vmatpush1.msra.mxu0 0.0
    %6570 = vmatprep.subr.mxu0 0.0
    %6571 = vmatpush1.msra.mxu0 0.0
    %6572 = vmatprep.subr.mxu0 0.0
    %6573 = vmatpush1.msra.mxu0 0.0
    %6574 = vmatprep.subr.mxu0 0.0
    %6575 = vmatpush1.msra.mxu0 0.0
    %6576 = vmatprep.subr.mxu0 0.0
    %6577 = vmatpush1.msra.mxu0 %v5613
    %6578 = vmatprep.subr.mxu0 0.0
    %6579 = vmatpush1.msra.mxu0 %v5612
    %6580 = vmatprep.subr.mxu0 0.0
    %6581 = vmatpush2.msra.mxu0 0.0
    %6582 = vmatprep.subr.mxu0 0.0
    %6583 = vmatpush2.msra.mxu0 0.0
    %6584 = vmatprep.subr.mxu0 0.0
    %6585 = vmatpush2.msra.mxu0 0.0
    %6586 = vmatprep.subr.mxu0 0.0
    %6587 = vmatpush2.msra.mxu0 0.0
    %6588 = vmatprep.subr.mxu0 0.0
    %6589 = vmatpush2.msra.mxu0 0.0
    %6590 = vmatprep.subr.mxu0 0.0
    %6591 = vmatpush2.msra.mxu0 0.0
    %6592 = vmatprep.subr.mxu0 0.0
    %6593 = vmatpush2.msra.mxu0 0.0
    %6594 = vmatprep.subr.mxu0 0.0
    %6595 = vmatpush2.msra.mxu0 0.0
    %6596 = vmatprep.subr.mxu0 0.0
    %6597 = vmatpush2.msra.mxu0 0.0
    %6598 = vmatprep.subr.mxu0 0.0
    %6599 = vmatpush2.msra.mxu0 0.0
    %6600 = vmatprep.subr.mxu0 0.0
    %6601 = vmatpush2.msra.mxu0 0.0
    %6602 = vmatprep.subr.mxu0 0.0
    %6603 = vmatpush2.msra.mxu0 0.0
    %6604 = vmatprep.subr.mxu0 0.0
    %6605 = vmatpush2.msra.mxu0 0.0
    %6606 = vmatprep.subr.mxu0 0.0
    %6607 = vmatpush2.msra.mxu0 0.0
    %6608 = vmatprep.subr.mxu0 0.0
    %6609 = vmatpush2.msra.mxu0 0.0
    %6610 = vmatprep.subr.mxu0 0.0
    %6611 = vmatpush2.msra.mxu0 0.0
    %6612 = vmatprep.mubr.f32.mxu0 0.0
    %6613 = vmatmul.mubr.f32.gmra.mxu0 %v5832
    %v6614 = vpop.f32.mrf.mxu0
    %v6615 = vadd.f32 0.0, %v6614
    %v6616 = vpop.f32.mrf.mxu0
    %6617 = vmatprep.mubr.f32.mxu0 0.0
    %6618 = vmatmul.mubr.f32.gmra.mxu0 %v5835
    %v6619 = vpop.f32.mrf.mxu0
    %v6620 = vadd.f32 0.0, %v6619
    %v6621 = vpop.f32.mrf.mxu0
    %6622 = vdwg.mxu0
    %6623 = vmatprep.subr.mxu0 0.0
    %6624 = vmatpush1.msra.mxu0 0.0
    %6625 = vmatprep.subr.mxu0 0.0
    %6626 = vmatpush1.msra.mxu0 0.0
    %6627 = vmatprep.subr.mxu0 0.0
    %6628 = vmatpush1.msra.mxu0 0.0
    %6629 = vmatprep.subr.mxu0 0.0
    %6630 = vmatpush1.msra.mxu0 0.0
    %6631 = vmatprep.subr.mxu0 0.0
    %6632 = vmatpush1.msra.mxu0 0.0
    %6633 = vmatprep.subr.mxu0 0.0
    %6634 = vmatpush1.msra.mxu0 0.0
    %6635 = vmatprep.subr.mxu0 0.0
    %6636 = vmatpush1.msra.mxu0 0.0
    %6637 = vmatprep.subr.mxu0 0.0
    %6638 = vmatpush1.msra.mxu0 0.0
    %6639 = vmatprep.subr.mxu0 0.0
    %6640 = vmatpush1.msra.mxu0 0.0
    %6641 = vmatprep.subr.mxu0 0.0
    %6642 = vmatpush1.msra.mxu0 0.0
    %6643 = vmatprep.subr.mxu0 0.0
    %6644 = vmatpush1.msra.mxu0 0.0
    %6645 = vmatprep.subr.mxu0 0.0
    %6646 = vmatpush1.msra.mxu0 0.0
    %6647 = vmatprep.subr.mxu0 0.0
    %6648 = vmatpush1.msra.mxu0 0.0
    %6649 = vmatprep.subr.mxu0 0.0
    %6650 = vmatpush1.msra.mxu0 0.0
    %6651 = vmatprep.subr.mxu0 0.0
    %6652 = vmatpush1.msra.mxu0 %v5613
    %6653 = vmatprep.subr.mxu0 0.0
    %6654 = vmatpush1.msra.mxu0 %v5612
    %6655 = vmatprep.subr.mxu0 0.0
    %6656 = vmatpush2.msra.mxu0 0.0
    %6657 = vmatprep.subr.mxu0 0.0
    %6658 = vmatpush2.msra.mxu0 0.0
    %6659 = vmatprep.subr.mxu0 0.0
    %6660 = vmatpush2.msra.mxu0 0.0
    %6661 = vmatprep.subr.mxu0 0.0
    %6662 = vmatpush2.msra.mxu0 0.0
    %6663 = vmatprep.subr.mxu0 0.0
    %6664 = vmatpush2.msra.mxu0 0.0
    %6665 = vmatprep.subr.mxu0 0.0
    %6666 = vmatpush2.msra.mxu0 0.0
    %6667 = vmatprep.subr.mxu0 0.0
    %6668 = vmatpush2.msra.mxu0 0.0
    %6669 = vmatprep.subr.mxu0 0.0
    %6670 = vmatpush2.msra.mxu0 0.0
    %6671 = vmatprep.subr.mxu0 0.0
    %6672 = vmatpush2.msra.mxu0 0.0
    %6673 = vmatprep.subr.mxu0 0.0
    %6674 = vmatpush2.msra.mxu0 0.0
    %6675 = vmatprep.subr.mxu0 0.0
    %6676 = vmatpush2.msra.mxu0 0.0
    %6677 = vmatprep.subr.mxu0 0.0
    %6678 = vmatpush2.msra.mxu0 0.0
    %6679 = vmatprep.subr.mxu0 0.0
    %6680 = vmatpush2.msra.mxu0 0.0
    %6681 = vmatprep.subr.mxu0 0.0
    %6682 = vmatpush2.msra.mxu0 0.0
    %6683 = vmatprep.subr.mxu0 0.0
    %6684 = vmatpush2.msra.mxu0 0.0
    %6685 = vmatprep.subr.mxu0 0.0
    %6686 = vmatpush2.msra.mxu0 0.0
    %6687 = vmatprep.mubr.f32.mxu0 0.0
    %6688 = vmatmul.mubr.f32.gmra.mxu0 %v5913
    %v6689 = vpop.f32.mrf.mxu0
    %v6690 = vadd.f32 0.0, %v6689
    %v6691 = vpop.f32.mrf.mxu0
    %6692 = vmatprep.mubr.f32.mxu0 0.0
    %6693 = vmatmul.mubr.f32.gmra.mxu0 %v5916
    %v6694 = vpop.f32.mrf.mxu0
    %v6695 = vadd.f32 0.0, %v6694
    %v6696 = vpop.f32.mrf.mxu0
    %6697 = vdwg.mxu0
    %6698 = vmatprep.subr.mxu0 0.0
    %6699 = vmatpush1.msra.mxu0 0.0
    %6700 = vmatprep.subr.mxu0 0.0
    %6701 = vmatpush1.msra.mxu0 0.0
    %6702 = vmatprep.subr.mxu0 0.0
    %6703 = vmatpush1.msra.mxu0 0.0
    %6704 = vmatprep.subr.mxu0 0.0
    %6705 = vmatpush1.msra.mxu0 0.0
    %6706 = vmatprep.subr.mxu0 0.0
    %6707 = vmatpush1.msra.mxu0 0.0
    %6708 = vmatprep.subr.mxu0 0.0
    %6709 = vmatpush1.msra.mxu0 0.0
    %6710 = vmatprep.subr.mxu0 0.0
    %6711 = vmatpush1.msra.mxu0 0.0
    %6712 = vmatprep.subr.mxu0 0.0
    %6713 = vmatpush1.msra.mxu0 0.0
    %6714 = vmatprep.subr.mxu0 0.0
    %6715 = vmatpush1.msra.mxu0 0.0
    %6716 = vmatprep.subr.mxu0 0.0
    %6717 = vmatpush1.msra.mxu0 0.0
    %6718 = vmatprep.subr.mxu0 0.0
    %6719 = vmatpush1.msra.mxu0 0.0
    %6720 = vmatprep.subr.mxu0 0.0
    %6721 = vmatpush1.msra.mxu0 0.0
    %6722 = vmatprep.subr.mxu0 0.0
    %6723 = vmatpush1.msra.mxu0 0.0
    %6724 = vmatprep.subr.mxu0 0.0
    %6725 = vmatpush1.msra.mxu0 0.0
    %6726 = vmatprep.subr.mxu0 0.0
    %6727 = vmatpush1.msra.mxu0 %v5613
    %6728 = vmatprep.subr.mxu0 0.0
    %6729 = vmatpush1.msra.mxu0 %v5612
    %6730 = vmatprep.subr.mxu0 0.0
    %6731 = vmatpush2.msra.mxu0 0.0
    %6732 = vmatprep.subr.mxu0 0.0
    %6733 = vmatpush2.msra.mxu0 0.0
    %6734 = vmatprep.subr.mxu0 0.0
    %6735 = vmatpush2.msra.mxu0 0.0
    %6736 = vmatprep.subr.mxu0 0.0
    %6737 = vmatpush2.msra.mxu0 0.0
    %6738 = vmatprep.subr.mxu0 0.0
    %6739 = vmatpush2.msra.mxu0 0.0
    %6740 = vmatprep.subr.mxu0 0.0
    %6741 = vmatpush2.msra.mxu0 0.0
    %6742 = vmatprep.subr.mxu0 0.0
    %6743 = vmatpush2.msra.mxu0 0.0
    %6744 = vmatprep.subr.mxu0 0.0
    %6745 = vmatpush2.msra.mxu0 0.0
    %6746 = vmatprep.subr.mxu0 0.0
    %6747 = vmatpush2.msra.mxu0 0.0
    %6748 = vmatprep.subr.mxu0 0.0
    %6749 = vmatpush2.msra.mxu0 0.0
    %6750 = vmatprep.subr.mxu0 0.0
    %6751 = vmatpush2.msra.mxu0 0.0
    %6752 = vmatprep.subr.mxu0 0.0
    %6753 = vmatpush2.msra.mxu0 0.0
    %6754 = vmatprep.subr.mxu0 0.0
    %6755 = vmatpush2.msra.mxu0 0.0
    %6756 = vmatprep.subr.mxu0 0.0
    %6757 = vmatpush2.msra.mxu0 0.0
    %6758 = vmatprep.subr.mxu0 0.0
    %6759 = vmatpush2.msra.mxu0 0.0
    %6760 = vmatprep.subr.mxu0 0.0
    %6761 = vmatpush2.msra.mxu0 0.0
    %6762 = vmatprep.mubr.f32.mxu0 0.0
    %6763 = vmatmul.mubr.f32.gmra.mxu0 %v5994
    %v6764 = vpop.f32.mrf.mxu0
    %v6765 = vadd.f32 0.0, %v6764
    %v6766 = vpop.f32.mrf.mxu0
    %6767 = vmatprep.mubr.f32.mxu0 0.0
    %6768 = vmatmul.mubr.f32.gmra.mxu0 %v5997
    %v6769 = vpop.f32.mrf.mxu0
    %v6770 = vadd.f32 0.0, %v6769
    %v6771 = vpop.f32.mrf.mxu0
    %6772 = vdwg.mxu0
    %6773 = vmatprep.subr.mxu0 0.0
    %6774 = vmatpush1.msra.mxu0 0.0
    %6775 = vmatprep.subr.mxu0 0.0
    %6776 = vmatpush1.msra.mxu0 0.0
    %6777 = vmatprep.subr.mxu0 0.0
    %6778 = vmatpush1.msra.mxu0 0.0
    %6779 = vmatprep.subr.mxu0 0.0
    %6780 = vmatpush1.msra.mxu0 0.0
    %6781 = vmatprep.subr.mxu0 0.0
    %6782 = vmatpush1.msra.mxu0 0.0
    %6783 = vmatprep.subr.mxu0 0.0
    %6784 = vmatpush1.msra.mxu0 0.0
    %6785 = vmatprep.subr.mxu0 0.0
    %6786 = vmatpush1.msra.mxu0 0.0
    %6787 = vmatprep.subr.mxu0 0.0
    %6788 = vmatpush1.msra.mxu0 0.0
    %6789 = vmatprep.subr.mxu0 0.0
    %6790 = vmatpush1.msra.mxu0 0.0
    %6791 = vmatprep.subr.mxu0 0.0
    %6792 = vmatpush1.msra.mxu0 0.0
    %6793 = vmatprep.subr.mxu0 0.0
    %6794 = vmatpush1.msra.mxu0 0.0
    %6795 = vmatprep.subr.mxu0 0.0
    %6796 = vmatpush1.msra.mxu0 0.0
    %6797 = vmatprep.subr.mxu0 0.0
    %6798 = vmatpush1.msra.mxu0 0.0
    %6799 = vmatprep.subr.mxu0 0.0
    %6800 = vmatpush1.msra.mxu0 0.0
    %6801 = vmatprep.subr.mxu0 0.0
    %6802 = vmatpush1.msra.mxu0 %v5613
    %6803 = vmatprep.subr.mxu0 0.0
    %6804 = vmatpush1.msra.mxu0 %v5612
    %6805 = vmatprep.subr.mxu0 0.0
    %6806 = vmatpush2.msra.mxu0 0.0
    %6807 = vmatprep.subr.mxu0 0.0
    %6808 = vmatpush2.msra.mxu0 0.0
    %6809 = vmatprep.subr.mxu0 0.0
    %6810 = vmatpush2.msra.mxu0 0.0
    %6811 = vmatprep.subr.mxu0 0.0
    %6812 = vmatpush2.msra.mxu0 0.0
    %6813 = vmatprep.subr.mxu0 0.0
    %6814 = vmatpush2.msra.mxu0 0.0
    %6815 = vmatprep.subr.mxu0 0.0
    %6816 = vmatpush2.msra.mxu0 0.0
    %6817 = vmatprep.subr.mxu0 0.0
    %6818 = vmatpush2.msra.mxu0 0.0
    %6819 = vmatprep.subr.mxu0 0.0
    %6820 = vmatpush2.msra.mxu0 0.0
    %6821 = vmatprep.subr.mxu0 0.0
    %6822 = vmatpush2.msra.mxu0 0.0
    %6823 = vmatprep.subr.mxu0 0.0
    %6824 = vmatpush2.msra.mxu0 0.0
    %6825 = vmatprep.subr.mxu0 0.0
    %6826 = vmatpush2.msra.mxu0 0.0
    %6827 = vmatprep.subr.mxu0 0.0
    %6828 = vmatpush2.msra.mxu0 0.0
    %6829 = vmatprep.subr.mxu0 0.0
    %6830 = vmatpush2.msra.mxu0 0.0
    %6831 = vmatprep.subr.mxu0 0.0
    %6832 = vmatpush2.msra.mxu0 0.0
    %6833 = vmatprep.subr.mxu0 0.0
    %6834 = vmatpush2.msra.mxu0 0.0
    %6835 = vmatprep.subr.mxu0 0.0
    %6836 = vmatpush2.msra.mxu0 0.0
    %6837 = vmatprep.mubr.f32.mxu0 0.0
    %6838 = vmatmul.mubr.f32.gmra.mxu0 %v6075
    %v6839 = vpop.f32.mrf.mxu0
    %v6840 = vadd.f32 0.0, %v6839
    %v6841 = vpop.f32.mrf.mxu0
    %6842 = vmatprep.mubr.f32.mxu0 0.0
    %6843 = vmatmul.mubr.f32.gmra.mxu0 %v6078
    %v6844 = vpop.f32.mrf.mxu0
    %v6845 = vadd.f32 0.0, %v6844
    %v6846 = vpop.f32.mrf.mxu0
    %6847 = vdwg.mxu0
    %6848 = vmatprep.subr.mxu0 0.0
    %6849 = vmatpush1.msra.mxu0 0.0
    %6850 = vmatprep.subr.mxu0 0.0
    %6851 = vmatpush1.msra.mxu0 0.0
    %6852 = vmatprep.subr.mxu0 0.0
    %6853 = vmatpush1.msra.mxu0 0.0
    %6854 = vmatprep.subr.mxu0 0.0
    %6855 = vmatpush1.msra.mxu0 0.0
    %6856 = vmatprep.subr.mxu0 0.0
    %6857 = vmatpush1.msra.mxu0 0.0
    %6858 = vmatprep.subr.mxu0 0.0
    %6859 = vmatpush1.msra.mxu0 0.0
    %6860 = vmatprep.subr.mxu0 0.0
    %6861 = vmatpush1.msra.mxu0 0.0
    %6862 = vmatprep.subr.mxu0 0.0
    %6863 = vmatpush1.msra.mxu0 0.0
    %6864 = vmatprep.subr.mxu0 0.0
    %6865 = vmatpush1.msra.mxu0 0.0
    %6866 = vmatprep.subr.mxu0 0.0
    %6867 = vmatpush1.msra.mxu0 0.0
    %6868 = vmatprep.subr.mxu0 0.0
    %6869 = vmatpush1.msra.mxu0 0.0
    %6870 = vmatprep.subr.mxu0 0.0
    %6871 = vmatpush1.msra.mxu0 0.0
    %6872 = vmatprep.subr.mxu0 0.0
    %6873 = vmatpush1.msra.mxu0 0.0
    %6874 = vmatprep.subr.mxu0 0.0
    %6875 = vmatpush1.msra.mxu0 0.0
    %6876 = vmatprep.subr.mxu0 0.0
    %6877 = vmatpush1.msra.mxu0 %v5613
    %6878 = vmatprep.subr.mxu0 0.0
    %6879 = vmatpush1.msra.mxu0 %v5612
    %6880 = vmatprep.subr.mxu0 0.0
    %6881 = vmatpush2.msra.mxu0 0.0
    %6882 = vmatprep.subr.mxu0 0.0
    %6883 = vmatpush2.msra.mxu0 0.0
    %6884 = vmatprep.subr.mxu0 0.0
    %6885 = vmatpush2.msra.mxu0 0.0
    %6886 = vmatprep.subr.mxu0 0.0
    %6887 = vmatpush2.msra.mxu0 0.0
    %6888 = vmatprep.subr.mxu0 0.0
    %6889 = vmatpush2.msra.mxu0 0.0
    %6890 = vmatprep.subr.mxu0 0.0
    %6891 = vmatpush2.msra.mxu0 0.0
    %6892 = vmatprep.subr.mxu0 0.0
    %6893 = vmatpush2.msra.mxu0 0.0
    %6894 = vmatprep.subr.mxu0 0.0
    %6895 = vmatpush2.msra.mxu0 0.0
    %6896 = vmatprep.subr.mxu0 0.0
    %6897 = vmatpush2.msra.mxu0 0.0
    %6898 = vmatprep.subr.mxu0 0.0
    %6899 = vmatpush2.msra.mxu0 0.0
    %6900 = vmatprep.subr.mxu0 0.0
    %6901 = vmatpush2.msra.mxu0 0.0
    %6902 = vmatprep.subr.mxu0 0.0
    %6903 = vmatpush2.msra.mxu0 0.0
    %6904 = vmatprep.subr.mxu0 0.0
    %6905 = vmatpush2.msra.mxu0 0.0
    %6906 = vmatprep.subr.mxu0 0.0
    %6907 = vmatpush2.msra.mxu0 0.0
    %6908 = vmatprep.subr.mxu0 0.0
    %6909 = vmatpush2.msra.mxu0 0.0
    %6910 = vmatprep.subr.mxu0 0.0
    %6911 = vmatpush2.msra.mxu0 0.0
    %6912 = vmatprep.mubr.f32.mxu0 0.0
    %6913 = vmatmul.mubr.f32.gmra.mxu0 %v6156
    %v6914 = vpop.f32.mrf.mxu0
    %v6915 = vadd.f32 0.0, %v6914
    %v6916 = vpop.f32.mrf.mxu0
    %6917 = vmatprep.mubr.f32.mxu0 0.0
    %6918 = vmatmul.mubr.f32.gmra.mxu0 %v6159
    %v6919 = vpop.f32.mrf.mxu0
    %v6920 = vadd.f32 0.0, %v6919
    %v6921 = vpop.f32.mrf.mxu0
    %6922 = vdwg.mxu0
    %6923 = vmatprep.subr.mxu0 0.0
    %6924 = vmatpush1.msra.mxu0 0.0
    %6925 = vmatprep.subr.mxu0 0.0
    %6926 = vmatpush1.msra.mxu0 0.0
    %6927 = vmatprep.subr.mxu0 0.0
    %6928 = vmatpush1.msra.mxu0 0.0
    %6929 = vmatprep.subr.mxu0 0.0
    %6930 = vmatpush1.msra.mxu0 0.0
    %6931 = vmatprep.subr.mxu0 0.0
    %6932 = vmatpush1.msra.mxu0 0.0
    %6933 = vmatprep.subr.mxu0 0.0
    %6934 = vmatpush1.msra.mxu0 0.0
    %6935 = vmatprep.subr.mxu0 0.0
    %6936 = vmatpush1.msra.mxu0 0.0
    %6937 = vmatprep.subr.mxu0 0.0
    %6938 = vmatpush1.msra.mxu0 0.0
    %6939 = vmatprep.subr.mxu0 0.0
    %6940 = vmatpush1.msra.mxu0 0.0
    %6941 = vmatprep.subr.mxu0 0.0
    %6942 = vmatpush1.msra.mxu0 0.0
    %6943 = vmatprep.subr.mxu0 0.0
    %6944 = vmatpush1.msra.mxu0 0.0
    %6945 = vmatprep.subr.mxu0 0.0
    %6946 = vmatpush1.msra.mxu0 0.0
    %6947 = vmatprep.subr.mxu0 0.0
    %6948 = vmatpush1.msra.mxu0 0.0
    %6949 = vmatprep.subr.mxu0 0.0
    %6950 = vmatpush1.msra.mxu0 0.0
    %6951 = vmatprep.subr.mxu0 0.0
    %6952 = vmatpush1.msra.mxu0 %v5613
    %6953 = vmatprep.subr.mxu0 0.0
    %6954 = vmatpush1.msra.mxu0 %v5612
    %6955 = vmatprep.subr.mxu0 0.0
    %6956 = vmatpush2.msra.mxu0 0.0
    %6957 = vmatprep.subr.mxu0 0.0
    %6958 = vmatpush2.msra.mxu0 0.0
    %6959 = vmatprep.subr.mxu0 0.0
    %6960 = vmatpush2.msra.mxu0 0.0
    %6961 = vmatprep.subr.mxu0 0.0
    %6962 = vmatpush2.msra.mxu0 0.0
    %6963 = vmatprep.subr.mxu0 0.0
    %6964 = vmatpush2.msra.mxu0 0.0
    %6965 = vmatprep.subr.mxu0 0.0
    %6966 = vmatpush2.msra.mxu0 0.0
    %6967 = vmatprep.subr.mxu0 0.0
    %6968 = vmatpush2.msra.mxu0 0.0
    %6969 = vmatprep.subr.mxu0 0.0
    %6970 = vmatpush2.msra.mxu0 0.0
    %6971 = vmatprep.subr.mxu0 0.0
    %6972 = vmatpush2.msra.mxu0 0.0
    %6973 = vmatprep.subr.mxu0 0.0
    %6974 = vmatpush2.msra.mxu0 0.0
    %6975 = vmatprep.subr.mxu0 0.0
    %6976 = vmatpush2.msra.mxu0 0.0
    %6977 = vmatprep.subr.mxu0 0.0
    %6978 = vmatpush2.msra.mxu0 0.0
    %6979 = vmatprep.subr.mxu0 0.0
    %6980 = vmatpush2.msra.mxu0 0.0
    %6981 = vmatprep.subr.mxu0 0.0
    %6982 = vmatpush2.msra.mxu0 0.0
    %6983 = vmatprep.subr.mxu0 0.0
    %6984 = vmatpush2.msra.mxu0 0.0
    %6985 = vmatprep.subr.mxu0 0.0
    %6986 = vmatpush2.msra.mxu0 0.0
    %6987 = vmatprep.mubr.f32.mxu0 0.0
    %6988 = vmatmul.mubr.f32.gmra.mxu0 %v6237
    %v6989 = vpop.f32.mrf.mxu0
    %v6990 = vadd.f32 0.0, %v6989
    %v6991 = vpop.f32.mrf.mxu0
    %6992 = vmatprep.mubr.f32.mxu0 0.0
    %6993 = vmatmul.mubr.f32.gmra.mxu0 %v6240
    %v6994 = vpop.f32.mrf.mxu0
    %v6995 = vadd.f32 0.0, %v6994
    %v6996 = vpop.f32.mrf.mxu0
    %6997 = vdwg.mxu0
    %6998 = vmatprep.subr.mxu0 0.0
    %6999 = vmatpush1.msra.mxu0 0.0
    %7000 = vmatprep.subr.mxu0 0.0
    %7001 = vmatpush1.msra.mxu0 0.0
    %7002 = vmatprep.subr.mxu0 0.0
    %7003 = vmatpush1.msra.mxu0 0.0
    %7004 = vmatprep.subr.mxu0 0.0
    %7005 = vmatpush1.msra.mxu0 0.0
    %7006 = vmatprep.subr.mxu0 0.0
    %7007 = vmatpush1.msra.mxu0 0.0
    %7008 = vmatprep.subr.mxu0 0.0
    %7009 = vmatpush1.msra.mxu0 0.0
    %7010 = vmatprep.subr.mxu0 0.0
    %7011 = vmatpush1.msra.mxu0 0.0
    %7012 = vmatprep.subr.mxu0 0.0
    %7013 = vmatpush1.msra.mxu0 0.0
    %7014 = vmatprep.subr.mxu0 0.0
    %7015 = vmatpush1.msra.mxu0 0.0
    %7016 = vmatprep.subr.mxu0 0.0
    %7017 = vmatpush1.msra.mxu0 0.0
    %7018 = vmatprep.subr.mxu0 0.0
    %7019 = vmatpush1.msra.mxu0 0.0
    %7020 = vmatprep.subr.mxu0 0.0
    %7021 = vmatpush1.msra.mxu0 0.0
    %7022 = vmatprep.subr.mxu0 0.0
    %7023 = vmatpush1.msra.mxu0 0.0
    %7024 = vmatprep.subr.mxu0 0.0
    %7025 = vmatpush1.msra.mxu0 0.0
    %7026 = vmatprep.subr.mxu0 0.0
    %7027 = vmatpush1.msra.mxu0 %v5613
    %7028 = vmatprep.subr.mxu0 0.0
    %7029 = vmatpush1.msra.mxu0 %v5612
    %7030 = vmatprep.subr.mxu0 0.0
    %7031 = vmatpush2.msra.mxu0 0.0
    %7032 = vmatprep.subr.mxu0 0.0
    %7033 = vmatpush2.msra.mxu0 0.0
    %7034 = vmatprep.subr.mxu0 0.0
    %7035 = vmatpush2.msra.mxu0 0.0
    %7036 = vmatprep.subr.mxu0 0.0
    %7037 = vmatpush2.msra.mxu0 0.0
    %7038 = vmatprep.subr.mxu0 0.0
    %7039 = vmatpush2.msra.mxu0 0.0
    %7040 = vmatprep.subr.mxu0 0.0
    %7041 = vmatpush2.msra.mxu0 0.0
    %7042 = vmatprep.subr.mxu0 0.0
    %7043 = vmatpush2.msra.mxu0 0.0
    %7044 = vmatprep.subr.mxu0 0.0
    %7045 = vmatpush2.msra.mxu0 0.0
    %7046 = vmatprep.subr.mxu0 0.0
    %7047 = vmatpush2.msra.mxu0 0.0
    %7048 = vmatprep.subr.mxu0 0.0
    %7049 = vmatpush2.msra.mxu0 0.0
    %7050 = vmatprep.subr.mxu0 0.0
    %7051 = vmatpush2.msra.mxu0 0.0
    %7052 = vmatprep.subr.mxu0 0.0
    %7053 = vmatpush2.msra.mxu0 0.0
    %7054 = vmatprep.subr.mxu0 0.0
    %7055 = vmatpush2.msra.mxu0 0.0
    %7056 = vmatprep.subr.mxu0 0.0
    %7057 = vmatpush2.msra.mxu0 0.0
    %7058 = vmatprep.subr.mxu0 0.0
    %7059 = vmatpush2.msra.mxu0 0.0
    %7060 = vmatprep.subr.mxu0 0.0
    %7061 = vmatpush2.msra.mxu0 0.0
    %7062 = vmatprep.mubr.f32.mxu0 0.0
    %7063 = vmatmul.mubr.f32.gmra.mxu0 %v6318
    %v7064 = vpop.f32.mrf.mxu0
    %v7065 = vadd.f32 0.0, %v7064
    %v7066 = vpop.f32.mrf.mxu0
    %7067 = vmatprep.mubr.f32.mxu0 0.0
    %7068 = vmatmul.mubr.f32.gmra.mxu0 %v6321
    %v7069 = vpop.f32.mrf.mxu0
    %v7070 = vadd.f32 0.0, %v7069
    %v7071 = vpop.f32.mrf.mxu0
    %7072 = vdwg.mxu0
    %v7074 = vsel %vm2884, %v5742, 0
    %v7077 = vsel %vm2884, %v5747, 0
    %7079 = vmatprep.subr.mxu0 0.0
    %7080 = vmatpush1.msra.mxu0 0.0
    %7081 = vmatprep.subr.mxu0 0.0
    %7082 = vmatpush1.msra.mxu0 0.0
    %7083 = vmatprep.subr.mxu0 0.0
    %7084 = vmatpush1.msra.mxu0 0.0
    %7085 = vmatprep.subr.mxu0 0.0
    %7086 = vmatpush1.msra.mxu0 0.0
    %7087 = vmatprep.subr.mxu0 0.0
    %7088 = vmatpush1.msra.mxu0 0.0
    %7089 = vmatprep.subr.mxu0 0.0
    %7090 = vmatpush1.msra.mxu0 0.0
    %7091 = vmatprep.subr.mxu0 0.0
    %7092 = vmatpush1.msra.mxu0 0.0
    %7093 = vmatprep.subr.mxu0 0.0
    %7094 = vmatpush1.msra.mxu0 0.0
    %7095 = vmatprep.subr.mxu0 0.0
    %7096 = vmatpush1.msra.mxu0 0.0
    %7097 = vmatprep.subr.mxu0 0.0
    %7098 = vmatpush1.msra.mxu0 0.0
    %7099 = vmatprep.subr.mxu0 0.0
    %7100 = vmatpush1.msra.mxu0 0.0
    %7101 = vmatprep.subr.mxu0 0.0
    %7102 = vmatpush1.msra.mxu0 0.0
    %7103 = vmatprep.subr.mxu0 0.0
    %7104 = vmatpush1.msra.mxu0 %v5635
    %7105 = vmatprep.subr.mxu0 0.0
    %7106 = vmatpush1.msra.mxu0 %v5634
    %7107 = vmatprep.subr.mxu0 0.0
    %7108 = vmatpush1.msra.mxu0 %v5633
    %7109 = vmatprep.subr.mxu0 0.0
    %7110 = vmatpush1.msra.mxu0 %v5632
    %7111 = vmatprep.subr.mxu0 0.0
    %7112 = vmatpush2.msra.mxu0 0.0
    %7113 = vmatprep.subr.mxu0 0.0
    %7114 = vmatpush2.msra.mxu0 0.0
    %7115 = vmatprep.subr.mxu0 0.0
    %7116 = vmatpush2.msra.mxu0 0.0
    %7117 = vmatprep.subr.mxu0 0.0
    %7118 = vmatpush2.msra.mxu0 0.0
    %7119 = vmatprep.subr.mxu0 0.0
    %7120 = vmatpush2.msra.mxu0 0.0
    %7121 = vmatprep.subr.mxu0 0.0
    %7122 = vmatpush2.msra.mxu0 0.0
    %7123 = vmatprep.subr.mxu0 0.0
    %7124 = vmatpush2.msra.mxu0 0.0
    %7125 = vmatprep.subr.mxu0 0.0
    %7126 = vmatpush2.msra.mxu0 0.0
    %7127 = vmatprep.subr.mxu0 0.0
    %7128 = vmatpush2.msra.mxu0 0.0
    %7129 = vmatprep.subr.mxu0 0.0
    %7130 = vmatpush2.msra.mxu0 0.0
    %7131 = vmatprep.subr.mxu0 0.0
    %7132 = vmatpush2.msra.mxu0 0.0
    %7133 = vmatprep.subr.mxu0 0.0
    %7134 = vmatpush2.msra.mxu0 0.0
    %7135 = vmatprep.subr.mxu0 0.0
    %7136 = vmatpush2.msra.mxu0 0.0
    %7137 = vmatprep.subr.mxu0 0.0
    %7138 = vmatpush2.msra.mxu0 0.0
    %7139 = vmatprep.subr.mxu0 0.0
    %7140 = vmatpush2.msra.mxu0 0.0
    %7141 = vmatprep.subr.mxu0 0.0
    %7142 = vmatpush2.msra.mxu0 0.0
    %7143 = vmatprep.mubr.f32.mxu0 0.0
    %7144 = vmatmul.mubr.f32.gmra.mxu0 %v7074
    %v7145 = vpop.f32.mrf.mxu0
    %v7146 = vadd.f32 0.0, %v7145
    %v7147 = vpop.f32.mrf.mxu0
    %7148 = vmatprep.mubr.f32.mxu0 0.0
    %7149 = vmatmul.mubr.f32.gmra.mxu0 %v7077
    %v7150 = vpop.f32.mrf.mxu0
    %v7151 = vadd.f32 0.0, %v7150
    %v7152 = vpop.f32.mrf.mxu0
    %7153 = vdwg.mxu0
    %v7155 = vsel %vm2884, %v5823, 0
    %v7158 = vsel %vm2884, %v5828, 0
    %7160 = vmatprep.subr.mxu0 0.0
    %7161 = vmatpush1.msra.mxu0 0.0
    %7162 = vmatprep.subr.mxu0 0.0
    %7163 = vmatpush1.msra.mxu0 0.0
    %7164 = vmatprep.subr.mxu0 0.0
    %7165 = vmatpush1.msra.mxu0 0.0
    %7166 = vmatprep.subr.mxu0 0.0
    %7167 = vmatpush1.msra.mxu0 0.0
    %7168 = vmatprep.subr.mxu0 0.0
    %7169 = vmatpush1.msra.mxu0 0.0
    %7170 = vmatprep.subr.mxu0 0.0
    %7171 = vmatpush1.msra.mxu0 0.0
    %7172 = vmatprep.subr.mxu0 0.0
    %7173 = vmatpush1.msra.mxu0 0.0
    %7174 = vmatprep.subr.mxu0 0.0
    %7175 = vmatpush1.msra.mxu0 0.0
    %7176 = vmatprep.subr.mxu0 0.0
    %7177 = vmatpush1.msra.mxu0 0.0
    %7178 = vmatprep.subr.mxu0 0.0
    %7179 = vmatpush1.msra.mxu0 0.0
    %7180 = vmatprep.subr.mxu0 0.0
    %7181 = vmatpush1.msra.mxu0 0.0
    %7182 = vmatprep.subr.mxu0 0.0
    %7183 = vmatpush1.msra.mxu0 0.0
    %7184 = vmatprep.subr.mxu0 0.0
    %7185 = vmatpush1.msra.mxu0 %v5639
    %7186 = vmatprep.subr.mxu0 0.0
    %7187 = vmatpush1.msra.mxu0 %v5638
    %7188 = vmatprep.subr.mxu0 0.0
    %7189 = vmatpush1.msra.mxu0 %v5637
    %7190 = vmatprep.subr.mxu0 0.0
    %7191 = vmatpush1.msra.mxu0 %v5636
    %7192 = vmatprep.subr.mxu0 0.0
    %7193 = vmatpush2.msra.mxu0 0.0
    %7194 = vmatprep.subr.mxu0 0.0
    %7195 = vmatpush2.msra.mxu0 0.0
    %7196 = vmatprep.subr.mxu0 0.0
    %7197 = vmatpush2.msra.mxu0 0.0
    %7198 = vmatprep.subr.mxu0 0.0
    %7199 = vmatpush2.msra.mxu0 0.0
    %7200 = vmatprep.subr.mxu0 0.0
    %7201 = vmatpush2.msra.mxu0 0.0
    %7202 = vmatprep.subr.mxu0 0.0
    %7203 = vmatpush2.msra.mxu0 0.0
    %7204 = vmatprep.subr.mxu0 0.0
    %7205 = vmatpush2.msra.mxu0 0.0
    %7206 = vmatprep.subr.mxu0 0.0
    %7207 = vmatpush2.msra.mxu0 0.0
    %7208 = vmatprep.subr.mxu0 0.0
    %7209 = vmatpush2.msra.mxu0 0.0
    %7210 = vmatprep.subr.mxu0 0.0
    %7211 = vmatpush2.msra.mxu0 0.0
    %7212 = vmatprep.subr.mxu0 0.0
    %7213 = vmatpush2.msra.mxu0 0.0
    %7214 = vmatprep.subr.mxu0 0.0
    %7215 = vmatpush2.msra.mxu0 0.0
    %7216 = vmatprep.subr.mxu0 0.0
    %7217 = vmatpush2.msra.mxu0 0.0
    %7218 = vmatprep.subr.mxu0 0.0
    %7219 = vmatpush2.msra.mxu0 0.0
    %7220 = vmatprep.subr.mxu0 0.0
    %7221 = vmatpush2.msra.mxu0 0.0
    %7222 = vmatprep.subr.mxu0 0.0
    %7223 = vmatpush2.msra.mxu0 0.0
    %7224 = vmatprep.mubr.f32.mxu0 0.0
    %7225 = vmatmul.mubr.f32.gmra.mxu0 %v7155
    %v7226 = vpop.f32.mrf.mxu0
    %v7227 = vadd.f32 0.0, %v7226
    %v7228 = vpop.f32.mrf.mxu0
    %7229 = vmatprep.mubr.f32.mxu0 0.0
    %7230 = vmatmul.mubr.f32.gmra.mxu0 %v7158
    %v7231 = vpop.f32.mrf.mxu0
    %v7232 = vadd.f32 0.0, %v7231
    %v7233 = vpop.f32.mrf.mxu0
    %7234 = vdwg.mxu0
    %v7236 = vsel %vm2884, %v5904, 0
    %v7239 = vsel %vm2884, %v5909, 0
    %7241 = vmatprep.subr.mxu0 0.0
    %7242 = vmatpush1.msra.mxu0 0.0
    %7243 = vmatprep.subr.mxu0 0.0
    %7244 = vmatpush1.msra.mxu0 0.0
    %7245 = vmatprep.subr.mxu0 0.0
    %7246 = vmatpush1.msra.mxu0 0.0
    %7247 = vmatprep.subr.mxu0 0.0
    %7248 = vmatpush1.msra.mxu0 0.0
    %7249 = vmatprep.subr.mxu0 0.0
    %7250 = vmatpush1.msra.mxu0 0.0
    %7251 = vmatprep.subr.mxu0 0.0
    %7252 = vmatpush1.msra.mxu0 0.0
    %7253 = vmatprep.subr.mxu0 0.0
    %7254 = vmatpush1.msra.mxu0 0.0
    %7255 = vmatprep.subr.mxu0 0.0
    %7256 = vmatpush1.msra.mxu0 0.0
    %7257 = vmatprep.subr.mxu0 0.0
    %7258 = vmatpush1.msra.mxu0 0.0
    %7259 = vmatprep.subr.mxu0 0.0
    %7260 = vmatpush1.msra.mxu0 0.0
    %7261 = vmatprep.subr.mxu0 0.0
    %7262 = vmatpush1.msra.mxu0 0.0
    %7263 = vmatprep.subr.mxu0 0.0
    %7264 = vmatpush1.msra.mxu0 0.0
    %7265 = vmatprep.subr.mxu0 0.0
    %7266 = vmatpush1.msra.mxu0 %v5643
    %7267 = vmatprep.subr.mxu0 0.0
    %7268 = vmatpush1.msra.mxu0 %v5642
    %7269 = vmatprep.subr.mxu0 0.0
    %7270 = vmatpush1.msra.mxu0 %v5641
    %7271 = vmatprep.subr.mxu0 0.0
    %7272 = vmatpush1.msra.mxu0 %v5640
    %7273 = vmatprep.subr.mxu0 0.0
    %7274 = vmatpush2.msra.mxu0 0.0
    %7275 = vmatprep.subr.mxu0 0.0
    %7276 = vmatpush2.msra.mxu0 0.0
    %7277 = vmatprep.subr.mxu0 0.0
    %7278 = vmatpush2.msra.mxu0 0.0
    %7279 = vmatprep.subr.mxu0 0.0
    %7280 = vmatpush2.msra.mxu0 0.0
    %7281 = vmatprep.subr.mxu0 0.0
    %7282 = vmatpush2.msra.mxu0 0.0
    %7283 = vmatprep.subr.mxu0 0.0
    %7284 = vmatpush2.msra.mxu0 0.0
    %7285 = vmatprep.subr.mxu0 0.0
    %7286 = vmatpush2.msra.mxu0 0.0
    %7287 = vmatprep.subr.mxu0 0.0
    %7288 = vmatpush2.msra.mxu0 0.0
    %7289 = vmatprep.subr.mxu0 0.0
    %7290 = vmatpush2.msra.mxu0 0.0
    %7291 = vmatprep.subr.mxu0 0.0
    %7292 = vmatpush2.msra.mxu0 0.0
    %7293 = vmatprep.subr.mxu0 0.0
    %7294 = vmatpush2.msra.mxu0 0.0
    %7295 = vmatprep.subr.mxu0 0.0
    %7296 = vmatpush2.msra.mxu0 0.0
    %7297 = vmatprep.subr.mxu0 0.0
    %7298 = vmatpush2.msra.mxu0 0.0
    %7299 = vmatprep.subr.mxu0 0.0
    %7300 = vmatpush2.msra.mxu0 0.0
    %7301 = vmatprep.subr.mxu0 0.0
    %7302 = vmatpush2.msra.mxu0 0.0
    %7303 = vmatprep.subr.mxu0 0.0
    %7304 = vmatpush2.msra.mxu0 0.0
    %7305 = vmatprep.mubr.f32.mxu0 0.0
    %7306 = vmatmul.mubr.f32.gmra.mxu0 %v7236
    %v7307 = vpop.f32.mrf.mxu0
    %v7308 = vadd.f32 0.0, %v7307
    %v7309 = vpop.f32.mrf.mxu0
    %7310 = vmatprep.mubr.f32.mxu0 0.0
    %7311 = vmatmul.mubr.f32.gmra.mxu0 %v7239
    %v7312 = vpop.f32.mrf.mxu0
    %v7313 = vadd.f32 0.0, %v7312
    %v7314 = vpop.f32.mrf.mxu0
    %7315 = vdwg.mxu0
    %v7317 = vsel %vm2884, %v5985, 0
    %v7320 = vsel %vm2884, %v5990, 0
    %7322 = vmatprep.subr.mxu0 0.0
    %7323 = vmatpush1.msra.mxu0 0.0
    %7324 = vmatprep.subr.mxu0 0.0
    %7325 = vmatpush1.msra.mxu0 0.0
    %7326 = vmatprep.subr.mxu0 0.0
    %7327 = vmatpush1.msra.mxu0 0.0
    %7328 = vmatprep.subr.mxu0 0.0
    %7329 = vmatpush1.msra.mxu0 0.0
    %7330 = vmatprep.subr.mxu0 0.0
    %7331 = vmatpush1.msra.mxu0 0.0
    %7332 = vmatprep.subr.mxu0 0.0
    %7333 = vmatpush1.msra.mxu0 0.0
    %7334 = vmatprep.subr.mxu0 0.0
    %7335 = vmatpush1.msra.mxu0 0.0
    %7336 = vmatprep.subr.mxu0 0.0
    %7337 = vmatpush1.msra.mxu0 0.0
    %7338 = vmatprep.subr.mxu0 0.0
    %7339 = vmatpush1.msra.mxu0 0.0
    %7340 = vmatprep.subr.mxu0 0.0
    %7341 = vmatpush1.msra.mxu0 0.0
    %7342 = vmatprep.subr.mxu0 0.0
    %7343 = vmatpush1.msra.mxu0 0.0
    %7344 = vmatprep.subr.mxu0 0.0
    %7345 = vmatpush1.msra.mxu0 0.0
    %7346 = vmatprep.subr.mxu0 0.0
    %7347 = vmatpush1.msra.mxu0 %v5647
    %7348 = vmatprep.subr.mxu0 0.0
    %7349 = vmatpush1.msra.mxu0 %v5646
    %7350 = vmatprep.subr.mxu0 0.0
    %7351 = vmatpush1.msra.mxu0 %v5645
    %7352 = vmatprep.subr.mxu0 0.0
    %7353 = vmatpush1.msra.mxu0 %v5644
    %7354 = vmatprep.subr.mxu0 0.0
    %7355 = vmatpush2.msra.mxu0 0.0
    %7356 = vmatprep.subr.mxu0 0.0
    %7357 = vmatpush2.msra.mxu0 0.0
    %7358 = vmatprep.subr.mxu0 0.0
    %7359 = vmatpush2.msra.mxu0 0.0
    %7360 = vmatprep.subr.mxu0 0.0
    %7361 = vmatpush2.msra.mxu0 0.0
    %7362 = vmatprep.subr.mxu0 0.0
    %7363 = vmatpush2.msra.mxu0 0.0
    %7364 = vmatprep.subr.mxu0 0.0
    %7365 = vmatpush2.msra.mxu0 0.0
    %7366 = vmatprep.subr.mxu0 0.0
    %7367 = vmatpush2.msra.mxu0 0.0
    %7368 = vmatprep.subr.mxu0 0.0
    %7369 = vmatpush2.msra.mxu0 0.0
    %7370 = vmatprep.subr.mxu0 0.0
    %7371 = vmatpush2.msra.mxu0 0.0
    %7372 = vmatprep.subr.mxu0 0.0
    %7373 = vmatpush2.msra.mxu0 0.0
    %7374 = vmatprep.subr.mxu0 0.0
    %7375 = vmatpush2.msra.mxu0 0.0
    %7376 = vmatprep.subr.mxu0 0.0
    %7377 = vmatpush2.msra.mxu0 0.0
    %7378 = vmatprep.subr.mxu0 0.0
    %7379 = vmatpush2.msra.mxu0 0.0
    %7380 = vmatprep.subr.mxu0 0.0
    %7381 = vmatpush2.msra.mxu0 0.0
    %7382 = vmatprep.subr.mxu0 0.0
    %7383 = vmatpush2.msra.mxu0 0.0
    %7384 = vmatprep.subr.mxu0 0.0
    %7385 = vmatpush2.msra.mxu0 0.0
    %7386 = vmatprep.mubr.f32.mxu0 0.0
    %7387 = vmatmul.mubr.f32.gmra.mxu0 %v7317
    %v7388 = vpop.f32.mrf.mxu0
    %v7389 = vadd.f32 0.0, %v7388
    %v7390 = vpop.f32.mrf.mxu0
    %7391 = vmatprep.mubr.f32.mxu0 0.0
    %7392 = vmatmul.mubr.f32.gmra.mxu0 %v7320
    %v7393 = vpop.f32.mrf.mxu0
    %v7394 = vadd.f32 0.0, %v7393
    %v7395 = vpop.f32.mrf.mxu0
    %7396 = vdwg.mxu0
    %v7398 = vsel %vm2884, %v6066, 0
    %v7401 = vsel %vm2884, %v6071, 0
    %7403 = vmatprep.subr.mxu0 0.0
    %7404 = vmatpush1.msra.mxu0 0.0
    %7405 = vmatprep.subr.mxu0 0.0
    %7406 = vmatpush1.msra.mxu0 0.0
    %7407 = vmatprep.subr.mxu0 0.0
    %7408 = vmatpush1.msra.mxu0 0.0
    %7409 = vmatprep.subr.mxu0 0.0
    %7410 = vmatpush1.msra.mxu0 0.0
    %7411 = vmatprep.subr.mxu0 0.0
    %7412 = vmatpush1.msra.mxu0 0.0
    %7413 = vmatprep.subr.mxu0 0.0
    %7414 = vmatpush1.msra.mxu0 0.0
    %7415 = vmatprep.subr.mxu0 0.0
    %7416 = vmatpush1.msra.mxu0 0.0
    %7417 = vmatprep.subr.mxu0 0.0
    %7418 = vmatpush1.msra.mxu0 0.0
    %7419 = vmatprep.subr.mxu0 0.0
    %7420 = vmatpush1.msra.mxu0 0.0
    %7421 = vmatprep.subr.mxu0 0.0
    %7422 = vmatpush1.msra.mxu0 0.0
    %7423 = vmatprep.subr.mxu0 0.0
    %7424 = vmatpush1.msra.mxu0 0.0
    %7425 = vmatprep.subr.mxu0 0.0
    %7426 = vmatpush1.msra.mxu0 0.0
    %7427 = vmatprep.subr.mxu0 0.0
    %7428 = vmatpush1.msra.mxu0 %v5651
    %7429 = vmatprep.subr.mxu0 0.0
    %7430 = vmatpush1.msra.mxu0 %v5650
    %7431 = vmatprep.subr.mxu0 0.0
    %7432 = vmatpush1.msra.mxu0 %v5649
    %7433 = vmatprep.subr.mxu0 0.0
    %7434 = vmatpush1.msra.mxu0 %v5648
    %7435 = vmatprep.subr.mxu0 0.0
    %7436 = vmatpush2.msra.mxu0 0.0
    %7437 = vmatprep.subr.mxu0 0.0
    %7438 = vmatpush2.msra.mxu0 0.0
    %7439 = vmatprep.subr.mxu0 0.0
    %7440 = vmatpush2.msra.mxu0 0.0
    %7441 = vmatprep.subr.mxu0 0.0
    %7442 = vmatpush2.msra.mxu0 0.0
    %7443 = vmatprep.subr.mxu0 0.0
    %7444 = vmatpush2.msra.mxu0 0.0
    %7445 = vmatprep.subr.mxu0 0.0
    %7446 = vmatpush2.msra.mxu0 0.0
    %7447 = vmatprep.subr.mxu0 0.0
    %7448 = vmatpush2.msra.mxu0 0.0
    %7449 = vmatprep.subr.mxu0 0.0
    %7450 = vmatpush2.msra.mxu0 0.0
    %7451 = vmatprep.subr.mxu0 0.0
    %7452 = vmatpush2.msra.mxu0 0.0
    %7453 = vmatprep.subr.mxu0 0.0
    %7454 = vmatpush2.msra.mxu0 0.0
    %7455 = vmatprep.subr.mxu0 0.0
    %7456 = vmatpush2.msra.mxu0 0.0
    %7457 = vmatprep.subr.mxu0 0.0
    %7458 = vmatpush2.msra.mxu0 0.0
    %7459 = vmatprep.subr.mxu0 0.0
    %7460 = vmatpush2.msra.mxu0 0.0
    %7461 = vmatprep.subr.mxu0 0.0
    %7462 = vmatpush2.msra.mxu0 0.0
    %7463 = vmatprep.subr.mxu0 0.0
    %7464 = vmatpush2.msra.mxu0 0.0
    %7465 = vmatprep.subr.mxu0 0.0
    %7466 = vmatpush2.msra.mxu0 0.0
    %7467 = vmatprep.mubr.f32.mxu0 0.0
    %7468 = vmatmul.mubr.f32.gmra.mxu0 %v7398
    %v7469 = vpop.f32.mrf.mxu0
    %v7470 = vadd.f32 0.0, %v7469
    %v7471 = vpop.f32.mrf.mxu0
    %7472 = vmatprep.mubr.f32.mxu0 0.0
    %7473 = vmatmul.mubr.f32.gmra.mxu0 %v7401
    %v7474 = vpop.f32.mrf.mxu0
    %v7475 = vadd.f32 0.0, %v7474
    %v7476 = vpop.f32.mrf.mxu0
    %7477 = vdwg.mxu0
    %v7479 = vsel %vm2884, %v6147, 0
    %v7482 = vsel %vm2884, %v6152, 0
    %7484 = vmatprep.subr.mxu0 0.0
    %7485 = vmatpush1.msra.mxu0 0.0
    %7486 = vmatprep.subr.mxu0 0.0
    %7487 = vmatpush1.msra.mxu0 0.0
    %7488 = vmatprep.subr.mxu0 0.0
    %7489 = vmatpush1.msra.mxu0 0.0
    %7490 = vmatprep.subr.mxu0 0.0
    %7491 = vmatpush1.msra.mxu0 0.0
    %7492 = vmatprep.subr.mxu0 0.0
    %7493 = vmatpush1.msra.mxu0 0.0
    %7494 = vmatprep.subr.mxu0 0.0
    %7495 = vmatpush1.msra.mxu0 0.0
    %7496 = vmatprep.subr.mxu0 0.0
    %7497 = vmatpush1.msra.mxu0 0.0
    %7498 = vmatprep.subr.mxu0 0.0
    %7499 = vmatpush1.msra.mxu0 0.0
    %7500 = vmatprep.subr.mxu0 0.0
    %7501 = vmatpush1.msra.mxu0 0.0
    %7502 = vmatprep.subr.mxu0 0.0
    %7503 = vmatpush1.msra.mxu0 0.0
    %7504 = vmatprep.subr.mxu0 0.0
    %7505 = vmatpush1.msra.mxu0 0.0
    %7506 = vmatprep.subr.mxu0 0.0
    %7507 = vmatpush1.msra.mxu0 0.0
    %7508 = vmatprep.subr.mxu0 0.0
    %7509 = vmatpush1.msra.mxu0 %v5655
    %7510 = vmatprep.subr.mxu0 0.0
    %7511 = vmatpush1.msra.mxu0 %v5654
    %7512 = vmatprep.subr.mxu0 0.0
    %7513 = vmatpush1.msra.mxu0 %v5653
    %7514 = vmatprep.subr.mxu0 0.0
    %7515 = vmatpush1.msra.mxu0 %v5652
    %7516 = vmatprep.subr.mxu0 0.0
    %7517 = vmatpush2.msra.mxu0 0.0
    %7518 = vmatprep.subr.mxu0 0.0
    %7519 = vmatpush2.msra.mxu0 0.0
    %7520 = vmatprep.subr.mxu0 0.0
    %7521 = vmatpush2.msra.mxu0 0.0
    %7522 = vmatprep.subr.mxu0 0.0
    %7523 = vmatpush2.msra.mxu0 0.0
    %7524 = vmatprep.subr.mxu0 0.0
    %7525 = vmatpush2.msra.mxu0 0.0
    %7526 = vmatprep.subr.mxu0 0.0
    %7527 = vmatpush2.msra.mxu0 0.0
    %7528 = vmatprep.subr.mxu0 0.0
    %7529 = vmatpush2.msra.mxu0 0.0
    %7530 = vmatprep.subr.mxu0 0.0
    %7531 = vmatpush2.msra.mxu0 0.0
    %7532 = vmatprep.subr.mxu0 0.0
    %7533 = vmatpush2.msra.mxu0 0.0
    %7534 = vmatprep.subr.mxu0 0.0
    %7535 = vmatpush2.msra.mxu0 0.0
    %7536 = vmatprep.subr.mxu0 0.0
    %7537 = vmatpush2.msra.mxu0 0.0
    %7538 = vmatprep.subr.mxu0 0.0
    %7539 = vmatpush2.msra.mxu0 0.0
    %7540 = vmatprep.subr.mxu0 0.0
    %7541 = vmatpush2.msra.mxu0 0.0
    %7542 = vmatprep.subr.mxu0 0.0
    %7543 = vmatpush2.msra.mxu0 0.0
    %7544 = vmatprep.subr.mxu0 0.0
    %7545 = vmatpush2.msra.mxu0 0.0
    %7546 = vmatprep.subr.mxu0 0.0
    %7547 = vmatpush2.msra.mxu0 0.0
    %7548 = vmatprep.mubr.f32.mxu0 0.0
    %7549 = vmatmul.mubr.f32.gmra.mxu0 %v7479
    %v7550 = vpop.f32.mrf.mxu0
    %v7551 = vadd.f32 0.0, %v7550
    %v7552 = vpop.f32.mrf.mxu0
    %7553 = vmatprep.mubr.f32.mxu0 0.0
    %7554 = vmatmul.mubr.f32.gmra.mxu0 %v7482
    %v7555 = vpop.f32.mrf.mxu0
    %v7556 = vadd.f32 0.0, %v7555
    %v7557 = vpop.f32.mrf.mxu0
    %7558 = vdwg.mxu0
    %v7560 = vsel %vm2884, %v6228, 0
    %v7563 = vsel %vm2884, %v6233, 0
    %7565 = vmatprep.subr.mxu0 0.0
    %7566 = vmatpush1.msra.mxu0 0.0
    %7567 = vmatprep.subr.mxu0 0.0
    %7568 = vmatpush1.msra.mxu0 0.0
    %7569 = vmatprep.subr.mxu0 0.0
    %7570 = vmatpush1.msra.mxu0 0.0
    %7571 = vmatprep.subr.mxu0 0.0
    %7572 = vmatpush1.msra.mxu0 0.0
    %7573 = vmatprep.subr.mxu0 0.0
    %7574 = vmatpush1.msra.mxu0 0.0
    %7575 = vmatprep.subr.mxu0 0.0
    %7576 = vmatpush1.msra.mxu0 0.0
    %7577 = vmatprep.subr.mxu0 0.0
    %7578 = vmatpush1.msra.mxu0 0.0
    %7579 = vmatprep.subr.mxu0 0.0
    %7580 = vmatpush1.msra.mxu0 0.0
    %7581 = vmatprep.subr.mxu0 0.0
    %7582 = vmatpush1.msra.mxu0 0.0
    %7583 = vmatprep.subr.mxu0 0.0
    %7584 = vmatpush1.msra.mxu0 0.0
    %7585 = vmatprep.subr.mxu0 0.0
    %7586 = vmatpush1.msra.mxu0 0.0
    %7587 = vmatprep.subr.mxu0 0.0
    %7588 = vmatpush1.msra.mxu0 0.0
    %7589 = vmatprep.subr.mxu0 0.0
    %7590 = vmatpush1.msra.mxu0 %v5659
    %7591 = vmatprep.subr.mxu0 0.0
    %7592 = vmatpush1.msra.mxu0 %v5658
    %7593 = vmatprep.subr.mxu0 0.0
    %7594 = vmatpush1.msra.mxu0 %v5657
    %7595 = vmatprep.subr.mxu0 0.0
    %7596 = vmatpush1.msra.mxu0 %v5656
    %7597 = vmatprep.subr.mxu0 0.0
    %7598 = vmatpush2.msra.mxu0 0.0
    %7599 = vmatprep.subr.mxu0 0.0
    %7600 = vmatpush2.msra.mxu0 0.0
    %7601 = vmatprep.subr.mxu0 0.0
    %7602 = vmatpush2.msra.mxu0 0.0
    %7603 = vmatprep.subr.mxu0 0.0
    %7604 = vmatpush2.msra.mxu0 0.0
    %7605 = vmatprep.subr.mxu0 0.0
    %7606 = vmatpush2.msra.mxu0 0.0
    %7607 = vmatprep.subr.mxu0 0.0
    %7608 = vmatpush2.msra.mxu0 0.0
    %7609 = vmatprep.subr.mxu0 0.0
    %7610 = vmatpush2.msra.mxu0 0.0
    %7611 = vmatprep.subr.mxu0 0.0
    %7612 = vmatpush2.msra.mxu0 0.0
    %7613 = vmatprep.subr.mxu0 0.0
    %7614 = vmatpush2.msra.mxu0 0.0
    %7615 = vmatprep.subr.mxu0 0.0
    %7616 = vmatpush2.msra.mxu0 0.0
    %7617 = vmatprep.subr.mxu0 0.0
    %7618 = vmatpush2.msra.mxu0 0.0
    %7619 = vmatprep.subr.mxu0 0.0
    %7620 = vmatpush2.msra.mxu0 0.0
    %7621 = vmatprep.subr.mxu0 0.0
    %7622 = vmatpush2.msra.mxu0 0.0
    %7623 = vmatprep.subr.mxu0 0.0
    %7624 = vmatpush2.msra.mxu0 0.0
    %7625 = vmatprep.subr.mxu0 0.0
    %7626 = vmatpush2.msra.mxu0 0.0
    %7627 = vmatprep.subr.mxu0 0.0
    %7628 = vmatpush2.msra.mxu0 0.0
    %7629 = vmatprep.mubr.f32.mxu0 0.0
    %7630 = vmatmul.mubr.f32.gmra.mxu0 %v7560
    %v7631 = vpop.f32.mrf.mxu0
    %v7632 = vadd.f32 0.0, %v7631
    %v7633 = vpop.f32.mrf.mxu0
    %7634 = vmatprep.mubr.f32.mxu0 0.0
    %7635 = vmatmul.mubr.f32.gmra.mxu0 %v7563
    %v7636 = vpop.f32.mrf.mxu0
    %v7637 = vadd.f32 0.0, %v7636
    %v7638 = vpop.f32.mrf.mxu0
    %7639 = vdwg.mxu0
    %v7641 = vsel %vm2884, %v6309, 0
    %v7644 = vsel %vm2884, %v6314, 0
    %7646 = vmatprep.subr.mxu0 0.0
    %7647 = vmatpush1.msra.mxu0 0.0
    %7648 = vmatprep.subr.mxu0 0.0
    %7649 = vmatpush1.msra.mxu0 0.0
    %7650 = vmatprep.subr.mxu0 0.0
    %7651 = vmatpush1.msra.mxu0 0.0
    %7652 = vmatprep.subr.mxu0 0.0
    %7653 = vmatpush1.msra.mxu0 0.0
    %7654 = vmatprep.subr.mxu0 0.0
    %7655 = vmatpush1.msra.mxu0 0.0
    %7656 = vmatprep.subr.mxu0 0.0
    %7657 = vmatpush1.msra.mxu0 0.0
    %7658 = vmatprep.subr.mxu0 0.0
    %7659 = vmatpush1.msra.mxu0 0.0
    %7660 = vmatprep.subr.mxu0 0.0
    %7661 = vmatpush1.msra.mxu0 0.0
    %7662 = vmatprep.subr.mxu0 0.0
    %7663 = vmatpush1.msra.mxu0 0.0
    %7664 = vmatprep.subr.mxu0 0.0
    %7665 = vmatpush1.msra.mxu0 0.0
    %7666 = vmatprep.subr.mxu0 0.0
    %7667 = vmatpush1.msra.mxu0 0.0
    %7668 = vmatprep.subr.mxu0 0.0
    %7669 = vmatpush1.msra.mxu0 0.0
    %7670 = vmatprep.subr.mxu0 0.0
    %7671 = vmatpush1.msra.mxu0 %v5663
    %7672 = vmatprep.subr.mxu0 0.0
    %7673 = vmatpush1.msra.mxu0 %v5662
    %7674 = vmatprep.subr.mxu0 0.0
    %7675 = vmatpush1.msra.mxu0 %v5661
    %7676 = vmatprep.subr.mxu0 0.0
    %7677 = vmatpush1.msra.mxu0 %v5660
    %7678 = vmatprep.subr.mxu0 0.0
    %7679 = vmatpush2.msra.mxu0 0.0
    %7680 = vmatprep.subr.mxu0 0.0
    %7681 = vmatpush2.msra.mxu0 0.0
    %7682 = vmatprep.subr.mxu0 0.0
    %7683 = vmatpush2.msra.mxu0 0.0
    %7684 = vmatprep.subr.mxu0 0.0
    %7685 = vmatpush2.msra.mxu0 0.0
    %7686 = vmatprep.subr.mxu0 0.0
    %7687 = vmatpush2.msra.mxu0 0.0
    %7688 = vmatprep.subr.mxu0 0.0
    %7689 = vmatpush2.msra.mxu0 0.0
    %7690 = vmatprep.subr.mxu0 0.0
    %7691 = vmatpush2.msra.mxu0 0.0
    %7692 = vmatprep.subr.mxu0 0.0
    %7693 = vmatpush2.msra.mxu0 0.0
    %7694 = vmatprep.subr.mxu0 0.0
    %7695 = vmatpush2.msra.mxu0 0.0
    %7696 = vmatprep.subr.mxu0 0.0
    %7697 = vmatpush2.msra.mxu0 0.0
    %7698 = vmatprep.subr.mxu0 0.0
    %7699 = vmatpush2.msra.mxu0 0.0
    %7700 = vmatprep.subr.mxu0 0.0
    %7701 = vmatpush2.msra.mxu0 0.0
    %7702 = vmatprep.subr.mxu0 0.0
    %7703 = vmatpush2.msra.mxu0 0.0
    %7704 = vmatprep.subr.mxu0 0.0
    %7705 = vmatpush2.msra.mxu0 0.0
    %7706 = vmatprep.subr.mxu0 0.0
    %7707 = vmatpush2.msra.mxu0 0.0
    %7708 = vmatprep.subr.mxu0 0.0
    %7709 = vmatpush2.msra.mxu0 0.0
    %7710 = vmatprep.mubr.f32.mxu0 0.0
    %7711 = vmatmul.mubr.f32.gmra.mxu0 %v7641
    %v7712 = vpop.f32.mrf.mxu0
    %v7713 = vadd.f32 0.0, %v7712
    %v7714 = vpop.f32.mrf.mxu0
    %7715 = vmatprep.mubr.f32.mxu0 0.0
    %7716 = vmatmul.mubr.f32.gmra.mxu0 %v7644
    %v7717 = vpop.f32.mrf.mxu0
    %v7718 = vadd.f32 0.0, %v7717
    %v7719 = vpop.f32.mrf.mxu0
    %7720 = vdwg.mxu0
    %v7722 = vsel %vm2884, %v6390, 0
    %v7725 = vsel %vm2884, %v6395, 0
    %7727 = vmatprep.subr.mxu0 0.0
    %7728 = vmatpush1.msra.mxu0 0.0
    %7729 = vmatprep.subr.mxu0 0.0
    %7730 = vmatpush1.msra.mxu0 0.0
    %7731 = vmatprep.subr.mxu0 0.0
    %7732 = vmatpush1.msra.mxu0 0.0
    %7733 = vmatprep.subr.mxu0 0.0
    %7734 = vmatpush1.msra.mxu0 0.0
    %7735 = vmatprep.subr.mxu0 0.0
    %7736 = vmatpush1.msra.mxu0 0.0
    %7737 = vmatprep.subr.mxu0 0.0
    %7738 = vmatpush1.msra.mxu0 0.0
    %7739 = vmatprep.subr.mxu0 0.0
    %7740 = vmatpush1.msra.mxu0 0.0
    %7741 = vmatprep.subr.mxu0 0.0
    %7742 = vmatpush1.msra.mxu0 0.0
    %7743 = vmatprep.subr.mxu0 0.0
    %7744 = vmatpush1.msra.mxu0 0.0
    %7745 = vmatprep.subr.mxu0 0.0
    %7746 = vmatpush1.msra.mxu0 0.0
    %7747 = vmatprep.subr.mxu0 0.0
    %7748 = vmatpush1.msra.mxu0 0.0
    %7749 = vmatprep.subr.mxu0 0.0
    %7750 = vmatpush1.msra.mxu0 0.0
    %7751 = vmatprep.subr.mxu0 0.0
    %7752 = vmatpush1.msra.mxu0 %v5667
    %7753 = vmatprep.subr.mxu0 0.0
    %7754 = vmatpush1.msra.mxu0 %v5666
    %7755 = vmatprep.subr.mxu0 0.0
    %7756 = vmatpush1.msra.mxu0 %v5665
    %7757 = vmatprep.subr.mxu0 0.0
    %7758 = vmatpush1.msra.mxu0 %v5664
    %7759 = vmatprep.subr.mxu0 0.0
    %7760 = vmatpush2.msra.mxu0 0.0
    %7761 = vmatprep.subr.mxu0 0.0
    %7762 = vmatpush2.msra.mxu0 0.0
    %7763 = vmatprep.subr.mxu0 0.0
    %7764 = vmatpush2.msra.mxu0 0.0
    %7765 = vmatprep.subr.mxu0 0.0
    %7766 = vmatpush2.msra.mxu0 0.0
    %7767 = vmatprep.subr.mxu0 0.0
    %7768 = vmatpush2.msra.mxu0 0.0
    %7769 = vmatprep.subr.mxu0 0.0
    %7770 = vmatpush2.msra.mxu0 0.0
    %7771 = vmatprep.subr.mxu0 0.0
    %7772 = vmatpush2.msra.mxu0 0.0
    %7773 = vmatprep.subr.mxu0 0.0
    %7774 = vmatpush2.msra.mxu0 0.0
    %7775 = vmatprep.subr.mxu0 0.0
    %7776 = vmatpush2.msra.mxu0 0.0
    %7777 = vmatprep.subr.mxu0 0.0
    %7778 = vmatpush2.msra.mxu0 0.0
    %7779 = vmatprep.subr.mxu0 0.0
    %7780 = vmatpush2.msra.mxu0 0.0
    %7781 = vmatprep.subr.mxu0 0.0
    %7782 = vmatpush2.msra.mxu0 0.0
    %7783 = vmatprep.subr.mxu0 0.0
    %7784 = vmatpush2.msra.mxu0 0.0
    %7785 = vmatprep.subr.mxu0 0.0
    %7786 = vmatpush2.msra.mxu0 0.0
    %7787 = vmatprep.subr.mxu0 0.0
    %7788 = vmatpush2.msra.mxu0 0.0
    %7789 = vmatprep.subr.mxu0 0.0
    %7790 = vmatpush2.msra.mxu0 0.0
    %7791 = vmatprep.mubr.f32.mxu0 0.0
    %7792 = vmatmul.mubr.f32.gmra.mxu0 %v7722
    %v7793 = vpop.f32.mrf.mxu0
    %v7794 = vadd.f32 0.0, %v7793
    %v7795 = vpop.f32.mrf.mxu0
    %7796 = vmatprep.mubr.f32.mxu0 0.0
    %7797 = vmatmul.mubr.f32.gmra.mxu0 %v7725
    %v7798 = vpop.f32.mrf.mxu0
    %v7799 = vadd.f32 0.0, %v7798
    %v7800 = vpop.f32.mrf.mxu0
    %7801 = vdwg.mxu0
    %v7803 = vsel %vm2884, %v6465, 0
    %v7806 = vsel %vm2884, %v6470, 0
    %7808 = vmatprep.subr.mxu0 0.0
    %7809 = vmatpush1.msra.mxu0 0.0
    %7810 = vmatprep.subr.mxu0 0.0
    %7811 = vmatpush1.msra.mxu0 0.0
    %7812 = vmatprep.subr.mxu0 0.0
    %7813 = vmatpush1.msra.mxu0 0.0
    %7814 = vmatprep.subr.mxu0 0.0
    %7815 = vmatpush1.msra.mxu0 0.0
    %7816 = vmatprep.subr.mxu0 0.0
    %7817 = vmatpush1.msra.mxu0 0.0
    %7818 = vmatprep.subr.mxu0 0.0
    %7819 = vmatpush1.msra.mxu0 0.0
    %7820 = vmatprep.subr.mxu0 0.0
    %7821 = vmatpush1.msra.mxu0 0.0
    %7822 = vmatprep.subr.mxu0 0.0
    %7823 = vmatpush1.msra.mxu0 0.0
    %7824 = vmatprep.subr.mxu0 0.0
    %7825 = vmatpush1.msra.mxu0 0.0
    %7826 = vmatprep.subr.mxu0 0.0
    %7827 = vmatpush1.msra.mxu0 0.0
    %7828 = vmatprep.subr.mxu0 0.0
    %7829 = vmatpush1.msra.mxu0 0.0
    %7830 = vmatprep.subr.mxu0 0.0
    %7831 = vmatpush1.msra.mxu0 0.0
    %7832 = vmatprep.subr.mxu0 0.0
    %7833 = vmatpush1.msra.mxu0 %v5635
    %7834 = vmatprep.subr.mxu0 0.0
    %7835 = vmatpush1.msra.mxu0 %v5634
    %7836 = vmatprep.subr.mxu0 0.0
    %7837 = vmatpush1.msra.mxu0 %v5633
    %7838 = vmatprep.subr.mxu0 0.0
    %7839 = vmatpush1.msra.mxu0 %v5632
    %7840 = vmatprep.subr.mxu0 0.0
    %7841 = vmatpush2.msra.mxu0 0.0
    %7842 = vmatprep.subr.mxu0 0.0
    %7843 = vmatpush2.msra.mxu0 0.0
    %7844 = vmatprep.subr.mxu0 0.0
    %7845 = vmatpush2.msra.mxu0 0.0
    %7846 = vmatprep.subr.mxu0 0.0
    %7847 = vmatpush2.msra.mxu0 0.0
    %7848 = vmatprep.subr.mxu0 0.0
    %7849 = vmatpush2.msra.mxu0 0.0
    %7850 = vmatprep.subr.mxu0 0.0
    %7851 = vmatpush2.msra.mxu0 0.0
    %7852 = vmatprep.subr.mxu0 0.0
    %7853 = vmatpush2.msra.mxu0 0.0
    %7854 = vmatprep.subr.mxu0 0.0
    %7855 = vmatpush2.msra.mxu0 0.0
    %7856 = vmatprep.subr.mxu0 0.0
    %7857 = vmatpush2.msra.mxu0 0.0
    %7858 = vmatprep.subr.mxu0 0.0
    %7859 = vmatpush2.msra.mxu0 0.0
    %7860 = vmatprep.subr.mxu0 0.0
    %7861 = vmatpush2.msra.mxu0 0.0
    %7862 = vmatprep.subr.mxu0 0.0
    %7863 = vmatpush2.msra.mxu0 0.0
    %7864 = vmatprep.subr.mxu0 0.0
    %7865 = vmatpush2.msra.mxu0 0.0
    %7866 = vmatprep.subr.mxu0 0.0
    %7867 = vmatpush2.msra.mxu0 0.0
    %7868 = vmatprep.subr.mxu0 0.0
    %7869 = vmatpush2.msra.mxu0 0.0
    %7870 = vmatprep.subr.mxu0 0.0
    %7871 = vmatpush2.msra.mxu0 0.0
    %7872 = vmatprep.mubr.f32.mxu0 0.0
    %7873 = vmatmul.mubr.f32.gmra.mxu0 %v7803
    %v7874 = vpop.f32.mrf.mxu0
    %v7875 = vadd.f32 0.0, %v7874
    %v7876 = vpop.f32.mrf.mxu0
    %7877 = vmatprep.mubr.f32.mxu0 0.0
    %7878 = vmatmul.mubr.f32.gmra.mxu0 %v7806
    %v7879 = vpop.f32.mrf.mxu0
    %v7880 = vadd.f32 0.0, %v7879
    %v7881 = vpop.f32.mrf.mxu0
    %7882 = vdwg.mxu0
    %v7884 = vsel %vm2884, %v6540, 0
    %v7887 = vsel %vm2884, %v6545, 0
    %7889 = vmatprep.subr.mxu0 0.0
    %7890 = vmatpush1.msra.mxu0 0.0
    %7891 = vmatprep.subr.mxu0 0.0
    %7892 = vmatpush1.msra.mxu0 0.0
    %7893 = vmatprep.subr.mxu0 0.0
    %7894 = vmatpush1.msra.mxu0 0.0
    %7895 = vmatprep.subr.mxu0 0.0
    %7896 = vmatpush1.msra.mxu0 0.0
    %7897 = vmatprep.subr.mxu0 0.0
    %7898 = vmatpush1.msra.mxu0 0.0
    %7899 = vmatprep.subr.mxu0 0.0
    %7900 = vmatpush1.msra.mxu0 0.0
    %7901 = vmatprep.subr.mxu0 0.0
    %7902 = vmatpush1.msra.mxu0 0.0
    %7903 = vmatprep.subr.mxu0 0.0
    %7904 = vmatpush1.msra.mxu0 0.0
    %7905 = vmatprep.subr.mxu0 0.0
    %7906 = vmatpush1.msra.mxu0 0.0
    %7907 = vmatprep.subr.mxu0 0.0
    %7908 = vmatpush1.msra.mxu0 0.0
    %7909 = vmatprep.subr.mxu0 0.0
    %7910 = vmatpush1.msra.mxu0 0.0
    %7911 = vmatprep.subr.mxu0 0.0
    %7912 = vmatpush1.msra.mxu0 0.0
    %7913 = vmatprep.subr.mxu0 0.0
    %7914 = vmatpush1.msra.mxu0 %v5639
    %7915 = vmatprep.subr.mxu0 0.0
    %7916 = vmatpush1.msra.mxu0 %v5638
    %7917 = vmatprep.subr.mxu0 0.0
    %7918 = vmatpush1.msra.mxu0 %v5637
    %7919 = vmatprep.subr.mxu0 0.0
    %7920 = vmatpush1.msra.mxu0 %v5636
    %7921 = vmatprep.subr.mxu0 0.0
    %7922 = vmatpush2.msra.mxu0 0.0
    %7923 = vmatprep.subr.mxu0 0.0
    %7924 = vmatpush2.msra.mxu0 0.0
    %7925 = vmatprep.subr.mxu0 0.0
    %7926 = vmatpush2.msra.mxu0 0.0
    %7927 = vmatprep.subr.mxu0 0.0
    %7928 = vmatpush2.msra.mxu0 0.0
    %7929 = vmatprep.subr.mxu0 0.0
    %7930 = vmatpush2.msra.mxu0 0.0
    %7931 = vmatprep.subr.mxu0 0.0
    %7932 = vmatpush2.msra.mxu0 0.0
    %7933 = vmatprep.subr.mxu0 0.0
    %7934 = vmatpush2.msra.mxu0 0.0
    %7935 = vmatprep.subr.mxu0 0.0
    %7936 = vmatpush2.msra.mxu0 0.0
    %7937 = vmatprep.subr.mxu0 0.0
    %7938 = vmatpush2.msra.mxu0 0.0
    %7939 = vmatprep.subr.mxu0 0.0
    %7940 = vmatpush2.msra.mxu0 0.0
    %7941 = vmatprep.subr.mxu0 0.0
    %7942 = vmatpush2.msra.mxu0 0.0
    %7943 = vmatprep.subr.mxu0 0.0
    %7944 = vmatpush2.msra.mxu0 0.0
    %7945 = vmatprep.subr.mxu0 0.0
    %7946 = vmatpush2.msra.mxu0 0.0
    %7947 = vmatprep.subr.mxu0 0.0
    %7948 = vmatpush2.msra.mxu0 0.0
    %7949 = vmatprep.subr.mxu0 0.0
    %7950 = vmatpush2.msra.mxu0 0.0
    %7951 = vmatprep.subr.mxu0 0.0
    %7952 = vmatpush2.msra.mxu0 0.0
    %7953 = vmatprep.mubr.f32.mxu0 0.0
    %7954 = vmatmul.mubr.f32.gmra.mxu0 %v7884
    %v7955 = vpop.f32.mrf.mxu0
    %v7956 = vadd.f32 0.0, %v7955
    %v7957 = vpop.f32.mrf.mxu0
    %7958 = vmatprep.mubr.f32.mxu0 0.0
    %7959 = vmatmul.mubr.f32.gmra.mxu0 %v7887
    %v7960 = vpop.f32.mrf.mxu0
    %v7961 = vadd.f32 0.0, %v7960
    %v7962 = vpop.f32.mrf.mxu0
    %7963 = vdwg.mxu0
    %v7965 = vsel %vm2884, %v6615, 0
    %v7968 = vsel %vm2884, %v6620, 0
    %7970 = vmatprep.subr.mxu0 0.0
    %7971 = vmatpush1.msra.mxu0 0.0
    %7972 = vmatprep.subr.mxu0 0.0
    %7973 = vmatpush1.msra.mxu0 0.0
    %7974 = vmatprep.subr.mxu0 0.0
    %7975 = vmatpush1.msra.mxu0 0.0
    %7976 = vmatprep.subr.mxu0 0.0
    %7977 = vmatpush1.msra.mxu0 0.0
    %7978 = vmatprep.subr.mxu0 0.0
    %7979 = vmatpush1.msra.mxu0 0.0
    %7980 = vmatprep.subr.mxu0 0.0
    %7981 = vmatpush1.msra.mxu0 0.0
    %7982 = vmatprep.subr.mxu0 0.0
    %7983 = vmatpush1.msra.mxu0 0.0
    %7984 = vmatprep.subr.mxu0 0.0
    %7985 = vmatpush1.msra.mxu0 0.0
    %7986 = vmatprep.subr.mxu0 0.0
    %7987 = vmatpush1.msra.mxu0 0.0
    %7988 = vmatprep.subr.mxu0 0.0
    %7989 = vmatpush1.msra.mxu0 0.0
    %7990 = vmatprep.subr.mxu0 0.0
    %7991 = vmatpush1.msra.mxu0 0.0
    %7992 = vmatprep.subr.mxu0 0.0
    %7993 = vmatpush1.msra.mxu0 0.0
    %7994 = vmatprep.subr.mxu0 0.0
    %7995 = vmatpush1.msra.mxu0 %v5643
    %7996 = vmatprep.subr.mxu0 0.0
    %7997 = vmatpush1.msra.mxu0 %v5642
    %7998 = vmatprep.subr.mxu0 0.0
    %7999 = vmatpush1.msra.mxu0 %v5641
    %8000 = vmatprep.subr.mxu0 0.0
    %8001 = vmatpush1.msra.mxu0 %v5640
    %8002 = vmatprep.subr.mxu0 0.0
    %8003 = vmatpush2.msra.mxu0 0.0
    %8004 = vmatprep.subr.mxu0 0.0
    %8005 = vmatpush2.msra.mxu0 0.0
    %8006 = vmatprep.subr.mxu0 0.0
    %8007 = vmatpush2.msra.mxu0 0.0
    %8008 = vmatprep.subr.mxu0 0.0
    %8009 = vmatpush2.msra.mxu0 0.0
    %8010 = vmatprep.subr.mxu0 0.0
    %8011 = vmatpush2.msra.mxu0 0.0
    %8012 = vmatprep.subr.mxu0 0.0
    %8013 = vmatpush2.msra.mxu0 0.0
    %8014 = vmatprep.subr.mxu0 0.0
    %8015 = vmatpush2.msra.mxu0 0.0
    %8016 = vmatprep.subr.mxu0 0.0
    %8017 = vmatpush2.msra.mxu0 0.0
    %8018 = vmatprep.subr.mxu0 0.0
    %8019 = vmatpush2.msra.mxu0 0.0
    %8020 = vmatprep.subr.mxu0 0.0
    %8021 = vmatpush2.msra.mxu0 0.0
    %8022 = vmatprep.subr.mxu0 0.0
    %8023 = vmatpush2.msra.mxu0 0.0
    %8024 = vmatprep.subr.mxu0 0.0
    %8025 = vmatpush2.msra.mxu0 0.0
    %8026 = vmatprep.subr.mxu0 0.0
    %8027 = vmatpush2.msra.mxu0 0.0
    %8028 = vmatprep.subr.mxu0 0.0
    %8029 = vmatpush2.msra.mxu0 0.0
    %8030 = vmatprep.subr.mxu0 0.0
    %8031 = vmatpush2.msra.mxu0 0.0
    %8032 = vmatprep.subr.mxu0 0.0
    %8033 = vmatpush2.msra.mxu0 0.0
    %8034 = vmatprep.mubr.f32.mxu0 0.0
    %8035 = vmatmul.mubr.f32.gmra.mxu0 %v7965
    %v8036 = vpop.f32.mrf.mxu0
    %v8037 = vadd.f32 0.0, %v8036
    %v8038 = vpop.f32.mrf.mxu0
    %8039 = vmatprep.mubr.f32.mxu0 0.0
    %8040 = vmatmul.mubr.f32.gmra.mxu0 %v7968
    %v8041 = vpop.f32.mrf.mxu0
    %v8042 = vadd.f32 0.0, %v8041
    %v8043 = vpop.f32.mrf.mxu0
    %8044 = vdwg.mxu0
    %v8046 = vsel %vm2884, %v6690, 0
    %v8049 = vsel %vm2884, %v6695, 0
    %8051 = vmatprep.subr.mxu0 0.0
    %8052 = vmatpush1.msra.mxu0 0.0
    %8053 = vmatprep.subr.mxu0 0.0
    %8054 = vmatpush1.msra.mxu0 0.0
    %8055 = vmatprep.subr.mxu0 0.0
    %8056 = vmatpush1.msra.mxu0 0.0
    %8057 = vmatprep.subr.mxu0 0.0
    %8058 = vmatpush1.msra.mxu0 0.0
    %8059 = vmatprep.subr.mxu0 0.0
    %8060 = vmatpush1.msra.mxu0 0.0
    %8061 = vmatprep.subr.mxu0 0.0
    %8062 = vmatpush1.msra.mxu0 0.0
    %8063 = vmatprep.subr.mxu0 0.0
    %8064 = vmatpush1.msra.mxu0 0.0
    %8065 = vmatprep.subr.mxu0 0.0
    %8066 = vmatpush1.msra.mxu0 0.0
    %8067 = vmatprep.subr.mxu0 0.0
    %8068 = vmatpush1.msra.mxu0 0.0
    %8069 = vmatprep.subr.mxu0 0.0
    %8070 = vmatpush1.msra.mxu0 0.0
    %8071 = vmatprep.subr.mxu0 0.0
    %8072 = vmatpush1.msra.mxu0 0.0
    %8073 = vmatprep.subr.mxu0 0.0
    %8074 = vmatpush1.msra.mxu0 0.0
    %8075 = vmatprep.subr.mxu0 0.0
    %8076 = vmatpush1.msra.mxu0 %v5647
    %8077 = vmatprep.subr.mxu0 0.0
    %8078 = vmatpush1.msra.mxu0 %v5646
    %8079 = vmatprep.subr.mxu0 0.0
    %8080 = vmatpush1.msra.mxu0 %v5645
    %8081 = vmatprep.subr.mxu0 0.0
    %8082 = vmatpush1.msra.mxu0 %v5644
    %8083 = vmatprep.subr.mxu0 0.0
    %8084 = vmatpush2.msra.mxu0 0.0
    %8085 = vmatprep.subr.mxu0 0.0
    %8086 = vmatpush2.msra.mxu0 0.0
    %8087 = vmatprep.subr.mxu0 0.0
    %8088 = vmatpush2.msra.mxu0 0.0
    %8089 = vmatprep.subr.mxu0 0.0
    %8090 = vmatpush2.msra.mxu0 0.0
    %8091 = vmatprep.subr.mxu0 0.0
    %8092 = vmatpush2.msra.mxu0 0.0
    %8093 = vmatprep.subr.mxu0 0.0
    %8094 = vmatpush2.msra.mxu0 0.0
    %8095 = vmatprep.subr.mxu0 0.0
    %8096 = vmatpush2.msra.mxu0 0.0
    %8097 = vmatprep.subr.mxu0 0.0
    %8098 = vmatpush2.msra.mxu0 0.0
    %8099 = vmatprep.subr.mxu0 0.0
    %8100 = vmatpush2.msra.mxu0 0.0
    %8101 = vmatprep.subr.mxu0 0.0
    %8102 = vmatpush2.msra.mxu0 0.0
    %8103 = vmatprep.subr.mxu0 0.0
    %8104 = vmatpush2.msra.mxu0 0.0
    %8105 = vmatprep.subr.mxu0 0.0
    %8106 = vmatpush2.msra.mxu0 0.0
    %8107 = vmatprep.subr.mxu0 0.0
    %8108 = vmatpush2.msra.mxu0 0.0
    %8109 = vmatprep.subr.mxu0 0.0
    %8110 = vmatpush2.msra.mxu0 0.0
    %8111 = vmatprep.subr.mxu0 0.0
    %8112 = vmatpush2.msra.mxu0 0.0
    %8113 = vmatprep.subr.mxu0 0.0
    %8114 = vmatpush2.msra.mxu0 0.0
    %8115 = vmatprep.mubr.f32.mxu0 0.0
    %8116 = vmatmul.mubr.f32.gmra.mxu0 %v8046
    %v8117 = vpop.f32.mrf.mxu0
    %v8118 = vadd.f32 0.0, %v8117
    %v8119 = vpop.f32.mrf.mxu0
    %8120 = vmatprep.mubr.f32.mxu0 0.0
    %8121 = vmatmul.mubr.f32.gmra.mxu0 %v8049
    %v8122 = vpop.f32.mrf.mxu0
    %v8123 = vadd.f32 0.0, %v8122
    %v8124 = vpop.f32.mrf.mxu0
    %8125 = vdwg.mxu0
    %v8127 = vsel %vm2884, %v6765, 0
    %v8130 = vsel %vm2884, %v6770, 0
    %8132 = vmatprep.subr.mxu0 0.0
    %8133 = vmatpush1.msra.mxu0 0.0
    %8134 = vmatprep.subr.mxu0 0.0
    %8135 = vmatpush1.msra.mxu0 0.0
    %8136 = vmatprep.subr.mxu0 0.0
    %8137 = vmatpush1.msra.mxu0 0.0
    %8138 = vmatprep.subr.mxu0 0.0
    %8139 = vmatpush1.msra.mxu0 0.0
    %8140 = vmatprep.subr.mxu0 0.0
    %8141 = vmatpush1.msra.mxu0 0.0
    %8142 = vmatprep.subr.mxu0 0.0
    %8143 = vmatpush1.msra.mxu0 0.0
    %8144 = vmatprep.subr.mxu0 0.0
    %8145 = vmatpush1.msra.mxu0 0.0
    %8146 = vmatprep.subr.mxu0 0.0
    %8147 = vmatpush1.msra.mxu0 0.0
    %8148 = vmatprep.subr.mxu0 0.0
    %8149 = vmatpush1.msra.mxu0 0.0
    %8150 = vmatprep.subr.mxu0 0.0
    %8151 = vmatpush1.msra.mxu0 0.0
    %8152 = vmatprep.subr.mxu0 0.0
    %8153 = vmatpush1.msra.mxu0 0.0
    %8154 = vmatprep.subr.mxu0 0.0
    %8155 = vmatpush1.msra.mxu0 0.0
    %8156 = vmatprep.subr.mxu0 0.0
    %8157 = vmatpush1.msra.mxu0 %v5651
    %8158 = vmatprep.subr.mxu0 0.0
    %8159 = vmatpush1.msra.mxu0 %v5650
    %8160 = vmatprep.subr.mxu0 0.0
    %8161 = vmatpush1.msra.mxu0 %v5649
    %8162 = vmatprep.subr.mxu0 0.0
    %8163 = vmatpush1.msra.mxu0 %v5648
    %8164 = vmatprep.subr.mxu0 0.0
    %8165 = vmatpush2.msra.mxu0 0.0
    %8166 = vmatprep.subr.mxu0 0.0
    %8167 = vmatpush2.msra.mxu0 0.0
    %8168 = vmatprep.subr.mxu0 0.0
    %8169 = vmatpush2.msra.mxu0 0.0
    %8170 = vmatprep.subr.mxu0 0.0
    %8171 = vmatpush2.msra.mxu0 0.0
    %8172 = vmatprep.subr.mxu0 0.0
    %8173 = vmatpush2.msra.mxu0 0.0
    %8174 = vmatprep.subr.mxu0 0.0
    %8175 = vmatpush2.msra.mxu0 0.0
    %8176 = vmatprep.subr.mxu0 0.0
    %8177 = vmatpush2.msra.mxu0 0.0
    %8178 = vmatprep.subr.mxu0 0.0
    %8179 = vmatpush2.msra.mxu0 0.0
    %8180 = vmatprep.subr.mxu0 0.0
    %8181 = vmatpush2.msra.mxu0 0.0
    %8182 = vmatprep.subr.mxu0 0.0
    %8183 = vmatpush2.msra.mxu0 0.0
    %8184 = vmatprep.subr.mxu0 0.0
    %8185 = vmatpush2.msra.mxu0 0.0
    %8186 = vmatprep.subr.mxu0 0.0
    %8187 = vmatpush2.msra.mxu0 0.0
    %8188 = vmatprep.subr.mxu0 0.0
    %8189 = vmatpush2.msra.mxu0 0.0
    %8190 = vmatprep.subr.mxu0 0.0
    %8191 = vmatpush2.msra.mxu0 0.0
    %8192 = vmatprep.subr.mxu0 0.0
    %8193 = vmatpush2.msra.mxu0 0.0
    %8194 = vmatprep.subr.mxu0 0.0
    %8195 = vmatpush2.msra.mxu0 0.0
    %8196 = vmatprep.mubr.f32.mxu0 0.0
    %8197 = vmatmul.mubr.f32.gmra.mxu0 %v8127
    %v8198 = vpop.f32.mrf.mxu0
    %v8199 = vadd.f32 0.0, %v8198
    %v8200 = vpop.f32.mrf.mxu0
    %8201 = vmatprep.mubr.f32.mxu0 0.0
    %8202 = vmatmul.mubr.f32.gmra.mxu0 %v8130
    %v8203 = vpop.f32.mrf.mxu0
    %v8204 = vadd.f32 0.0, %v8203
    %v8205 = vpop.f32.mrf.mxu0
    %8206 = vdwg.mxu0
    %v8208 = vsel %vm2884, %v6840, 0
    %v8211 = vsel %vm2884, %v6845, 0
    %8213 = vmatprep.subr.mxu0 0.0
    %8214 = vmatpush1.msra.mxu0 0.0
    %8215 = vmatprep.subr.mxu0 0.0
    %8216 = vmatpush1.msra.mxu0 0.0
    %8217 = vmatprep.subr.mxu0 0.0
    %8218 = vmatpush1.msra.mxu0 0.0
    %8219 = vmatprep.subr.mxu0 0.0
    %8220 = vmatpush1.msra.mxu0 0.0
    %8221 = vmatprep.subr.mxu0 0.0
    %8222 = vmatpush1.msra.mxu0 0.0
    %8223 = vmatprep.subr.mxu0 0.0
    %8224 = vmatpush1.msra.mxu0 0.0
    %8225 = vmatprep.subr.mxu0 0.0
    %8226 = vmatpush1.msra.mxu0 0.0
    %8227 = vmatprep.subr.mxu0 0.0
    %8228 = vmatpush1.msra.mxu0 0.0
    %8229 = vmatprep.subr.mxu0 0.0
    %8230 = vmatpush1.msra.mxu0 0.0
    %8231 = vmatprep.subr.mxu0 0.0
    %8232 = vmatpush1.msra.mxu0 0.0
    %8233 = vmatprep.subr.mxu0 0.0
    %8234 = vmatpush1.msra.mxu0 0.0
    %8235 = vmatprep.subr.mxu0 0.0
    %8236 = vmatpush1.msra.mxu0 0.0
    %8237 = vmatprep.subr.mxu0 0.0
    %8238 = vmatpush1.msra.mxu0 %v5655
    %8239 = vmatprep.subr.mxu0 0.0
    %8240 = vmatpush1.msra.mxu0 %v5654
    %8241 = vmatprep.subr.mxu0 0.0
    %8242 = vmatpush1.msra.mxu0 %v5653
    %8243 = vmatprep.subr.mxu0 0.0
    %8244 = vmatpush1.msra.mxu0 %v5652
    %8245 = vmatprep.subr.mxu0 0.0
    %8246 = vmatpush2.msra.mxu0 0.0
    %8247 = vmatprep.subr.mxu0 0.0
    %8248 = vmatpush2.msra.mxu0 0.0
    %8249 = vmatprep.subr.mxu0 0.0
    %8250 = vmatpush2.msra.mxu0 0.0
    %8251 = vmatprep.subr.mxu0 0.0
    %8252 = vmatpush2.msra.mxu0 0.0
    %8253 = vmatprep.subr.mxu0 0.0
    %8254 = vmatpush2.msra.mxu0 0.0
    %8255 = vmatprep.subr.mxu0 0.0
    %8256 = vmatpush2.msra.mxu0 0.0
    %8257 = vmatprep.subr.mxu0 0.0
    %8258 = vmatpush2.msra.mxu0 0.0
    %8259 = vmatprep.subr.mxu0 0.0
    %8260 = vmatpush2.msra.mxu0 0.0
    %8261 = vmatprep.subr.mxu0 0.0
    %8262 = vmatpush2.msra.mxu0 0.0
    %8263 = vmatprep.subr.mxu0 0.0
    %8264 = vmatpush2.msra.mxu0 0.0
    %8265 = vmatprep.subr.mxu0 0.0
    %8266 = vmatpush2.msra.mxu0 0.0
    %8267 = vmatprep.subr.mxu0 0.0
    %8268 = vmatpush2.msra.mxu0 0.0
    %8269 = vmatprep.subr.mxu0 0.0
    %8270 = vmatpush2.msra.mxu0 0.0
    %8271 = vmatprep.subr.mxu0 0.0
    %8272 = vmatpush2.msra.mxu0 0.0
    %8273 = vmatprep.subr.mxu0 0.0
    %8274 = vmatpush2.msra.mxu0 0.0
    %8275 = vmatprep.subr.mxu0 0.0
    %8276 = vmatpush2.msra.mxu0 0.0
    %8277 = vmatprep.mubr.f32.mxu0 0.0
    %8278 = vmatmul.mubr.f32.gmra.mxu0 %v8208
    %v8279 = vpop.f32.mrf.mxu0
    %v8280 = vadd.f32 0.0, %v8279
    %v8281 = vpop.f32.mrf.mxu0
    %8282 = vmatprep.mubr.f32.mxu0 0.0
    %8283 = vmatmul.mubr.f32.gmra.mxu0 %v8211
    %v8284 = vpop.f32.mrf.mxu0
    %v8285 = vadd.f32 0.0, %v8284
    %v8286 = vpop.f32.mrf.mxu0
    %8287 = vdwg.mxu0
    %v8289 = vsel %vm2884, %v6915, 0
    %v8292 = vsel %vm2884, %v6920, 0
    %8294 = vmatprep.subr.mxu0 0.0
    %8295 = vmatpush1.msra.mxu0 0.0
    %8296 = vmatprep.subr.mxu0 0.0
    %8297 = vmatpush1.msra.mxu0 0.0
    %8298 = vmatprep.subr.mxu0 0.0
    %8299 = vmatpush1.msra.mxu0 0.0
    %8300 = vmatprep.subr.mxu0 0.0
    %8301 = vmatpush1.msra.mxu0 0.0
    %8302 = vmatprep.subr.mxu0 0.0
    %8303 = vmatpush1.msra.mxu0 0.0
    %8304 = vmatprep.subr.mxu0 0.0
    %8305 = vmatpush1.msra.mxu0 0.0
    %8306 = vmatprep.subr.mxu0 0.0
    %8307 = vmatpush1.msra.mxu0 0.0
    %8308 = vmatprep.subr.mxu0 0.0
    %8309 = vmatpush1.msra.mxu0 0.0
    %8310 = vmatprep.subr.mxu0 0.0
    %8311 = vmatpush1.msra.mxu0 0.0
    %8312 = vmatprep.subr.mxu0 0.0
    %8313 = vmatpush1.msra.mxu0 0.0
    %8314 = vmatprep.subr.mxu0 0.0
    %8315 = vmatpush1.msra.mxu0 0.0
    %8316 = vmatprep.subr.mxu0 0.0
    %8317 = vmatpush1.msra.mxu0 0.0
    %8318 = vmatprep.subr.mxu0 0.0
    %8319 = vmatpush1.msra.mxu0 %v5659
    %8320 = vmatprep.subr.mxu0 0.0
    %8321 = vmatpush1.msra.mxu0 %v5658
    %8322 = vmatprep.subr.mxu0 0.0
    %8323 = vmatpush1.msra.mxu0 %v5657
    %8324 = vmatprep.subr.mxu0 0.0
    %8325 = vmatpush1.msra.mxu0 %v5656
    %8326 = vmatprep.subr.mxu0 0.0
    %8327 = vmatpush2.msra.mxu0 0.0
    %8328 = vmatprep.subr.mxu0 0.0
    %8329 = vmatpush2.msra.mxu0 0.0
    %8330 = vmatprep.subr.mxu0 0.0
    %8331 = vmatpush2.msra.mxu0 0.0
    %8332 = vmatprep.subr.mxu0 0.0
    %8333 = vmatpush2.msra.mxu0 0.0
    %8334 = vmatprep.subr.mxu0 0.0
    %8335 = vmatpush2.msra.mxu0 0.0
    %8336 = vmatprep.subr.mxu0 0.0
    %8337 = vmatpush2.msra.mxu0 0.0
    %8338 = vmatprep.subr.mxu0 0.0
    %8339 = vmatpush2.msra.mxu0 0.0
    %8340 = vmatprep.subr.mxu0 0.0
    %8341 = vmatpush2.msra.mxu0 0.0
    %8342 = vmatprep.subr.mxu0 0.0
    %8343 = vmatpush2.msra.mxu0 0.0
    %8344 = vmatprep.subr.mxu0 0.0
    %8345 = vmatpush2.msra.mxu0 0.0
    %8346 = vmatprep.subr.mxu0 0.0
    %8347 = vmatpush2.msra.mxu0 0.0
    %8348 = vmatprep.subr.mxu0 0.0
    %8349 = vmatpush2.msra.mxu0 0.0
    %8350 = vmatprep.subr.mxu0 0.0
    %8351 = vmatpush2.msra.mxu0 0.0
    %8352 = vmatprep.subr.mxu0 0.0
    %8353 = vmatpush2.msra.mxu0 0.0
    %8354 = vmatprep.subr.mxu0 0.0
    %8355 = vmatpush2.msra.mxu0 0.0
    %8356 = vmatprep.subr.mxu0 0.0
    %8357 = vmatpush2.msra.mxu0 0.0
    %8358 = vmatprep.mubr.f32.mxu0 0.0
    %8359 = vmatmul.mubr.f32.gmra.mxu0 %v8289
    %v8360 = vpop.f32.mrf.mxu0
    %v8361 = vadd.f32 0.0, %v8360
    %v8362 = vpop.f32.mrf.mxu0
    %8363 = vmatprep.mubr.f32.mxu0 0.0
    %8364 = vmatmul.mubr.f32.gmra.mxu0 %v8292
    %v8365 = vpop.f32.mrf.mxu0
    %v8366 = vadd.f32 0.0, %v8365
    %v8367 = vpop.f32.mrf.mxu0
    %8368 = vdwg.mxu0
    %v8370 = vsel %vm2884, %v6990, 0
    %v8373 = vsel %vm2884, %v6995, 0
    %8375 = vmatprep.subr.mxu0 0.0
    %8376 = vmatpush1.msra.mxu0 0.0
    %8377 = vmatprep.subr.mxu0 0.0
    %8378 = vmatpush1.msra.mxu0 0.0
    %8379 = vmatprep.subr.mxu0 0.0
    %8380 = vmatpush1.msra.mxu0 0.0
    %8381 = vmatprep.subr.mxu0 0.0
    %8382 = vmatpush1.msra.mxu0 0.0
    %8383 = vmatprep.subr.mxu0 0.0
    %8384 = vmatpush1.msra.mxu0 0.0
    %8385 = vmatprep.subr.mxu0 0.0
    %8386 = vmatpush1.msra.mxu0 0.0
    %8387 = vmatprep.subr.mxu0 0.0
    %8388 = vmatpush1.msra.mxu0 0.0
    %8389 = vmatprep.subr.mxu0 0.0
    %8390 = vmatpush1.msra.mxu0 0.0
    %8391 = vmatprep.subr.mxu0 0.0
    %8392 = vmatpush1.msra.mxu0 0.0
    %8393 = vmatprep.subr.mxu0 0.0
    %8394 = vmatpush1.msra.mxu0 0.0
    %8395 = vmatprep.subr.mxu0 0.0
    %8396 = vmatpush1.msra.mxu0 0.0
    %8397 = vmatprep.subr.mxu0 0.0
    %8398 = vmatpush1.msra.mxu0 0.0
    %8399 = vmatprep.subr.mxu0 0.0
    %8400 = vmatpush1.msra.mxu0 %v5663
    %8401 = vmatprep.subr.mxu0 0.0
    %8402 = vmatpush1.msra.mxu0 %v5662
    %8403 = vmatprep.subr.mxu0 0.0
    %8404 = vmatpush1.msra.mxu0 %v5661
    %8405 = vmatprep.subr.mxu0 0.0
    %8406 = vmatpush1.msra.mxu0 %v5660
    %8407 = vmatprep.subr.mxu0 0.0
    %8408 = vmatpush2.msra.mxu0 0.0
    %8409 = vmatprep.subr.mxu0 0.0
    %8410 = vmatpush2.msra.mxu0 0.0
    %8411 = vmatprep.subr.mxu0 0.0
    %8412 = vmatpush2.msra.mxu0 0.0
    %8413 = vmatprep.subr.mxu0 0.0
    %8414 = vmatpush2.msra.mxu0 0.0
    %8415 = vmatprep.subr.mxu0 0.0
    %8416 = vmatpush2.msra.mxu0 0.0
    %8417 = vmatprep.subr.mxu0 0.0
    %8418 = vmatpush2.msra.mxu0 0.0
    %8419 = vmatprep.subr.mxu0 0.0
    %8420 = vmatpush2.msra.mxu0 0.0
    %8421 = vmatprep.subr.mxu0 0.0
    %8422 = vmatpush2.msra.mxu0 0.0
    %8423 = vmatprep.subr.mxu0 0.0
    %8424 = vmatpush2.msra.mxu0 0.0
    %8425 = vmatprep.subr.mxu0 0.0
    %8426 = vmatpush2.msra.mxu0 0.0
    %8427 = vmatprep.subr.mxu0 0.0
    %8428 = vmatpush2.msra.mxu0 0.0
    %8429 = vmatprep.subr.mxu0 0.0
    %8430 = vmatpush2.msra.mxu0 0.0
    %8431 = vmatprep.subr.mxu0 0.0
    %8432 = vmatpush2.msra.mxu0 0.0
    %8433 = vmatprep.subr.mxu0 0.0
    %8434 = vmatpush2.msra.mxu0 0.0
    %8435 = vmatprep.subr.mxu0 0.0
    %8436 = vmatpush2.msra.mxu0 0.0
    %8437 = vmatprep.subr.mxu0 0.0
    %8438 = vmatpush2.msra.mxu0 0.0
    %8439 = vmatprep.mubr.f32.mxu0 0.0
    %8440 = vmatmul.mubr.f32.gmra.mxu0 %v8370
    %v8441 = vpop.f32.mrf.mxu0
    %v8442 = vadd.f32 0.0, %v8441
    %v8443 = vpop.f32.mrf.mxu0
    %8444 = vmatprep.mubr.f32.mxu0 0.0
    %8445 = vmatmul.mubr.f32.gmra.mxu0 %v8373
    %v8446 = vpop.f32.mrf.mxu0
    %v8447 = vadd.f32 0.0, %v8446
    %v8448 = vpop.f32.mrf.mxu0
    %8449 = vdwg.mxu0
    %v8451 = vsel %vm2884, %v7065, 0
    %v8454 = vsel %vm2884, %v7070, 0
    %8456 = vmatprep.subr.mxu0 0.0
    %8457 = vmatpush1.msra.mxu0 0.0
    %8458 = vmatprep.subr.mxu0 0.0
    %8459 = vmatpush1.msra.mxu0 0.0
    %8460 = vmatprep.subr.mxu0 0.0
    %8461 = vmatpush1.msra.mxu0 0.0
    %8462 = vmatprep.subr.mxu0 0.0
    %8463 = vmatpush1.msra.mxu0 0.0
    %8464 = vmatprep.subr.mxu0 0.0
    %8465 = vmatpush1.msra.mxu0 0.0
    %8466 = vmatprep.subr.mxu0 0.0
    %8467 = vmatpush1.msra.mxu0 0.0
    %8468 = vmatprep.subr.mxu0 0.0
    %8469 = vmatpush1.msra.mxu0 0.0
    %8470 = vmatprep.subr.mxu0 0.0
    %8471 = vmatpush1.msra.mxu0 0.0
    %8472 = vmatprep.subr.mxu0 0.0
    %8473 = vmatpush1.msra.mxu0 0.0
    %8474 = vmatprep.subr.mxu0 0.0
    %8475 = vmatpush1.msra.mxu0 0.0
    %8476 = vmatprep.subr.mxu0 0.0
    %8477 = vmatpush1.msra.mxu0 0.0
    %8478 = vmatprep.subr.mxu0 0.0
    %8479 = vmatpush1.msra.mxu0 0.0
    %8480 = vmatprep.subr.mxu0 0.0
    %8481 = vmatpush1.msra.mxu0 %v5667
    %8482 = vmatprep.subr.mxu0 0.0
    %8483 = vmatpush1.msra.mxu0 %v5666
    %8484 = vmatprep.subr.mxu0 0.0
    %8485 = vmatpush1.msra.mxu0 %v5665
    %8486 = vmatprep.subr.mxu0 0.0
    %8487 = vmatpush1.msra.mxu0 %v5664
    %8488 = vmatprep.subr.mxu0 0.0
    %8489 = vmatpush2.msra.mxu0 0.0
    %8490 = vmatprep.subr.mxu0 0.0
    %8491 = vmatpush2.msra.mxu0 0.0
    %8492 = vmatprep.subr.mxu0 0.0
    %8493 = vmatpush2.msra.mxu0 0.0
    %8494 = vmatprep.subr.mxu0 0.0
    %8495 = vmatpush2.msra.mxu0 0.0
    %8496 = vmatprep.subr.mxu0 0.0
    %8497 = vmatpush2.msra.mxu0 0.0
    %8498 = vmatprep.subr.mxu0 0.0
    %8499 = vmatpush2.msra.mxu0 0.0
    %8500 = vmatprep.subr.mxu0 0.0
    %8501 = vmatpush2.msra.mxu0 0.0
    %8502 = vmatprep.subr.mxu0 0.0
    %8503 = vmatpush2.msra.mxu0 0.0
    %8504 = vmatprep.subr.mxu0 0.0
    %8505 = vmatpush2.msra.mxu0 0.0
    %8506 = vmatprep.subr.mxu0 0.0
    %8507 = vmatpush2.msra.mxu0 0.0
    %8508 = vmatprep.subr.mxu0 0.0
    %8509 = vmatpush2.msra.mxu0 0.0
    %8510 = vmatprep.subr.mxu0 0.0
    %8511 = vmatpush2.msra.mxu0 0.0
    %8512 = vmatprep.subr.mxu0 0.0
    %8513 = vmatpush2.msra.mxu0 0.0
    %8514 = vmatprep.subr.mxu0 0.0
    %8515 = vmatpush2.msra.mxu0 0.0
    %8516 = vmatprep.subr.mxu0 0.0
    %8517 = vmatpush2.msra.mxu0 0.0
    %8518 = vmatprep.subr.mxu0 0.0
    %8519 = vmatpush2.msra.mxu0 0.0
    %8520 = vmatprep.mubr.f32.mxu0 0.0
    %8521 = vmatmul.mubr.f32.gmra.mxu0 %v8451
    %v8522 = vpop.f32.mrf.mxu0
    %v8523 = vadd.f32 0.0, %v8522
    %v8524 = vpop.f32.mrf.mxu0
    %8525 = vmatprep.mubr.f32.mxu0 0.0
    %8526 = vmatmul.mubr.f32.gmra.mxu0 %v8454
    %v8527 = vpop.f32.mrf.mxu0
    %v8528 = vadd.f32 0.0, %v8527
    %v8529 = vpop.f32.mrf.mxu0
    %8530 = vdwg.mxu0
    %v8531 = vsel %vm5668, %v7146, 0.0
    %v8532 = vsel %vm5668, %v7227, 0.0
    %v8533 = vadd.f32 %v8531, %v8532
    %v8534 = vsel %vm5668, %v7308, 0.0
    %v8535 = vadd.f32 %v8533, %v8534
    %v8536 = vsel %vm5668, %v7389, 0.0
    %v8537 = vadd.f32 %v8535, %v8536
    %v8538 = vsel %vm5668, %v7470, 0.0
    %v8539 = vadd.f32 %v8537, %v8538
    %v8540 = vsel %vm5668, %v7551, 0.0
    %v8541 = vadd.f32 %v8539, %v8540
    %v8542 = vsel %vm5668, %v7632, 0.0
    %v8543 = vadd.f32 %v8541, %v8542
    %v8544 = vsel %vm5668, %v7713, 0.0
    %v8545 = vadd.f32 %v8543, %v8544
    %v8546 = vsel %vm5668, %v7794, 0.0
    %v8547 = vadd.f32 %v8545, %v8546
    %v8548 = vsel %vm5668, %v7151, 0.0
    %v8549 = vsel %vm5668, %v7232, 0.0
    %v8550 = vadd.f32 %v8548, %v8549
    %v8551 = vsel %vm5668, %v7313, 0.0
    %v8552 = vadd.f32 %v8550, %v8551
    %v8553 = vsel %vm5668, %v7394, 0.0
    %v8554 = vadd.f32 %v8552, %v8553
    %v8555 = vsel %vm5668, %v7475, 0.0
    %v8556 = vadd.f32 %v8554, %v8555
    %v8557 = vsel %vm5668, %v7556, 0.0
    %v8558 = vadd.f32 %v8556, %v8557
    %v8559 = vsel %vm5668, %v7637, 0.0
    %v8560 = vadd.f32 %v8558, %v8559
    %v8561 = vsel %vm5668, %v7718, 0.0
    %v8562 = vadd.f32 %v8560, %v8561
    %v8563 = vsel %vm5668, %v7799, 0.0
    %v8564 = vadd.f32 %v8562, %v8563
    %v8565 = vsel %vm5668, %v7875, 0.0
    %v8566 = vsel %vm5668, %v7956, 0.0
    %v8567 = vadd.f32 %v8565, %v8566
    %v8568 = vsel %vm5668, %v8037, 0.0
    %v8569 = vadd.f32 %v8567, %v8568
    %v8570 = vsel %vm5668, %v8118, 0.0
    %v8571 = vadd.f32 %v8569, %v8570
    %v8572 = vsel %vm5668, %v8199, 0.0
    %v8573 = vadd.f32 %v8571, %v8572
    %v8574 = vsel %vm5668, %v8280, 0.0
    %v8575 = vadd.f32 %v8573, %v8574
    %v8576 = vsel %vm5668, %v8361, 0.0
    %v8577 = vadd.f32 %v8575, %v8576
    %v8578 = vsel %vm5668, %v8442, 0.0
    %v8579 = vadd.f32 %v8577, %v8578
    %v8580 = vsel %vm5668, %v8523, 0.0
    %v8581 = vadd.f32 %v8579, %v8580
    %v8582 = vsel %vm5668, %v7880, 0.0
    %v8583 = vsel %vm5668, %v7961, 0.0
    %v8584 = vadd.f32 %v8582, %v8583
    %v8585 = vsel %vm5668, %v8042, 0.0
    %v8586 = vadd.f32 %v8584, %v8585
    %v8587 = vsel %vm5668, %v8123, 0.0
    %v8588 = vadd.f32 %v8586, %v8587
    %v8589 = vsel %vm5668, %v8204, 0.0
    %v8590 = vadd.f32 %v8588, %v8589
    %v8591 = vsel %vm5668, %v8285, 0.0
    %v8592 = vadd.f32 %v8590, %v8591
    %v8593 = vsel %vm5668, %v8366, 0.0
    %v8594 = vadd.f32 %v8592, %v8593
    %v8595 = vsel %vm5668, %v8447, 0.0
    %v8596 = vadd.f32 %v8594, %v8595
    %v8597 = vsel %vm5668, %v8528, 0.0
    %v8598 = vadd.f32 %v8596, %v8597
    %v8599 = vld [vmem:[%s14 + $0x2] sm:$0x1]
    %v8600 = vlaneseq
    %v8601 = vshrl.u32 %v8600, 7
    %v8602 = vsub.s32 0, %v8601
    %v8603 = vrot.slane %v8599, %v8602
    %v8604 = vadd.f32 %v8547, %v8603
    %v8605 = vadd.f32 %v8564, %v8603
    %v8606 = vadd.f32 %v8581, %v8603
    %v8607 = vadd.f32 %v8598, %v8603
    %v8608 = vld [vmem:[%s13] sm:$0xff]
    %v8609 = vld [vmem:[%s13 + $0x8] sm:$0xff]
    %v8610 = vld [vmem:[%s13 + $0x10] sm:$0xff]
    %v8611 = vld [vmem:[%s13 + $0x18] sm:$0xff]
    %8612 = vxpose.xlu0.b32.start [1/16] %v8608, 128
    %8613 = vxpose.xlu0.b32.cont [2/16] %v8609, 128
    %8614 = vxpose.xlu0.b32.cont [3/16] %v8610, 128
    %8615 = vxpose.xlu0.b32.cont [4/16] %v8611, 128
    %8616 = vxpose.xlu0.b32.cont [5/16] 0.0, 128
    %8617 = vxpose.xlu0.b32.cont [6/16] 0.0, 128
    %8618 = vxpose.xlu0.b32.cont [7/16] 0.0, 128
    %8619 = vxpose.xlu0.b32.cont [8/16] 0.0, 128
    %8620 = vxpose.xlu0.b32.cont [9/16] 0.0, 128
    %8621 = vxpose.xlu0.b32.cont [10/16] 0.0, 128
    %8622 = vxpose.xlu0.b32.cont [11/16] 0.0, 128
    %8623 = vxpose.xlu0.b32.cont [12/16] 0.0, 128
    %8624 = vxpose.xlu0.b32.cont [13/16] 0.0, 128
    %8625 = vxpose.xlu0.b32.cont [14/16] 0.0, 128
    %8626 = vxpose.xlu0.b32.cont [15/16] 0.0, 128
    %8627 = vxpose.xlu0.b32.end [16/16] 0.0, 128
    %v8628 = vpop.trf.xlu0
    %v8629 = vpop.trf.xlu0
    %v8630 = vpop.trf.xlu0
    %v8631 = vpop.trf.xlu0
    %v8632 = vpop.trf.xlu0
    %v8633 = vpop.trf.xlu0
    %v8634 = vpop.trf.xlu0
    %v8635 = vpop.trf.xlu0
    %v8636 = vpop.trf.xlu0
    %v8637 = vpop.trf.xlu0
    %v8638 = vpop.trf.xlu0
    %v8639 = vpop.trf.xlu0
    %v8640 = vpop.trf.xlu0
    %v8641 = vpop.trf.xlu0
    %v8642 = vpop.trf.xlu0
    %v8643 = vpop.trf.xlu0
    %v8644 = vmul.f32 %v8604, %v8604
    %v8645 = vmul.f32 %v8605, %v8605
    %v8646 = vmul.f32 %v8606, %v8606
    %v8647 = vmul.f32 %v8607, %v8607
    %v8648 = vsel %vm5668, %v8644, 0.0
    %8649 = vadd.xlane.f32.xlu0 %v8648
    %v8650 = vpop.xlane.xlu0 %8649
    %v8651 = vsel %vm5668, %v8645, 0.0
    %8652 = vadd.xlane.f32.xlu0 %v8651
    %v8653 = vpop.xlane.xlu0 %8652
    %v8654 = vsel %vm5668, %v8646, 0.0
    %8655 = vadd.xlane.f32.xlu0 %v8654
    %v8656 = vpop.xlane.xlu0 %8655
    %v8657 = vsel %vm5668, %v8647, 0.0
    %8658 = vadd.xlane.f32.xlu0 %v8657
    %v8659 = vpop.xlane.xlu0 %8658
    %v8660 = vmul.f32 %v8628, %v8628
    %v8661 = vmul.f32 %v8629, %v8629
    %v8662 = vsel %vm2884, %v8660, 0.0
    %v8663 = vsel %vm2884, %v8661, 0.0
    %v8664 = vadd.f32 %v8662, %v8663
    %v8665 = vrot.slane %v8664, 4
    %v8666 = vadd.f32 %v8664, %v8665
    %v8667 = vrot.slane %v8666, 2
    %v8668 = vadd.f32 %v8666, %v8667
    %v8669 = vrot.slane %v8668, 1
    %v8670 = vadd.f32 %v8668, %v8669
    %v8672 = vsel %vm5668, %v8604, 0
    %v8675 = vsel %vm5668, %v8605, 0
    %v8678 = vsel %vm5668, %v8606, 0
    %v8681 = vsel %vm5668, %v8607, 0
    %8683 = vmatprep.subr.mxu0 0.0
    %8684 = vmatpush1.msra.mxu0 0.0
    %8685 = vmatprep.subr.mxu0 0.0
    %8686 = vmatpush1.msra.mxu0 0.0
    %8687 = vmatprep.subr.mxu0 0.0
    %8688 = vmatpush1.msra.mxu0 0.0
    %8689 = vmatprep.subr.mxu0 0.0
    %8690 = vmatpush1.msra.mxu0 0.0
    %8691 = vmatprep.subr.mxu0 0.0
    %8692 = vmatpush1.msra.mxu0 0.0
    %8693 = vmatprep.subr.mxu0 0.0
    %8694 = vmatpush1.msra.mxu0 0.0
    %8695 = vmatprep.subr.mxu0 0.0
    %8696 = vmatpush1.msra.mxu0 0.0
    %8697 = vmatprep.subr.mxu0 0.0
    %8698 = vmatpush1.msra.mxu0 0.0
    %8699 = vmatprep.subr.mxu0 0.0
    %8700 = vmatpush1.msra.mxu0 0.0
    %8701 = vmatprep.subr.mxu0 0.0
    %8702 = vmatpush1.msra.mxu0 0.0
    %8703 = vmatprep.subr.mxu0 0.0
    %8704 = vmatpush1.msra.mxu0 0.0
    %8705 = vmatprep.subr.mxu0 0.0
    %8706 = vmatpush1.msra.mxu0 0.0
    %8707 = vmatprep.subr.mxu0 0.0
    %8708 = vmatpush1.msra.mxu0 0.0
    %8709 = vmatprep.subr.mxu0 0.0
    %8710 = vmatpush1.msra.mxu0 0.0
    %8711 = vmatprep.subr.mxu0 0.0
    %8712 = vmatpush1.msra.mxu0 %v8629
    %8713 = vmatprep.subr.mxu0 0.0
    %8714 = vmatpush1.msra.mxu0 %v8628
    %8715 = vmatprep.subr.mxu0 0.0
    %8716 = vmatpush2.msra.mxu0 0.0
    %8717 = vmatprep.subr.mxu0 0.0
    %8718 = vmatpush2.msra.mxu0 0.0
    %8719 = vmatprep.subr.mxu0 0.0
    %8720 = vmatpush2.msra.mxu0 0.0
    %8721 = vmatprep.subr.mxu0 0.0
    %8722 = vmatpush2.msra.mxu0 0.0
    %8723 = vmatprep.subr.mxu0 0.0
    %8724 = vmatpush2.msra.mxu0 0.0
    %8725 = vmatprep.subr.mxu0 0.0
    %8726 = vmatpush2.msra.mxu0 0.0
    %8727 = vmatprep.subr.mxu0 0.0
    %8728 = vmatpush2.msra.mxu0 0.0
    %8729 = vmatprep.subr.mxu0 0.0
    %8730 = vmatpush2.msra.mxu0 0.0
    %8731 = vmatprep.subr.mxu0 0.0
    %8732 = vmatpush2.msra.mxu0 0.0
    %8733 = vmatprep.subr.mxu0 0.0
    %8734 = vmatpush2.msra.mxu0 0.0
    %8735 = vmatprep.subr.mxu0 0.0
    %8736 = vmatpush2.msra.mxu0 0.0
    %8737 = vmatprep.subr.mxu0 0.0
    %8738 = vmatpush2.msra.mxu0 0.0
    %8739 = vmatprep.subr.mxu0 0.0
    %8740 = vmatpush2.msra.mxu0 0.0
    %8741 = vmatprep.subr.mxu0 0.0
    %8742 = vmatpush2.msra.mxu0 0.0
    %8743 = vmatprep.subr.mxu0 0.0
    %8744 = vmatpush2.msra.mxu0 0.0
    %8745 = vmatprep.subr.mxu0 0.0
    %8746 = vmatpush2.msra.mxu0 0.0
    %8747 = vmatprep.mubr.f32.mxu0 0.0
    %8748 = vmatmul.mubr.f32.gmra.mxu0 %v8672
    %v8749 = vpop.f32.mrf.mxu0
    %v8750 = vadd.f32 0.0, %v8749
    %v8751 = vpop.f32.mrf.mxu0
    %8752 = vmatprep.mubr.f32.mxu0 0.0
    %8753 = vmatmul.mubr.f32.gmra.mxu0 %v8675
    %v8754 = vpop.f32.mrf.mxu0
    %v8755 = vadd.f32 0.0, %v8754
    %v8756 = vpop.f32.mrf.mxu0
    %8757 = vmatprep.mubr.f32.mxu0 0.0
    %8758 = vmatmul.mubr.f32.gmra.mxu0 %v8678
    %v8759 = vpop.f32.mrf.mxu0
    %v8760 = vadd.f32 0.0, %v8759
    %v8761 = vpop.f32.mrf.mxu0
    %8762 = vmatprep.mubr.f32.mxu0 0.0
    %8763 = vmatmul.mubr.f32.gmra.mxu0 %v8681
    %v8764 = vpop.f32.mrf.mxu0
    %v8765 = vadd.f32 0.0, %v8764
    %v8766 = vpop.f32.mrf.mxu0
    %8767 = vdwg.mxu0
    %v8768 = vmul.f32 %v8750, 2.0
    %v8769 = vmul.f32 %v8755, 2.0
    %v8770 = vmul.f32 %v8760, 2.0
    %v8771 = vmul.f32 %v8765, 2.0
    %v8772 = vsub.f32 %v8650, %v8768
    %v8773 = vsub.f32 %v8653, %v8769
    %v8774 = vsub.f32 %v8656, %v8770
    %v8775 = vsub.f32 %v8659, %v8771
    %v8776 = vadd.f32 %v8772, %v8670
    %v8777 = vadd.f32 %v8773, %v8670
    %v8778 = vadd.f32 %v8774, %v8670
    %v8779 = vadd.f32 %v8775, %v8670
    %v8780 = vsel %vm2884, %v8776, inf
    %8781 = vmin.xlane.f32.xlu0 %v8780
    %v8782 = vpop.xlane.xlu0 %8781
    %v8783 = vsel %vm2884, %v8777, inf
    %8784 = vmin.xlane.f32.xlu0 %v8783
    %v8785 = vpop.xlane.xlu0 %8784
    %v8786 = vsel %vm2884, %v8778, inf
    %8787 = vmin.xlane.f32.xlu0 %v8786
    %v8788 = vpop.xlane.xlu0 %8787
    %v8789 = vsel %vm2884, %v8779, inf
    %8790 = vmin.xlane.f32.xlu0 %v8789
    %v8791 = vpop.xlane.xlu0 %8790
    %v8792 = vlaneseq
    %v8793 = vand.u32 %v8792, 127
    %vm8794 = vcmp.le.f32.partialorder %v8776, %v8782
    %vm8795 = vcmp.le.f32.partialorder %v8777, %v8785
    %vm8796 = vcmp.le.f32.partialorder %v8778, %v8788
    %vm8797 = vcmp.le.f32.partialorder %v8779, %v8791
    %v8798 = vsel %vm8794, %v8793, 32
    %v8799 = vsel %vm8795, %v8793, 32
    %v8800 = vsel %vm8796, %v8793, 32
    %v8801 = vsel %vm8797, %v8793, 32
    %v8802 = vsel %vm2884, %v8798, 2147483647
    %v8803 = vand.u32 %v8802, 65535
    %v8804 = vshra.s32 %v8802, 16
    %v8805 = vcvt.s32.f32 %v8803
    %v8806 = vcvt.s32.f32 %v8804
    %8807 = vmin.xlane.f32.xlu0 %v8806
    %v8808 = vpop.xlane.xlu0 %8807
    %vm8809 = vcmp.eq.f32.partialorder %v8806, %v8808
    %v8810 = vsel %vm8809, %v8805, inf
    %8811 = vmin.xlane.f32.xlu0 %v8810
    %v8812 = vpop.xlane.xlu0 %8811
    %v8813 = vcvt.f32.s32 %v8812
    %v8814 = vcvt.f32.s32 %v8808
    %v8815 = vshll.u32 %v8814, 16
    %v8816 = vadd.s32 %v8815, %v8813
    %v8817 = vsel %vm2884, %v8799, 2147483647
    %v8818 = vand.u32 %v8817, 65535
    %v8819 = vshra.s32 %v8817, 16
    %v8820 = vcvt.s32.f32 %v8818
    %v8821 = vcvt.s32.f32 %v8819
    %8822 = vmin.xlane.f32.xlu0 %v8821
    %v8823 = vpop.xlane.xlu0 %8822
    %vm8824 = vcmp.eq.f32.partialorder %v8821, %v8823
    %v8825 = vsel %vm8824, %v8820, inf
    %8826 = vmin.xlane.f32.xlu0 %v8825
    %v8827 = vpop.xlane.xlu0 %8826
    %v8828 = vcvt.f32.s32 %v8827
    %v8829 = vcvt.f32.s32 %v8823
    %v8830 = vshll.u32 %v8829, 16
    %v8831 = vadd.s32 %v8830, %v8828
    %v8832 = vsel %vm2884, %v8800, 2147483647
    %v8833 = vand.u32 %v8832, 65535
    %v8834 = vshra.s32 %v8832, 16
    %v8835 = vcvt.s32.f32 %v8833
    %v8836 = vcvt.s32.f32 %v8834
    %8837 = vmin.xlane.f32.xlu0 %v8836
    %v8838 = vpop.xlane.xlu0 %8837
    %vm8839 = vcmp.eq.f32.partialorder %v8836, %v8838
    %v8840 = vsel %vm8839, %v8835, inf
    %8841 = vmin.xlane.f32.xlu0 %v8840
    %v8842 = vpop.xlane.xlu0 %8841
    %v8843 = vcvt.f32.s32 %v8842
    %v8844 = vcvt.f32.s32 %v8838
    %v8845 = vshll.u32 %v8844, 16
    %v8846 = vadd.s32 %v8845, %v8843
    %v8847 = vsel %vm2884, %v8801, 2147483647
    %v8848 = vand.u32 %v8847, 65535
    %v8849 = vshra.s32 %v8847, 16
    %v8850 = vcvt.s32.f32 %v8848
    %v8851 = vcvt.s32.f32 %v8849
    %8852 = vmin.xlane.f32.xlu0 %v8851
    %v8853 = vpop.xlane.xlu0 %8852
    %vm8854 = vcmp.eq.f32.partialorder %v8851, %v8853
    %v8855 = vsel %vm8854, %v8850, inf
    %8856 = vmin.xlane.f32.xlu0 %v8855
    %v8857 = vpop.xlane.xlu0 %8856
    %v8858 = vcvt.f32.s32 %v8857
    %v8859 = vcvt.f32.s32 %v8853
    %v8860 = vshll.u32 %v8859, 16
    %v8861 = vadd.s32 %v8860, %v8858
    %vm8862 = vcmp.eq.s32.totalorder %v8793, %v8816
    %vm8863 = vcmp.eq.s32.totalorder %v8793, %v8831
    %vm8864 = vcmp.eq.s32.totalorder %v8793, %v8846
    %vm8865 = vcmp.eq.s32.totalorder %v8793, %v8861
    %v8866 = vsel %vm8862, 1, 0
    %v8867 = vsel %vm8863, 1, 0
    %v8868 = vsel %vm8864, 1, 0
    %v8869 = vsel %vm8865, 1, 0
    %v8870 = vcvt.s32.f32 %v8866
    %v8871 = vcvt.s32.f32 %v8867
    %v8872 = vcvt.s32.f32 %v8868
    %v8873 = vcvt.s32.f32 %v8869
    %v8875 = vsel %vm2884, %v8870, 0
    %v8878 = vsel %vm2884, %v8871, 0
    %v8881 = vsel %vm2884, %v8872, 0
    %v8884 = vsel %vm2884, %v8873, 0
    %8886 = vmatprep.subr.mxu0 0.0
    %8887 = vmatpush1.msra.mxu0 0.0
    %8888 = vmatprep.subr.mxu0 0.0
    %8889 = vmatpush1.msra.mxu0 0.0
    %8890 = vmatprep.subr.mxu0 0.0
    %8891 = vmatpush1.msra.mxu0 0.0
    %8892 = vmatprep.subr.mxu0 0.0
    %8893 = vmatpush1.msra.mxu0 0.0
    %8894 = vmatprep.subr.mxu0 0.0
    %8895 = vmatpush1.msra.mxu0 0.0
    %8896 = vmatprep.subr.mxu0 0.0
    %8897 = vmatpush1.msra.mxu0 0.0
    %8898 = vmatprep.subr.mxu0 0.0
    %8899 = vmatpush1.msra.mxu0 0.0
    %8900 = vmatprep.subr.mxu0 0.0
    %8901 = vmatpush1.msra.mxu0 0.0
    %8902 = vmatprep.subr.mxu0 0.0
    %8903 = vmatpush1.msra.mxu0 0.0
    %8904 = vmatprep.subr.mxu0 0.0
    %8905 = vmatpush1.msra.mxu0 0.0
    %8906 = vmatprep.subr.mxu0 0.0
    %8907 = vmatpush1.msra.mxu0 0.0
    %8908 = vmatprep.subr.mxu0 0.0
    %8909 = vmatpush1.msra.mxu0 0.0
    %8910 = vmatprep.subr.mxu0 0.0
    %8911 = vmatpush1.msra.mxu0 %v8611
    %8912 = vmatprep.subr.mxu0 0.0
    %8913 = vmatpush1.msra.mxu0 %v8610
    %8914 = vmatprep.subr.mxu0 0.0
    %8915 = vmatpush1.msra.mxu0 %v8609
    %8916 = vmatprep.subr.mxu0 0.0
    %8917 = vmatpush1.msra.mxu0 %v8608
    %8918 = vmatprep.subr.mxu0 0.0
    %8919 = vmatpush2.msra.mxu0 0.0
    %8920 = vmatprep.subr.mxu0 0.0
    %8921 = vmatpush2.msra.mxu0 0.0
    %8922 = vmatprep.subr.mxu0 0.0
    %8923 = vmatpush2.msra.mxu0 0.0
    %8924 = vmatprep.subr.mxu0 0.0
    %8925 = vmatpush2.msra.mxu0 0.0
    %8926 = vmatprep.subr.mxu0 0.0
    %8927 = vmatpush2.msra.mxu0 0.0
    %8928 = vmatprep.subr.mxu0 0.0
    %8929 = vmatpush2.msra.mxu0 0.0
    %8930 = vmatprep.subr.mxu0 0.0
    %8931 = vmatpush2.msra.mxu0 0.0
    %8932 = vmatprep.subr.mxu0 0.0
    %8933 = vmatpush2.msra.mxu0 0.0
    %8934 = vmatprep.subr.mxu0 0.0
    %8935 = vmatpush2.msra.mxu0 0.0
    %8936 = vmatprep.subr.mxu0 0.0
    %8937 = vmatpush2.msra.mxu0 0.0
    %8938 = vmatprep.subr.mxu0 0.0
    %8939 = vmatpush2.msra.mxu0 0.0
    %8940 = vmatprep.subr.mxu0 0.0
    %8941 = vmatpush2.msra.mxu0 0.0
    %8942 = vmatprep.subr.mxu0 0.0
    %8943 = vmatpush2.msra.mxu0 0.0
    %8944 = vmatprep.subr.mxu0 0.0
    %8945 = vmatpush2.msra.mxu0 0.0
    %8946 = vmatprep.subr.mxu0 0.0
    %8947 = vmatpush2.msra.mxu0 0.0
    %8948 = vmatprep.subr.mxu0 0.0
    %8949 = vmatpush2.msra.mxu0 0.0
    %8950 = vmatprep.mubr.f32.mxu0 0.0
    %8951 = vmatmul.mubr.f32.gmra.mxu0 %v8875
    %v8952 = vpop.f32.mrf.mxu0
    %v8953 = vadd.f32 0.0, %v8952
    %v8954 = vpop.f32.mrf.mxu0
    %8955 = vmatprep.mubr.f32.mxu0 0.0
    %8956 = vmatmul.mubr.f32.gmra.mxu0 %v8878
    %v8957 = vpop.f32.mrf.mxu0
    %v8958 = vadd.f32 0.0, %v8957
    %v8959 = vpop.f32.mrf.mxu0
    %8960 = vmatprep.mubr.f32.mxu0 0.0
    %8961 = vmatmul.mubr.f32.gmra.mxu0 %v8881
    %v8962 = vpop.f32.mrf.mxu0
    %v8963 = vadd.f32 0.0, %v8962
    %v8964 = vpop.f32.mrf.mxu0
    %8965 = vmatprep.mubr.f32.mxu0 0.0
    %8966 = vmatmul.mubr.f32.gmra.mxu0 %v8884
    %v8967 = vpop.f32.mrf.mxu0
    %v8968 = vadd.f32 0.0, %v8967
    %v8969 = vpop.f32.mrf.mxu0
    %8970 = vdwg.mxu0
    %8971 = vst [vmem:[#allocation2] sm:$0xff] %v8953
    %8972 = vst [vmem:[#allocation2 + $0x8] sm:$0xff] %v8958
    %8973 = vst [vmem:[#allocation2 + $0x10] sm:$0xff] %v8963
    %8974 = vst [vmem:[#allocation2 + $0x18] sm:$0xff] %v8968
    %v8975 = vld [vmem:[%s1] sm:$0xff]
    %v8976 = vld [vmem:[%s1 + $0x8] sm:$0xff]
    %8977 = vset.pattern.permute.xlu0 0
    %8978 = vperm.xlu0 %8977, %v8975
    %v8979 = vpop.permute.xlu0 %8978
    %8980 = vset.pattern.permute.xlu0 0
    %8981 = vperm.xlu0 %8980, %v8976
    %v8982 = vpop.permute.xlu0 %8981
    %vm8983 = vcmp.eq.s32.totalorder %v8793, %v8979
    %vm8984 = vcmp.eq.s32.totalorder %v8793, %v8982
    %v8985 = vsel %vm8983, 1, 0
    %v8986 = vsel %vm8984, 1, 0
    %v8987 = vcvt.s32.f32 %v8985
    %v8988 = vcvt.s32.f32 %v8986
    %v8989 = vld [vmem:[%s7] sm:$0xff]
    %v8990 = vld [vmem:[%s7 + $0x8] sm:$0xff]
    %v8991 = vld [vmem:[%s7 + $0x10] sm:$0xff]
    %v8992 = vld [vmem:[%s7 + $0x18] sm:$0xff]
    %v8993 = vld [vmem:[%s7 + $0x20] sm:$0xff]
    %v8994 = vld [vmem:[%s7 + $0x28] sm:$0xff]
    %v8995 = vld [vmem:[%s7 + $0x30] sm:$0xff]
    %v8996 = vld [vmem:[%s7 + $0x38] sm:$0xff]
    %v8997 = vld [vmem:[%s8] sm:$0xff]
    %v8999 = vsel %vm82, %v8987, 0
    %v9002 = vsel %vm82, %v8988, 0
    %9004 = vmatprep.subr.mxu0 0.0
    %9005 = vmatpush1.msra.mxu0 0.0
    %9006 = vmatprep.subr.mxu0 0.0
    %9007 = vmatpush1.msra.mxu0 0.0
    %9008 = vmatprep.subr.mxu0 0.0
    %9009 = vmatpush1.msra.mxu0 0.0
    %9010 = vmatprep.subr.mxu0 0.0
    %9011 = vmatpush1.msra.mxu0 0.0
    %9012 = vmatprep.subr.mxu0 0.0
    %9013 = vmatpush1.msra.mxu0 0.0
    %9014 = vmatprep.subr.mxu0 0.0
    %9015 = vmatpush1.msra.mxu0 0.0
    %9016 = vmatprep.subr.mxu0 0.0
    %9017 = vmatpush1.msra.mxu0 0.0
    %9018 = vmatprep.subr.mxu0 0.0
    %9019 = vmatpush1.msra.mxu0 0.0
    %9020 = vmatprep.subr.mxu0 0.0
    %9021 = vmatpush1.msra.mxu0 %v8996
    %9022 = vmatprep.subr.mxu0 0.0
    %9023 = vmatpush1.msra.mxu0 %v8995
    %9024 = vmatprep.subr.mxu0 0.0
    %9025 = vmatpush1.msra.mxu0 %v8994
    %9026 = vmatprep.subr.mxu0 0.0
    %9027 = vmatpush1.msra.mxu0 %v8993
    %9028 = vmatprep.subr.mxu0 0.0
    %9029 = vmatpush1.msra.mxu0 %v8992
    %9030 = vmatprep.subr.mxu0 0.0
    %9031 = vmatpush1.msra.mxu0 %v8991
    %9032 = vmatprep.subr.mxu0 0.0
    %9033 = vmatpush1.msra.mxu0 %v8990
    %9034 = vmatprep.subr.mxu0 0.0
    %9035 = vmatpush1.msra.mxu0 %v8989
    %9036 = vmatprep.subr.mxu0 0.0
    %9037 = vmatpush2.msra.mxu0 0.0
    %9038 = vmatprep.subr.mxu0 0.0
    %9039 = vmatpush2.msra.mxu0 0.0
    %9040 = vmatprep.subr.mxu0 0.0
    %9041 = vmatpush2.msra.mxu0 0.0
    %9042 = vmatprep.subr.mxu0 0.0
    %9043 = vmatpush2.msra.mxu0 0.0
    %9044 = vmatprep.subr.mxu0 0.0
    %9045 = vmatpush2.msra.mxu0 0.0
    %9046 = vmatprep.subr.mxu0 0.0
    %9047 = vmatpush2.msra.mxu0 0.0
    %9048 = vmatprep.subr.mxu0 0.0
    %9049 = vmatpush2.msra.mxu0 0.0
    %9050 = vmatprep.subr.mxu0 0.0
    %9051 = vmatpush2.msra.mxu0 0.0
    %9052 = vmatprep.subr.mxu0 0.0
    %9053 = vmatpush2.msra.mxu0 0.0
    %9054 = vmatprep.subr.mxu0 0.0
    %9055 = vmatpush2.msra.mxu0 0.0
    %9056 = vmatprep.subr.mxu0 0.0
    %9057 = vmatpush2.msra.mxu0 0.0
    %9058 = vmatprep.subr.mxu0 0.0
    %9059 = vmatpush2.msra.mxu0 0.0
    %9060 = vmatprep.subr.mxu0 0.0
    %9061 = vmatpush2.msra.mxu0 0.0
    %9062 = vmatprep.subr.mxu0 0.0
    %9063 = vmatpush2.msra.mxu0 0.0
    %9064 = vmatprep.subr.mxu0 0.0
    %9065 = vmatpush2.msra.mxu0 0.0
    %9066 = vmatprep.subr.mxu0 0.0
    %9067 = vmatpush2.msra.mxu0 0.0
    %9068 = vmatprep.mubr.f32.mxu0 0.0
    %9069 = vmatmul.mubr.f32.gmra.mxu0 %v8999
    %v9070 = vpop.f32.mrf.mxu0
    %v9071 = vadd.f32 %v8997, %v9070
    %v9072 = vpop.f32.mrf.mxu0
    %9073 = vmatprep.mubr.f32.mxu0 0.0
    %9074 = vmatmul.mubr.f32.gmra.mxu0 %v9002
    %v9075 = vpop.f32.mrf.mxu0
    %v9076 = vadd.f32 %v8997, %v9075
    %v9077 = vpop.f32.mrf.mxu0
    %9078 = vdwg.mxu0
    %v9079 = vld [vmem:[%s14 + $0x3] sm:$0x1]
    %v9080 = vld [vmem:[%s14 + $0x4] sm:$0x1]
    %v9081 = vsel %vm2884, %v9071, 0.0
    %9082 = vadd.xlane.f32.xlu0 %v9081
    %v9083 = vpop.xlane.xlu0 %9082
    %v9084 = vsel %vm2884, %v9076, 0.0
    %9085 = vadd.xlane.f32.xlu0 %v9084
    %v9086 = vpop.xlane.xlu0 %9085
    %v9087 = vrcp.pop 32.0
    %v9088 = vmul.f32 %v9083, %v9087
    %v9089 = vmul.f32 %v9086, %v9087
    %v9090 = vsub.f32 %v9071, %v9088
    %v9091 = vsub.f32 %v9076, %v9089
    %v9092 = vmul.f32 %v9090, %v9090
    %v9093 = vmul.f32 %v9091, %v9091
    %v9094 = vsel %vm2884, %v9092, 0.0
    %9095 = vadd.xlane.f32.xlu0 %v9094
    %v9096 = vpop.xlane.xlu0 %9095
    %v9097 = vsel %vm2884, %v9093, 0.0
    %9098 = vadd.xlane.f32.xlu0 %v9097
    %v9099 = vpop.xlane.xlu0 %9098
    %v9100 = vmul.f32 %v9096, %v9087
    %v9101 = vmul.f32 %v9099, %v9087
    %v9102 = vadd.f32 %v9100, 1e-05
    %v9103 = vadd.f32 %v9101, 1e-05
    %v9104 = vrsqrt.pop %v9102
    %v9105 = vrsqrt.pop %v9103
    %v9106 = vmul.f32 %v9090, %v9104
    %v9107 = vmul.f32 %v9091, %v9105
    %v9108 = vlaneseq
    %v9109 = vshrl.u32 %v9108, 7
    %v9110 = vsub.s32 0, %v9109
    %v9111 = vrot.slane %v9079, %v9110
    %v9112 = vmul.f32 %v9106, %v9111
    %v9113 = vmul.f32 %v9107, %v9111
    %v9114 = vlaneseq
    %v9115 = vshrl.u32 %v9114, 7
    %v9116 = vsub.s32 0, %v9115
    %v9117 = vrot.slane %v9080, %v9116
    %v9118 = vadd.f32 %v9112, %v9117
    %v9119 = vadd.f32 %v9113, %v9117
    %v9120 = vld [vmem:[%s9] sm:$0xff]
    %v9121 = vld [vmem:[%s9 + $0x8] sm:$0xff]
    %v9122 = vld [vmem:[%s9 + $0x10] sm:$0xff]
    %v9123 = vld [vmem:[%s9 + $0x18] sm:$0xff]
    %v9124 = vld [vmem:[%s14 + $0x5] sm:$0x1]
    %v9125 = vlaneseq
    %v9126 = vshrl.u32 %v9125, 7
    %v9127 = vsub.s32 0, %v9126
    %v9128 = vrot.slane %v9124, %v9127
    %v9130 = vsel %vm2884, %v9118, 0
    %v9133 = vsel %vm2884, %v9119, 0
    %9135 = vmatprep.subr.mxu0 0.0
    %9136 = vmatpush1.msra.mxu0 0.0
    %9137 = vmatprep.subr.mxu0 0.0
    %9138 = vmatpush1.msra.mxu0 0.0
    %9139 = vmatprep.subr.mxu0 0.0
    %9140 = vmatpush1.msra.mxu0 0.0
    %9141 = vmatprep.subr.mxu0 0.0
    %9142 = vmatpush1.msra.mxu0 0.0
    %9143 = vmatprep.subr.mxu0 0.0
    %9144 = vmatpush1.msra.mxu0 0.0
    %9145 = vmatprep.subr.mxu0 0.0
    %9146 = vmatpush1.msra.mxu0 0.0
    %9147 = vmatprep.subr.mxu0 0.0
    %9148 = vmatpush1.msra.mxu0 0.0
    %9149 = vmatprep.subr.mxu0 0.0
    %9150 = vmatpush1.msra.mxu0 0.0
    %9151 = vmatprep.subr.mxu0 0.0
    %9152 = vmatpush1.msra.mxu0 0.0
    %9153 = vmatprep.subr.mxu0 0.0
    %9154 = vmatpush1.msra.mxu0 0.0
    %9155 = vmatprep.subr.mxu0 0.0
    %9156 = vmatpush1.msra.mxu0 0.0
    %9157 = vmatprep.subr.mxu0 0.0
    %9158 = vmatpush1.msra.mxu0 0.0
    %9159 = vmatprep.subr.mxu0 0.0
    %9160 = vmatpush1.msra.mxu0 %v9123
    %9161 = vmatprep.subr.mxu0 0.0
    %9162 = vmatpush1.msra.mxu0 %v9122
    %9163 = vmatprep.subr.mxu0 0.0
    %9164 = vmatpush1.msra.mxu0 %v9121
    %9165 = vmatprep.subr.mxu0 0.0
    %9166 = vmatpush1.msra.mxu0 %v9120
    %9167 = vmatprep.subr.mxu0 0.0
    %9168 = vmatpush2.msra.mxu0 0.0
    %9169 = vmatprep.subr.mxu0 0.0
    %9170 = vmatpush2.msra.mxu0 0.0
    %9171 = vmatprep.subr.mxu0 0.0
    %9172 = vmatpush2.msra.mxu0 0.0
    %9173 = vmatprep.subr.mxu0 0.0
    %9174 = vmatpush2.msra.mxu0 0.0
    %9175 = vmatprep.subr.mxu0 0.0
    %9176 = vmatpush2.msra.mxu0 0.0
    %9177 = vmatprep.subr.mxu0 0.0
    %9178 = vmatpush2.msra.mxu0 0.0
    %9179 = vmatprep.subr.mxu0 0.0
    %9180 = vmatpush2.msra.mxu0 0.0
    %9181 = vmatprep.subr.mxu0 0.0
    %9182 = vmatpush2.msra.mxu0 0.0
    %9183 = vmatprep.subr.mxu0 0.0
    %9184 = vmatpush2.msra.mxu0 0.0
    %9185 = vmatprep.subr.mxu0 0.0
    %9186 = vmatpush2.msra.mxu0 0.0
    %9187 = vmatprep.subr.mxu0 0.0
    %9188 = vmatpush2.msra.mxu0 0.0
    %9189 = vmatprep.subr.mxu0 0.0
    %9190 = vmatpush2.msra.mxu0 0.0
    %9191 = vmatprep.subr.mxu0 0.0
    %9192 = vmatpush2.msra.mxu0 0.0
    %9193 = vmatprep.subr.mxu0 0.0
    %9194 = vmatpush2.msra.mxu0 0.0
    %9195 = vmatprep.subr.mxu0 0.0
    %9196 = vmatpush2.msra.mxu0 0.0
    %9197 = vmatprep.subr.mxu0 0.0
    %9198 = vmatpush2.msra.mxu0 0.0
    %9199 = vmatprep.mubr.f32.mxu0 0.0
    %9200 = vmatmul.mubr.f32.gmra.mxu0 %v9130
    %v9201 = vpop.f32.mrf.mxu0
    %v9202 = vadd.f32 %v9128, %v9201
    %v9203 = vpop.f32.mrf.mxu0
    %9204 = vmatprep.mubr.f32.mxu0 0.0
    %9205 = vmatmul.mubr.f32.gmra.mxu0 %v9133
    %v9206 = vpop.f32.mrf.mxu0
    %v9207 = vadd.f32 %v9128, %v9206
    %v9208 = vpop.f32.mrf.mxu0
    %9209 = vdwg.mxu0
    %s9210 = scalar_lea.vmem %s9, 32
    %v9211 = vld [vmem:[%s9210] sm:$0xff]
    %v9212 = vld [vmem:[%s9210 + $0x8] sm:$0xff]
    %v9213 = vld [vmem:[%s9210 + $0x10] sm:$0xff]
    %v9214 = vld [vmem:[%s9210 + $0x18] sm:$0xff]
    %v9215 = vld [vmem:[%s14 + $0x6] sm:$0x1]
    %v9216 = vlaneseq
    %v9217 = vshrl.u32 %v9216, 7
    %v9218 = vsub.s32 0, %v9217
    %v9219 = vrot.slane %v9215, %v9218
    %9220 = vmatprep.subr.mxu0 0.0
    %9221 = vmatpush1.msra.mxu0 0.0
    %9222 = vmatprep.subr.mxu0 0.0
    %9223 = vmatpush1.msra.mxu0 0.0
    %9224 = vmatprep.subr.mxu0 0.0
    %9225 = vmatpush1.msra.mxu0 0.0
    %9226 = vmatprep.subr.mxu0 0.0
    %9227 = vmatpush1.msra.mxu0 0.0
    %9228 = vmatprep.subr.mxu0 0.0
    %9229 = vmatpush1.msra.mxu0 0.0
    %9230 = vmatprep.subr.mxu0 0.0
    %9231 = vmatpush1.msra.mxu0 0.0
    %9232 = vmatprep.subr.mxu0 0.0
    %9233 = vmatpush1.msra.mxu0 0.0
    %9234 = vmatprep.subr.mxu0 0.0
    %9235 = vmatpush1.msra.mxu0 0.0
    %9236 = vmatprep.subr.mxu0 0.0
    %9237 = vmatpush1.msra.mxu0 0.0
    %9238 = vmatprep.subr.mxu0 0.0
    %9239 = vmatpush1.msra.mxu0 0.0
    %9240 = vmatprep.subr.mxu0 0.0
    %9241 = vmatpush1.msra.mxu0 0.0
    %9242 = vmatprep.subr.mxu0 0.0
    %9243 = vmatpush1.msra.mxu0 0.0
    %9244 = vmatprep.subr.mxu0 0.0
    %9245 = vmatpush1.msra.mxu0 %v9214
    %9246 = vmatprep.subr.mxu0 0.0
    %9247 = vmatpush1.msra.mxu0 %v9213
    %9248 = vmatprep.subr.mxu0 0.0
    %9249 = vmatpush1.msra.mxu0 %v9212
    %9250 = vmatprep.subr.mxu0 0.0
    %9251 = vmatpush1.msra.mxu0 %v9211
    %9252 = vmatprep.subr.mxu0 0.0
    %9253 = vmatpush2.msra.mxu0 0.0
    %9254 = vmatprep.subr.mxu0 0.0
    %9255 = vmatpush2.msra.mxu0 0.0
    %9256 = vmatprep.subr.mxu0 0.0
    %9257 = vmatpush2.msra.mxu0 0.0
    %9258 = vmatprep.subr.mxu0 0.0
    %9259 = vmatpush2.msra.mxu0 0.0
    %9260 = vmatprep.subr.mxu0 0.0
    %9261 = vmatpush2.msra.mxu0 0.0
    %9262 = vmatprep.subr.mxu0 0.0
    %9263 = vmatpush2.msra.mxu0 0.0
    %9264 = vmatprep.subr.mxu0 0.0
    %9265 = vmatpush2.msra.mxu0 0.0
    %9266 = vmatprep.subr.mxu0 0.0
    %9267 = vmatpush2.msra.mxu0 0.0
    %9268 = vmatprep.subr.mxu0 0.0
    %9269 = vmatpush2.msra.mxu0 0.0
    %9270 = vmatprep.subr.mxu0 0.0
    %9271 = vmatpush2.msra.mxu0 0.0
    %9272 = vmatprep.subr.mxu0 0.0
    %9273 = vmatpush2.msra.mxu0 0.0
    %9274 = vmatprep.subr.mxu0 0.0
    %9275 = vmatpush2.msra.mxu0 0.0
    %9276 = vmatprep.subr.mxu0 0.0
    %9277 = vmatpush2.msra.mxu0 0.0
    %9278 = vmatprep.subr.mxu0 0.0
    %9279 = vmatpush2.msra.mxu0 0.0
    %9280 = vmatprep.subr.mxu0 0.0
    %9281 = vmatpush2.msra.mxu0 0.0
    %9282 = vmatprep.subr.mxu0 0.0
    %9283 = vmatpush2.msra.mxu0 0.0
    %9284 = vmatprep.mubr.f32.mxu0 0.0
    %9285 = vmatmul.mubr.f32.gmra.mxu0 %v9130
    %v9286 = vpop.f32.mrf.mxu0
    %v9287 = vadd.f32 %v9219, %v9286
    %v9288 = vpop.f32.mrf.mxu0
    %9289 = vmatprep.mubr.f32.mxu0 0.0
    %9290 = vmatmul.mubr.f32.gmra.mxu0 %v9133
    %v9291 = vpop.f32.mrf.mxu0
    %v9292 = vadd.f32 %v9219, %v9291
    %v9293 = vpop.f32.mrf.mxu0
    %9294 = vdwg.mxu0
    %s9295 = scalar_lea.vmem %s9, 64
    %v9296 = vld [vmem:[%s9295] sm:$0xff]
    %v9297 = vld [vmem:[%s9295 + $0x8] sm:$0xff]
    %v9298 = vld [vmem:[%s9295 + $0x10] sm:$0xff]
    %v9299 = vld [vmem:[%s9295 + $0x18] sm:$0xff]
    %v9300 = vld [vmem:[%s14 + $0x7] sm:$0x1]
    %v9301 = vlaneseq
    %v9302 = vshrl.u32 %v9301, 7
    %v9303 = vsub.s32 0, %v9302
    %v9304 = vrot.slane %v9300, %v9303
    %9305 = vmatprep.subr.mxu0 0.0
    %9306 = vmatpush1.msra.mxu0 0.0
    %9307 = vmatprep.subr.mxu0 0.0
    %9308 = vmatpush1.msra.mxu0 0.0
    %9309 = vmatprep.subr.mxu0 0.0
    %9310 = vmatpush1.msra.mxu0 0.0
    %9311 = vmatprep.subr.mxu0 0.0
    %9312 = vmatpush1.msra.mxu0 0.0
    %9313 = vmatprep.subr.mxu0 0.0
    %9314 = vmatpush1.msra.mxu0 0.0
    %9315 = vmatprep.subr.mxu0 0.0
    %9316 = vmatpush1.msra.mxu0 0.0
    %9317 = vmatprep.subr.mxu0 0.0
    %9318 = vmatpush1.msra.mxu0 0.0
    %9319 = vmatprep.subr.mxu0 0.0
    %9320 = vmatpush1.msra.mxu0 0.0
    %9321 = vmatprep.subr.mxu0 0.0
    %9322 = vmatpush1.msra.mxu0 0.0
    %9323 = vmatprep.subr.mxu0 0.0
    %9324 = vmatpush1.msra.mxu0 0.0
    %9325 = vmatprep.subr.mxu0 0.0
    %9326 = vmatpush1.msra.mxu0 0.0
    %9327 = vmatprep.subr.mxu0 0.0
    %9328 = vmatpush1.msra.mxu0 0.0
    %9329 = vmatprep.subr.mxu0 0.0
    %9330 = vmatpush1.msra.mxu0 %v9299
    %9331 = vmatprep.subr.mxu0 0.0
    %9332 = vmatpush1.msra.mxu0 %v9298
    %9333 = vmatprep.subr.mxu0 0.0
    %9334 = vmatpush1.msra.mxu0 %v9297
    %9335 = vmatprep.subr.mxu0 0.0
    %9336 = vmatpush1.msra.mxu0 %v9296
    %9337 = vmatprep.subr.mxu0 0.0
    %9338 = vmatpush2.msra.mxu0 0.0
    %9339 = vmatprep.subr.mxu0 0.0
    %9340 = vmatpush2.msra.mxu0 0.0
    %9341 = vmatprep.subr.mxu0 0.0
    %9342 = vmatpush2.msra.mxu0 0.0
    %9343 = vmatprep.subr.mxu0 0.0
    %9344 = vmatpush2.msra.mxu0 0.0
    %9345 = vmatprep.subr.mxu0 0.0
    %9346 = vmatpush2.msra.mxu0 0.0
    %9347 = vmatprep.subr.mxu0 0.0
    %9348 = vmatpush2.msra.mxu0 0.0
    %9349 = vmatprep.subr.mxu0 0.0
    %9350 = vmatpush2.msra.mxu0 0.0
    %9351 = vmatprep.subr.mxu0 0.0
    %9352 = vmatpush2.msra.mxu0 0.0
    %9353 = vmatprep.subr.mxu0 0.0
    %9354 = vmatpush2.msra.mxu0 0.0
    %9355 = vmatprep.subr.mxu0 0.0
    %9356 = vmatpush2.msra.mxu0 0.0
    %9357 = vmatprep.subr.mxu0 0.0
    %9358 = vmatpush2.msra.mxu0 0.0
    %9359 = vmatprep.subr.mxu0 0.0
    %9360 = vmatpush2.msra.mxu0 0.0
    %9361 = vmatprep.subr.mxu0 0.0
    %9362 = vmatpush2.msra.mxu0 0.0
    %9363 = vmatprep.subr.mxu0 0.0
    %9364 = vmatpush2.msra.mxu0 0.0
    %9365 = vmatprep.subr.mxu0 0.0
    %9366 = vmatpush2.msra.mxu0 0.0
    %9367 = vmatprep.subr.mxu0 0.0
    %9368 = vmatpush2.msra.mxu0 0.0
    %9369 = vmatprep.mubr.f32.mxu0 0.0
    %9370 = vmatmul.mubr.f32.gmra.mxu0 %v9130
    %v9371 = vpop.f32.mrf.mxu0
    %v9372 = vadd.f32 %v9304, %v9371
    %v9373 = vpop.f32.mrf.mxu0
    %9374 = vmatprep.mubr.f32.mxu0 0.0
    %9375 = vmatmul.mubr.f32.gmra.mxu0 %v9133
    %v9376 = vpop.f32.mrf.mxu0
    %v9377 = vadd.f32 %v9304, %v9376
    %v9378 = vpop.f32.mrf.mxu0
    %9379 = vdwg.mxu0
    %v9381 = vsel %vm5668, %v9202, 0
    %v9384 = vsel %vm5668, %v9287, 0
    %9386 = vmatprep.subr.mxu0 0.0
    %9387 = vmatpush1.xpose.msra.mxu0 0.0
    %9388 = vmatprep.subr.mxu0 0.0
    %9389 = vmatpush1.xpose.msra.mxu0 0.0
    %9390 = vmatprep.subr.mxu0 0.0
    %9391 = vmatpush1.xpose.msra.mxu0 0.0
    %9392 = vmatprep.subr.mxu0 0.0
    %9393 = vmatpush1.xpose.msra.mxu0 0.0
    %9394 = vmatprep.subr.mxu0 0.0
    %9395 = vmatpush1.xpose.msra.mxu0 0.0
    %9396 = vmatprep.subr.mxu0 0.0
    %9397 = vmatpush1.xpose.msra.mxu0 0.0
    %9398 = vmatprep.subr.mxu0 0.0
    %9399 = vmatpush1.xpose.msra.mxu0 0.0
    %9400 = vmatprep.subr.mxu0 0.0
    %9401 = vmatpush1.xpose.msra.mxu0 0.0
    %9402 = vmatprep.subr.mxu0 0.0
    %9403 = vmatpush1.xpose.msra.mxu0 0.0
    %9404 = vmatprep.subr.mxu0 0.0
    %9405 = vmatpush1.xpose.msra.mxu0 0.0
    %9406 = vmatprep.subr.mxu0 0.0
    %9407 = vmatpush1.xpose.msra.mxu0 0.0
    %9408 = vmatprep.subr.mxu0 0.0
    %9409 = vmatpush1.xpose.msra.mxu0 0.0
    %9410 = vmatprep.subr.mxu0 0.0
    %9411 = vmatpush1.xpose.msra.mxu0 0.0
    %9412 = vmatprep.subr.mxu0 0.0
    %9413 = vmatpush1.xpose.msra.mxu0 0.0
    %9414 = vmatprep.subr.mxu0 0.0
    %9415 = vmatpush1.xpose.msra.mxu0 0.0
    %9416 = vmatprep.subr.mxu0 0.0
    %9417 = vmatpush1.xpose.msra.mxu0 %v9384
    %9418 = vmatprep.subr.mxu0 0.0
    %9419 = vmatpush2.xpose.msra.mxu0 0.0
    %9420 = vmatprep.subr.mxu0 0.0
    %9421 = vmatpush2.xpose.msra.mxu0 0.0
    %9422 = vmatprep.subr.mxu0 0.0
    %9423 = vmatpush2.xpose.msra.mxu0 0.0
    %9424 = vmatprep.subr.mxu0 0.0
    %9425 = vmatpush2.xpose.msra.mxu0 0.0
    %9426 = vmatprep.subr.mxu0 0.0
    %9427 = vmatpush2.xpose.msra.mxu0 0.0
    %9428 = vmatprep.subr.mxu0 0.0
    %9429 = vmatpush2.xpose.msra.mxu0 0.0
    %9430 = vmatprep.subr.mxu0 0.0
    %9431 = vmatpush2.xpose.msra.mxu0 0.0
    %9432 = vmatprep.subr.mxu0 0.0
    %9433 = vmatpush2.xpose.msra.mxu0 0.0
    %9434 = vmatprep.subr.mxu0 0.0
    %9435 = vmatpush2.xpose.msra.mxu0 0.0
    %9436 = vmatprep.subr.mxu0 0.0
    %9437 = vmatpush2.xpose.msra.mxu0 0.0
    %9438 = vmatprep.subr.mxu0 0.0
    %9439 = vmatpush2.xpose.msra.mxu0 0.0
    %9440 = vmatprep.subr.mxu0 0.0
    %9441 = vmatpush2.xpose.msra.mxu0 0.0
    %9442 = vmatprep.subr.mxu0 0.0
    %9443 = vmatpush2.xpose.msra.mxu0 0.0
    %9444 = vmatprep.subr.mxu0 0.0
    %9445 = vmatpush2.xpose.msra.mxu0 0.0
    %9446 = vmatprep.subr.mxu0 0.0
    %9447 = vmatpush2.xpose.msra.mxu0 0.0
    %9448 = vmatprep.subr.mxu0 0.0
    %9449 = vmatpush2.xpose.msra.mxu0 0.0
    %9450 = vmatprep.mubr.f32.mxu0 0.0
    %9451 = vmatmul.mubr.f32.gmra.mxu0 %v9381
    %v9452 = vpop.f32.mrf.mxu0
    %v9453 = vadd.f32 0.0, %v9452
    %v9454 = vpop.f32.mrf.mxu0
    %9455 = vdwg.mxu0
    %v9457 = vsel %vm5668, %v9207, 0
    %v9460 = vsel %vm5668, %v9292, 0
    %9462 = vmatprep.subr.mxu0 0.0
    %9463 = vmatpush1.xpose.msra.mxu0 0.0
    %9464 = vmatprep.subr.mxu0 0.0
    %9465 = vmatpush1.xpose.msra.mxu0 0.0
    %9466 = vmatprep.subr.mxu0 0.0
    %9467 = vmatpush1.xpose.msra.mxu0 0.0
    %9468 = vmatprep.subr.mxu0 0.0
    %9469 = vmatpush1.xpose.msra.mxu0 0.0
    %9470 = vmatprep.subr.mxu0 0.0
    %9471 = vmatpush1.xpose.msra.mxu0 0.0
    %9472 = vmatprep.subr.mxu0 0.0
    %9473 = vmatpush1.xpose.msra.mxu0 0.0
    %9474 = vmatprep.subr.mxu0 0.0
    %9475 = vmatpush1.xpose.msra.mxu0 0.0
    %9476 = vmatprep.subr.mxu0 0.0
    %9477 = vmatpush1.xpose.msra.mxu0 0.0
    %9478 = vmatprep.subr.mxu0 0.0
    %9479 = vmatpush1.xpose.msra.mxu0 0.0
    %9480 = vmatprep.subr.mxu0 0.0
    %9481 = vmatpush1.xpose.msra.mxu0 0.0
    %9482 = vmatprep.subr.mxu0 0.0
    %9483 = vmatpush1.xpose.msra.mxu0 0.0
    %9484 = vmatprep.subr.mxu0 0.0
    %9485 = vmatpush1.xpose.msra.mxu0 0.0
    %9486 = vmatprep.subr.mxu0 0.0
    %9487 = vmatpush1.xpose.msra.mxu0 0.0
    %9488 = vmatprep.subr.mxu0 0.0
    %9489 = vmatpush1.xpose.msra.mxu0 0.0
    %9490 = vmatprep.subr.mxu0 0.0
    %9491 = vmatpush1.xpose.msra.mxu0 0.0
    %9492 = vmatprep.subr.mxu0 0.0
    %9493 = vmatpush1.xpose.msra.mxu0 %v9460
    %9494 = vmatprep.subr.mxu0 0.0
    %9495 = vmatpush2.xpose.msra.mxu0 0.0
    %9496 = vmatprep.subr.mxu0 0.0
    %9497 = vmatpush2.xpose.msra.mxu0 0.0
    %9498 = vmatprep.subr.mxu0 0.0
    %9499 = vmatpush2.xpose.msra.mxu0 0.0
    %9500 = vmatprep.subr.mxu0 0.0
    %9501 = vmatpush2.xpose.msra.mxu0 0.0
    %9502 = vmatprep.subr.mxu0 0.0
    %9503 = vmatpush2.xpose.msra.mxu0 0.0
    %9504 = vmatprep.subr.mxu0 0.0
    %9505 = vmatpush2.xpose.msra.mxu0 0.0
    %9506 = vmatprep.subr.mxu0 0.0
    %9507 = vmatpush2.xpose.msra.mxu0 0.0
    %9508 = vmatprep.subr.mxu0 0.0
    %9509 = vmatpush2.xpose.msra.mxu0 0.0
    %9510 = vmatprep.subr.mxu0 0.0
    %9511 = vmatpush2.xpose.msra.mxu0 0.0
    %9512 = vmatprep.subr.mxu0 0.0
    %9513 = vmatpush2.xpose.msra.mxu0 0.0
    %9514 = vmatprep.subr.mxu0 0.0
    %9515 = vmatpush2.xpose.msra.mxu0 0.0
    %9516 = vmatprep.subr.mxu0 0.0
    %9517 = vmatpush2.xpose.msra.mxu0 0.0
    %9518 = vmatprep.subr.mxu0 0.0
    %9519 = vmatpush2.xpose.msra.mxu0 0.0
    %9520 = vmatprep.subr.mxu0 0.0
    %9521 = vmatpush2.xpose.msra.mxu0 0.0
    %9522 = vmatprep.subr.mxu0 0.0
    %9523 = vmatpush2.xpose.msra.mxu0 0.0
    %9524 = vmatprep.subr.mxu0 0.0
    %9525 = vmatpush2.xpose.msra.mxu0 0.0
    %9526 = vmatprep.mubr.f32.mxu0 0.0
    %9527 = vmatmul.mubr.f32.gmra.mxu0 %v9457
    %v9528 = vpop.f32.mrf.mxu0
    %v9529 = vadd.f32 0.0, %v9528
    %v9530 = vpop.f32.mrf.mxu0
    %9531 = vdwg.mxu0
    %v9532 = vmul.f32 %v9453, 0.25
    %v9533 = vmul.f32 %v9529, 0.25
    %vm9534 = vcmask 64512
    %v9535 = vsel %vm9534, %v9532, -inf
    %9536 = vmax.xlane.f32.xlu0 %v9535
    %v9537 = vpop.xlane.xlu0 %9536
    %v9538 = vsel %vm9534, %v9533, -inf
    %9539 = vmax.xlane.f32.xlu0 %v9538
    %v9540 = vpop.xlane.xlu0 %9539
    %v9541 = vsub.f32 %v9532, %v9537
    %v9542 = vsub.f32 %v9533, %v9540
    %v9543 = vmul.f32 %v9541, 1.442695
    %v9544 = vpow.pop %v9543
    %v9545 = vmul.f32 %v9542, 1.442695
    %v9546 = vpow.pop %v9545
    %v9547 = vsel %vm9534, %v9544, 0.0
    %9548 = vadd.xlane.f32.xlu0 %v9547
    %v9549 = vpop.xlane.xlu0 %9548
    %v9550 = vsel %vm9534, %v9546, 0.0
    %9551 = vadd.xlane.f32.xlu0 %v9550
    %v9552 = vpop.xlane.xlu0 %9551
    %v9553 = vrcp.pop %v9549
    %v9554 = vrcp.pop %v9552
    %v9555 = vmul.f32 %v9544, %v9553
    %v9556 = vmul.f32 %v9546, %v9554
    %v9558 = vsel %vm9534, %v9555, 0
    %9560 = vmatprep.subr.mxu0 0.0
    %9561 = vmatpush1.msra.mxu0 0.0
    %9562 = vmatprep.subr.mxu0 0.0
    %9563 = vmatpush1.msra.mxu0 0.0
    %9564 = vmatprep.subr.mxu0 0.0
    %9565 = vmatpush1.msra.mxu0 0.0
    %9566 = vmatprep.subr.mxu0 0.0
    %9567 = vmatpush1.msra.mxu0 0.0
    %9568 = vmatprep.subr.mxu0 0.0
    %9569 = vmatpush1.msra.mxu0 0.0
    %9570 = vmatprep.subr.mxu0 0.0
    %9571 = vmatpush1.msra.mxu0 0.0
    %9572 = vmatprep.subr.mxu0 0.0
    %9573 = vmatpush1.msra.mxu0 0.0
    %9574 = vmatprep.subr.mxu0 0.0
    %9575 = vmatpush1.msra.mxu0 0.0
    %9576 = vmatprep.subr.mxu0 0.0
    %9577 = vmatpush1.msra.mxu0 0.0
    %9578 = vmatprep.subr.mxu0 0.0
    %9579 = vmatpush1.msra.mxu0 0.0
    %9580 = vmatprep.subr.mxu0 0.0
    %9581 = vmatpush1.msra.mxu0 0.0
    %9582 = vmatprep.subr.mxu0 0.0
    %9583 = vmatpush1.msra.mxu0 0.0
    %9584 = vmatprep.subr.mxu0 0.0
    %9585 = vmatpush1.msra.mxu0 0.0
    %9586 = vmatprep.subr.mxu0 0.0
    %9587 = vmatpush1.msra.mxu0 0.0
    %9588 = vmatprep.subr.mxu0 0.0
    %9589 = vmatpush1.msra.mxu0 0.0
    %9590 = vmatprep.subr.mxu0 0.0
    %9591 = vmatpush1.msra.mxu0 %v9372
    %9592 = vmatprep.subr.mxu0 0.0
    %9593 = vmatpush2.msra.mxu0 0.0
    %9594 = vmatprep.subr.mxu0 0.0
    %9595 = vmatpush2.msra.mxu0 0.0
    %9596 = vmatprep.subr.mxu0 0.0
    %9597 = vmatpush2.msra.mxu0 0.0
    %9598 = vmatprep.subr.mxu0 0.0
    %9599 = vmatpush2.msra.mxu0 0.0
    %9600 = vmatprep.subr.mxu0 0.0
    %9601 = vmatpush2.msra.mxu0 0.0
    %9602 = vmatprep.subr.mxu0 0.0
    %9603 = vmatpush2.msra.mxu0 0.0
    %9604 = vmatprep.subr.mxu0 0.0
    %9605 = vmatpush2.msra.mxu0 0.0
    %9606 = vmatprep.subr.mxu0 0.0
    %9607 = vmatpush2.msra.mxu0 0.0
    %9608 = vmatprep.subr.mxu0 0.0
    %9609 = vmatpush2.msra.mxu0 0.0
    %9610 = vmatprep.subr.mxu0 0.0
    %9611 = vmatpush2.msra.mxu0 0.0
    %9612 = vmatprep.subr.mxu0 0.0
    %9613 = vmatpush2.msra.mxu0 0.0
    %9614 = vmatprep.subr.mxu0 0.0
    %9615 = vmatpush2.msra.mxu0 0.0
    %9616 = vmatprep.subr.mxu0 0.0
    %9617 = vmatpush2.msra.mxu0 0.0
    %9618 = vmatprep.subr.mxu0 0.0
    %9619 = vmatpush2.msra.mxu0 0.0
    %9620 = vmatprep.subr.mxu0 0.0
    %9621 = vmatpush2.msra.mxu0 0.0
    %9622 = vmatprep.subr.mxu0 0.0
    %9623 = vmatpush2.msra.mxu0 0.0
    %9624 = vmatprep.mubr.f32.mxu0 0.0
    %9625 = vmatmul.mubr.f32.gmra.mxu0 %v9558
    %v9626 = vpop.f32.mrf.mxu0
    %v9627 = vadd.f32 0.0, %v9626
    %v9628 = vpop.f32.mrf.mxu0
    %9629 = vdwg.mxu0
    %v9631 = vsel %vm9534, %v9556, 0
    %9633 = vmatprep.subr.mxu0 0.0
    %9634 = vmatpush1.msra.mxu0 0.0
    %9635 = vmatprep.subr.mxu0 0.0
    %9636 = vmatpush1.msra.mxu0 0.0
    %9637 = vmatprep.subr.mxu0 0.0
    %9638 = vmatpush1.msra.mxu0 0.0
    %9639 = vmatprep.subr.mxu0 0.0
    %9640 = vmatpush1.msra.mxu0 0.0
    %9641 = vmatprep.subr.mxu0 0.0
    %9642 = vmatpush1.msra.mxu0 0.0
    %9643 = vmatprep.subr.mxu0 0.0
    %9644 = vmatpush1.msra.mxu0 0.0
    %9645 = vmatprep.subr.mxu0 0.0
    %9646 = vmatpush1.msra.mxu0 0.0
    %9647 = vmatprep.subr.mxu0 0.0
    %9648 = vmatpush1.msra.mxu0 0.0
    %9649 = vmatprep.subr.mxu0 0.0
    %9650 = vmatpush1.msra.mxu0 0.0
    %9651 = vmatprep.subr.mxu0 0.0
    %9652 = vmatpush1.msra.mxu0 0.0
    %9653 = vmatprep.subr.mxu0 0.0
    %9654 = vmatpush1.msra.mxu0 0.0
    %9655 = vmatprep.subr.mxu0 0.0
    %9656 = vmatpush1.msra.mxu0 0.0
    %9657 = vmatprep.subr.mxu0 0.0
    %9658 = vmatpush1.msra.mxu0 0.0
    %9659 = vmatprep.subr.mxu0 0.0
    %9660 = vmatpush1.msra.mxu0 0.0
    %9661 = vmatprep.subr.mxu0 0.0
    %9662 = vmatpush1.msra.mxu0 0.0
    %9663 = vmatprep.subr.mxu0 0.0
    %9664 = vmatpush1.msra.mxu0 %v9377
    %9665 = vmatprep.subr.mxu0 0.0
    %9666 = vmatpush2.msra.mxu0 0.0
    %9667 = vmatprep.subr.mxu0 0.0
    %9668 = vmatpush2.msra.mxu0 0.0
    %9669 = vmatprep.subr.mxu0 0.0
    %9670 = vmatpush2.msra.mxu0 0.0
    %9671 = vmatprep.subr.mxu0 0.0
    %9672 = vmatpush2.msra.mxu0 0.0
    %9673 = vmatprep.subr.mxu0 0.0
    %9674 = vmatpush2.msra.mxu0 0.0
    %9675 = vmatprep.subr.mxu0 0.0
    %9676 = vmatpush2.msra.mxu0 0.0
    %9677 = vmatprep.subr.mxu0 0.0
    %9678 = vmatpush2.msra.mxu0 0.0
    %9679 = vmatprep.subr.mxu0 0.0
    %9680 = vmatpush2.msra.mxu0 0.0
    %9681 = vmatprep.subr.mxu0 0.0
    %9682 = vmatpush2.msra.mxu0 0.0
    %9683 = vmatprep.subr.mxu0 0.0
    %9684 = vmatpush2.msra.mxu0 0.0
    %9685 = vmatprep.subr.mxu0 0.0
    %9686 = vmatpush2.msra.mxu0 0.0
    %9687 = vmatprep.subr.mxu0 0.0
    %9688 = vmatpush2.msra.mxu0 0.0
    %9689 = vmatprep.subr.mxu0 0.0
    %9690 = vmatpush2.msra.mxu0 0.0
    %9691 = vmatprep.subr.mxu0 0.0
    %9692 = vmatpush2.msra.mxu0 0.0
    %9693 = vmatprep.subr.mxu0 0.0
    %9694 = vmatpush2.msra.mxu0 0.0
    %9695 = vmatprep.subr.mxu0 0.0
    %9696 = vmatpush2.msra.mxu0 0.0
    %9697 = vmatprep.mubr.f32.mxu0 0.0
    %9698 = vmatmul.mubr.f32.gmra.mxu0 %v9631
    %v9699 = vpop.f32.mrf.mxu0
    %v9700 = vadd.f32 0.0, %v9699
    %v9701 = vpop.f32.mrf.mxu0
    %9702 = vdwg.mxu0
    %9703 = vrot.lane.b32.xlu0 %v9202, 112
    %v9704 = vpop.permute.xlu0 %9703
    %9705 = vrot.lane.b32.xlu0 %v9287, 112
    %v9706 = vpop.permute.xlu0 %9705
    %v9707 = vsel %vm5668, %v9704, 0
    %v9709 = vsel %vm5668, %v9706, 0
    %9711 = vmatprep.subr.mxu0 0.0
    %9712 = vmatpush1.xpose.msra.mxu0 0.0
    %9713 = vmatprep.subr.mxu0 0.0
    %9714 = vmatpush1.xpose.msra.mxu0 0.0
    %9715 = vmatprep.subr.mxu0 0.0
    %9716 = vmatpush1.xpose.msra.mxu0 0.0
    %9717 = vmatprep.subr.mxu0 0.0
    %9718 = vmatpush1.xpose.msra.mxu0 0.0
    %9719 = vmatprep.subr.mxu0 0.0
    %9720 = vmatpush1.xpose.msra.mxu0 0.0
    %9721 = vmatprep.subr.mxu0 0.0
    %9722 = vmatpush1.xpose.msra.mxu0 0.0
    %9723 = vmatprep.subr.mxu0 0.0
    %9724 = vmatpush1.xpose.msra.mxu0 0.0
    %9725 = vmatprep.subr.mxu0 0.0
    %9726 = vmatpush1.xpose.msra.mxu0 0.0
    %9727 = vmatprep.subr.mxu0 0.0
    %9728 = vmatpush1.xpose.msra.mxu0 0.0
    %9729 = vmatprep.subr.mxu0 0.0
    %9730 = vmatpush1.xpose.msra.mxu0 0.0
    %9731 = vmatprep.subr.mxu0 0.0
    %9732 = vmatpush1.xpose.msra.mxu0 0.0
    %9733 = vmatprep.subr.mxu0 0.0
    %9734 = vmatpush1.xpose.msra.mxu0 0.0
    %9735 = vmatprep.subr.mxu0 0.0
    %9736 = vmatpush1.xpose.msra.mxu0 0.0
    %9737 = vmatprep.subr.mxu0 0.0
    %9738 = vmatpush1.xpose.msra.mxu0 0.0
    %9739 = vmatprep.subr.mxu0 0.0
    %9740 = vmatpush1.xpose.msra.mxu0 0.0
    %9741 = vmatprep.subr.mxu0 0.0
    %9742 = vmatpush1.xpose.msra.mxu0 %v9709
    %9743 = vmatprep.subr.mxu0 0.0
    %9744 = vmatpush2.xpose.msra.mxu0 0.0
    %9745 = vmatprep.subr.mxu0 0.0
    %9746 = vmatpush2.xpose.msra.mxu0 0.0
    %9747 = vmatprep.subr.mxu0 0.0
    %9748 = vmatpush2.xpose.msra.mxu0 0.0
    %9749 = vmatprep.subr.mxu0 0.0
    %9750 = vmatpush2.xpose.msra.mxu0 0.0
    %9751 = vmatprep.subr.mxu0 0.0
    %9752 = vmatpush2.xpose.msra.mxu0 0.0
    %9753 = vmatprep.subr.mxu0 0.0
    %9754 = vmatpush2.xpose.msra.mxu0 0.0
    %9755 = vmatprep.subr.mxu0 0.0
    %9756 = vmatpush2.xpose.msra.mxu0 0.0
    %9757 = vmatprep.subr.mxu0 0.0
    %9758 = vmatpush2.xpose.msra.mxu0 0.0
    %9759 = vmatprep.subr.mxu0 0.0
    %9760 = vmatpush2.xpose.msra.mxu0 0.0
    %9761 = vmatprep.subr.mxu0 0.0
    %9762 = vmatpush2.xpose.msra.mxu0 0.0
    %9763 = vmatprep.subr.mxu0 0.0
    %9764 = vmatpush2.xpose.msra.mxu0 0.0
    %9765 = vmatprep.subr.mxu0 0.0
    %9766 = vmatpush2.xpose.msra.mxu0 0.0
    %9767 = vmatprep.subr.mxu0 0.0
    %9768 = vmatpush2.xpose.msra.mxu0 0.0
    %9769 = vmatprep.subr.mxu0 0.0
    %9770 = vmatpush2.xpose.msra.mxu0 0.0
    %9771 = vmatprep.subr.mxu0 0.0
    %9772 = vmatpush2.xpose.msra.mxu0 0.0
    %9773 = vmatprep.subr.mxu0 0.0
    %9774 = vmatpush2.xpose.msra.mxu0 0.0
    %9775 = vmatprep.mubr.f32.mxu0 0.0
    %9776 = vmatmul.mubr.f32.gmra.mxu0 %v9707
    %v9777 = vpop.f32.mrf.mxu0
    %v9778 = vadd.f32 0.0, %v9777
    %v9779 = vpop.f32.mrf.mxu0
    %9780 = vdwg.mxu0
    %9781 = vrot.lane.b32.xlu0 %v9207, 112
    %v9782 = vpop.permute.xlu0 %9781
    %9783 = vrot.lane.b32.xlu0 %v9292, 112
    %v9784 = vpop.permute.xlu0 %9783
    %v9785 = vsel %vm5668, %v9782, 0
    %v9787 = vsel %vm5668, %v9784, 0
    %9789 = vmatprep.subr.mxu0 0.0
    %9790 = vmatpush1.xpose.msra.mxu0 0.0
    %9791 = vmatprep.subr.mxu0 0.0
    %9792 = vmatpush1.xpose.msra.mxu0 0.0
    %9793 = vmatprep.subr.mxu0 0.0
    %9794 = vmatpush1.xpose.msra.mxu0 0.0
    %9795 = vmatprep.subr.mxu0 0.0
    %9796 = vmatpush1.xpose.msra.mxu0 0.0
    %9797 = vmatprep.subr.mxu0 0.0
    %9798 = vmatpush1.xpose.msra.mxu0 0.0
    %9799 = vmatprep.subr.mxu0 0.0
    %9800 = vmatpush1.xpose.msra.mxu0 0.0
    %9801 = vmatprep.subr.mxu0 0.0
    %9802 = vmatpush1.xpose.msra.mxu0 0.0
    %9803 = vmatprep.subr.mxu0 0.0
    %9804 = vmatpush1.xpose.msra.mxu0 0.0
    %9805 = vmatprep.subr.mxu0 0.0
    %9806 = vmatpush1.xpose.msra.mxu0 0.0
    %9807 = vmatprep.subr.mxu0 0.0
    %9808 = vmatpush1.xpose.msra.mxu0 0.0
    %9809 = vmatprep.subr.mxu0 0.0
    %9810 = vmatpush1.xpose.msra.mxu0 0.0
    %9811 = vmatprep.subr.mxu0 0.0
    %9812 = vmatpush1.xpose.msra.mxu0 0.0
    %9813 = vmatprep.subr.mxu0 0.0
    %9814 = vmatpush1.xpose.msra.mxu0 0.0
    %9815 = vmatprep.subr.mxu0 0.0
    %9816 = vmatpush1.xpose.msra.mxu0 0.0
    %9817 = vmatprep.subr.mxu0 0.0
    %9818 = vmatpush1.xpose.msra.mxu0 0.0
    %9819 = vmatprep.subr.mxu0 0.0
    %9820 = vmatpush1.xpose.msra.mxu0 %v9787
    %9821 = vmatprep.subr.mxu0 0.0
    %9822 = vmatpush2.xpose.msra.mxu0 0.0
    %9823 = vmatprep.subr.mxu0 0.0
    %9824 = vmatpush2.xpose.msra.mxu0 0.0
    %9825 = vmatprep.subr.mxu0 0.0
    %9826 = vmatpush2.xpose.msra.mxu0 0.0
    %9827 = vmatprep.subr.mxu0 0.0
    %9828 = vmatpush2.xpose.msra.mxu0 0.0
    %9829 = vmatprep.subr.mxu0 0.0
    %9830 = vmatpush2.xpose.msra.mxu0 0.0
    %9831 = vmatprep.subr.mxu0 0.0
    %9832 = vmatpush2.xpose.msra.mxu0 0.0
    %9833 = vmatprep.subr.mxu0 0.0
    %9834 = vmatpush2.xpose.msra.mxu0 0.0
    %9835 = vmatprep.subr.mxu0 0.0
    %9836 = vmatpush2.xpose.msra.mxu0 0.0
    %9837 = vmatprep.subr.mxu0 0.0
    %9838 = vmatpush2.xpose.msra.mxu0 0.0
    %9839 = vmatprep.subr.mxu0 0.0
    %9840 = vmatpush2.xpose.msra.mxu0 0.0
    %9841 = vmatprep.subr.mxu0 0.0
    %9842 = vmatpush2.xpose.msra.mxu0 0.0
    %9843 = vmatprep.subr.mxu0 0.0
    %9844 = vmatpush2.xpose.msra.mxu0 0.0
    %9845 = vmatprep.subr.mxu0 0.0
    %9846 = vmatpush2.xpose.msra.mxu0 0.0
    %9847 = vmatprep.subr.mxu0 0.0
    %9848 = vmatpush2.xpose.msra.mxu0 0.0
    %9849 = vmatprep.subr.mxu0 0.0
    %9850 = vmatpush2.xpose.msra.mxu0 0.0
    %9851 = vmatprep.subr.mxu0 0.0
    %9852 = vmatpush2.xpose.msra.mxu0 0.0
    %9853 = vmatprep.mubr.f32.mxu0 0.0
    %9854 = vmatmul.mubr.f32.gmra.mxu0 %v9785
    %v9855 = vpop.f32.mrf.mxu0
    %v9856 = vadd.f32 0.0, %v9855
    %v9857 = vpop.f32.mrf.mxu0
    %9858 = vdwg.mxu0
    %v9859 = vmul.f32 %v9778, 0.25
    %v9860 = vmul.f32 %v9856, 0.25
    %v9861 = vsel %vm9534, %v9859, -inf
    %9862 = vmax.xlane.f32.xlu0 %v9861
    %v9863 = vpop.xlane.xlu0 %9862
    %v9864 = vsel %vm9534, %v9860, -inf
    %9865 = vmax.xlane.f32.xlu0 %v9864
    %v9866 = vpop.xlane.xlu0 %9865
    %v9867 = vsub.f32 %v9859, %v9863
    %v9868 = vsub.f32 %v9860, %v9866
    %v9869 = vmul.f32 %v9867, 1.442695
    %v9870 = vpow.pop %v9869
    %v9871 = vmul.f32 %v9868, 1.442695
    %v9872 = vpow.pop %v9871
    %v9873 = vsel %vm9534, %v9870, 0.0
    %9874 = vadd.xlane.f32.xlu0 %v9873
    %v9875 = vpop.xlane.xlu0 %9874
    %v9876 = vsel %vm9534, %v9872, 0.0
    %9877 = vadd.xlane.f32.xlu0 %v9876
    %v9878 = vpop.xlane.xlu0 %9877
    %v9879 = vrcp.pop %v9875
    %v9880 = vrcp.pop %v9878
    %v9881 = vmul.f32 %v9870, %v9879
    %v9882 = vmul.f32 %v9872, %v9880
    %9884 = vrot.lane.b32.xlu0 %v9372, 112
    %v9885 = vpop.permute.xlu0 %9884
    %v9888 = vsel %vm9534, %v9881, 0
    %9890 = vmatprep.subr.mxu0 0.0
    %9891 = vmatpush1.msra.mxu0 0.0
    %9892 = vmatprep.subr.mxu0 0.0
    %9893 = vmatpush1.msra.mxu0 0.0
    %9894 = vmatprep.subr.mxu0 0.0
    %9895 = vmatpush1.msra.mxu0 0.0
    %9896 = vmatprep.subr.mxu0 0.0
    %9897 = vmatpush1.msra.mxu0 0.0
    %9898 = vmatprep.subr.mxu0 0.0
    %9899 = vmatpush1.msra.mxu0 0.0
    %9900 = vmatprep.subr.mxu0 0.0
    %9901 = vmatpush1.msra.mxu0 0.0
    %9902 = vmatprep.subr.mxu0 0.0
    %9903 = vmatpush1.msra.mxu0 0.0
    %9904 = vmatprep.subr.mxu0 0.0
    %9905 = vmatpush1.msra.mxu0 0.0
    %9906 = vmatprep.subr.mxu0 0.0
    %9907 = vmatpush1.msra.mxu0 0.0
    %9908 = vmatprep.subr.mxu0 0.0
    %9909 = vmatpush1.msra.mxu0 0.0
    %9910 = vmatprep.subr.mxu0 0.0
    %9911 = vmatpush1.msra.mxu0 0.0
    %9912 = vmatprep.subr.mxu0 0.0
    %9913 = vmatpush1.msra.mxu0 0.0
    %9914 = vmatprep.subr.mxu0 0.0
    %9915 = vmatpush1.msra.mxu0 0.0
    %9916 = vmatprep.subr.mxu0 0.0
    %9917 = vmatpush1.msra.mxu0 0.0
    %9918 = vmatprep.subr.mxu0 0.0
    %9919 = vmatpush1.msra.mxu0 0.0
    %9920 = vmatprep.subr.mxu0 0.0
    %9921 = vmatpush1.msra.mxu0 %v9885
    %9922 = vmatprep.subr.mxu0 0.0
    %9923 = vmatpush2.msra.mxu0 0.0
    %9924 = vmatprep.subr.mxu0 0.0
    %9925 = vmatpush2.msra.mxu0 0.0
    %9926 = vmatprep.subr.mxu0 0.0
    %9927 = vmatpush2.msra.mxu0 0.0
    %9928 = vmatprep.subr.mxu0 0.0
    %9929 = vmatpush2.msra.mxu0 0.0
    %9930 = vmatprep.subr.mxu0 0.0
    %9931 = vmatpush2.msra.mxu0 0.0
    %9932 = vmatprep.subr.mxu0 0.0
    %9933 = vmatpush2.msra.mxu0 0.0
    %9934 = vmatprep.subr.mxu0 0.0
    %9935 = vmatpush2.msra.mxu0 0.0
    %9936 = vmatprep.subr.mxu0 0.0
    %9937 = vmatpush2.msra.mxu0 0.0
    %9938 = vmatprep.subr.mxu0 0.0
    %9939 = vmatpush2.msra.mxu0 0.0
    %9940 = vmatprep.subr.mxu0 0.0
    %9941 = vmatpush2.msra.mxu0 0.0
    %9942 = vmatprep.subr.mxu0 0.0
    %9943 = vmatpush2.msra.mxu0 0.0
    %9944 = vmatprep.subr.mxu0 0.0
    %9945 = vmatpush2.msra.mxu0 0.0
    %9946 = vmatprep.subr.mxu0 0.0
    %9947 = vmatpush2.msra.mxu0 0.0
    %9948 = vmatprep.subr.mxu0 0.0
    %9949 = vmatpush2.msra.mxu0 0.0
    %9950 = vmatprep.subr.mxu0 0.0
    %9951 = vmatpush2.msra.mxu0 0.0
    %9952 = vmatprep.subr.mxu0 0.0
    %9953 = vmatpush2.msra.mxu0 0.0
    %9954 = vmatprep.mubr.f32.mxu0 0.0
    %9955 = vmatmul.mubr.f32.gmra.mxu0 %v9888
    %v9956 = vpop.f32.mrf.mxu0
    %v9957 = vadd.f32 0.0, %v9956
    %v9958 = vpop.f32.mrf.mxu0
    %9959 = vdwg.mxu0
    %9961 = vrot.lane.b32.xlu0 %v9377, 112
    %v9962 = vpop.permute.xlu0 %9961
    %v9965 = vsel %vm9534, %v9882, 0
    %9967 = vmatprep.subr.mxu0 0.0
    %9968 = vmatpush1.msra.mxu0 0.0
    %9969 = vmatprep.subr.mxu0 0.0
    %9970 = vmatpush1.msra.mxu0 0.0
    %9971 = vmatprep.subr.mxu0 0.0
    %9972 = vmatpush1.msra.mxu0 0.0
    %9973 = vmatprep.subr.mxu0 0.0
    %9974 = vmatpush1.msra.mxu0 0.0
    %9975 = vmatprep.subr.mxu0 0.0
    %9976 = vmatpush1.msra.mxu0 0.0
    %9977 = vmatprep.subr.mxu0 0.0
    %9978 = vmatpush1.msra.mxu0 0.0
    %9979 = vmatprep.subr.mxu0 0.0
    %9980 = vmatpush1.msra.mxu0 0.0
    %9981 = vmatprep.subr.mxu0 0.0
    %9982 = vmatpush1.msra.mxu0 0.0
    %9983 = vmatprep.subr.mxu0 0.0
    %9984 = vmatpush1.msra.mxu0 0.0
    %9985 = vmatprep.subr.mxu0 0.0
    %9986 = vmatpush1.msra.mxu0 0.0
    %9987 = vmatprep.subr.mxu0 0.0
    %9988 = vmatpush1.msra.mxu0 0.0
    %9989 = vmatprep.subr.mxu0 0.0
    %9990 = vmatpush1.msra.mxu0 0.0
    %9991 = vmatprep.subr.mxu0 0.0
    %9992 = vmatpush1.msra.mxu0 0.0
    %9993 = vmatprep.subr.mxu0 0.0
    %9994 = vmatpush1.msra.mxu0 0.0
    %9995 = vmatprep.subr.mxu0 0.0
    %9996 = vmatpush1.msra.mxu0 0.0
    %9997 = vmatprep.subr.mxu0 0.0
    %9998 = vmatpush1.msra.mxu0 %v9962
    %9999 = vmatprep.subr.mxu0 0.0
    %10000 = vmatpush2.msra.mxu0 0.0
    %10001 = vmatprep.subr.mxu0 0.0
    %10002 = vmatpush2.msra.mxu0 0.0
    %10003 = vmatprep.subr.mxu0 0.0
    %10004 = vmatpush2.msra.mxu0 0.0
    %10005 = vmatprep.subr.mxu0 0.0
    %10006 = vmatpush2.msra.mxu0 0.0
    %10007 = vmatprep.subr.mxu0 0.0
    %10008 = vmatpush2.msra.mxu0 0.0
    %10009 = vmatprep.subr.mxu0 0.0
    %10010 = vmatpush2.msra.mxu0 0.0
    %10011 = vmatprep.subr.mxu0 0.0
    %10012 = vmatpush2.msra.mxu0 0.0
    %10013 = vmatprep.subr.mxu0 0.0
    %10014 = vmatpush2.msra.mxu0 0.0
    %10015 = vmatprep.subr.mxu0 0.0
    %10016 = vmatpush2.msra.mxu0 0.0
    %10017 = vmatprep.subr.mxu0 0.0
    %10018 = vmatpush2.msra.mxu0 0.0
    %10019 = vmatprep.subr.mxu0 0.0
    %10020 = vmatpush2.msra.mxu0 0.0
    %10021 = vmatprep.subr.mxu0 0.0
    %10022 = vmatpush2.msra.mxu0 0.0
    %10023 = vmatprep.subr.mxu0 0.0
    %10024 = vmatpush2.msra.mxu0 0.0
    %10025 = vmatprep.subr.mxu0 0.0
    %10026 = vmatpush2.msra.mxu0 0.0
    %10027 = vmatprep.subr.mxu0 0.0
    %10028 = vmatpush2.msra.mxu0 0.0
    %10029 = vmatprep.subr.mxu0 0.0
    %10030 = vmatpush2.msra.mxu0 0.0
    %10031 = vmatprep.mubr.f32.mxu0 0.0
    %10032 = vmatmul.mubr.f32.gmra.mxu0 %v9965
    %v10033 = vpop.f32.mrf.mxu0
    %v10034 = vadd.f32 0.0, %v10033
    %v10035 = vpop.f32.mrf.mxu0
    %10036 = vdwg.mxu0
    %10039 = vrot.lane.b32.xlu0 %v9957, 16
    %v10040 = vpop.permute.xlu0 %10039
    %10041 = vrot.lane.b32.xlu0 %v10034, 16
    %v10042 = vpop.permute.xlu0 %10041
    %v10045 = vsel %vm5668, %v9627, %v10040
    %v10046 = vsel %vm5668, %v9700, %v10042
    %s10047 = scalar_lea.vmem %s9, 96
    %v10048 = vld [vmem:[%s10047] sm:$0xff]
    %v10049 = vld [vmem:[%s10047 + $0x8] sm:$0xff]
    %v10050 = vld [vmem:[%s10047 + $0x10] sm:$0xff]
    %v10051 = vld [vmem:[%s10047 + $0x18] sm:$0xff]
    %v10052 = vld [vmem:[%s14 + $0x8] sm:$0x1]
    %v10053 = vlaneseq
    %v10054 = vshrl.u32 %v10053, 7
    %v10055 = vsub.s32 0, %v10054
    %v10056 = vrot.slane %v10052, %v10055
    %v10058 = vsel %vm2884, %v10045, 0
    %v10061 = vsel %vm2884, %v10046, 0
    %10063 = vmatprep.subr.mxu0 0.0
    %10064 = vmatpush1.msra.mxu0 0.0
    %10065 = vmatprep.subr.mxu0 0.0
    %10066 = vmatpush1.msra.mxu0 0.0
    %10067 = vmatprep.subr.mxu0 0.0
    %10068 = vmatpush1.msra.mxu0 0.0
    %10069 = vmatprep.subr.mxu0 0.0
    %10070 = vmatpush1.msra.mxu0 0.0
    %10071 = vmatprep.subr.mxu0 0.0
    %10072 = vmatpush1.msra.mxu0 0.0
    %10073 = vmatprep.subr.mxu0 0.0
    %10074 = vmatpush1.msra.mxu0 0.0
    %10075 = vmatprep.subr.mxu0 0.0
    %10076 = vmatpush1.msra.mxu0 0.0
    %10077 = vmatprep.subr.mxu0 0.0
    %10078 = vmatpush1.msra.mxu0 0.0
    %10079 = vmatprep.subr.mxu0 0.0
    %10080 = vmatpush1.msra.mxu0 0.0
    %10081 = vmatprep.subr.mxu0 0.0
    %10082 = vmatpush1.msra.mxu0 0.0
    %10083 = vmatprep.subr.mxu0 0.0
    %10084 = vmatpush1.msra.mxu0 0.0
    %10085 = vmatprep.subr.mxu0 0.0
    %10086 = vmatpush1.msra.mxu0 0.0
    %10087 = vmatprep.subr.mxu0 0.0
    %10088 = vmatpush1.msra.mxu0 %v10051
    %10089 = vmatprep.subr.mxu0 0.0
    %10090 = vmatpush1.msra.mxu0 %v10050
    %10091 = vmatprep.subr.mxu0 0.0
    %10092 = vmatpush1.msra.mxu0 %v10049
    %10093 = vmatprep.subr.mxu0 0.0
    %10094 = vmatpush1.msra.mxu0 %v10048
    %10095 = vmatprep.subr.mxu0 0.0
    %10096 = vmatpush2.msra.mxu0 0.0
    %10097 = vmatprep.subr.mxu0 0.0
    %10098 = vmatpush2.msra.mxu0 0.0
    %10099 = vmatprep.subr.mxu0 0.0
    %10100 = vmatpush2.msra.mxu0 0.0
    %10101 = vmatprep.subr.mxu0 0.0
    %10102 = vmatpush2.msra.mxu0 0.0
    %10103 = vmatprep.subr.mxu0 0.0
    %10104 = vmatpush2.msra.mxu0 0.0
    %10105 = vmatprep.subr.mxu0 0.0
    %10106 = vmatpush2.msra.mxu0 0.0
    %10107 = vmatprep.subr.mxu0 0.0
    %10108 = vmatpush2.msra.mxu0 0.0
    %10109 = vmatprep.subr.mxu0 0.0
    %10110 = vmatpush2.msra.mxu0 0.0
    %10111 = vmatprep.subr.mxu0 0.0
    %10112 = vmatpush2.msra.mxu0 0.0
    %10113 = vmatprep.subr.mxu0 0.0
    %10114 = vmatpush2.msra.mxu0 0.0
    %10115 = vmatprep.subr.mxu0 0.0
    %10116 = vmatpush2.msra.mxu0 0.0
    %10117 = vmatprep.subr.mxu0 0.0
    %10118 = vmatpush2.msra.mxu0 0.0
    %10119 = vmatprep.subr.mxu0 0.0
    %10120 = vmatpush2.msra.mxu0 0.0
    %10121 = vmatprep.subr.mxu0 0.0
    %10122 = vmatpush2.msra.mxu0 0.0
    %10123 = vmatprep.subr.mxu0 0.0
    %10124 = vmatpush2.msra.mxu0 0.0
    %10125 = vmatprep.subr.mxu0 0.0
    %10126 = vmatpush2.msra.mxu0 0.0
    %10127 = vmatprep.mubr.f32.mxu0 0.0
    %10128 = vmatmul.mubr.f32.gmra.mxu0 %v10058
    %v10129 = vpop.f32.mrf.mxu0
    %v10130 = vadd.f32 %v10056, %v10129
    %v10131 = vpop.f32.mrf.mxu0
    %10132 = vmatprep.mubr.f32.mxu0 0.0
    %10133 = vmatmul.mubr.f32.gmra.mxu0 %v10061
    %v10134 = vpop.f32.mrf.mxu0
    %v10135 = vadd.f32 %v10056, %v10134
    %v10136 = vpop.f32.mrf.mxu0
    %10137 = vdwg.mxu0
    %v10138 = vadd.f32 %v9071, %v10130
    %v10139 = vadd.f32 %v9076, %v10135
    %v10140 = vld [vmem:[%s14 + $0x9] sm:$0x1]
    %v10141 = vld [vmem:[%s14 + $0xa] sm:$0x1]
    %v10142 = vsel %vm2884, %v10138, 0.0
    %10143 = vadd.xlane.f32.xlu0 %v10142
    %v10144 = vpop.xlane.xlu0 %10143
    %v10145 = vsel %vm2884, %v10139, 0.0
    %10146 = vadd.xlane.f32.xlu0 %v10145
    %v10147 = vpop.xlane.xlu0 %10146
    %v10148 = vmul.f32 %v10144, %v9087
    %v10149 = vmul.f32 %v10147, %v9087
    %v10150 = vsub.f32 %v10138, %v10148
    %v10151 = vsub.f32 %v10139, %v10149
    %v10152 = vmul.f32 %v10150, %v10150
    %v10153 = vmul.f32 %v10151, %v10151
    %v10154 = vsel %vm2884, %v10152, 0.0
    %10155 = vadd.xlane.f32.xlu0 %v10154
    %v10156 = vpop.xlane.xlu0 %10155
    %v10157 = vsel %vm2884, %v10153, 0.0
    %10158 = vadd.xlane.f32.xlu0 %v10157
    %v10159 = vpop.xlane.xlu0 %10158
    %v10160 = vmul.f32 %v10156, %v9087
    %v10161 = vmul.f32 %v10159, %v9087
    %v10162 = vadd.f32 %v10160, 1e-05
    %v10163 = vadd.f32 %v10161, 1e-05
    %v10164 = vrsqrt.pop %v10162
    %v10165 = vrsqrt.pop %v10163
    %v10166 = vmul.f32 %v10150, %v10164
    %v10167 = vmul.f32 %v10151, %v10165
    %v10168 = vlaneseq
    %v10169 = vshrl.u32 %v10168, 7
    %v10170 = vsub.s32 0, %v10169
    %v10171 = vrot.slane %v10140, %v10170
    %v10172 = vmul.f32 %v10166, %v10171
    %v10173 = vmul.f32 %v10167, %v10171
    %v10174 = vlaneseq
    %v10175 = vshrl.u32 %v10174, 7
    %v10176 = vsub.s32 0, %v10175
    %v10177 = vrot.slane %v10141, %v10176
    %v10178 = vadd.f32 %v10172, %v10177
    %v10179 = vadd.f32 %v10173, %v10177
    %v10180 = vld [vmem:[%s10] sm:$0xff]
    %v10181 = vld [vmem:[%s10 + $0x8] sm:$0xff]
    %v10182 = vld [vmem:[%s10 + $0x10] sm:$0xff]
    %v10183 = vld [vmem:[%s10 + $0x18] sm:$0xff]
    %v10184 = vld [vmem:[%s14 + $0xb] sm:$0x1]
    %v10185 = vlaneseq
    %v10186 = vshrl.u32 %v10185, 7
    %v10187 = vsub.s32 0, %v10186
    %v10188 = vrot.slane %v10184, %v10187
    %v10190 = vsel %vm2884, %v10178, 0
    %v10193 = vsel %vm2884, %v10179, 0
    %10195 = vmatprep.subr.mxu0 0.0
    %10196 = vmatpush1.msra.mxu0 0.0
    %10197 = vmatprep.subr.mxu0 0.0
    %10198 = vmatpush1.msra.mxu0 0.0
    %10199 = vmatprep.subr.mxu0 0.0
    %10200 = vmatpush1.msra.mxu0 0.0
    %10201 = vmatprep.subr.mxu0 0.0
    %10202 = vmatpush1.msra.mxu0 0.0
    %10203 = vmatprep.subr.mxu0 0.0
    %10204 = vmatpush1.msra.mxu0 0.0
    %10205 = vmatprep.subr.mxu0 0.0
    %10206 = vmatpush1.msra.mxu0 0.0
    %10207 = vmatprep.subr.mxu0 0.0
    %10208 = vmatpush1.msra.mxu0 0.0
    %10209 = vmatprep.subr.mxu0 0.0
    %10210 = vmatpush1.msra.mxu0 0.0
    %10211 = vmatprep.subr.mxu0 0.0
    %10212 = vmatpush1.msra.mxu0 0.0
    %10213 = vmatprep.subr.mxu0 0.0
    %10214 = vmatpush1.msra.mxu0 0.0
    %10215 = vmatprep.subr.mxu0 0.0
    %10216 = vmatpush1.msra.mxu0 0.0
    %10217 = vmatprep.subr.mxu0 0.0
    %10218 = vmatpush1.msra.mxu0 0.0
    %10219 = vmatprep.subr.mxu0 0.0
    %10220 = vmatpush1.msra.mxu0 %v10183
    %10221 = vmatprep.subr.mxu0 0.0
    %10222 = vmatpush1.msra.mxu0 %v10182
    %10223 = vmatprep.subr.mxu0 0.0
    %10224 = vmatpush1.msra.mxu0 %v10181
    %10225 = vmatprep.subr.mxu0 0.0
    %10226 = vmatpush1.msra.mxu0 %v10180
    %10227 = vmatprep.subr.mxu0 0.0
    %10228 = vmatpush2.msra.mxu0 0.0
    %10229 = vmatprep.subr.mxu0 0.0
    %10230 = vmatpush2.msra.mxu0 0.0
    %10231 = vmatprep.subr.mxu0 0.0
    %10232 = vmatpush2.msra.mxu0 0.0
    %10233 = vmatprep.subr.mxu0 0.0
    %10234 = vmatpush2.msra.mxu0 0.0
    %10235 = vmatprep.subr.mxu0 0.0
    %10236 = vmatpush2.msra.mxu0 0.0
    %10237 = vmatprep.subr.mxu0 0.0
    %10238 = vmatpush2.msra.mxu0 0.0
    %10239 = vmatprep.subr.mxu0 0.0
    %10240 = vmatpush2.msra.mxu0 0.0
    %10241 = vmatprep.subr.mxu0 0.0
    %10242 = vmatpush2.msra.mxu0 0.0
    %10243 = vmatprep.subr.mxu0 0.0
    %10244 = vmatpush2.msra.mxu0 0.0
    %10245 = vmatprep.subr.mxu0 0.0
    %10246 = vmatpush2.msra.mxu0 0.0
    %10247 = vmatprep.subr.mxu0 0.0
    %10248 = vmatpush2.msra.mxu0 0.0
    %10249 = vmatprep.subr.mxu0 0.0
    %10250 = vmatpush2.msra.mxu0 0.0
    %10251 = vmatprep.subr.mxu0 0.0
    %10252 = vmatpush2.msra.mxu0 0.0
    %10253 = vmatprep.subr.mxu0 0.0
    %10254 = vmatpush2.msra.mxu0 0.0
    %10255 = vmatprep.subr.mxu0 0.0
    %10256 = vmatpush2.msra.mxu0 0.0
    %10257 = vmatprep.subr.mxu0 0.0
    %10258 = vmatpush2.msra.mxu0 0.0
    %10259 = vmatprep.mubr.f32.mxu0 0.0
    %10260 = vmatmul.mubr.f32.gmra.mxu0 %v10190
    %v10261 = vpop.f32.mrf.mxu0
    %v10262 = vadd.f32 %v10188, %v10261
    %v10263 = vpop.f32.mrf.mxu0
    %10264 = vmatprep.mubr.f32.mxu0 0.0
    %10265 = vmatmul.mubr.f32.gmra.mxu0 %v10193
    %v10266 = vpop.f32.mrf.mxu0
    %v10267 = vadd.f32 %v10188, %v10266
    %v10268 = vpop.f32.mrf.mxu0
    %10269 = vdwg.mxu0
    %v10270 = vmax.f32 %v10262, 0.0
    %v10271 = vmax.f32 %v10267, 0.0
    %v10272 = vld [vmem:[%s11] sm:$0xff]
    %v10273 = vld [vmem:[%s11 + $0x8] sm:$0xff]
    %v10274 = vld [vmem:[%s11 + $0x10] sm:$0xff]
    %v10275 = vld [vmem:[%s11 + $0x18] sm:$0xff]
    %v10276 = vld [vmem:[%s11 + $0x20] sm:$0xff]
    %v10277 = vld [vmem:[%s11 + $0x28] sm:$0xff]
    %v10278 = vld [vmem:[%s11 + $0x30] sm:$0xff]
    %v10279 = vld [vmem:[%s11 + $0x38] sm:$0xff]
    %v10280 = vld [vmem:[%s11 + $0x40] sm:$0xff]
    %v10281 = vld [vmem:[%s11 + $0x48] sm:$0xff]
    %v10282 = vld [vmem:[%s11 + $0x50] sm:$0xff]
    %v10283 = vld [vmem:[%s11 + $0x58] sm:$0xff]
    %v10284 = vld [vmem:[%s11 + $0x60] sm:$0xff]
    %v10285 = vld [vmem:[%s11 + $0x68] sm:$0xff]
    %v10286 = vld [vmem:[%s11 + $0x70] sm:$0xff]
    %v10287 = vld [vmem:[%s11 + $0x78] sm:$0xff]
    %10288 = vmatprep.subr.mxu0 0.0
    %10289 = vmatpush1.msra.mxu0 %v10287
    %10290 = vmatprep.subr.mxu0 0.0
    %10291 = vmatpush1.msra.mxu0 %v10286
    %10292 = vmatprep.subr.mxu0 0.0
    %10293 = vmatpush1.msra.mxu0 %v10285
    %10294 = vmatprep.subr.mxu0 0.0
    %10295 = vmatpush1.msra.mxu0 %v10284
    %10296 = vmatprep.subr.mxu0 0.0
    %10297 = vmatpush1.msra.mxu0 %v10283
    %10298 = vmatprep.subr.mxu0 0.0
    %10299 = vmatpush1.msra.mxu0 %v10282
    %10300 = vmatprep.subr.mxu0 0.0
    %10301 = vmatpush1.msra.mxu0 %v10281
    %10302 = vmatprep.subr.mxu0 0.0
    %10303 = vmatpush1.msra.mxu0 %v10280
    %10304 = vmatprep.subr.mxu0 0.0
    %10305 = vmatpush1.msra.mxu0 %v10279
    %10306 = vmatprep.subr.mxu0 0.0
    %10307 = vmatpush1.msra.mxu0 %v10278
    %10308 = vmatprep.subr.mxu0 0.0
    %10309 = vmatpush1.msra.mxu0 %v10277
    %10310 = vmatprep.subr.mxu0 0.0
    %10311 = vmatpush1.msra.mxu0 %v10276
    %10312 = vmatprep.subr.mxu0 0.0
    %10313 = vmatpush1.msra.mxu0 %v10275
    %10314 = vmatprep.subr.mxu0 0.0
    %10315 = vmatpush1.msra.mxu0 %v10274
    %10316 = vmatprep.subr.mxu0 0.0
    %10317 = vmatpush1.msra.mxu0 %v10273
    %10318 = vmatprep.subr.mxu0 0.0
    %10319 = vmatpush1.msra.mxu0 %v10272
    %10320 = vmatprep.subr.mxu0 0.0
    %10321 = vmatpush2.msra.mxu0 0.0
    %10322 = vmatprep.subr.mxu0 0.0
    %10323 = vmatpush2.msra.mxu0 0.0
    %10324 = vmatprep.subr.mxu0 0.0
    %10325 = vmatpush2.msra.mxu0 0.0
    %10326 = vmatprep.subr.mxu0 0.0
    %10327 = vmatpush2.msra.mxu0 0.0
    %10328 = vmatprep.subr.mxu0 0.0
    %10329 = vmatpush2.msra.mxu0 0.0
    %10330 = vmatprep.subr.mxu0 0.0
    %10331 = vmatpush2.msra.mxu0 0.0
    %10332 = vmatprep.subr.mxu0 0.0
    %10333 = vmatpush2.msra.mxu0 0.0
    %10334 = vmatprep.subr.mxu0 0.0
    %10335 = vmatpush2.msra.mxu0 0.0
    %10336 = vmatprep.subr.mxu0 0.0
    %10337 = vmatpush2.msra.mxu0 0.0
    %10338 = vmatprep.subr.mxu0 0.0
    %10339 = vmatpush2.msra.mxu0 0.0
    %10340 = vmatprep.subr.mxu0 0.0
    %10341 = vmatpush2.msra.mxu0 0.0
    %10342 = vmatprep.subr.mxu0 0.0
    %10343 = vmatpush2.msra.mxu0 0.0
    %10344 = vmatprep.subr.mxu0 0.0
    %10345 = vmatpush2.msra.mxu0 0.0
    %10346 = vmatprep.subr.mxu0 0.0
    %10347 = vmatpush2.msra.mxu0 0.0
    %10348 = vmatprep.subr.mxu0 0.0
    %10349 = vmatpush2.msra.mxu0 0.0
    %10350 = vmatprep.subr.mxu0 0.0
    %10351 = vmatpush2.msra.mxu0 0.0
    %10352 = vmatprep.mubr.f32.mxu0 0.0
    %10353 = vmatmul.mubr.f32.gmra.mxu0 %v10270
    %v10354 = vpop.f32.mrf.mxu0
    %v10355 = vadd.f32 0.0, %v10354
    %v10356 = vpop.f32.mrf.mxu0
    %10357 = vmatprep.mubr.f32.mxu0 0.0
    %10358 = vmatmul.mubr.f32.gmra.mxu0 %v10271
    %v10359 = vpop.f32.mrf.mxu0
    %v10360 = vadd.f32 0.0, %v10359
    %v10361 = vpop.f32.mrf.mxu0
    %10362 = vdwg.mxu0
    %v10363 = vadd.f32 %v10138, %v10355
    %v10364 = vadd.f32 %v10139, %v10360
    %v10365 = vld [vmem:[%s14 + $0xc] sm:$0x1]
    %v10366 = vlaneseq
    %v10367 = vshrl.u32 %v10366, 7
    %v10368 = vsub.s32 0, %v10367
    %v10369 = vrot.slane %v10365, %v10368
    %v10370 = vadd.f32 %v10363, %v10369
    %v10371 = vadd.f32 %v10364, %v10369
    %v10372 = vld [vmem:[%s14 + $0xd] sm:$0x1]
    %v10373 = vld [vmem:[%s14 + $0xe] sm:$0x1]
    %v10374 = vsel %vm2884, %v10370, 0.0
    %10375 = vadd.xlane.f32.xlu0 %v10374
    %v10376 = vpop.xlane.xlu0 %10375
    %v10377 = vsel %vm2884, %v10371, 0.0
    %10378 = vadd.xlane.f32.xlu0 %v10377
    %v10379 = vpop.xlane.xlu0 %10378
    %v10380 = vmul.f32 %v10376, %v9087
    %v10381 = vmul.f32 %v10379, %v9087
    %v10382 = vsub.f32 %v10370, %v10380
    %v10383 = vsub.f32 %v10371, %v10381
    %v10384 = vmul.f32 %v10382, %v10382
    %v10385 = vmul.f32 %v10383, %v10383
    %v10386 = vsel %vm2884, %v10384, 0.0
    %10387 = vadd.xlane.f32.xlu0 %v10386
    %v10388 = vpop.xlane.xlu0 %10387
    %v10389 = vsel %vm2884, %v10385, 0.0
    %10390 = vadd.xlane.f32.xlu0 %v10389
    %v10391 = vpop.xlane.xlu0 %10390
    %v10392 = vmul.f32 %v10388, %v9087
    %v10393 = vmul.f32 %v10391, %v9087
    %v10394 = vadd.f32 %v10392, 1e-05
    %v10395 = vadd.f32 %v10393, 1e-05
    %v10396 = vrsqrt.pop %v10394
    %v10397 = vrsqrt.pop %v10395
    %v10398 = vmul.f32 %v10382, %v10396
    %v10399 = vmul.f32 %v10383, %v10397
    %v10400 = vlaneseq
    %v10401 = vshrl.u32 %v10400, 7
    %v10402 = vsub.s32 0, %v10401
    %v10403 = vrot.slane %v10372, %v10402
    %v10404 = vmul.f32 %v10398, %v10403
    %v10405 = vmul.f32 %v10399, %v10403
    %v10406 = vlaneseq
    %v10407 = vshrl.u32 %v10406, 7
    %v10408 = vsub.s32 0, %v10407
    %v10409 = vrot.slane %v10373, %v10408
    %v10410 = vadd.f32 %v10404, %v10409
    %v10411 = vadd.f32 %v10405, %v10409
    %v10412 = vld [vmem:[%s12] sm:$0xff]
    %v10413 = vld [vmem:[%s12 + $0x8] sm:$0xff]
    %v10414 = vld [vmem:[%s12 + $0x10] sm:$0xff]
    %v10415 = vld [vmem:[%s12 + $0x18] sm:$0xff]
    %v10416 = vld [vmem:[%s14 + $0xf] sm:$0x1]
    %v10417 = vlaneseq
    %v10418 = vshrl.u32 %v10417, 7
    %v10419 = vsub.s32 0, %v10418
    %v10420 = vrot.slane %v10416, %v10419
    %v10422 = vsel %vm2884, %v10410, 0
    %v10425 = vsel %vm2884, %v10411, 0
    %10427 = vmatprep.subr.mxu0 0.0
    %10428 = vmatpush1.msra.mxu0 0.0
    %10429 = vmatprep.subr.mxu0 0.0
    %10430 = vmatpush1.msra.mxu0 0.0
    %10431 = vmatprep.subr.mxu0 0.0
    %10432 = vmatpush1.msra.mxu0 0.0
    %10433 = vmatprep.subr.mxu0 0.0
    %10434 = vmatpush1.msra.mxu0 0.0
    %10435 = vmatprep.subr.mxu0 0.0
    %10436 = vmatpush1.msra.mxu0 0.0
    %10437 = vmatprep.subr.mxu0 0.0
    %10438 = vmatpush1.msra.mxu0 0.0
    %10439 = vmatprep.subr.mxu0 0.0
    %10440 = vmatpush1.msra.mxu0 0.0
    %10441 = vmatprep.subr.mxu0 0.0
    %10442 = vmatpush1.msra.mxu0 0.0
    %10443 = vmatprep.subr.mxu0 0.0
    %10444 = vmatpush1.msra.mxu0 0.0
    %10445 = vmatprep.subr.mxu0 0.0
    %10446 = vmatpush1.msra.mxu0 0.0
    %10447 = vmatprep.subr.mxu0 0.0
    %10448 = vmatpush1.msra.mxu0 0.0
    %10449 = vmatprep.subr.mxu0 0.0
    %10450 = vmatpush1.msra.mxu0 0.0
    %10451 = vmatprep.subr.mxu0 0.0
    %10452 = vmatpush1.msra.mxu0 %v10415
    %10453 = vmatprep.subr.mxu0 0.0
    %10454 = vmatpush1.msra.mxu0 %v10414
    %10455 = vmatprep.subr.mxu0 0.0
    %10456 = vmatpush1.msra.mxu0 %v10413
    %10457 = vmatprep.subr.mxu0 0.0
    %10458 = vmatpush1.msra.mxu0 %v10412
    %10459 = vmatprep.subr.mxu0 0.0
    %10460 = vmatpush2.msra.mxu0 0.0
    %10461 = vmatprep.subr.mxu0 0.0
    %10462 = vmatpush2.msra.mxu0 0.0
    %10463 = vmatprep.subr.mxu0 0.0
    %10464 = vmatpush2.msra.mxu0 0.0
    %10465 = vmatprep.subr.mxu0 0.0
    %10466 = vmatpush2.msra.mxu0 0.0
    %10467 = vmatprep.subr.mxu0 0.0
    %10468 = vmatpush2.msra.mxu0 0.0
    %10469 = vmatprep.subr.mxu0 0.0
    %10470 = vmatpush2.msra.mxu0 0.0
    %10471 = vmatprep.subr.mxu0 0.0
    %10472 = vmatpush2.msra.mxu0 0.0
    %10473 = vmatprep.subr.mxu0 0.0
    %10474 = vmatpush2.msra.mxu0 0.0
    %10475 = vmatprep.subr.mxu0 0.0
    %10476 = vmatpush2.msra.mxu0 0.0
    %10477 = vmatprep.subr.mxu0 0.0
    %10478 = vmatpush2.msra.mxu0 0.0
    %10479 = vmatprep.subr.mxu0 0.0
    %10480 = vmatpush2.msra.mxu0 0.0
    %10481 = vmatprep.subr.mxu0 0.0
    %10482 = vmatpush2.msra.mxu0 0.0
    %10483 = vmatprep.subr.mxu0 0.0
    %10484 = vmatpush2.msra.mxu0 0.0
    %10485 = vmatprep.subr.mxu0 0.0
    %10486 = vmatpush2.msra.mxu0 0.0
    %10487 = vmatprep.subr.mxu0 0.0
    %10488 = vmatpush2.msra.mxu0 0.0
    %10489 = vmatprep.subr.mxu0 0.0
    %10490 = vmatpush2.msra.mxu0 0.0
    %10491 = vmatprep.mubr.f32.mxu0 0.0
    %10492 = vmatmul.mubr.f32.gmra.mxu0 %v10422
    %v10493 = vpop.f32.mrf.mxu0
    %v10494 = vadd.f32 %v10420, %v10493
    %v10495 = vpop.f32.mrf.mxu0
    %10496 = vmatprep.mubr.f32.mxu0 0.0
    %10497 = vmatmul.mubr.f32.gmra.mxu0 %v10425
    %v10498 = vpop.f32.mrf.mxu0
    %v10499 = vadd.f32 %v10420, %v10498
    %v10500 = vpop.f32.mrf.mxu0
    %10501 = vdwg.mxu0
    %v10502 = vld [vmem:[%s13] sm:$0xff]
    %v10503 = vld [vmem:[%s13 + $0x8] sm:$0xff]
    %v10504 = vld [vmem:[%s13 + $0x10] sm:$0xff]
    %v10505 = vld [vmem:[%s13 + $0x18] sm:$0xff]
    %10506 = vxpose.xlu0.b32.start [1/16] %v10502, 128
    %10507 = vxpose.xlu0.b32.cont [2/16] %v10503, 128
    %10508 = vxpose.xlu0.b32.cont [3/16] %v10504, 128
    %10509 = vxpose.xlu0.b32.cont [4/16] %v10505, 128
    %10510 = vxpose.xlu0.b32.cont [5/16] 0.0, 128
    %10511 = vxpose.xlu0.b32.cont [6/16] 0.0, 128
    %10512 = vxpose.xlu0.b32.cont [7/16] 0.0, 128
    %10513 = vxpose.xlu0.b32.cont [8/16] 0.0, 128
    %10514 = vxpose.xlu0.b32.cont [9/16] 0.0, 128
    %10515 = vxpose.xlu0.b32.cont [10/16] 0.0, 128
    %10516 = vxpose.xlu0.b32.cont [11/16] 0.0, 128
    %10517 = vxpose.xlu0.b32.cont [12/16] 0.0, 128
    %10518 = vxpose.xlu0.b32.cont [13/16] 0.0, 128
    %10519 = vxpose.xlu0.b32.cont [14/16] 0.0, 128
    %10520 = vxpose.xlu0.b32.cont [15/16] 0.0, 128
    %10521 = vxpose.xlu0.b32.end [16/16] 0.0, 128
    %v10522 = vpop.trf.xlu0
    %v10523 = vpop.trf.xlu0
    %v10524 = vpop.trf.xlu0
    %v10525 = vpop.trf.xlu0
    %v10526 = vpop.trf.xlu0
    %v10527 = vpop.trf.xlu0
    %v10528 = vpop.trf.xlu0
    %v10529 = vpop.trf.xlu0
    %v10530 = vpop.trf.xlu0
    %v10531 = vpop.trf.xlu0
    %v10532 = vpop.trf.xlu0
    %v10533 = vpop.trf.xlu0
    %v10534 = vpop.trf.xlu0
    %v10535 = vpop.trf.xlu0
    %v10536 = vpop.trf.xlu0
    %v10537 = vpop.trf.xlu0
    %v10538 = vmul.f32 %v10494, %v10494
    %v10539 = vmul.f32 %v10499, %v10499
    %v10540 = vsel %vm5668, %v10538, 0.0
    %10541 = vadd.xlane.f32.xlu0 %v10540
    %v10542 = vpop.xlane.xlu0 %10541
    %v10543 = vsel %vm5668, %v10539, 0.0
    %10544 = vadd.xlane.f32.xlu0 %v10543
    %v10545 = vpop.xlane.xlu0 %10544
    %v10546 = vmul.f32 %v10522, %v10522
    %v10547 = vmul.f32 %v10523, %v10523
    %v10548 = vsel %vm2884, %v10546, 0.0
    %v10549 = vsel %vm2884, %v10547, 0.0
    %v10550 = vadd.f32 %v10548, %v10549
    %v10551 = vrot.slane %v10550, 4
    %v10552 = vadd.f32 %v10550, %v10551
    %v10553 = vrot.slane %v10552, 2
    %v10554 = vadd.f32 %v10552, %v10553
    %v10555 = vrot.slane %v10554, 1
    %v10556 = vadd.f32 %v10554, %v10555
    %v10558 = vsel %vm5668, %v10494, 0
    %v10561 = vsel %vm5668, %v10499, 0
    %10563 = vmatprep.subr.mxu0 0.0
    %10564 = vmatpush1.msra.mxu0 0.0
    %10565 = vmatprep.subr.mxu0 0.0
    %10566 = vmatpush1.msra.mxu0 0.0
    %10567 = vmatprep.subr.mxu0 0.0
    %10568 = vmatpush1.msra.mxu0 0.0
    %10569 = vmatprep.subr.mxu0 0.0
    %10570 = vmatpush1.msra.mxu0 0.0
    %10571 = vmatprep.subr.mxu0 0.0
    %10572 = vmatpush1.msra.mxu0 0.0
    %10573 = vmatprep.subr.mxu0 0.0
    %10574 = vmatpush1.msra.mxu0 0.0
    %10575 = vmatprep.subr.mxu0 0.0
    %10576 = vmatpush1.msra.mxu0 0.0
    %10577 = vmatprep.subr.mxu0 0.0
    %10578 = vmatpush1.msra.mxu0 0.0
    %10579 = vmatprep.subr.mxu0 0.0
    %10580 = vmatpush1.msra.mxu0 0.0
    %10581 = vmatprep.subr.mxu0 0.0
    %10582 = vmatpush1.msra.mxu0 0.0
    %10583 = vmatprep.subr.mxu0 0.0
    %10584 = vmatpush1.msra.mxu0 0.0
    %10585 = vmatprep.subr.mxu0 0.0
    %10586 = vmatpush1.msra.mxu0 0.0
    %10587 = vmatprep.subr.mxu0 0.0
    %10588 = vmatpush1.msra.mxu0 0.0
    %10589 = vmatprep.subr.mxu0 0.0
    %10590 = vmatpush1.msra.mxu0 0.0
    %10591 = vmatprep.subr.mxu0 0.0
    %10592 = vmatpush1.msra.mxu0 %v10523
    %10593 = vmatprep.subr.mxu0 0.0
    %10594 = vmatpush1.msra.mxu0 %v10522
    %10595 = vmatprep.subr.mxu0 0.0
    %10596 = vmatpush2.msra.mxu0 0.0
    %10597 = vmatprep.subr.mxu0 0.0
    %10598 = vmatpush2.msra.mxu0 0.0
    %10599 = vmatprep.subr.mxu0 0.0
    %10600 = vmatpush2.msra.mxu0 0.0
    %10601 = vmatprep.subr.mxu0 0.0
    %10602 = vmatpush2.msra.mxu0 0.0
    %10603 = vmatprep.subr.mxu0 0.0
    %10604 = vmatpush2.msra.mxu0 0.0
    %10605 = vmatprep.subr.mxu0 0.0
    %10606 = vmatpush2.msra.mxu0 0.0
    %10607 = vmatprep.subr.mxu0 0.0
    %10608 = vmatpush2.msra.mxu0 0.0
    %10609 = vmatprep.subr.mxu0 0.0
    %10610 = vmatpush2.msra.mxu0 0.0
    %10611 = vmatprep.subr.mxu0 0.0
    %10612 = vmatpush2.msra.mxu0 0.0
    %10613 = vmatprep.subr.mxu0 0.0
    %10614 = vmatpush2.msra.mxu0 0.0
    %10615 = vmatprep.subr.mxu0 0.0
    %10616 = vmatpush2.msra.mxu0 0.0
    %10617 = vmatprep.subr.mxu0 0.0
    %10618 = vmatpush2.msra.mxu0 0.0
    %10619 = vmatprep.subr.mxu0 0.0
    %10620 = vmatpush2.msra.mxu0 0.0
    %10621 = vmatprep.subr.mxu0 0.0
    %10622 = vmatpush2.msra.mxu0 0.0
    %10623 = vmatprep.subr.mxu0 0.0
    %10624 = vmatpush2.msra.mxu0 0.0
    %10625 = vmatprep.subr.mxu0 0.0
    %10626 = vmatpush2.msra.mxu0 0.0
    %10627 = vmatprep.mubr.f32.mxu0 0.0
    %10628 = vmatmul.mubr.f32.gmra.mxu0 %v10558
    %v10629 = vpop.f32.mrf.mxu0
    %v10630 = vadd.f32 0.0, %v10629
    %v10631 = vpop.f32.mrf.mxu0
    %10632 = vmatprep.mubr.f32.mxu0 0.0
    %10633 = vmatmul.mubr.f32.gmra.mxu0 %v10561
    %v10634 = vpop.f32.mrf.mxu0
    %v10635 = vadd.f32 0.0, %v10634
    %v10636 = vpop.f32.mrf.mxu0
    %10637 = vdwg.mxu0
    %v10638 = vmul.f32 %v10630, 2.0
    %v10639 = vmul.f32 %v10635, 2.0
    %v10640 = vsub.f32 %v10542, %v10638
    %v10641 = vsub.f32 %v10545, %v10639
    %v10642 = vadd.f32 %v10640, %v10556
    %v10643 = vadd.f32 %v10641, %v10556
    %v10644 = vsel %vm2884, %v10642, inf
    %10645 = vmin.xlane.f32.xlu0 %v10644
    %v10646 = vpop.xlane.xlu0 %10645
    %v10647 = vsel %vm2884, %v10643, inf
    %10648 = vmin.xlane.f32.xlu0 %v10647
    %v10649 = vpop.xlane.xlu0 %10648
    %vm10650 = vcmp.le.f32.partialorder %v10642, %v10646
    %vm10651 = vcmp.le.f32.partialorder %v10643, %v10649
    %v10652 = vsel %vm10650, %v8793, 32
    %v10653 = vsel %vm10651, %v8793, 32
    %v10654 = vsel %vm2884, %v10652, 2147483647
    %v10655 = vand.u32 %v10654, 65535
    %v10656 = vshra.s32 %v10654, 16
    %v10657 = vcvt.s32.f32 %v10655
    %v10658 = vcvt.s32.f32 %v10656
    %10659 = vmin.xlane.f32.xlu0 %v10658
    %v10660 = vpop.xlane.xlu0 %10659
    %vm10661 = vcmp.eq.f32.partialorder %v10658, %v10660
    %v10662 = vsel %vm10661, %v10657, inf
    %10663 = vmin.xlane.f32.xlu0 %v10662
    %v10664 = vpop.xlane.xlu0 %10663
    %v10665 = vcvt.f32.s32 %v10664
    %v10666 = vcvt.f32.s32 %v10660
    %v10667 = vshll.u32 %v10666, 16
    %v10668 = vadd.s32 %v10667, %v10665
    %v10669 = vsel %vm2884, %v10653, 2147483647
    %v10670 = vand.u32 %v10669, 65535
    %v10671 = vshra.s32 %v10669, 16
    %v10672 = vcvt.s32.f32 %v10670
    %v10673 = vcvt.s32.f32 %v10671
    %10674 = vmin.xlane.f32.xlu0 %v10673
    %v10675 = vpop.xlane.xlu0 %10674
    %vm10676 = vcmp.eq.f32.partialorder %v10673, %v10675
    %v10677 = vsel %vm10676, %v10672, inf
    %10678 = vmin.xlane.f32.xlu0 %v10677
    %v10679 = vpop.xlane.xlu0 %10678
    %v10680 = vcvt.f32.s32 %v10679
    %v10681 = vcvt.f32.s32 %v10675
    %v10682 = vshll.u32 %v10681, 16
    %v10683 = vadd.s32 %v10682, %v10680
    %vm10684 = vcmp.eq.s32.totalorder %v8793, %v10668
    %vm10685 = vcmp.eq.s32.totalorder %v8793, %v10683
    %v10686 = vsel %vm10684, 1, 0
    %v10687 = vsel %vm10685, 1, 0
    %v10688 = vcvt.s32.f32 %v10686
    %v10689 = vcvt.s32.f32 %v10687
    %v10691 = vsel %vm2884, %v10688, 0
    %v10694 = vsel %vm2884, %v10689, 0
    %10696 = vmatprep.subr.mxu0 0.0
    %10697 = vmatpush1.msra.mxu0 0.0
    %10698 = vmatprep.subr.mxu0 0.0
    %10699 = vmatpush1.msra.mxu0 0.0
    %10700 = vmatprep.subr.mxu0 0.0
    %10701 = vmatpush1.msra.mxu0 0.0
    %10702 = vmatprep.subr.mxu0 0.0
    %10703 = vmatpush1.msra.mxu0 0.0
    %10704 = vmatprep.subr.mxu0 0.0
    %10705 = vmatpush1.msra.mxu0 0.0
    %10706 = vmatprep.subr.mxu0 0.0
    %10707 = vmatpush1.msra.mxu0 0.0
    %10708 = vmatprep.subr.mxu0 0.0
    %10709 = vmatpush1.msra.mxu0 0.0
    %10710 = vmatprep.subr.mxu0 0.0
    %10711 = vmatpush1.msra.mxu0 0.0
    %10712 = vmatprep.subr.mxu0 0.0
    %10713 = vmatpush1.msra.mxu0 0.0
    %10714 = vmatprep.subr.mxu0 0.0
    %10715 = vmatpush1.msra.mxu0 0.0
    %10716 = vmatprep.subr.mxu0 0.0
    %10717 = vmatpush1.msra.mxu0 0.0
    %10718 = vmatprep.subr.mxu0 0.0
    %10719 = vmatpush1.msra.mxu0 0.0
    %10720 = vmatprep.subr.mxu0 0.0
    %10721 = vmatpush1.msra.mxu0 %v10505
    %10722 = vmatprep.subr.mxu0 0.0
    %10723 = vmatpush1.msra.mxu0 %v10504
    %10724 = vmatprep.subr.mxu0 0.0
    %10725 = vmatpush1.msra.mxu0 %v10503
    %10726 = vmatprep.subr.mxu0 0.0
    %10727 = vmatpush1.msra.mxu0 %v10502
    %10728 = vmatprep.subr.mxu0 0.0
    %10729 = vmatpush2.msra.mxu0 0.0
    %10730 = vmatprep.subr.mxu0 0.0
    %10731 = vmatpush2.msra.mxu0 0.0
    %10732 = vmatprep.subr.mxu0 0.0
    %10733 = vmatpush2.msra.mxu0 0.0
    %10734 = vmatprep.subr.mxu0 0.0
    %10735 = vmatpush2.msra.mxu0 0.0
    %10736 = vmatprep.subr.mxu0 0.0
    %10737 = vmatpush2.msra.mxu0 0.0
    %10738 = vmatprep.subr.mxu0 0.0
    %10739 = vmatpush2.msra.mxu0 0.0
    %10740 = vmatprep.subr.mxu0 0.0
    %10741 = vmatpush2.msra.mxu0 0.0
    %10742 = vmatprep.subr.mxu0 0.0
    %10743 = vmatpush2.msra.mxu0 0.0
    %10744 = vmatprep.subr.mxu0 0.0
    %10745 = vmatpush2.msra.mxu0 0.0
    %10746 = vmatprep.subr.mxu0 0.0
    %10747 = vmatpush2.msra.mxu0 0.0
    %10748 = vmatprep.subr.mxu0 0.0
    %10749 = vmatpush2.msra.mxu0 0.0
    %10750 = vmatprep.subr.mxu0 0.0
    %10751 = vmatpush2.msra.mxu0 0.0
    %10752 = vmatprep.subr.mxu0 0.0
    %10753 = vmatpush2.msra.mxu0 0.0
    %10754 = vmatprep.subr.mxu0 0.0
    %10755 = vmatpush2.msra.mxu0 0.0
    %10756 = vmatprep.subr.mxu0 0.0
    %10757 = vmatpush2.msra.mxu0 0.0
    %10758 = vmatprep.subr.mxu0 0.0
    %10759 = vmatpush2.msra.mxu0 0.0
    %10760 = vmatprep.mubr.f32.mxu0 0.0
    %10761 = vmatmul.mubr.f32.gmra.mxu0 %v10691
    %v10762 = vpop.f32.mrf.mxu0
    %v10763 = vadd.f32 0.0, %v10762
    %v10764 = vpop.f32.mrf.mxu0
    %10765 = vmatprep.mubr.f32.mxu0 0.0
    %10766 = vmatmul.mubr.f32.gmra.mxu0 %v10694
    %v10767 = vpop.f32.mrf.mxu0
    %v10768 = vadd.f32 0.0, %v10767
    %v10769 = vpop.f32.mrf.mxu0
    %10770 = vdwg.mxu0
    %10771 = vst [vmem:[%s16] sm:$0xff] %v10763
    %10772 = vst [vmem:[%s16 + $0x8] sm:$0xff] %v10768
    // Predicated region
    $region62: #{lg_baseline_forward.1} parent=1 // pred_check
      _
    $region63: #{lg_baseline_forward.1} parent=1 // pred_check_branch
      %10774 = sbr.rel (0) target = $region65
    $region64: #{lg_baseline_forward.1} parent=1 // pred_region
      %s10776 = ssub.s32 512, 512
      %10777 = vsyncadd [#allocation3], %s10776
      %s10778 = sshll.u32 [#allocation2], 4
      %s10779 = int_to_ptr.vmem [resolvable:$true] %s10778
      %10784 = dma.vmem_to_hbm [thread:$0]  %s10779, 512, %s15, [#allocation3], 128, 128, 8
    $region65: #{lg_baseline_forward.1} parent=1 // pred_fallthru
      _
    // Predicated region
    $region66: #{lg_baseline_forward.1} parent=1 // pred_check
      _
    $region67: #{lg_baseline_forward.1} parent=1 // pred_check_branch
      %10786 = sbr.rel (0) target = $region69
    $region68: #{lg_baseline_forward.1} parent=1 // pred_region
      _
    $region69: #{lg_baseline_forward.1} parent=1 // pred_fallthru
      _
    // Predicated region
    $region70: #{lg_baseline_forward.1} parent=1 // pred_check
      _
    $region71: #{lg_baseline_forward.1} parent=1 // pred_check_branch
      %10788 = sbr.rel (0) target = $region73
    $region72: #{lg_baseline_forward.1} parent=1 // pred_region
      %10789 = dma.done [#allocation3], 512
    $region73: #{lg_baseline_forward.1} parent=1 // pred_fallthru
      _
    // Predicated region
    $region74: #{lg_baseline_forward.1} parent=1 // pred_check
      _
    $region75: #{lg_baseline_forward.1} parent=1 // pred_check_branch
      %10791 = sbr.rel (0) target = $region77
    $region76: #{lg_baseline_forward.1} parent=1 // pred_region
      _
    $region77: #{lg_baseline_forward.1} parent=1 // pred_fallthru
      _
    %10792 = vsyncpa [#allocation3], 1

</llo_original>
